<compile_context>
chip_gen: v7x
topology: tpu7x:2x2x1
jax: 0.10.0
libtpu: 0.0.40
codegen_flags: <defaults>
</compile_context>

<pallas_src>
import functools

import jax
import jax.numpy as jnp
from jax.experimental import pallas as pl
from jax.experimental.pallas import tpu as pltpu


# ---------------------------------------------------------------------------
# Pallas kernels
# ---------------------------------------------------------------------------
def _conv1_pool_kernel(p1_ref, w1_ref, b1_ref, o_ref):
    """Fused conv1 (im2col matmul) + bias + ReLU + 2x2/2 max-pool.

    p1_ref : (4, R, 25)  patches, one slab per pool phase (dy, dx); rows (n, py, px).
    w1_ref : (25, 20)    conv1 weights, rows ordered (kh, kw)  (C_in == 1).
    o_ref  : (R, 20)     pooled NHWC-flattened feature map, rows (n, py, px).
    """
    out = None
    for phase in range(p1_ref.shape[0]):
        y = jnp.dot(p1_ref[phase], w1_ref[...], preferred_element_type=jnp.float32)
        y = jnp.maximum(y + b1_ref[...], 0.0)
        out = y if out is None else jnp.maximum(out, y)
    o_ref[...] = out.astype(o_ref.dtype)


def _fused_tail_kernel(p2_ref, w2_ref, b2_ref, wf_ref, bf_ref, wv_ref, bv_ref,
                       ww_ref, bw_ref, wc_ref, bc_ref, logit_ref, a_ref, *,
                       n_inst):
    """Fused conv2 + ReLU + max-pool + fc + ReLU + attention head + classifier.

    p2_ref : (4, 16*n, 500)  conv2 patches per pool phase; rows (py, px, n),
                             columns (kh, kw, c) -- matches w2_ref row order.
    wf_ref : (16, 50, 500)   fc weight, one (50, 500) block per pooled (py, px).
    """
    f32 = jnp.float32

    # conv2 (im2col matmul) + bias + ReLU, elementwise max over the 4 pool phases.
    hp = None
    for phase in range(p2_ref.shape[0]):
        y = jnp.dot(p2_ref[phase], w2_ref[...], preferred_element_type=f32)
        y = jnp.maximum(y + b2_ref[...], 0.0)
        hp = y if hp is None else jnp.maximum(hp, y)          # (16*n, 50)

    # fc 800->500 + ReLU, decomposed over the 16 pooled spatial positions so the
    # pooled map never needs an in-kernel reshape.
    n_blocks, _, m_dim = wf_ref.shape
    acc = jnp.zeros((n_inst, m_dim), f32)
    for q in range(n_blocks):
        acc = acc + jnp.dot(hp[q * n_inst:(q + 1) * n_inst, :], wf_ref[q],
                            preferred_element_type=f32)
    h = jnp.maximum(acc + bf_ref[...], 0.0)                   # (n, 500)

    # attention (gate=False): scores -> softmax over instances -> weighted pooling.
    av = jnp.tanh(jnp.dot(h, wv_ref[...], preferred_element_type=f32) + bv_ref[...])
    s = jnp.dot(av, ww_ref[...], preferred_element_type=f32) + bw_ref[...]   # (n, 1)
    mx = jnp.max(s, axis=0, keepdims=True)
    e = jnp.exp(s - mx)
    a = e * pl.reciprocal(jnp.sum(e, axis=0, keepdims=True), approx=False)   # (n, 1)

    z = jnp.sum(a * h, axis=0, keepdims=True)                                # (1, 500)
    logit = jax.nn.sigmoid(
        jnp.dot(z, wc_ref[...], preferred_element_type=f32) + bc_ref[...])   # (1, 1)

    logit_ref[...] = logit.astype(logit_ref.dtype)
    a_ref[...] = a.astype(a_ref.dtype)


# ---------------------------------------------------------------------------
# pallas_call wrappers (single grid step, everything resident in VMEM)
# ---------------------------------------------------------------------------
def _full_specs(arrays):
    return [pl.BlockSpec(a.shape, (lambda nd: (lambda i: (0,) * nd))(a.ndim))
            for a in arrays]


def conv1_pool(p1, w1f, b1):
    rows, co = p1.shape[1], w1f.shape[1]
    ins = (p1, w1f, b1)
    return pl.pallas_call(
        _conv1_pool_kernel,
        out_shape=jax.ShapeDtypeStruct((rows, co), jnp.float32),
        grid_spec=pltpu.PrefetchScalarGridSpec(
            num_scalar_prefetch=0,
            grid=(1,),
            in_specs=_full_specs(ins),
            out_specs=pl.BlockSpec((rows, co), lambda i: (0, 0)),
        ),
        compiler_params=pltpu.CompilerParams(dimension_semantics=("arbitrary",)),
    )(*ins)


def fused_tail(p2, kp, n_inst):
    ins = (p2, kp["w2f"], kp["b2"], kp["wfp"], kp["bf"], kp["wv"], kp["bv"],
           kp["ww"], kp["bw"], kp["wc"], kp["bc"])
    return pl.pallas_call(
        functools.partial(_fused_tail_kernel, n_inst=n_inst),
        out_shape=(jax.ShapeDtypeStruct((1, 1), jnp.float32),
                   jax.ShapeDtypeStruct((n_inst, 1), jnp.float32)),
        grid_spec=pltpu.PrefetchScalarGridSpec(
            num_scalar_prefetch=0,
            grid=(1,),
            in_specs=_full_specs(ins),
            out_specs=(pl.BlockSpec((1, 1), lambda i: (0, 0)),
                       pl.BlockSpec((n_inst, 1), lambda i: (0, 0))),
        ),
        compiler_params=pltpu.CompilerParams(dimension_semantics=("arbitrary",)),
    )(*ins)


# ---------------------------------------------------------------------------
# XLA glue: pool-phase-grouped im2col (data movement only), weight repacking
# ---------------------------------------------------------------------------
def pooled_conv_patches(x, k, rows):
    """im2col for a valid kxk conv (stride 1) followed by a 2x2/2 max-pool.

    x: (N, H, W, C) NHWC.  Returns (4, R, k*k*C); slab p = dy*2+dx holds the patches
    of conv-output pixels (2*py+dy, 2*px+dx).  Patch columns are ordered (kh, kw, c)
    to match the flattened conv weights.
    rows == "nyx" -> row order (n, py, px);  rows == "yxn" -> (py, px, n).
    """
    n, h, w, c = x.shape
    ho, wo = h - k + 1, w - k + 1
    ph, pw = ho // 2, wo // 2
    cols = [x[:, i:i + ho, j:j + wo, :] for i in range(k) for j in range(k)]
    p = jnp.concatenate(cols, axis=-1)                       # (N, Ho, Wo, k*k*C)
    p = p.reshape(n, ph, 2, pw, 2, k * k * c)
    perm = (2, 4, 0, 1, 3, 5) if rows == "nyx" else (2, 4, 1, 3, 0, 5)
    return jnp.transpose(p, perm).reshape(4, -1, k * k * c)


def prepare_params(p):
    """One-time repack of PyTorch-layout params into kernel layouts (outside jit).

    Conv weights OIHW -> (kh*kw*Cin, Cout) with (kh, kw, cin) row order; fc weight
    rows go from PyTorch's (c, h, w) flatten order to 16 blocks of 50 channels,
    one block per pooled (h, w) position (matches the kernel's row order).
    """
    co1, co2, m = p["w1"].shape[0], p["w2"].shape[0], p["wf"].shape[1]
    wf_hwc = jnp.transpose(p["wf"].reshape(co2, 4, 4, m), (1, 2, 0, 3))
    return dict(
        w1f=p["w1"].reshape(co1, -1).T,                              # (25, 20)
        b1=p["b1"].reshape(1, -1),
        w2f=jnp.transpose(p["w2"], (2, 3, 1, 0)).reshape(-1, co2),   # (500, 50)
        b2=p["b2"].reshape(1, -1),
        wfp=wf_hwc.reshape(16, co2, m),                              # (16, 50, 500)
        bf=p["bf"].reshape(1, -1),
        wv=p["wv"], bv=p["bv"].reshape(1, -1),
        ww=p["ww"], bw=p["bw"].reshape(1, -1),
        wc=p["wc"], bc=p["bc"].reshape(1, -1),
    )


def attention_mil_forward(x, kp):
    """x: (1, N, 1, 28, 28) bag of N 28x28 instances (gate=False path)."""
    x = jnp.squeeze(x, axis=0)                        # (N, 1, 28, 28)
    n = x.shape[0]
    x = jnp.transpose(x, (0, 2, 3, 1))                # NHWC (N, 28, 28, 1)

    p1 = pooled_conv_patches(x, 5, rows="nyx")        # (4, N*144, 25)
    h1 = conv1_pool(p1, kp["w1f"], kp["b1"])          # (N*144, 20), rows (n, py, px)
    ph1 = (x.shape[1] - 5 + 1) // 2                   # 12
    h1 = h1.reshape(n, ph1, ph1, kp["w1f"].shape[1])  # (N, 12, 12, 20) NHWC

    p2 = pooled_conv_patches(h1, 5, rows="yxn")       # (4, 16*N, 500)
    logit, a_col = fused_tail(p2, kp, n)              # (1, 1), (N, 1)
    return logit, a_col.reshape(1, n)                 # A returned as (1, N)


# ---------------------------------------------------------------------------
# Main
# ---------------------------------------------------------------------------
if __name__ == "__main__":
    N_INSTANCES = 8     # bag size (small); 28x28 is forced by Linear(50*4*4)
    M, L = 500, 128     # module constants

    key = jax.random.PRNGKey(0)
    ks = jax.random.split(key, 13)

    def init(k, shape, scale):
        return scale * jax.random.normal(k, shape, dtype=jnp.float32)

    # Parameters in PyTorch layouts (OIHW conv weights, CHW-flattened fc rows).
    torch_params = dict(
        w1=init(ks[0], (20, 1, 5, 5), 0.20),   b1=init(ks[1], (20,), 0.10),
        w2=init(ks[2], (50, 20, 5, 5), 0.05),  b2=init(ks[3], (50,), 0.10),
        wf=init(ks[4], (50 * 4 * 4, M), 0.03), bf=init(ks[5], (M,), 0.05),
        wv=init(ks[6], (M, L), 0.04),          bv=init(ks[7], (L,), 0.05),
        ww=init(ks[8], (L, 1), 0.08),          bw=init(ks[9], (1,), 0.05),
        wc=init(ks[10], (M, 1), 0.04),         bc=init(ks[11], (1,), 0.05),
    )
    kp = prepare_params(torch_params)   # one-time repack, outside the jitted forward

    x = jax.random.normal(ks[12], (1, N_INSTANCES, 1, 28, 28), dtype=jnp.float32)

    logit, a = jax.jit(attention_mil_forward)(x, kp)
    jax.block_until_ready((logit, a))

    assert logit.shape == (1, 1), logit.shape
    assert a.shape == (1, N_INSTANCES), a.shape
    assert bool(jnp.isclose(jnp.sum(a), 1.0, atol=1e-5))  # softmax over instances
    print("KERNEL_OK")
</pallas_src>

<mosaic_0001>
module attributes {stable_mosaic.version = 11 : i64} {
  func.func @_conv1_pool_kernel(%arg0: i32, %arg1: memref<4x1152x25xf32, #tpu.memory_space<vmem>>, %arg2: memref<25x20xf32, #tpu.memory_space<vmem>>, %arg3: memref<1x20xf32, #tpu.memory_space<vmem>>, %arg4: memref<1152x20xf32, #tpu.memory_space<vmem>>) attributes {dimension_semantics = [#tpu.dimension_semantics<arbitrary>], iteration_bounds = array<i64: 1>, scalar_prefetch = 0 : i64, scratch_operands = 0 : i64, tpu.core_type = #tpu.core_type<tc>, window_params = [{pipeline_mode = #tpu.pipeline_mode<synchronous>, transform_indices = @transform_0, window_bounds = array<i64: 4, 1152, 25>}, {pipeline_mode = #tpu.pipeline_mode<synchronous>, transform_indices = @transform_1, window_bounds = array<i64: 25, 20>}, {pipeline_mode = #tpu.pipeline_mode<synchronous>, transform_indices = @transform_2, window_bounds = array<i64: 1, 20>}, {pipeline_mode = #tpu.pipeline_mode<synchronous>, transform_indices = @transform_3, window_bounds = array<i64: 1152, 20>}]} {
    %c0 = arith.constant 0 : index
    %c0_0 = arith.constant 0 : index
    %c0_1 = arith.constant 0 : index
    %0 = vector.load %arg1[%c0, %c0_0, %c0_1] : memref<4x1152x25xf32, #tpu.memory_space<vmem>>, vector<1x1152x25xf32>
    %1 = vector.shape_cast %0 : vector<1x1152x25xf32> to vector<1152x25xf32>
    %c0_2 = arith.constant 0 : index
    %c0_3 = arith.constant 0 : index
    %2 = vector.load %arg2[%c0_2, %c0_3] : memref<25x20xf32, #tpu.memory_space<vmem>>, vector<25x20xf32>
    %cst = arith.constant dense<0.000000e+00> : vector<1152x20xf32>
    %3 = tpu.matmul %1, %2, %cst {dimension_numbers = #tpu.dot_dimension_numbers<[1], [0], [0], [1], [0, 0, 1, 1], [], []>} : vector<1152x25xf32>, vector<25x20xf32>, vector<1152x20xf32> -> vector<1152x20xf32>
    %c0_4 = arith.constant 0 : index
    %c0_5 = arith.constant 0 : index
    %4 = vector.load %arg3[%c0_4, %c0_5] : memref<1x20xf32, #tpu.memory_space<vmem>>, vector<1x20xf32>
    %5 = vector.broadcast %4 : vector<1x20xf32> to vector<1152x20xf32>
    %6 = arith.addf %3, %5 : vector<1152x20xf32>
    %cst_6 = arith.constant 0.000000e+00 : f32
    %7 = vector.broadcast %cst_6 : f32 to vector<1152x20xf32>
    %8 = arith.maximumf %6, %7 : vector<1152x20xf32>
    %c1 = arith.constant 1 : index
    %c0_7 = arith.constant 0 : index
    %c0_8 = arith.constant 0 : index
    %9 = vector.load %arg1[%c1, %c0_7, %c0_8] : memref<4x1152x25xf32, #tpu.memory_space<vmem>>, vector<1x1152x25xf32>
    %10 = vector.shape_cast %9 : vector<1x1152x25xf32> to vector<1152x25xf32>
    %c0_9 = arith.constant 0 : index
    %c0_10 = arith.constant 0 : index
    %11 = vector.load %arg2[%c0_9, %c0_10] : memref<25x20xf32, #tpu.memory_space<vmem>>, vector<25x20xf32>
    %cst_11 = arith.constant dense<0.000000e+00> : vector<1152x20xf32>
    %12 = tpu.matmul %10, %11, %cst_11 {dimension_numbers = #tpu.dot_dimension_numbers<[1], [0], [0], [1], [0, 0, 1, 1], [], []>} : vector<1152x25xf32>, vector<25x20xf32>, vector<1152x20xf32> -> vector<1152x20xf32>
    %c0_12 = arith.constant 0 : index
    %c0_13 = arith.constant 0 : index
    %13 = vector.load %arg3[%c0_12, %c0_13] : memref<1x20xf32, #tpu.memory_space<vmem>>, vector<1x20xf32>
    %14 = vector.broadcast %13 : vector<1x20xf32> to vector<1152x20xf32>
    %15 = arith.addf %12, %14 : vector<1152x20xf32>
    %cst_14 = arith.constant 0.000000e+00 : f32
    %16 = vector.broadcast %cst_14 : f32 to vector<1152x20xf32>
    %17 = arith.maximumf %15, %16 : vector<1152x20xf32>
    %18 = arith.maximumf %8, %17 : vector<1152x20xf32>
    %c2 = arith.constant 2 : index
    %c0_15 = arith.constant 0 : index
    %c0_16 = arith.constant 0 : index
    %19 = vector.load %arg1[%c2, %c0_15, %c0_16] : memref<4x1152x25xf32, #tpu.memory_space<vmem>>, vector<1x1152x25xf32>
    %20 = vector.shape_cast %19 : vector<1x1152x25xf32> to vector<1152x25xf32>
    %c0_17 = arith.constant 0 : index
    %c0_18 = arith.constant 0 : index
    %21 = vector.load %arg2[%c0_17, %c0_18] : memref<25x20xf32, #tpu.memory_space<vmem>>, vector<25x20xf32>
    %cst_19 = arith.constant dense<0.000000e+00> : vector<1152x20xf32>
    %22 = tpu.matmul %20, %21, %cst_19 {dimension_numbers = #tpu.dot_dimension_numbers<[1], [0], [0], [1], [0, 0, 1, 1], [], []>} : vector<1152x25xf32>, vector<25x20xf32>, vector<1152x20xf32> -> vector<1152x20xf32>
    %c0_20 = arith.constant 0 : index
    %c0_21 = arith.constant 0 : index
    %23 = vector.load %arg3[%c0_20, %c0_21] : memref<1x20xf32, #tpu.memory_space<vmem>>, vector<1x20xf32>
    %24 = vector.broadcast %23 : vector<1x20xf32> to vector<1152x20xf32>
    %25 = arith.addf %22, %24 : vector<1152x20xf32>
    %cst_22 = arith.constant 0.000000e+00 : f32
    %26 = vector.broadcast %cst_22 : f32 to vector<1152x20xf32>
    %27 = arith.maximumf %25, %26 : vector<1152x20xf32>
    %28 = arith.maximumf %18, %27 : vector<1152x20xf32>
    %c3 = arith.constant 3 : index
    %c0_23 = arith.constant 0 : index
    %c0_24 = arith.constant 0 : index
    %29 = vector.load %arg1[%c3, %c0_23, %c0_24] : memref<4x1152x25xf32, #tpu.memory_space<vmem>>, vector<1x1152x25xf32>
    %30 = vector.shape_cast %29 : vector<1x1152x25xf32> to vector<1152x25xf32>
    %c0_25 = arith.constant 0 : index
    %c0_26 = arith.constant 0 : index
    %31 = vector.load %arg2[%c0_25, %c0_26] : memref<25x20xf32, #tpu.memory_space<vmem>>, vector<25x20xf32>
    %cst_27 = arith.constant dense<0.000000e+00> : vector<1152x20xf32>
    %32 = tpu.matmul %30, %31, %cst_27 {dimension_numbers = #tpu.dot_dimension_numbers<[1], [0], [0], [1], [0, 0, 1, 1], [], []>} : vector<1152x25xf32>, vector<25x20xf32>, vector<1152x20xf32> -> vector<1152x20xf32>
    %c0_28 = arith.constant 0 : index
    %c0_29 = arith.constant 0 : index
    %33 = vector.load %arg3[%c0_28, %c0_29] : memref<1x20xf32, #tpu.memory_space<vmem>>, vector<1x20xf32>
    %34 = vector.broadcast %33 : vector<1x20xf32> to vector<1152x20xf32>
    %35 = arith.addf %32, %34 : vector<1152x20xf32>
    %cst_30 = arith.constant 0.000000e+00 : f32
    %36 = vector.broadcast %cst_30 : f32 to vector<1152x20xf32>
    %37 = arith.maximumf %35, %36 : vector<1152x20xf32>
    %38 = arith.maximumf %28, %37 : vector<1152x20xf32>
    %c0_31 = arith.constant 0 : index
    %c0_32 = arith.constant 0 : index
    %39 = vector.load %arg4[%c0_31, %c0_32] : memref<1152x20xf32, #tpu.memory_space<vmem>>, vector<1152x20xf32>
    tpu.vector_store %arg4[%c0_31, %c0_32], %38 {strides = array<i32>} : memref<1152x20xf32, #tpu.memory_space<vmem>>, vector<1152x20xf32>,
    return
  }
  func.func @transform_0(%arg0: i32) -> (i32, i32, i32) {
    %c0_i32 = arith.constant 0 : i32
    %c0_i32_0 = arith.constant 0 : i32
    %c0_i32_1 = arith.constant 0 : i32
    %c0_i32_2 = arith.constant 0 : i32
    return %c0_i32, %c0_i32_0, %c0_i32_1 : i32, i32, i32
  }
  func.func @transform_1(%arg0: i32) -> (i32, i32) {
    %c0_i32 = arith.constant 0 : i32
    %c0_i32_0 = arith.constant 0 : i32
    %c0_i32_1 = arith.constant 0 : i32
    return %c0_i32, %c0_i32_0 : i32, i32
  }
  func.func @transform_2(%arg0: i32) -> (i32, i32) {
    %c0_i32 = arith.constant 0 : i32
    %c0_i32_0 = arith.constant 0 : i32
    %c0_i32_1 = arith.constant 0 : i32
    return %c0_i32, %c0_i32_0 : i32, i32
  }
  func.func @transform_3(%arg0: i32) -> (i32, i32) {
    %c0_i32 = arith.constant 0 : i32
    %c0_i32_0 = arith.constant 0 : i32
    %c0_i32_1 = arith.constant 0 : i32
    return %c0_i32, %c0_i32_0 : i32, i32
  }
}

module attributes {stable_mosaic.version = 11 : i64} {
  func.func @_fused_tail_kernel(%arg0: i32, %arg1: memref<4x128x500xf32, #tpu.memory_space<vmem>>, %arg2: memref<500x50xf32, #tpu.memory_space<vmem>>, %arg3: memref<1x50xf32, #tpu.memory_space<vmem>>, %arg4: memref<16x50x500xf32, #tpu.memory_space<vmem>>, %arg5: memref<1x500xf32, #tpu.memory_space<vmem>>, %arg6: memref<500x128xf32, #tpu.memory_space<vmem>>, %arg7: memref<1x128xf32, #tpu.memory_space<vmem>>, %arg8: memref<128x1xf32, #tpu.memory_space<vmem>>, %arg9: memref<1x1xf32, #tpu.memory_space<vmem>>, %arg10: memref<500x1xf32, #tpu.memory_space<vmem>>, %arg11: memref<1x1xf32, #tpu.memory_space<vmem>>, %arg12: memref<1x1xf32, #tpu.memory_space<vmem>>, %arg13: memref<8x1xf32, #tpu.memory_space<vmem>>) attributes {dimension_semantics = [#tpu.dimension_semantics<arbitrary>], iteration_bounds = array<i64: 1>, scalar_prefetch = 0 : i64, scratch_operands = 0 : i64, tpu.core_type = #tpu.core_type<tc>, window_params = [{pipeline_mode = #tpu.pipeline_mode<synchronous>, transform_indices = @transform_0, window_bounds = array<i64: 4, 128, 500>}, {pipeline_mode = #tpu.pipeline_mode<synchronous>, transform_indices = @transform_1, window_bounds = array<i64: 500, 50>}, {pipeline_mode = #tpu.pipeline_mode<synchronous>, transform_indices = @transform_2, window_bounds = array<i64: 1, 50>}, {pipeline_mode = #tpu.pipeline_mode<synchronous>, transform_indices = @transform_3, window_bounds = array<i64: 16, 50, 500>}, {pipeline_mode = #tpu.pipeline_mode<synchronous>, transform_indices = @transform_4, window_bounds = array<i64: 1, 500>}, {pipeline_mode = #tpu.pipeline_mode<synchronous>, transform_indices = @transform_5, window_bounds = array<i64: 500, 128>}, {pipeline_mode = #tpu.pipeline_mode<synchronous>, transform_indices = @transform_6, window_bounds = array<i64: 1, 128>}, {pipeline_mode = #tpu.pipeline_mode<synchronous>, transform_indices = @transform_7, window_bounds = array<i64: 128, 1>}, {pipeline_mode = #tpu.pipeline_mode<synchronous>, transform_indices = @transform_8, window_bounds = array<i64: 1, 1>}, {pipeline_mode = #tpu.pipeline_mode<synchronous>, transform_indices = @transform_9, window_bounds = array<i64: 500, 1>}, {pipeline_mode = #tpu.pipeline_mode<synchronous>, transform_indices = @transform_10, window_bounds = array<i64: 1, 1>}, {pipeline_mode = #tpu.pipeline_mode<synchronous>, transform_indices = @transform_11, window_bounds = array<i64: 1, 1>}, {pipeline_mode = #tpu.pipeline_mode<synchronous>, transform_indices = @transform_12, window_bounds = array<i64: 8, 1>}]} {
    %c0 = arith.constant 0 : index
    %c0_0 = arith.constant 0 : index
    %c0_1 = arith.constant 0 : index
    %0 = vector.load %arg1[%c0, %c0_0, %c0_1] : memref<4x128x500xf32, #tpu.memory_space<vmem>>, vector<1x128x500xf32>
    %1 = vector.shape_cast %0 : vector<1x128x500xf32> to vector<128x500xf32>
    %c0_2 = arith.constant 0 : index
    %c0_3 = arith.constant 0 : index
    %2 = vector.load %arg2[%c0_2, %c0_3] : memref<500x50xf32, #tpu.memory_space<vmem>>, vector<500x50xf32>
    %cst = arith.constant dense<0.000000e+00> : vector<128x50xf32>
    %3 = tpu.matmul %1, %2, %cst {dimension_numbers = #tpu.dot_dimension_numbers<[1], [0], [0], [1], [0, 0, 1, 1], [], []>} : vector<128x500xf32>, vector<500x50xf32>, vector<128x50xf32> -> vector<128x50xf32>
    %c0_4 = arith.constant 0 : index
    %c0_5 = arith.constant 0 : index
    %4 = vector.load %arg3[%c0_4, %c0_5] : memref<1x50xf32, #tpu.memory_space<vmem>>, vector<1x50xf32>
    %5 = vector.broadcast %4 : vector<1x50xf32> to vector<128x50xf32>
    %6 = arith.addf %3, %5 : vector<128x50xf32>
    %cst_6 = arith.constant 0.000000e+00 : f32
    %7 = vector.broadcast %cst_6 : f32 to vector<128x50xf32>
    %8 = arith.maximumf %6, %7 : vector<128x50xf32>
    %c1 = arith.constant 1 : index
    %c0_7 = arith.constant 0 : index
    %c0_8 = arith.constant 0 : index
    %9 = vector.load %arg1[%c1, %c0_7, %c0_8] : memref<4x128x500xf32, #tpu.memory_space<vmem>>, vector<1x128x500xf32>
    %10 = vector.shape_cast %9 : vector<1x128x500xf32> to vector<128x500xf32>
    %c0_9 = arith.constant 0 : index
    %c0_10 = arith.constant 0 : index
    %11 = vector.load %arg2[%c0_9, %c0_10] : memref<500x50xf32, #tpu.memory_space<vmem>>, vector<500x50xf32>
    %cst_11 = arith.constant dense<0.000000e+00> : vector<128x50xf32>
    %12 = tpu.matmul %10, %11, %cst_11 {dimension_numbers = #tpu.dot_dimension_numbers<[1], [0], [0], [1], [0, 0, 1, 1], [], []>} : vector<128x500xf32>, vector<500x50xf32>, vector<128x50xf32> -> vector<128x50xf32>
    %c0_12 = arith.constant 0 : index
    %c0_13 = arith.constant 0 : index
    %13 = vector.load %arg3[%c0_12, %c0_13] : memref<1x50xf32, #tpu.memory_space<vmem>>, vector<1x50xf32>
    %14 = vector.broadcast %13 : vector<1x50xf32> to vector<128x50xf32>
    %15 = arith.addf %12, %14 : vector<128x50xf32>
    %cst_14 = arith.constant 0.000000e+00 : f32
    %16 = vector.broadcast %cst_14 : f32 to vector<128x50xf32>
    %17 = arith.maximumf %15, %16 : vector<128x50xf32>
    %18 = arith.maximumf %8, %17 : vector<128x50xf32>
    %c2 = arith.constant 2 : index
    %c0_15 = arith.constant 0 : index
    %c0_16 = arith.constant 0 : index
    %19 = vector.load %arg1[%c2, %c0_15, %c0_16] : memref<4x128x500xf32, #tpu.memory_space<vmem>>, vector<1x128x500xf32>
    %20 = vector.shape_cast %19 : vector<1x128x500xf32> to vector<128x500xf32>
    %c0_17 = arith.constant 0 : index
    %c0_18 = arith.constant 0 : index
    %21 = vector.load %arg2[%c0_17, %c0_18] : memref<500x50xf32, #tpu.memory_space<vmem>>, vector<500x50xf32>
    %cst_19 = arith.constant dense<0.000000e+00> : vector<128x50xf32>
    %22 = tpu.matmul %20, %21, %cst_19 {dimension_numbers = #tpu.dot_dimension_numbers<[1], [0], [0], [1], [0, 0, 1, 1], [], []>} : vector<128x500xf32>, vector<500x50xf32>, vector<128x50xf32> -> vector<128x50xf32>
    %c0_20 = arith.constant 0 : index
    %c0_21 = arith.constant 0 : index
    %23 = vector.load %arg3[%c0_20, %c0_21] : memref<1x50xf32, #tpu.memory_space<vmem>>, vector<1x50xf32>
    %24 = vector.broadcast %23 : vector<1x50xf32> to vector<128x50xf32>
    %25 = arith.addf %22, %24 : vector<128x50xf32>
    %cst_22 = arith.constant 0.000000e+00 : f32
    %26 = vector.broadcast %cst_22 : f32 to vector<128x50xf32>
    %27 = arith.maximumf %25, %26 : vector<128x50xf32>
    %28 = arith.maximumf %18, %27 : vector<128x50xf32>
    %c3 = arith.constant 3 : index
    %c0_23 = arith.constant 0 : index
    %c0_24 = arith.constant 0 : index
    %29 = vector.load %arg1[%c3, %c0_23, %c0_24] : memref<4x128x500xf32, #tpu.memory_space<vmem>>, vector<1x128x500xf32>
    %30 = vector.shape_cast %29 : vector<1x128x500xf32> to vector<128x500xf32>
    %c0_25 = arith.constant 0 : index
    %c0_26 = arith.constant 0 : index
    %31 = vector.load %arg2[%c0_25, %c0_26] : memref<500x50xf32, #tpu.memory_space<vmem>>, vector<500x50xf32>
    %cst_27 = arith.constant dense<0.000000e+00> : vector<128x50xf32>
    %32 = tpu.matmul %30, %31, %cst_27 {dimension_numbers = #tpu.dot_dimension_numbers<[1], [0], [0], [1], [0, 0, 1, 1], [], []>} : vector<128x500xf32>, vector<500x50xf32>, vector<128x50xf32> -> vector<128x50xf32>
    %c0_28 = arith.constant 0 : index
    %c0_29 = arith.constant 0 : index
    %33 = vector.load %arg3[%c0_28, %c0_29] : memref<1x50xf32, #tpu.memory_space<vmem>>, vector<1x50xf32>
    %34 = vector.broadcast %33 : vector<1x50xf32> to vector<128x50xf32>
    %35 = arith.addf %32, %34 : vector<128x50xf32>
    %cst_30 = arith.constant 0.000000e+00 : f32
    %36 = vector.broadcast %cst_30 : f32 to vector<128x50xf32>
    %37 = arith.maximumf %35, %36 : vector<128x50xf32>
    %38 = arith.maximumf %28, %37 : vector<128x50xf32>
    %cst_31 = arith.constant 0.000000e+00 : f32
    %39 = vector.broadcast %cst_31 : f32 to vector<8x500xf32>
    %40 = vector.extract_strided_slice %38 {offsets = [0, 0], sizes = [8, 50], strides = [1, 1]} : vector<128x50xf32> to vector<8x50xf32>
    %c0_32 = arith.constant 0 : index
    %c0_33 = arith.constant 0 : index
    %c0_34 = arith.constant 0 : index
    %41 = vector.load %arg4[%c0_32, %c0_33, %c0_34] : memref<16x50x500xf32, #tpu.memory_space<vmem>>, vector<1x50x500xf32>
    %42 = vector.shape_cast %41 : vector<1x50x500xf32> to vector<50x500xf32>
    %cst_35 = arith.constant dense<0.000000e+00> : vector<8x500xf32>
    %43 = tpu.matmul %40, %42, %cst_35 {dimension_numbers = #tpu.dot_dimension_numbers<[1], [0], [0], [1], [0, 0, 1, 1], [], []>} : vector<8x50xf32>, vector<50x500xf32>, vector<8x500xf32> -> vector<8x500xf32>
    %44 = arith.addf %39, %43 : vector<8x500xf32>
    %45 = vector.extract_strided_slice %38 {offsets = [8, 0], sizes = [8, 50], strides = [1, 1]} : vector<128x50xf32> to vector<8x50xf32>
    %c1_36 = arith.constant 1 : index
    %c0_37 = arith.constant 0 : index
    %c0_38 = arith.constant 0 : index
    %46 = vector.load %arg4[%c1_36, %c0_37, %c0_38] : memref<16x50x500xf32, #tpu.memory_space<vmem>>, vector<1x50x500xf32>
    %47 = vector.shape_cast %46 : vector<1x50x500xf32> to vector<50x500xf32>
    %cst_39 = arith.constant dense<0.000000e+00> : vector<8x500xf32>
    %48 = tpu.matmul %45, %47, %cst_39 {dimension_numbers = #tpu.dot_dimension_numbers<[1], [0], [0], [1], [0, 0, 1, 1], [], []>} : vector<8x50xf32>, vector<50x500xf32>, vector<8x500xf32> -> vector<8x500xf32>
    %49 = arith.addf %44, %48 : vector<8x500xf32>
    %50 = vector.extract_strided_slice %38 {offsets = [16, 0], sizes = [8, 50], strides = [1, 1]} : vector<128x50xf32> to vector<8x50xf32>
    %c2_40 = arith.constant 2 : index
    %c0_41 = arith.constant 0 : index
    %c0_42 = arith.constant 0 : index
    %51 = vector.load %arg4[%c2_40, %c0_41, %c0_42] : memref<16x50x500xf32, #tpu.memory_space<vmem>>, vector<1x50x500xf32>
    %52 = vector.shape_cast %51 : vector<1x50x500xf32> to vector<50x500xf32>
    %cst_43 = arith.constant dense<0.000000e+00> : vector<8x500xf32>
    %53 = tpu.matmul %50, %52, %cst_43 {dimension_numbers = #tpu.dot_dimension_numbers<[1], [0], [0], [1], [0, 0, 1, 1], [], []>} : vector<8x50xf32>, vector<50x500xf32>, vector<8x500xf32> -> vector<8x500xf32>
    %54 = arith.addf %49, %53 : vector<8x500xf32>
    %55 = vector.extract_strided_slice %38 {offsets = [24, 0], sizes = [8, 50], strides = [1, 1]} : vector<128x50xf32> to vector<8x50xf32>
    %c3_44 = arith.constant 3 : index
    %c0_45 = arith.constant 0 : index
    %c0_46 = arith.constant 0 : index
    %56 = vector.load %arg4[%c3_44, %c0_45, %c0_46] : memref<16x50x500xf32, #tpu.memory_space<vmem>>, vector<1x50x500xf32>
    %57 = vector.shape_cast %56 : vector<1x50x500xf32> to vector<50x500xf32>
    %cst_47 = arith.constant dense<0.000000e+00> : vector<8x500xf32>
    %58 = tpu.matmul %55, %57, %cst_47 {dimension_numbers = #tpu.dot_dimension_numbers<[1], [0], [0], [1], [0, 0, 1, 1], [], []>} : vector<8x50xf32>, vector<50x500xf32>, vector<8x500xf32> -> vector<8x500xf32>
    %59 = arith.addf %54, %58 : vector<8x500xf32>
    %60 = vector.extract_strided_slice %38 {offsets = [32, 0], sizes = [8, 50], strides = [1, 1]} : vector<128x50xf32> to vector<8x50xf32>
    %c4 = arith.constant 4 : index
    %c0_48 = arith.constant 0 : index
    %c0_49 = arith.constant 0 : index
    %61 = vector.load %arg4[%c4, %c0_48, %c0_49] : memref<16x50x500xf32, #tpu.memory_space<vmem>>, vector<1x50x500xf32>
    %62 = vector.shape_cast %61 : vector<1x50x500xf32> to vector<50x500xf32>
    %cst_50 = arith.constant dense<0.000000e+00> : vector<8x500xf32>
    %63 = tpu.matmul %60, %62, %cst_50 {dimension_numbers = #tpu.dot_dimension_numbers<[1], [0], [0], [1], [0, 0, 1, 1], [], []>} : vector<8x50xf32>, vector<50x500xf32>, vector<8x500xf32> -> vector<8x500xf32>
    %64 = arith.addf %59, %63 : vector<8x500xf32>
    %65 = vector.extract_strided_slice %38 {offsets = [40, 0], sizes = [8, 50], strides = [1, 1]} : vector<128x50xf32> to vector<8x50xf32>
    %c5 = arith.constant 5 : index
    %c0_51 = arith.constant 0 : index
    %c0_52 = arith.constant 0 : index
    %66 = vector.load %arg4[%c5, %c0_51, %c0_52] : memref<16x50x500xf32, #tpu.memory_space<vmem>>, vector<1x50x500xf32>
    %67 = vector.shape_cast %66 : vector<1x50x500xf32> to vector<50x500xf32>
    %cst_53 = arith.constant dense<0.000000e+00> : vector<8x500xf32>
    %68 = tpu.matmul %65, %67, %cst_53 {dimension_numbers = #tpu.dot_dimension_numbers<[1], [0], [0], [1], [0, 0, 1, 1], [], []>} : vector<8x50xf32>, vector<50x500xf32>, vector<8x500xf32> -> vector<8x500xf32>
    %69 = arith.addf %64, %68 : vector<8x500xf32>
    %70 = vector.extract_strided_slice %38 {offsets = [48, 0], sizes = [8, 50], strides = [1, 1]} : vector<128x50xf32> to vector<8x50xf32>
    %c6 = arith.constant 6 : index
    %c0_54 = arith.constant 0 : index
    %c0_55 = arith.constant 0 : index
    %71 = vector.load %arg4[%c6, %c0_54, %c0_55] : memref<16x50x500xf32, #tpu.memory_space<vmem>>, vector<1x50x500xf32>
    %72 = vector.shape_cast %71 : vector<1x50x500xf32> to vector<50x500xf32>
    %cst_56 = arith.constant dense<0.000000e+00> : vector<8x500xf32>
    %73 = tpu.matmul %70, %72, %cst_56 {dimension_numbers = #tpu.dot_dimension_numbers<[1], [0], [0], [1], [0, 0, 1, 1], [], []>} : vector<8x50xf32>, vector<50x500xf32>, vector<8x500xf32> -> vector<8x500xf32>
    %74 = arith.addf %69, %73 : vector<8x500xf32>
    %75 = vector.extract_strided_slice %38 {offsets = [56, 0], sizes = [8, 50], strides = [1, 1]} : vector<128x50xf32> to vector<8x50xf32>
    %c7 = arith.constant 7 : index
    %c0_57 = arith.constant 0 : index
    %c0_58 = arith.constant 0 : index
    %76 = vector.load %arg4[%c7, %c0_57, %c0_58] : memref<16x50x500xf32, #tpu.memory_space<vmem>>, vector<1x50x500xf32>
    %77 = vector.shape_cast %76 : vector<1x50x500xf32> to vector<50x500xf32>
    %cst_59 = arith.constant dense<0.000000e+00> : vector<8x500xf32>
    %78 = tpu.matmul %75, %77, %cst_59 {dimension_numbers = #tpu.dot_dimension_numbers<[1], [0], [0], [1], [0, 0, 1, 1], [], []>} : vector<8x50xf32>, vector<50x500xf32>, vector<8x500xf32> -> vector<8x500xf32>
    %79 = arith.addf %74, %78 : vector<8x500xf32>
    %80 = vector.extract_strided_slice %38 {offsets = [64, 0], sizes = [8, 50], strides = [1, 1]} : vector<128x50xf32> to vector<8x50xf32>
    %c8 = arith.constant 8 : index
    %c0_60 = arith.constant 0 : index
    %c0_61 = arith.constant 0 : index
    %81 = vector.load %arg4[%c8, %c0_60, %c0_61] : memref<16x50x500xf32, #tpu.memory_space<vmem>>, vector<1x50x500xf32>
    %82 = vector.shape_cast %81 : vector<1x50x500xf32> to vector<50x500xf32>
    %cst_62 = arith.constant dense<0.000000e+00> : vector<8x500xf32>
    %83 = tpu.matmul %80, %82, %cst_62 {dimension_numbers = #tpu.dot_dimension_numbers<[1], [0], [0], [1], [0, 0, 1, 1], [], []>} : vector<8x50xf32>, vector<50x500xf32>, vector<8x500xf32> -> vector<8x500xf32>
    %84 = arith.addf %79, %83 : vector<8x500xf32>
    %85 = vector.extract_strided_slice %38 {offsets = [72, 0], sizes = [8, 50], strides = [1, 1]} : vector<128x50xf32> to vector<8x50xf32>
    %c9 = arith.constant 9 : index
    %c0_63 = arith.constant 0 : index
    %c0_64 = arith.constant 0 : index
    %86 = vector.load %arg4[%c9, %c0_63, %c0_64] : memref<16x50x500xf32, #tpu.memory_space<vmem>>, vector<1x50x500xf32>
    %87 = vector.shape_cast %86 : vector<1x50x500xf32> to vector<50x500xf32>
    %cst_65 = arith.constant dense<0.000000e+00> : vector<8x500xf32>
    %88 = tpu.matmul %85, %87, %cst_65 {dimension_numbers = #tpu.dot_dimension_numbers<[1], [0], [0], [1], [0, 0, 1, 1], [], []>} : vector<8x50xf32>, vector<50x500xf32>, vector<8x500xf32> -> vector<8x500xf32>
    %89 = arith.addf %84, %88 : vector<8x500xf32>
    %90 = vector.extract_strided_slice %38 {offsets = [80, 0], sizes = [8, 50], strides = [1, 1]} : vector<128x50xf32> to vector<8x50xf32>
    %c10 = arith.constant 10 : index
    %c0_66 = arith.constant 0 : index
    %c0_67 = arith.constant 0 : index
    %91 = vector.load %arg4[%c10, %c0_66, %c0_67] : memref<16x50x500xf32, #tpu.memory_space<vmem>>, vector<1x50x500xf32>
    %92 = vector.shape_cast %91 : vector<1x50x500xf32> to vector<50x500xf32>
    %cst_68 = arith.constant dense<0.000000e+00> : vector<8x500xf32>
    %93 = tpu.matmul %90, %92, %cst_68 {dimension_numbers = #tpu.dot_dimension_numbers<[1], [0], [0], [1], [0, 0, 1, 1], [], []>} : vector<8x50xf32>, vector<50x500xf32>, vector<8x500xf32> -> vector<8x500xf32>
    %94 = arith.addf %89, %93 : vector<8x500xf32>
    %95 = vector.extract_strided_slice %38 {offsets = [88, 0], sizes = [8, 50], strides = [1, 1]} : vector<128x50xf32> to vector<8x50xf32>
    %c11 = arith.constant 11 : index
    %c0_69 = arith.constant 0 : index
    %c0_70 = arith.constant 0 : index
    %96 = vector.load %arg4[%c11, %c0_69, %c0_70] : memref<16x50x500xf32, #tpu.memory_space<vmem>>, vector<1x50x500xf32>
    %97 = vector.shape_cast %96 : vector<1x50x500xf32> to vector<50x500xf32>
    %cst_71 = arith.constant dense<0.000000e+00> : vector<8x500xf32>
    %98 = tpu.matmul %95, %97, %cst_71 {dimension_numbers = #tpu.dot_dimension_numbers<[1], [0], [0], [1], [0, 0, 1, 1], [], []>} : vector<8x50xf32>, vector<50x500xf32>, vector<8x500xf32> -> vector<8x500xf32>
    %99 = arith.addf %94, %98 : vector<8x500xf32>
    %100 = vector.extract_strided_slice %38 {offsets = [96, 0], sizes = [8, 50], strides = [1, 1]} : vector<128x50xf32> to vector<8x50xf32>
    %c12 = arith.constant 12 : index
    %c0_72 = arith.constant 0 : index
    %c0_73 = arith.constant 0 : index
    %101 = vector.load %arg4[%c12, %c0_72, %c0_73] : memref<16x50x500xf32, #tpu.memory_space<vmem>>, vector<1x50x500xf32>
    %102 = vector.shape_cast %101 : vector<1x50x500xf32> to vector<50x500xf32>
    %cst_74 = arith.constant dense<0.000000e+00> : vector<8x500xf32>
    %103 = tpu.matmul %100, %102, %cst_74 {dimension_numbers = #tpu.dot_dimension_numbers<[1], [0], [0], [1], [0, 0, 1, 1], [], []>} : vector<8x50xf32>, vector<50x500xf32>, vector<8x500xf32> -> vector<8x500xf32>
    %104 = arith.addf %99, %103 : vector<8x500xf32>
    %105 = vector.extract_strided_slice %38 {offsets = [104, 0], sizes = [8, 50], strides = [1, 1]} : vector<128x50xf32> to vector<8x50xf32>
    %c13 = arith.constant 13 : index
    %c0_75 = arith.constant 0 : index
    %c0_76 = arith.constant 0 : index
    %106 = vector.load %arg4[%c13, %c0_75, %c0_76] : memref<16x50x500xf32, #tpu.memory_space<vmem>>, vector<1x50x500xf32>
    %107 = vector.shape_cast %106 : vector<1x50x500xf32> to vector<50x500xf32>
    %cst_77 = arith.constant dense<0.000000e+00> : vector<8x500xf32>
    %108 = tpu.matmul %105, %107, %cst_77 {dimension_numbers = #tpu.dot_dimension_numbers<[1], [0], [0], [1], [0, 0, 1, 1], [], []>} : vector<8x50xf32>, vector<50x500xf32>, vector<8x500xf32> -> vector<8x500xf32>
    %109 = arith.addf %104, %108 : vector<8x500xf32>
    %110 = vector.extract_strided_slice %38 {offsets = [112, 0], sizes = [8, 50], strides = [1, 1]} : vector<128x50xf32> to vector<8x50xf32>
    %c14 = arith.constant 14 : index
    %c0_78 = arith.constant 0 : index
    %c0_79 = arith.constant 0 : index
    %111 = vector.load %arg4[%c14, %c0_78, %c0_79] : memref<16x50x500xf32, #tpu.memory_space<vmem>>, vector<1x50x500xf32>
    %112 = vector.shape_cast %111 : vector<1x50x500xf32> to vector<50x500xf32>
    %cst_80 = arith.constant dense<0.000000e+00> : vector<8x500xf32>
    %113 = tpu.matmul %110, %112, %cst_80 {dimension_numbers = #tpu.dot_dimension_numbers<[1], [0], [0], [1], [0, 0, 1, 1], [], []>} : vector<8x50xf32>, vector<50x500xf32>, vector<8x500xf32> -> vector<8x500xf32>
    %114 = arith.addf %109, %113 : vector<8x500xf32>
    %115 = vector.extract_strided_slice %38 {offsets = [120, 0], sizes = [8, 50], strides = [1, 1]} : vector<128x50xf32> to vector<8x50xf32>
    %c15 = arith.constant 15 : index
    %c0_81 = arith.constant 0 : index
    %c0_82 = arith.constant 0 : index
    %116 = vector.load %arg4[%c15, %c0_81, %c0_82] : memref<16x50x500xf32, #tpu.memory_space<vmem>>, vector<1x50x500xf32>
    %117 = vector.shape_cast %116 : vector<1x50x500xf32> to vector<50x500xf32>
    %cst_83 = arith.constant dense<0.000000e+00> : vector<8x500xf32>
    %118 = tpu.matmul %115, %117, %cst_83 {dimension_numbers = #tpu.dot_dimension_numbers<[1], [0], [0], [1], [0, 0, 1, 1], [], []>} : vector<8x50xf32>, vector<50x500xf32>, vector<8x500xf32> -> vector<8x500xf32>
    %119 = arith.addf %114, %118 : vector<8x500xf32>
    %c0_84 = arith.constant 0 : index
    %c0_85 = arith.constant 0 : index
    %120 = vector.load %arg5[%c0_84, %c0_85] : memref<1x500xf32, #tpu.memory_space<vmem>>, vector<1x500xf32>
    %121 = vector.broadcast %120 : vector<1x500xf32> to vector<8x500xf32>
    %122 = arith.addf %119, %121 : vector<8x500xf32>
    %cst_86 = arith.constant 0.000000e+00 : f32
    %123 = vector.broadcast %cst_86 : f32 to vector<8x500xf32>
    %124 = arith.maximumf %122, %123 : vector<8x500xf32>
    %c0_87 = arith.constant 0 : index
    %c0_88 = arith.constant 0 : index
    %125 = vector.load %arg6[%c0_87, %c0_88] : memref<500x128xf32, #tpu.memory_space<vmem>>, vector<500x128xf32>
    %cst_89 = arith.constant dense<0.000000e+00> : vector<8x128xf32>
    %126 = tpu.matmul %124, %125, %cst_89 {dimension_numbers = #tpu.dot_dimension_numbers<[1], [0], [0], [1], [0, 0, 1, 1], [], []>} : vector<8x500xf32>, vector<500x128xf32>, vector<8x128xf32> -> vector<8x128xf32>
    %c0_90 = arith.constant 0 : index
    %c0_91 = arith.constant 0 : index
    %127 = vector.load %arg7[%c0_90, %c0_91] : memref<1x128xf32, #tpu.memory_space<vmem>>, vector<1x128xf32>
    %128 = vector.broadcast %127 : vector<1x128xf32> to vector<8x128xf32>
    %129 = arith.addf %126, %128 : vector<8x128xf32>
    %130 = math.tanh %129 : vector<8x128xf32>
    %c0_92 = arith.constant 0 : index
    %c0_93 = arith.constant 0 : index
    %131 = vector.load %arg8[%c0_92, %c0_93] : memref<128x1xf32, #tpu.memory_space<vmem>>, vector<128x1xf32>
    %cst_94 = arith.constant dense<0.000000e+00> : vector<8x1xf32>
    %132 = tpu.matmul %130, %131, %cst_94 {dimension_numbers = #tpu.dot_dimension_numbers<[1], [0], [0], [1], [0, 0, 1, 1], [], []>} : vector<8x128xf32>, vector<128x1xf32>, vector<8x1xf32> -> vector<8x1xf32>
    %c0_95 = arith.constant 0 : index
    %c0_96 = arith.constant 0 : index
    %133 = vector.load %arg9[%c0_95, %c0_96] : memref<1x1xf32, #tpu.memory_space<vmem>>, vector<1x1xf32>
    %134 = vector.broadcast %133 : vector<1x1xf32> to vector<8x1xf32>
    %135 = arith.addf %132, %134 : vector<8x1xf32>
    %cst_97 = arith.constant dense<0xFF800000> : vector<1xf32>
    %136 = vector.multi_reduction <maximumf>, %135, %cst_97 [0] : vector<8x1xf32> to vector<1xf32>
    %137 = vector.shape_cast %136 : vector<1xf32> to vector<1x1xf32>
    %138 = vector.broadcast %137 : vector<1x1xf32> to vector<8x1xf32>
    %139 = arith.subf %135, %138 : vector<8x1xf32>
    %140 = math.exp %139 : vector<8x1xf32>
    %cst_98 = arith.constant dense<0.000000e+00> : vector<1xf32>
    %141 = vector.multi_reduction <add>, %140, %cst_98 [0] : vector<8x1xf32> to vector<1xf32>
    %142 = vector.shape_cast %141 : vector<1xf32> to vector<1x1xf32>
    %143 = tpu.reciprocal %142 : vector<1x1xf32> -> vector<1x1xf32>
    %144 = vector.broadcast %143 : vector<1x1xf32> to vector<8x1xf32>
    %145 = arith.mulf %140, %144 : vector<8x1xf32>
    %146 = vector.broadcast %145 : vector<8x1xf32> to vector<8x500xf32>
    %147 = arith.mulf %146, %124 : vector<8x500xf32>
    %cst_99 = arith.constant dense<0.000000e+00> : vector<500xf32>
    %148 = vector.multi_reduction <add>, %147, %cst_99 [0] : vector<8x500xf32> to vector<500xf32>
    %149 = vector.shape_cast %148 : vector<500xf32> to vector<1x500xf32>
    %c0_100 = arith.constant 0 : index
    %c0_101 = arith.constant 0 : index
    %150 = vector.load %arg10[%c0_100, %c0_101] : memref<500x1xf32, #tpu.memory_space<vmem>>, vector<500x1xf32>
    %cst_102 = arith.constant dense<0.000000e+00> : vector<1x1xf32>
    %151 = tpu.matmul %149, %150, %cst_102 {dimension_numbers = #tpu.dot_dimension_numbers<[1], [0], [0], [1], [0, 0, 1, 1], [], []>} : vector<1x500xf32>, vector<500x1xf32>, vector<1x1xf32> -> vector<1x1xf32>
    %c0_103 = arith.constant 0 : index
    %c0_104 = arith.constant 0 : index
    %152 = vector.load %arg11[%c0_103, %c0_104] : memref<1x1xf32, #tpu.memory_space<vmem>>, vector<1x1xf32>
    %153 = arith.addf %151, %152 : vector<1x1xf32>
    %154 = arith.negf %153 : vector<1x1xf32>
    %155 = math.exp %154 : vector<1x1xf32>
    %cst_105 = arith.constant 1.000000e+00 : f32
    %156 = vector.broadcast %cst_105 : f32 to vector<1x1xf32>
    %157 = arith.addf %156, %155 : vector<1x1xf32>
    %158 = arith.divf %156, %157 : vector<1x1xf32>
    %c0_106 = arith.constant 0 : index
    %c0_107 = arith.constant 0 : index
    %159 = vector.load %arg12[%c0_106, %c0_107] : memref<1x1xf32, #tpu.memory_space<vmem>>, vector<1x1xf32>
    tpu.vector_store %arg12[%c0_106, %c0_107], %158 {strides = array<i32>} : memref<1x1xf32, #tpu.memory_space<vmem>>, vector<1x1xf32>,
    %c0_108 = arith.constant 0 : index
    %c0_109 = arith.constant 0 : index
    %160 = vector.load %arg13[%c0_108, %c0_109] : memref<8x1xf32, #tpu.memory_space<vmem>>, vector<8x1xf32>
    tpu.vector_store %arg13[%c0_108, %c0_109], %145 {strides = array<i32>} : memref<8x1xf32, #tpu.memory_space<vmem>>, vector<8x1xf32>,
    return
  }
  func.func @transform_0(%arg0: i32) -> (i32, i32, i32) {
    %c0_i32 = arith.constant 0 : i32
    %c0_i32_0 = arith.constant 0 : i32
    %c0_i32_1 = arith.constant 0 : i32
    %c0_i32_2 = arith.constant 0 : i32
    return %c0_i32, %c0_i32_0, %c0_i32_1 : i32, i32, i32
  }
  func.func @transform_1(%arg0: i32) -> (i32, i32) {
    %c0_i32 = arith.constant 0 : i32
    %c0_i32_0 = arith.constant 0 : i32
    %c0_i32_1 = arith.constant 0 : i32
    return %c0_i32, %c0_i32_0 : i32, i32
  }
  func.func @transform_2(%arg0: i32) -> (i32, i32) {
    %c0_i32 = arith.constant 0 : i32
    %c0_i32_0 = arith.constant 0 : i32
    %c0_i32_1 = arith.constant 0 : i32
    return %c0_i32, %c0_i32_0 : i32, i32
  }
  func.func @transform_3(%arg0: i32) -> (i32, i32, i32) {
    %c0_i32 = arith.constant 0 : i32
    %c0_i32_0 = arith.constant 0 : i32
    %c0_i32_1 = arith.constant 0 : i32
    %c0_i32_2 = arith.constant 0 : i32
    return %c0_i32, %c0_i32_0, %c0_i32_1 : i32, i32, i32
  }
  func.func @transform_4(%arg0: i32) -> (i32, i32) {
    %c0_i32 = arith.constant 0 : i32
    %c0_i32_0 = arith.constant 0 : i32
    %c0_i32_1 = arith.constant 0 : i32
    return %c0_i32, %c0_i32_0 : i32, i32
  }
  func.func @transform_5(%arg0: i32) -> (i32, i32) {
    %c0_i32 = arith.constant 0 : i32
    %c0_i32_0 = arith.constant 0 : i32
    %c0_i32_1 = arith.constant 0 : i32
    return %c0_i32, %c0_i32_0 : i32, i32
  }
  func.func @transform_6(%arg0: i32) -> (i32, i32) {
    %c0_i32 = arith.constant 0 : i32
    %c0_i32_0 = arith.constant 0 : i32
    %c0_i32_1 = arith.constant 0 : i32
    return %c0_i32, %c0_i32_0 : i32, i32
  }
  func.func @transform_7(%arg0: i32) -> (i32, i32) {
    %c0_i32 = arith.constant 0 : i32
    %c0_i32_0 = arith.constant 0 : i32
    %c0_i32_1 = arith.constant 0 : i32
    return %c0_i32, %c0_i32_0 : i32, i32
  }
  func.func @transform_8(%arg0: i32) -> (i32, i32) {
    %c0_i32 = arith.constant 0 : i32
    %c0_i32_0 = arith.constant 0 : i32
    %c0_i32_1 = arith.constant 0 : i32
    return %c0_i32, %c0_i32_0 : i32, i32
  }
  func.func @transform_9(%arg0: i32) -> (i32, i32) {
    %c0_i32 = arith.constant 0 : i32
    %c0_i32_0 = arith.constant 0 : i32
    %c0_i32_1 = arith.constant 0 : i32
    return %c0_i32, %c0_i32_0 : i32, i32
  }
  func.func @transform_10(%arg0: i32) -> (i32, i32) {
    %c0_i32 = arith.constant 0 : i32
    %c0_i32_0 = arith.constant 0 : i32
    %c0_i32_1 = arith.constant 0 : i32
    return %c0_i32, %c0_i32_0 : i32, i32
  }
  func.func @transform_11(%arg0: i32) -> (i32, i32) {
    %c0_i32 = arith.constant 0 : i32
    %c0_i32_0 = arith.constant 0 : i32
    %c0_i32_1 = arith.constant 0 : i32
    return %c0_i32, %c0_i32_0 : i32, i32
  }
  func.func @transform_12(%arg0: i32) -> (i32, i32) {
    %c0_i32 = arith.constant 0 : i32
    %c0_i32_0 = arith.constant 0 : i32
    %c0_i32_1 = arith.constant 0 : i32
    return %c0_i32, %c0_i32_0 : i32, i32
  }
}

</mosaic_0001>

<llo_original>
// kernel: attention_mil_forward.2
$region0: #{attention_mil_forward.2}
  #allocation0 [shape = 'u32[]', space=smem, size = 0x4, offset = 0x4, fixed_abs, tag = 'smem constant byte address 0x4 - core index']
  #allocation1 [shape = 'u32[144,128]{1,0:T(1,128)}', space=vmem, size = 0x12000, scoped, tag = 'internal scratch']
  %s0 = inlined_call_operand.vmem [shape: f32[4,1152,25], index: 0, kind: input, shape index: {}]
  %s1 = inlined_call_operand.vmem [shape: f32[25,20], index: 1, kind: input, shape index: {}]
  %s2 = inlined_call_operand.vmem [shape: f32[1,20], index: 2, kind: input, shape index: {}]
  %s3 = inlined_call_operand.vmem [shape: f32[1152,20], index: 3, kind: output, shape index: {}]
  %s4 = sld [smem:[#allocation0]]
  $region22: #{attention_mil_forward.2} parent=0
    _
  %s6 = ssub.s32 1, %s4
  %s7 = scalar_select 0, %s6, %s4
  // Predicated region
  $region2: #{attention_mil_forward.2} parent=0 // pred_check
    _
  $region3: #{attention_mil_forward.2} parent=0 // pred_check_branch
    %9 = sbr.rel (0) target = $region5
  $region4: #{attention_mil_forward.2} parent=0 // pred_region
    _
  $region5: #{attention_mil_forward.2} parent=0 // pred_fallthru
    _
  // Predicated region
  $region6: #{attention_mil_forward.2} parent=0 // pred_check
    _
  $region7: #{attention_mil_forward.2} parent=0 // pred_check_branch
    %11 = sbr.rel (0) target = $region9
  $region8: #{attention_mil_forward.2} parent=0 // pred_region
    _
  $region9: #{attention_mil_forward.2} parent=0 // pred_fallthru
    _
  // Predicated region
  $region10: #{attention_mil_forward.2} parent=0 // pred_check
    _
  $region11: #{attention_mil_forward.2} parent=0 // pred_check_branch
    %13 = sbr.rel (0) target = $region13
  $region12: #{attention_mil_forward.2} parent=0 // pred_region
    _
  $region13: #{attention_mil_forward.2} parent=0 // pred_fallthru
    _
  %v14 = vld [vmem:[%s0] sm:$0xff]
  %v15 = vld [vmem:[%s0 + $0x8] sm:$0xff]
  %v16 = vld [vmem:[%s0 + $0x10] sm:$0xff]
  %v17 = vld [vmem:[%s0 + $0x18] sm:$0xff]
  %v18 = vld [vmem:[%s0 + $0x20] sm:$0xff]
  %v19 = vld [vmem:[%s0 + $0x28] sm:$0xff]
  %v20 = vld [vmem:[%s0 + $0x30] sm:$0xff]
  %v21 = vld [vmem:[%s0 + $0x38] sm:$0xff]
  %v22 = vld [vmem:[%s0 + $0x40] sm:$0xff]
  %v23 = vld [vmem:[%s0 + $0x48] sm:$0xff]
  %v24 = vld [vmem:[%s0 + $0x50] sm:$0xff]
  %v25 = vld [vmem:[%s0 + $0x58] sm:$0xff]
  %v26 = vld [vmem:[%s0 + $0x60] sm:$0xff]
  %v27 = vld [vmem:[%s0 + $0x68] sm:$0xff]
  %v28 = vld [vmem:[%s0 + $0x70] sm:$0xff]
  %v29 = vld [vmem:[%s0 + $0x78] sm:$0xff]
  %v30 = vld [vmem:[%s0 + $0x80] sm:$0xff]
  %v31 = vld [vmem:[%s0 + $0x88] sm:$0xff]
  %v32 = vld [vmem:[%s0 + $0x90] sm:$0xff]
  %v33 = vld [vmem:[%s0 + $0x98] sm:$0xff]
  %v34 = vld [vmem:[%s0 + $0xa0] sm:$0xff]
  %v35 = vld [vmem:[%s0 + $0xa8] sm:$0xff]
  %v36 = vld [vmem:[%s0 + $0xb0] sm:$0xff]
  %v37 = vld [vmem:[%s0 + $0xb8] sm:$0xff]
  %v38 = vld [vmem:[%s0 + $0xc0] sm:$0xff]
  %v39 = vld [vmem:[%s0 + $0xc8] sm:$0xff]
  %v40 = vld [vmem:[%s0 + $0xd0] sm:$0xff]
  %v41 = vld [vmem:[%s0 + $0xd8] sm:$0xff]
  %v42 = vld [vmem:[%s0 + $0xe0] sm:$0xff]
  %v43 = vld [vmem:[%s0 + $0xe8] sm:$0xff]
  %v44 = vld [vmem:[%s0 + $0xf0] sm:$0xff]
  %v45 = vld [vmem:[%s0 + $0xf8] sm:$0xff]
  %v46 = vld [vmem:[%s0 + $0x100] sm:$0xff]
  %v47 = vld [vmem:[%s0 + $0x108] sm:$0xff]
  %v48 = vld [vmem:[%s0 + $0x110] sm:$0xff]
  %v49 = vld [vmem:[%s0 + $0x118] sm:$0xff]
  %v50 = vld [vmem:[%s0 + $0x120] sm:$0xff]
  %v51 = vld [vmem:[%s0 + $0x128] sm:$0xff]
  %v52 = vld [vmem:[%s0 + $0x130] sm:$0xff]
  %v53 = vld [vmem:[%s0 + $0x138] sm:$0xff]
  %v54 = vld [vmem:[%s0 + $0x140] sm:$0xff]
  %v55 = vld [vmem:[%s0 + $0x148] sm:$0xff]
  %v56 = vld [vmem:[%s0 + $0x150] sm:$0xff]
  %v57 = vld [vmem:[%s0 + $0x158] sm:$0xff]
  %v58 = vld [vmem:[%s0 + $0x160] sm:$0xff]
  %v59 = vld [vmem:[%s0 + $0x168] sm:$0xff]
  %v60 = vld [vmem:[%s0 + $0x170] sm:$0xff]
  %v61 = vld [vmem:[%s0 + $0x178] sm:$0xff]
  %v62 = vld [vmem:[%s0 + $0x180] sm:$0xff]
  %v63 = vld [vmem:[%s0 + $0x188] sm:$0xff]
  %v64 = vld [vmem:[%s0 + $0x190] sm:$0xff]
  %v65 = vld [vmem:[%s0 + $0x198] sm:$0xff]
  %v66 = vld [vmem:[%s0 + $0x1a0] sm:$0xff]
  %v67 = vld [vmem:[%s0 + $0x1a8] sm:$0xff]
  %v68 = vld [vmem:[%s0 + $0x1b0] sm:$0xff]
  %v69 = vld [vmem:[%s0 + $0x1b8] sm:$0xff]
  %v70 = vld [vmem:[%s0 + $0x1c0] sm:$0xff]
  %v71 = vld [vmem:[%s0 + $0x1c8] sm:$0xff]
  %v72 = vld [vmem:[%s0 + $0x1d0] sm:$0xff]
  %v73 = vld [vmem:[%s0 + $0x1d8] sm:$0xff]
  %v74 = vld [vmem:[%s0 + $0x1e0] sm:$0xff]
  %v75 = vld [vmem:[%s0 + $0x1e8] sm:$0xff]
  %v76 = vld [vmem:[%s0 + $0x1f0] sm:$0xff]
  %v77 = vld [vmem:[%s0 + $0x1f8] sm:$0xff]
  %v78 = vld [vmem:[%s0 + $0x200] sm:$0xff]
  %v79 = vld [vmem:[%s0 + $0x208] sm:$0xff]
  %v80 = vld [vmem:[%s0 + $0x210] sm:$0xff]
  %v81 = vld [vmem:[%s0 + $0x218] sm:$0xff]
  %v82 = vld [vmem:[%s0 + $0x220] sm:$0xff]
  %v83 = vld [vmem:[%s0 + $0x228] sm:$0xff]
  %v84 = vld [vmem:[%s0 + $0x230] sm:$0xff]
  %v85 = vld [vmem:[%s0 + $0x238] sm:$0xff]
  %v86 = vld [vmem:[%s0 + $0x240] sm:$0xff]
  %v87 = vld [vmem:[%s0 + $0x248] sm:$0xff]
  %v88 = vld [vmem:[%s0 + $0x250] sm:$0xff]
  %v89 = vld [vmem:[%s0 + $0x258] sm:$0xff]
  %v90 = vld [vmem:[%s0 + $0x260] sm:$0xff]
  %v91 = vld [vmem:[%s0 + $0x268] sm:$0xff]
  %v92 = vld [vmem:[%s0 + $0x270] sm:$0xff]
  %v93 = vld [vmem:[%s0 + $0x278] sm:$0xff]
  %v94 = vld [vmem:[%s0 + $0x280] sm:$0xff]
  %v95 = vld [vmem:[%s0 + $0x288] sm:$0xff]
  %v96 = vld [vmem:[%s0 + $0x290] sm:$0xff]
  %v97 = vld [vmem:[%s0 + $0x298] sm:$0xff]
  %v98 = vld [vmem:[%s0 + $0x2a0] sm:$0xff]
  %v99 = vld [vmem:[%s0 + $0x2a8] sm:$0xff]
  %v100 = vld [vmem:[%s0 + $0x2b0] sm:$0xff]
  %v101 = vld [vmem:[%s0 + $0x2b8] sm:$0xff]
  %v102 = vld [vmem:[%s0 + $0x2c0] sm:$0xff]
  %v103 = vld [vmem:[%s0 + $0x2c8] sm:$0xff]
  %v104 = vld [vmem:[%s0 + $0x2d0] sm:$0xff]
  %v105 = vld [vmem:[%s0 + $0x2d8] sm:$0xff]
  %v106 = vld [vmem:[%s0 + $0x2e0] sm:$0xff]
  %v107 = vld [vmem:[%s0 + $0x2e8] sm:$0xff]
  %v108 = vld [vmem:[%s0 + $0x2f0] sm:$0xff]
  %v109 = vld [vmem:[%s0 + $0x2f8] sm:$0xff]
  %v110 = vld [vmem:[%s0 + $0x300] sm:$0xff]
  %v111 = vld [vmem:[%s0 + $0x308] sm:$0xff]
  %v112 = vld [vmem:[%s0 + $0x310] sm:$0xff]
  %v113 = vld [vmem:[%s0 + $0x318] sm:$0xff]
  %v114 = vld [vmem:[%s0 + $0x320] sm:$0xff]
  %v115 = vld [vmem:[%s0 + $0x328] sm:$0xff]
  %v116 = vld [vmem:[%s0 + $0x330] sm:$0xff]
  %v117 = vld [vmem:[%s0 + $0x338] sm:$0xff]
  %v118 = vld [vmem:[%s0 + $0x340] sm:$0xff]
  %v119 = vld [vmem:[%s0 + $0x348] sm:$0xff]
  %v120 = vld [vmem:[%s0 + $0x350] sm:$0xff]
  %v121 = vld [vmem:[%s0 + $0x358] sm:$0xff]
  %v122 = vld [vmem:[%s0 + $0x360] sm:$0xff]
  %v123 = vld [vmem:[%s0 + $0x368] sm:$0xff]
  %v124 = vld [vmem:[%s0 + $0x370] sm:$0xff]
  %v125 = vld [vmem:[%s0 + $0x378] sm:$0xff]
  %v126 = vld [vmem:[%s0 + $0x380] sm:$0xff]
  %v127 = vld [vmem:[%s0 + $0x388] sm:$0xff]
  %v128 = vld [vmem:[%s0 + $0x390] sm:$0xff]
  %v129 = vld [vmem:[%s0 + $0x398] sm:$0xff]
  %v130 = vld [vmem:[%s0 + $0x3a0] sm:$0xff]
  %v131 = vld [vmem:[%s0 + $0x3a8] sm:$0xff]
  %v132 = vld [vmem:[%s0 + $0x3b0] sm:$0xff]
  %v133 = vld [vmem:[%s0 + $0x3b8] sm:$0xff]
  %v134 = vld [vmem:[%s0 + $0x3c0] sm:$0xff]
  %v135 = vld [vmem:[%s0 + $0x3c8] sm:$0xff]
  %v136 = vld [vmem:[%s0 + $0x3d0] sm:$0xff]
  %v137 = vld [vmem:[%s0 + $0x3d8] sm:$0xff]
  %v138 = vld [vmem:[%s0 + $0x3e0] sm:$0xff]
  %v139 = vld [vmem:[%s0 + $0x3e8] sm:$0xff]
  %v140 = vld [vmem:[%s0 + $0x3f0] sm:$0xff]
  %v141 = vld [vmem:[%s0 + $0x3f8] sm:$0xff]
  %v142 = vld [vmem:[%s0 + $0x400] sm:$0xff]
  %v143 = vld [vmem:[%s0 + $0x408] sm:$0xff]
  %v144 = vld [vmem:[%s0 + $0x410] sm:$0xff]
  %v145 = vld [vmem:[%s0 + $0x418] sm:$0xff]
  %v146 = vld [vmem:[%s0 + $0x420] sm:$0xff]
  %v147 = vld [vmem:[%s0 + $0x428] sm:$0xff]
  %v148 = vld [vmem:[%s0 + $0x430] sm:$0xff]
  %v149 = vld [vmem:[%s0 + $0x438] sm:$0xff]
  %v150 = vld [vmem:[%s0 + $0x440] sm:$0xff]
  %v151 = vld [vmem:[%s0 + $0x448] sm:$0xff]
  %v152 = vld [vmem:[%s0 + $0x450] sm:$0xff]
  %v153 = vld [vmem:[%s0 + $0x458] sm:$0xff]
  %v154 = vld [vmem:[%s0 + $0x460] sm:$0xff]
  %v155 = vld [vmem:[%s0 + $0x468] sm:$0xff]
  %v156 = vld [vmem:[%s0 + $0x470] sm:$0xff]
  %v157 = vld [vmem:[%s0 + $0x478] sm:$0xff]
  %v158 = vld [vmem:[%s1] sm:$0xff]
  %v159 = vld [vmem:[%s1 + $0x8] sm:$0xff]
  %v160 = vld [vmem:[%s1 + $0x10] sm:$0xff]
  %v161 = vld [vmem:[%s1 + $0x18] sm:$0x1]
  %v162 = vld [vmem:[%s2] sm:$0x1]
  %v164 = vlaneseq
  %v165 = vshrl.u32 %v164, 7
  %v166 = vsub.s32 0, %v165
  %v167 = vrot.slane %v162, %v166
  %vm169 = vcmask 203776
  %v171 = vsel %vm169, %v14, 0
  %v174 = vsel %vm169, %v15, 0
  %v177 = vsel %vm169, %v16, 0
  %v180 = vsel %vm169, %v17, 0
  %v183 = vsel %vm169, %v18, 0
  %v186 = vsel %vm169, %v19, 0
  %v189 = vsel %vm169, %v20, 0
  %v192 = vsel %vm169, %v21, 0
  %v195 = vsel %vm169, %v22, 0
  %v198 = vsel %vm169, %v23, 0
  %v201 = vsel %vm169, %v24, 0
  %v204 = vsel %vm169, %v25, 0
  %v207 = vsel %vm169, %v26, 0
  %v210 = vsel %vm169, %v27, 0
  %v213 = vsel %vm169, %v28, 0
  %v216 = vsel %vm169, %v29, 0
  %v219 = vsel %vm169, %v30, 0
  %v222 = vsel %vm169, %v31, 0
  %v225 = vsel %vm169, %v32, 0
  %v228 = vsel %vm169, %v33, 0
  %v231 = vsel %vm169, %v34, 0
  %v234 = vsel %vm169, %v35, 0
  %v237 = vsel %vm169, %v36, 0
  %v240 = vsel %vm169, %v37, 0
  %v243 = vsel %vm169, %v38, 0
  %v246 = vsel %vm169, %v39, 0
  %v249 = vsel %vm169, %v40, 0
  %v252 = vsel %vm169, %v41, 0
  %v255 = vsel %vm169, %v42, 0
  %v258 = vsel %vm169, %v43, 0
  %v261 = vsel %vm169, %v44, 0
  %v264 = vsel %vm169, %v45, 0
  %v267 = vsel %vm169, %v46, 0
  %v270 = vsel %vm169, %v47, 0
  %v273 = vsel %vm169, %v48, 0
  %v276 = vsel %vm169, %v49, 0
  %v279 = vsel %vm169, %v50, 0
  %v282 = vsel %vm169, %v51, 0
  %v285 = vsel %vm169, %v52, 0
  %v288 = vsel %vm169, %v53, 0
  %v291 = vsel %vm169, %v54, 0
  %v294 = vsel %vm169, %v55, 0
  %v297 = vsel %vm169, %v56, 0
  %v300 = vsel %vm169, %v57, 0
  %v303 = vsel %vm169, %v58, 0
  %v306 = vsel %vm169, %v59, 0
  %v309 = vsel %vm169, %v60, 0
  %v312 = vsel %vm169, %v61, 0
  %v315 = vsel %vm169, %v62, 0
  %v318 = vsel %vm169, %v63, 0
  %v321 = vsel %vm169, %v64, 0
  %v324 = vsel %vm169, %v65, 0
  %v327 = vsel %vm169, %v66, 0
  %v330 = vsel %vm169, %v67, 0
  %v333 = vsel %vm169, %v68, 0
  %v336 = vsel %vm169, %v69, 0
  %v339 = vsel %vm169, %v70, 0
  %v342 = vsel %vm169, %v71, 0
  %v345 = vsel %vm169, %v72, 0
  %v348 = vsel %vm169, %v73, 0
  %v351 = vsel %vm169, %v74, 0
  %v354 = vsel %vm169, %v75, 0
  %v357 = vsel %vm169, %v76, 0
  %v360 = vsel %vm169, %v77, 0
  %v363 = vsel %vm169, %v78, 0
  %v366 = vsel %vm169, %v79, 0
  %v369 = vsel %vm169, %v80, 0
  %v372 = vsel %vm169, %v81, 0
  %v375 = vsel %vm169, %v82, 0
  %v378 = vsel %vm169, %v83, 0
  %v381 = vsel %vm169, %v84, 0
  %v384 = vsel %vm169, %v85, 0
  %v387 = vsel %vm169, %v86, 0
  %v390 = vsel %vm169, %v87, 0
  %v393 = vsel %vm169, %v88, 0
  %v396 = vsel %vm169, %v89, 0
  %v399 = vsel %vm169, %v90, 0
  %v402 = vsel %vm169, %v91, 0
  %v405 = vsel %vm169, %v92, 0
  %v408 = vsel %vm169, %v93, 0
  %v411 = vsel %vm169, %v94, 0
  %v414 = vsel %vm169, %v95, 0
  %v417 = vsel %vm169, %v96, 0
  %v420 = vsel %vm169, %v97, 0
  %v423 = vsel %vm169, %v98, 0
  %v426 = vsel %vm169, %v99, 0
  %v429 = vsel %vm169, %v100, 0
  %v432 = vsel %vm169, %v101, 0
  %v435 = vsel %vm169, %v102, 0
  %v438 = vsel %vm169, %v103, 0
  %v441 = vsel %vm169, %v104, 0
  %v444 = vsel %vm169, %v105, 0
  %v447 = vsel %vm169, %v106, 0
  %v450 = vsel %vm169, %v107, 0
  %v453 = vsel %vm169, %v108, 0
  %v456 = vsel %vm169, %v109, 0
  %v459 = vsel %vm169, %v110, 0
  %v462 = vsel %vm169, %v111, 0
  %v465 = vsel %vm169, %v112, 0
  %v468 = vsel %vm169, %v113, 0
  %v471 = vsel %vm169, %v114, 0
  %v474 = vsel %vm169, %v115, 0
  %v477 = vsel %vm169, %v116, 0
  %v480 = vsel %vm169, %v117, 0
  %v483 = vsel %vm169, %v118, 0
  %v486 = vsel %vm169, %v119, 0
  %v489 = vsel %vm169, %v120, 0
  %v492 = vsel %vm169, %v121, 0
  %v495 = vsel %vm169, %v122, 0
  %v498 = vsel %vm169, %v123, 0
  %v501 = vsel %vm169, %v124, 0
  %v504 = vsel %vm169, %v125, 0
  %v507 = vsel %vm169, %v126, 0
  %v510 = vsel %vm169, %v127, 0
  %v513 = vsel %vm169, %v128, 0
  %v516 = vsel %vm169, %v129, 0
  %v519 = vsel %vm169, %v130, 0
  %v522 = vsel %vm169, %v131, 0
  %v525 = vsel %vm169, %v132, 0
  %v528 = vsel %vm169, %v133, 0
  %v531 = vsel %vm169, %v134, 0
  %v534 = vsel %vm169, %v135, 0
  %v537 = vsel %vm169, %v136, 0
  %v540 = vsel %vm169, %v137, 0
  %v543 = vsel %vm169, %v138, 0
  %v546 = vsel %vm169, %v139, 0
  %v549 = vsel %vm169, %v140, 0
  %v552 = vsel %vm169, %v141, 0
  %v555 = vsel %vm169, %v142, 0
  %v558 = vsel %vm169, %v143, 0
  %v561 = vsel %vm169, %v144, 0
  %v564 = vsel %vm169, %v145, 0
  %v567 = vsel %vm169, %v146, 0
  %v570 = vsel %vm169, %v147, 0
  %v573 = vsel %vm169, %v148, 0
  %v576 = vsel %vm169, %v149, 0
  %v579 = vsel %vm169, %v150, 0
  %v582 = vsel %vm169, %v151, 0
  %v585 = vsel %vm169, %v152, 0
  %v588 = vsel %vm169, %v153, 0
  %v591 = vsel %vm169, %v154, 0
  %v594 = vsel %vm169, %v155, 0
  %v597 = vsel %vm169, %v156, 0
  %v600 = vsel %vm169, %v157, 0
  %vm602 = vcmask 1040384
  %v604 = vsel %vm602, %v161, 0
  %606 = vmatprep.subr.mxu0 0.0
  %607 = vmatpush1.msra.mxu0 %v158
  %608 = vmatprep.subr.mxu0 0.0
  %609 = vmatpush1.msra.mxu0 %v159
  %610 = vmatprep.subr.mxu0 0.0
  %611 = vmatpush1.msra.mxu0 %v160
  %612 = vmatprep.subr.mxu0 0.0
  %613 = vmatpush1.msra.mxu0 %v604
  %614 = vmatprep.subr.mxu0 0.0
  %615 = vmatpush1.msra.mxu0 0.0
  %616 = vmatprep.subr.mxu0 0.0
  %617 = vmatpush1.msra.mxu0 0.0
  %618 = vmatprep.subr.mxu0 0.0
  %619 = vmatpush1.msra.mxu0 0.0
  %620 = vmatprep.subr.mxu0 0.0
  %621 = vmatpush1.msra.mxu0 0.0
  %622 = vmatprep.subr.mxu0 0.0
  %623 = vmatpush1.msra.mxu0 0.0
  %624 = vmatprep.subr.mxu0 0.0
  %625 = vmatpush1.msra.mxu0 0.0
  %626 = vmatprep.subr.mxu0 0.0
  %627 = vmatpush1.msra.mxu0 0.0
  %628 = vmatprep.subr.mxu0 0.0
  %629 = vmatpush1.msra.mxu0 0.0
  %630 = vmatprep.subr.mxu0 0.0
  %631 = vmatpush1.msra.mxu0 0.0
  %632 = vmatprep.subr.mxu0 0.0
  %633 = vmatpush1.msra.mxu0 0.0
  %634 = vmatprep.subr.mxu0 0.0
  %635 = vmatpush1.msra.mxu0 0.0
  %636 = vmatprep.subr.mxu0 0.0
  %637 = vmatpush1.msra.mxu0 0.0
  %638 = vmatprep.subr.mxu0 0.0
  %639 = vmatpush1.msra.mxu0 0.0
  %640 = vmatprep.subr.mxu0 0.0
  %641 = vmatpush1.msra.mxu0 0.0
  %642 = vmatprep.subr.mxu0 0.0
  %643 = vmatpush1.msra.mxu0 0.0
  %644 = vmatprep.subr.mxu0 0.0
  %645 = vmatpush1.msra.mxu0 0.0
  %646 = vmatprep.subr.mxu0 0.0
  %647 = vmatpush1.msra.mxu0 0.0
  %648 = vmatprep.subr.mxu0 0.0
  %649 = vmatpush1.msra.mxu0 0.0
  %650 = vmatprep.subr.mxu0 0.0
  %651 = vmatpush1.msra.mxu0 0.0
  %652 = vmatprep.subr.mxu0 0.0
  %653 = vmatpush1.msra.mxu0 0.0
  %654 = vmatprep.subr.mxu0 0.0
  %655 = vmatpush1.msra.mxu0 0.0
  %656 = vmatprep.subr.mxu0 0.0
  %657 = vmatpush1.msra.mxu0 0.0
  %658 = vmatprep.subr.mxu0 0.0
  %659 = vmatpush1.msra.mxu0 0.0
  %660 = vmatprep.subr.mxu0 0.0
  %661 = vmatpush1.msra.mxu0 0.0
  %662 = vmatprep.subr.mxu0 0.0
  %663 = vmatpush1.msra.mxu0 0.0
  %664 = vmatprep.subr.mxu0 0.0
  %665 = vmatpush1.msra.mxu0 0.0
  %666 = vmatprep.subr.mxu0 0.0
  %667 = vmatpush1.msra.mxu0 0.0
  %668 = vmatprep.subr.mxu0 0.0
  %669 = vmatpush1.msra.mxu0 0.0
  %670 = vmatprep.mubr.f32.mxu0 0.0
  %671 = vmatmul.mubr.f32.gmra.mrb[0].mxu0 %v171
  %v672 = vpop.f32.mrb[0].mxu0
  %v673 = vadd.f32 %v167, %v672
  %v674 = vpop.f32.mrb[0].mxu0
  %675 = vmatprep.mubr.f32.mxu0 0.0
  %676 = vmatmul.mubr.f32.gmra.mrb[0].mxu0 %v174
  %v677 = vpop.f32.mrb[0].mxu0
  %v678 = vadd.f32 %v167, %v677
  %v679 = vpop.f32.mrb[0].mxu0
  %680 = vmatprep.mubr.f32.mxu0 0.0
  %681 = vmatmul.mubr.f32.gmra.mrb[0].mxu0 %v177
  %v682 = vpop.f32.mrb[0].mxu0
  %v683 = vadd.f32 %v167, %v682
  %v684 = vpop.f32.mrb[0].mxu0
  %685 = vmatprep.mubr.f32.mxu0 0.0
  %686 = vmatmul.mubr.f32.gmra.mrb[0].mxu0 %v180
  %v687 = vpop.f32.mrb[0].mxu0
  %v688 = vadd.f32 %v167, %v687
  %v689 = vpop.f32.mrb[0].mxu0
  %690 = vmatprep.mubr.f32.mxu0 0.0
  %691 = vmatmul.mubr.f32.gmra.mrb[0].mxu0 %v183
  %v692 = vpop.f32.mrb[0].mxu0
  %v693 = vadd.f32 %v167, %v692
  %v694 = vpop.f32.mrb[0].mxu0
  %695 = vmatprep.mubr.f32.mxu0 0.0
  %696 = vmatmul.mubr.f32.gmra.mrb[0].mxu0 %v186
  %v697 = vpop.f32.mrb[0].mxu0
  %v698 = vadd.f32 %v167, %v697
  %v699 = vpop.f32.mrb[0].mxu0
  %700 = vmatprep.mubr.f32.mxu0 0.0
  %701 = vmatmul.mubr.f32.gmra.mrb[0].mxu0 %v189
  %v702 = vpop.f32.mrb[0].mxu0
  %v703 = vadd.f32 %v167, %v702
  %v704 = vpop.f32.mrb[0].mxu0
  %705 = vmatprep.mubr.f32.mxu0 0.0
  %706 = vmatmul.mubr.f32.gmra.mrb[0].mxu0 %v192
  %v707 = vpop.f32.mrb[0].mxu0
  %v708 = vadd.f32 %v167, %v707
  %v709 = vpop.f32.mrb[0].mxu0
  %710 = vmatprep.mubr.f32.mxu0 0.0
  %711 = vmatmul.mubr.f32.gmra.mrb[0].mxu0 %v195
  %v712 = vpop.f32.mrb[0].mxu0
  %v713 = vadd.f32 %v167, %v712
  %v714 = vpop.f32.mrb[0].mxu0
  %715 = vmatprep.mubr.f32.mxu0 0.0
  %716 = vmatmul.mubr.f32.gmra.mrb[0].mxu0 %v198
  %v717 = vpop.f32.mrb[0].mxu0
  %v718 = vadd.f32 %v167, %v717
  %v719 = vpop.f32.mrb[0].mxu0
  %720 = vmatprep.mubr.f32.mxu0 0.0
  %721 = vmatmul.mubr.f32.gmra.mrb[0].mxu0 %v201
  %v722 = vpop.f32.mrb[0].mxu0
  %v723 = vadd.f32 %v167, %v722
  %v724 = vpop.f32.mrb[0].mxu0
  %725 = vmatprep.mubr.f32.mxu0 0.0
  %726 = vmatmul.mubr.f32.gmra.mrb[0].mxu0 %v204
  %v727 = vpop.f32.mrb[0].mxu0
  %v728 = vadd.f32 %v167, %v727
  %v729 = vpop.f32.mrb[0].mxu0
  %730 = vmatprep.mubr.f32.mxu0 0.0
  %731 = vmatmul.mubr.f32.gmra.mrb[0].mxu0 %v207
  %v732 = vpop.f32.mrb[0].mxu0
  %v733 = vadd.f32 %v167, %v732
  %v734 = vpop.f32.mrb[0].mxu0
  %735 = vmatprep.mubr.f32.mxu0 0.0
  %736 = vmatmul.mubr.f32.gmra.mrb[0].mxu0 %v210
  %v737 = vpop.f32.mrb[0].mxu0
  %v738 = vadd.f32 %v167, %v737
  %v739 = vpop.f32.mrb[0].mxu0
  %740 = vmatprep.mubr.f32.mxu0 0.0
  %741 = vmatmul.mubr.f32.gmra.mrb[0].mxu0 %v213
  %v742 = vpop.f32.mrb[0].mxu0
  %v743 = vadd.f32 %v167, %v742
  %v744 = vpop.f32.mrb[0].mxu0
  %745 = vmatprep.mubr.f32.mxu0 0.0
  %746 = vmatmul.mubr.f32.gmra.mrb[0].mxu0 %v216
  %v747 = vpop.f32.mrb[0].mxu0
  %v748 = vadd.f32 %v167, %v747
  %v749 = vpop.f32.mrb[0].mxu0
  %750 = vmatprep.mubr.f32.mxu0 0.0
  %751 = vmatmul.mubr.f32.gmra.mrb[0].mxu0 %v219
  %v752 = vpop.f32.mrb[0].mxu0
  %v753 = vadd.f32 %v167, %v752
  %v754 = vpop.f32.mrb[0].mxu0
  %755 = vmatprep.mubr.f32.mxu0 0.0
  %756 = vmatmul.mubr.f32.gmra.mrb[0].mxu0 %v222
  %v757 = vpop.f32.mrb[0].mxu0
  %v758 = vadd.f32 %v167, %v757
  %v759 = vpop.f32.mrb[0].mxu0
  %760 = vmatprep.mubr.f32.mxu0 0.0
  %761 = vmatmul.mubr.f32.gmra.mrb[0].mxu0 %v225
  %v762 = vpop.f32.mrb[0].mxu0
  %v763 = vadd.f32 %v167, %v762
  %v764 = vpop.f32.mrb[0].mxu0
  %765 = vmatprep.mubr.f32.mxu0 0.0
  %766 = vmatmul.mubr.f32.gmra.mrb[0].mxu0 %v228
  %v767 = vpop.f32.mrb[0].mxu0
  %v768 = vadd.f32 %v167, %v767
  %v769 = vpop.f32.mrb[0].mxu0
  %770 = vmatprep.mubr.f32.mxu0 0.0
  %771 = vmatmul.mubr.f32.gmra.mrb[0].mxu0 %v231
  %v772 = vpop.f32.mrb[0].mxu0
  %v773 = vadd.f32 %v167, %v772
  %v774 = vpop.f32.mrb[0].mxu0
  %775 = vmatprep.mubr.f32.mxu0 0.0
  %776 = vmatmul.mubr.f32.gmra.mrb[0].mxu0 %v234
  %v777 = vpop.f32.mrb[0].mxu0
  %v778 = vadd.f32 %v167, %v777
  %v779 = vpop.f32.mrb[0].mxu0
  %780 = vmatprep.mubr.f32.mxu0 0.0
  %781 = vmatmul.mubr.f32.gmra.mrb[0].mxu0 %v237
  %v782 = vpop.f32.mrb[0].mxu0
  %v783 = vadd.f32 %v167, %v782
  %v784 = vpop.f32.mrb[0].mxu0
  %785 = vmatprep.mubr.f32.mxu0 0.0
  %786 = vmatmul.mubr.f32.gmra.mrb[0].mxu0 %v240
  %v787 = vpop.f32.mrb[0].mxu0
  %v788 = vadd.f32 %v167, %v787
  %v789 = vpop.f32.mrb[0].mxu0
  %790 = vmatprep.mubr.f32.mxu0 0.0
  %791 = vmatmul.mubr.f32.gmra.mrb[0].mxu0 %v243
  %v792 = vpop.f32.mrb[0].mxu0
  %v793 = vadd.f32 %v167, %v792
  %v794 = vpop.f32.mrb[0].mxu0
  %795 = vmatprep.mubr.f32.mxu0 0.0
  %796 = vmatmul.mubr.f32.gmra.mrb[0].mxu0 %v246
  %v797 = vpop.f32.mrb[0].mxu0
  %v798 = vadd.f32 %v167, %v797
  %v799 = vpop.f32.mrb[0].mxu0
  %800 = vmatprep.mubr.f32.mxu0 0.0
  %801 = vmatmul.mubr.f32.gmra.mrb[0].mxu0 %v249
  %v802 = vpop.f32.mrb[0].mxu0
  %v803 = vadd.f32 %v167, %v802
  %v804 = vpop.f32.mrb[0].mxu0
  %805 = vmatprep.mubr.f32.mxu0 0.0
  %806 = vmatmul.mubr.f32.gmra.mrb[0].mxu0 %v252
  %v807 = vpop.f32.mrb[0].mxu0
  %v808 = vadd.f32 %v167, %v807
  %v809 = vpop.f32.mrb[0].mxu0
  %810 = vmatprep.mubr.f32.mxu0 0.0
  %811 = vmatmul.mubr.f32.gmra.mrb[0].mxu0 %v255
  %v812 = vpop.f32.mrb[0].mxu0
  %v813 = vadd.f32 %v167, %v812
  %v814 = vpop.f32.mrb[0].mxu0
  %815 = vmatprep.mubr.f32.mxu0 0.0
  %816 = vmatmul.mubr.f32.gmra.mrb[0].mxu0 %v258
  %v817 = vpop.f32.mrb[0].mxu0
  %v818 = vadd.f32 %v167, %v817
  %v819 = vpop.f32.mrb[0].mxu0
  %820 = vmatprep.mubr.f32.mxu0 0.0
  %821 = vmatmul.mubr.f32.gmra.mrb[0].mxu0 %v261
  %v822 = vpop.f32.mrb[0].mxu0
  %v823 = vadd.f32 %v167, %v822
  %v824 = vpop.f32.mrb[0].mxu0
  %825 = vmatprep.mubr.f32.mxu0 0.0
  %826 = vmatmul.mubr.f32.gmra.mrb[0].mxu0 %v264
  %v827 = vpop.f32.mrb[0].mxu0
  %v828 = vadd.f32 %v167, %v827
  %v829 = vpop.f32.mrb[0].mxu0
  %830 = vmatprep.mubr.f32.mxu0 0.0
  %831 = vmatmul.mubr.f32.gmra.mrb[0].mxu0 %v267
  %v832 = vpop.f32.mrb[0].mxu0
  %v833 = vadd.f32 %v167, %v832
  %v834 = vpop.f32.mrb[0].mxu0
  %835 = vmatprep.mubr.f32.mxu0 0.0
  %836 = vmatmul.mubr.f32.gmra.mrb[0].mxu0 %v270
  %v837 = vpop.f32.mrb[0].mxu0
  %v838 = vadd.f32 %v167, %v837
  %v839 = vpop.f32.mrb[0].mxu0
  %840 = vmatprep.mubr.f32.mxu0 0.0
  %841 = vmatmul.mubr.f32.gmra.mrb[0].mxu0 %v273
  %v842 = vpop.f32.mrb[0].mxu0
  %v843 = vadd.f32 %v167, %v842
  %v844 = vpop.f32.mrb[0].mxu0
  %845 = vmatprep.mubr.f32.mxu0 0.0
  %846 = vmatmul.mubr.f32.gmra.mrb[0].mxu0 %v276
  %v847 = vpop.f32.mrb[0].mxu0
  %v848 = vadd.f32 %v167, %v847
  %v849 = vpop.f32.mrb[0].mxu0
  %850 = vmatprep.mubr.f32.mxu0 0.0
  %851 = vmatmul.mubr.f32.gmra.mrb[0].mxu0 %v279
  %v852 = vpop.f32.mrb[0].mxu0
  %v853 = vadd.f32 %v167, %v852
  %v854 = vpop.f32.mrb[0].mxu0
  %855 = vmatprep.mubr.f32.mxu0 0.0
  %856 = vmatmul.mubr.f32.gmra.mrb[0].mxu0 %v282
  %v857 = vpop.f32.mrb[0].mxu0
  %v858 = vadd.f32 %v167, %v857
  %v859 = vpop.f32.mrb[0].mxu0
  %860 = vmatprep.mubr.f32.mxu0 0.0
  %861 = vmatmul.mubr.f32.gmra.mrb[0].mxu0 %v285
  %v862 = vpop.f32.mrb[0].mxu0
  %v863 = vadd.f32 %v167, %v862
  %v864 = vpop.f32.mrb[0].mxu0
  %865 = vmatprep.mubr.f32.mxu0 0.0
  %866 = vmatmul.mubr.f32.gmra.mrb[0].mxu0 %v288
  %v867 = vpop.f32.mrb[0].mxu0
  %v868 = vadd.f32 %v167, %v867
  %v869 = vpop.f32.mrb[0].mxu0
  %870 = vmatprep.mubr.f32.mxu0 0.0
  %871 = vmatmul.mubr.f32.gmra.mrb[0].mxu0 %v291
  %v872 = vpop.f32.mrb[0].mxu0
  %v873 = vadd.f32 %v167, %v872
  %v874 = vpop.f32.mrb[0].mxu0
  %875 = vmatprep.mubr.f32.mxu0 0.0
  %876 = vmatmul.mubr.f32.gmra.mrb[0].mxu0 %v294
  %v877 = vpop.f32.mrb[0].mxu0
  %v878 = vadd.f32 %v167, %v877
  %v879 = vpop.f32.mrb[0].mxu0
  %880 = vmatprep.mubr.f32.mxu0 0.0
  %881 = vmatmul.mubr.f32.gmra.mrb[0].mxu0 %v297
  %v882 = vpop.f32.mrb[0].mxu0
  %v883 = vadd.f32 %v167, %v882
  %v884 = vpop.f32.mrb[0].mxu0
  %885 = vmatprep.mubr.f32.mxu0 0.0
  %886 = vmatmul.mubr.f32.gmra.mrb[0].mxu0 %v300
  %v887 = vpop.f32.mrb[0].mxu0
  %v888 = vadd.f32 %v167, %v887
  %v889 = vpop.f32.mrb[0].mxu0
  %890 = vmatprep.mubr.f32.mxu0 0.0
  %891 = vmatmul.mubr.f32.gmra.mrb[0].mxu0 %v303
  %v892 = vpop.f32.mrb[0].mxu0
  %v893 = vadd.f32 %v167, %v892
  %v894 = vpop.f32.mrb[0].mxu0
  %895 = vmatprep.mubr.f32.mxu0 0.0
  %896 = vmatmul.mubr.f32.gmra.mrb[0].mxu0 %v306
  %v897 = vpop.f32.mrb[0].mxu0
  %v898 = vadd.f32 %v167, %v897
  %v899 = vpop.f32.mrb[0].mxu0
  %900 = vmatprep.mubr.f32.mxu0 0.0
  %901 = vmatmul.mubr.f32.gmra.mrb[0].mxu0 %v309
  %v902 = vpop.f32.mrb[0].mxu0
  %v903 = vadd.f32 %v167, %v902
  %v904 = vpop.f32.mrb[0].mxu0
  %905 = vmatprep.mubr.f32.mxu0 0.0
  %906 = vmatmul.mubr.f32.gmra.mrb[0].mxu0 %v312
  %v907 = vpop.f32.mrb[0].mxu0
  %v908 = vadd.f32 %v167, %v907
  %v909 = vpop.f32.mrb[0].mxu0
  %910 = vmatprep.mubr.f32.mxu0 0.0
  %911 = vmatmul.mubr.f32.gmra.mrb[0].mxu0 %v315
  %v912 = vpop.f32.mrb[0].mxu0
  %v913 = vadd.f32 %v167, %v912
  %v914 = vpop.f32.mrb[0].mxu0
  %915 = vmatprep.mubr.f32.mxu0 0.0
  %916 = vmatmul.mubr.f32.gmra.mrb[0].mxu0 %v318
  %v917 = vpop.f32.mrb[0].mxu0
  %v918 = vadd.f32 %v167, %v917
  %v919 = vpop.f32.mrb[0].mxu0
  %920 = vmatprep.mubr.f32.mxu0 0.0
  %921 = vmatmul.mubr.f32.gmra.mrb[0].mxu0 %v321
  %v922 = vpop.f32.mrb[0].mxu0
  %v923 = vadd.f32 %v167, %v922
  %v924 = vpop.f32.mrb[0].mxu0
  %925 = vmatprep.mubr.f32.mxu0 0.0
  %926 = vmatmul.mubr.f32.gmra.mrb[0].mxu0 %v324
  %v927 = vpop.f32.mrb[0].mxu0
  %v928 = vadd.f32 %v167, %v927
  %v929 = vpop.f32.mrb[0].mxu0
  %930 = vmatprep.mubr.f32.mxu0 0.0
  %931 = vmatmul.mubr.f32.gmra.mrb[0].mxu0 %v327
  %v932 = vpop.f32.mrb[0].mxu0
  %v933 = vadd.f32 %v167, %v932
  %v934 = vpop.f32.mrb[0].mxu0
  %935 = vmatprep.mubr.f32.mxu0 0.0
  %936 = vmatmul.mubr.f32.gmra.mrb[0].mxu0 %v330
  %v937 = vpop.f32.mrb[0].mxu0
  %v938 = vadd.f32 %v167, %v937
  %v939 = vpop.f32.mrb[0].mxu0
  %940 = vmatprep.mubr.f32.mxu0 0.0
  %941 = vmatmul.mubr.f32.gmra.mrb[0].mxu0 %v333
  %v942 = vpop.f32.mrb[0].mxu0
  %v943 = vadd.f32 %v167, %v942
  %v944 = vpop.f32.mrb[0].mxu0
  %945 = vmatprep.mubr.f32.mxu0 0.0
  %946 = vmatmul.mubr.f32.gmra.mrb[0].mxu0 %v336
  %v947 = vpop.f32.mrb[0].mxu0
  %v948 = vadd.f32 %v167, %v947
  %v949 = vpop.f32.mrb[0].mxu0
  %950 = vmatprep.mubr.f32.mxu0 0.0
  %951 = vmatmul.mubr.f32.gmra.mrb[0].mxu0 %v339
  %v952 = vpop.f32.mrb[0].mxu0
  %v953 = vadd.f32 %v167, %v952
  %v954 = vpop.f32.mrb[0].mxu0
  %955 = vmatprep.mubr.f32.mxu0 0.0
  %956 = vmatmul.mubr.f32.gmra.mrb[0].mxu0 %v342
  %v957 = vpop.f32.mrb[0].mxu0
  %v958 = vadd.f32 %v167, %v957
  %v959 = vpop.f32.mrb[0].mxu0
  %960 = vmatprep.mubr.f32.mxu0 0.0
  %961 = vmatmul.mubr.f32.gmra.mrb[0].mxu0 %v345
  %v962 = vpop.f32.mrb[0].mxu0
  %v963 = vadd.f32 %v167, %v962
  %v964 = vpop.f32.mrb[0].mxu0
  %965 = vmatprep.mubr.f32.mxu0 0.0
  %966 = vmatmul.mubr.f32.gmra.mrb[0].mxu0 %v348
  %v967 = vpop.f32.mrb[0].mxu0
  %v968 = vadd.f32 %v167, %v967
  %v969 = vpop.f32.mrb[0].mxu0
  %970 = vmatprep.mubr.f32.mxu0 0.0
  %971 = vmatmul.mubr.f32.gmra.mrb[0].mxu0 %v351
  %v972 = vpop.f32.mrb[0].mxu0
  %v973 = vadd.f32 %v167, %v972
  %v974 = vpop.f32.mrb[0].mxu0
  %975 = vmatprep.mubr.f32.mxu0 0.0
  %976 = vmatmul.mubr.f32.gmra.mrb[0].mxu0 %v354
  %v977 = vpop.f32.mrb[0].mxu0
  %v978 = vadd.f32 %v167, %v977
  %v979 = vpop.f32.mrb[0].mxu0
  %980 = vmatprep.mubr.f32.mxu0 0.0
  %981 = vmatmul.mubr.f32.gmra.mrb[0].mxu0 %v357
  %v982 = vpop.f32.mrb[0].mxu0
  %v983 = vadd.f32 %v167, %v982
  %v984 = vpop.f32.mrb[0].mxu0
  %985 = vmatprep.mubr.f32.mxu0 0.0
  %986 = vmatmul.mubr.f32.gmra.mrb[0].mxu0 %v360
  %v987 = vpop.f32.mrb[0].mxu0
  %v988 = vadd.f32 %v167, %v987
  %v989 = vpop.f32.mrb[0].mxu0
  %990 = vmatprep.mubr.f32.mxu0 0.0
  %991 = vmatmul.mubr.f32.gmra.mrb[0].mxu0 %v363
  %v992 = vpop.f32.mrb[0].mxu0
  %v993 = vadd.f32 %v167, %v992
  %v994 = vpop.f32.mrb[0].mxu0
  %995 = vmatprep.mubr.f32.mxu0 0.0
  %996 = vmatmul.mubr.f32.gmra.mrb[0].mxu0 %v366
  %v997 = vpop.f32.mrb[0].mxu0
  %v998 = vadd.f32 %v167, %v997
  %v999 = vpop.f32.mrb[0].mxu0
  %1000 = vmatprep.mubr.f32.mxu0 0.0
  %1001 = vmatmul.mubr.f32.gmra.mrb[0].mxu0 %v369
  %v1002 = vpop.f32.mrb[0].mxu0
  %v1003 = vadd.f32 %v167, %v1002
  %v1004 = vpop.f32.mrb[0].mxu0
  %1005 = vmatprep.mubr.f32.mxu0 0.0
  %1006 = vmatmul.mubr.f32.gmra.mrb[0].mxu0 %v372
  %v1007 = vpop.f32.mrb[0].mxu0
  %v1008 = vadd.f32 %v167, %v1007
  %v1009 = vpop.f32.mrb[0].mxu0
  %1010 = vmatprep.mubr.f32.mxu0 0.0
  %1011 = vmatmul.mubr.f32.gmra.mrb[0].mxu0 %v375
  %v1012 = vpop.f32.mrb[0].mxu0
  %v1013 = vadd.f32 %v167, %v1012
  %v1014 = vpop.f32.mrb[0].mxu0
  %1015 = vmatprep.mubr.f32.mxu0 0.0
  %1016 = vmatmul.mubr.f32.gmra.mrb[0].mxu0 %v378
  %v1017 = vpop.f32.mrb[0].mxu0
  %v1018 = vadd.f32 %v167, %v1017
  %v1019 = vpop.f32.mrb[0].mxu0
  %1020 = vmatprep.mubr.f32.mxu0 0.0
  %1021 = vmatmul.mubr.f32.gmra.mrb[0].mxu0 %v381
  %v1022 = vpop.f32.mrb[0].mxu0
  %v1023 = vadd.f32 %v167, %v1022
  %v1024 = vpop.f32.mrb[0].mxu0
  %1025 = vmatprep.mubr.f32.mxu0 0.0
  %1026 = vmatmul.mubr.f32.gmra.mrb[0].mxu0 %v384
  %v1027 = vpop.f32.mrb[0].mxu0
  %v1028 = vadd.f32 %v167, %v1027
  %v1029 = vpop.f32.mrb[0].mxu0
  %1030 = vmatprep.mubr.f32.mxu0 0.0
  %1031 = vmatmul.mubr.f32.gmra.mrb[0].mxu0 %v387
  %v1032 = vpop.f32.mrb[0].mxu0
  %v1033 = vadd.f32 %v167, %v1032
  %v1034 = vpop.f32.mrb[0].mxu0
  %1035 = vmatprep.mubr.f32.mxu0 0.0
  %1036 = vmatmul.mubr.f32.gmra.mrb[0].mxu0 %v390
  %v1037 = vpop.f32.mrb[0].mxu0
  %v1038 = vadd.f32 %v167, %v1037
  %v1039 = vpop.f32.mrb[0].mxu0
  %1040 = vmatprep.mubr.f32.mxu0 0.0
  %1041 = vmatmul.mubr.f32.gmra.mrb[0].mxu0 %v393
  %v1042 = vpop.f32.mrb[0].mxu0
  %v1043 = vadd.f32 %v167, %v1042
  %v1044 = vpop.f32.mrb[0].mxu0
  %1045 = vmatprep.mubr.f32.mxu0 0.0
  %1046 = vmatmul.mubr.f32.gmra.mrb[0].mxu0 %v396
  %v1047 = vpop.f32.mrb[0].mxu0
  %v1048 = vadd.f32 %v167, %v1047
  %v1049 = vpop.f32.mrb[0].mxu0
  %1050 = vmatprep.mubr.f32.mxu0 0.0
  %1051 = vmatmul.mubr.f32.gmra.mrb[0].mxu0 %v399
  %v1052 = vpop.f32.mrb[0].mxu0
  %v1053 = vadd.f32 %v167, %v1052
  %v1054 = vpop.f32.mrb[0].mxu0
  %1055 = vmatprep.mubr.f32.mxu0 0.0
  %1056 = vmatmul.mubr.f32.gmra.mrb[0].mxu0 %v402
  %v1057 = vpop.f32.mrb[0].mxu0
  %v1058 = vadd.f32 %v167, %v1057
  %v1059 = vpop.f32.mrb[0].mxu0
  %1060 = vmatprep.mubr.f32.mxu0 0.0
  %1061 = vmatmul.mubr.f32.gmra.mrb[0].mxu0 %v405
  %v1062 = vpop.f32.mrb[0].mxu0
  %v1063 = vadd.f32 %v167, %v1062
  %v1064 = vpop.f32.mrb[0].mxu0
  %1065 = vmatprep.mubr.f32.mxu0 0.0
  %1066 = vmatmul.mubr.f32.gmra.mrb[0].mxu0 %v408
  %v1067 = vpop.f32.mrb[0].mxu0
  %v1068 = vadd.f32 %v167, %v1067
  %v1069 = vpop.f32.mrb[0].mxu0
  %1070 = vmatprep.mubr.f32.mxu0 0.0
  %1071 = vmatmul.mubr.f32.gmra.mrb[0].mxu0 %v411
  %v1072 = vpop.f32.mrb[0].mxu0
  %v1073 = vadd.f32 %v167, %v1072
  %v1074 = vpop.f32.mrb[0].mxu0
  %1075 = vmatprep.mubr.f32.mxu0 0.0
  %1076 = vmatmul.mubr.f32.gmra.mrb[0].mxu0 %v414
  %v1077 = vpop.f32.mrb[0].mxu0
  %v1078 = vadd.f32 %v167, %v1077
  %v1079 = vpop.f32.mrb[0].mxu0
  %1080 = vmatprep.mubr.f32.mxu0 0.0
  %1081 = vmatmul.mubr.f32.gmra.mrb[0].mxu0 %v417
  %v1082 = vpop.f32.mrb[0].mxu0
  %v1083 = vadd.f32 %v167, %v1082
  %v1084 = vpop.f32.mrb[0].mxu0
  %1085 = vmatprep.mubr.f32.mxu0 0.0
  %1086 = vmatmul.mubr.f32.gmra.mrb[0].mxu0 %v420
  %v1087 = vpop.f32.mrb[0].mxu0
  %v1088 = vadd.f32 %v167, %v1087
  %v1089 = vpop.f32.mrb[0].mxu0
  %1090 = vmatprep.mubr.f32.mxu0 0.0
  %1091 = vmatmul.mubr.f32.gmra.mrb[0].mxu0 %v423
  %v1092 = vpop.f32.mrb[0].mxu0
  %v1093 = vadd.f32 %v167, %v1092
  %v1094 = vpop.f32.mrb[0].mxu0
  %1095 = vmatprep.mubr.f32.mxu0 0.0
  %1096 = vmatmul.mubr.f32.gmra.mrb[0].mxu0 %v426
  %v1097 = vpop.f32.mrb[0].mxu0
  %v1098 = vadd.f32 %v167, %v1097
  %v1099 = vpop.f32.mrb[0].mxu0
  %1100 = vmatprep.mubr.f32.mxu0 0.0
  %1101 = vmatmul.mubr.f32.gmra.mrb[0].mxu0 %v429
  %v1102 = vpop.f32.mrb[0].mxu0
  %v1103 = vadd.f32 %v167, %v1102
  %v1104 = vpop.f32.mrb[0].mxu0
  %1105 = vmatprep.mubr.f32.mxu0 0.0
  %1106 = vmatmul.mubr.f32.gmra.mrb[0].mxu0 %v432
  %v1107 = vpop.f32.mrb[0].mxu0
  %v1108 = vadd.f32 %v167, %v1107
  %v1109 = vpop.f32.mrb[0].mxu0
  %1110 = vmatprep.mubr.f32.mxu0 0.0
  %1111 = vmatmul.mubr.f32.gmra.mrb[0].mxu0 %v435
  %v1112 = vpop.f32.mrb[0].mxu0
  %v1113 = vadd.f32 %v167, %v1112
  %v1114 = vpop.f32.mrb[0].mxu0
  %1115 = vmatprep.mubr.f32.mxu0 0.0
  %1116 = vmatmul.mubr.f32.gmra.mrb[0].mxu0 %v438
  %v1117 = vpop.f32.mrb[0].mxu0
  %v1118 = vadd.f32 %v167, %v1117
  %v1119 = vpop.f32.mrb[0].mxu0
  %1120 = vmatprep.mubr.f32.mxu0 0.0
  %1121 = vmatmul.mubr.f32.gmra.mrb[0].mxu0 %v441
  %v1122 = vpop.f32.mrb[0].mxu0
  %v1123 = vadd.f32 %v167, %v1122
  %v1124 = vpop.f32.mrb[0].mxu0
  %1125 = vmatprep.mubr.f32.mxu0 0.0
  %1126 = vmatmul.mubr.f32.gmra.mrb[0].mxu0 %v444
  %v1127 = vpop.f32.mrb[0].mxu0
  %v1128 = vadd.f32 %v167, %v1127
  %v1129 = vpop.f32.mrb[0].mxu0
  %1130 = vmatprep.mubr.f32.mxu0 0.0
  %1131 = vmatmul.mubr.f32.gmra.mrb[0].mxu0 %v447
  %v1132 = vpop.f32.mrb[0].mxu0
  %v1133 = vadd.f32 %v167, %v1132
  %v1134 = vpop.f32.mrb[0].mxu0
  %1135 = vmatprep.mubr.f32.mxu0 0.0
  %1136 = vmatmul.mubr.f32.gmra.mrb[0].mxu0 %v450
  %v1137 = vpop.f32.mrb[0].mxu0
  %v1138 = vadd.f32 %v167, %v1137
  %v1139 = vpop.f32.mrb[0].mxu0
  %1140 = vmatprep.mubr.f32.mxu0 0.0
  %1141 = vmatmul.mubr.f32.gmra.mrb[0].mxu0 %v453
  %v1142 = vpop.f32.mrb[0].mxu0
  %v1143 = vadd.f32 %v167, %v1142
  %v1144 = vpop.f32.mrb[0].mxu0
  %1145 = vmatprep.mubr.f32.mxu0 0.0
  %1146 = vmatmul.mubr.f32.gmra.mrb[0].mxu0 %v456
  %v1147 = vpop.f32.mrb[0].mxu0
  %v1148 = vadd.f32 %v167, %v1147
  %v1149 = vpop.f32.mrb[0].mxu0
  %1150 = vmatprep.mubr.f32.mxu0 0.0
  %1151 = vmatmul.mubr.f32.gmra.mrb[0].mxu0 %v459
  %v1152 = vpop.f32.mrb[0].mxu0
  %v1153 = vadd.f32 %v167, %v1152
  %v1154 = vpop.f32.mrb[0].mxu0
  %1155 = vmatprep.mubr.f32.mxu0 0.0
  %1156 = vmatmul.mubr.f32.gmra.mrb[0].mxu0 %v462
  %v1157 = vpop.f32.mrb[0].mxu0
  %v1158 = vadd.f32 %v167, %v1157
  %v1159 = vpop.f32.mrb[0].mxu0
  %1160 = vmatprep.mubr.f32.mxu0 0.0
  %1161 = vmatmul.mubr.f32.gmra.mrb[0].mxu0 %v465
  %v1162 = vpop.f32.mrb[0].mxu0
  %v1163 = vadd.f32 %v167, %v1162
  %v1164 = vpop.f32.mrb[0].mxu0
  %1165 = vmatprep.mubr.f32.mxu0 0.0
  %1166 = vmatmul.mubr.f32.gmra.mrb[0].mxu0 %v468
  %v1167 = vpop.f32.mrb[0].mxu0
  %v1168 = vadd.f32 %v167, %v1167
  %v1169 = vpop.f32.mrb[0].mxu0
  %1170 = vmatprep.mubr.f32.mxu0 0.0
  %1171 = vmatmul.mubr.f32.gmra.mrb[0].mxu0 %v471
  %v1172 = vpop.f32.mrb[0].mxu0
  %v1173 = vadd.f32 %v167, %v1172
  %v1174 = vpop.f32.mrb[0].mxu0
  %1175 = vmatprep.mubr.f32.mxu0 0.0
  %1176 = vmatmul.mubr.f32.gmra.mrb[0].mxu0 %v474
  %v1177 = vpop.f32.mrb[0].mxu0
  %v1178 = vadd.f32 %v167, %v1177
  %v1179 = vpop.f32.mrb[0].mxu0
  %1180 = vmatprep.mubr.f32.mxu0 0.0
  %1181 = vmatmul.mubr.f32.gmra.mrb[0].mxu0 %v477
  %v1182 = vpop.f32.mrb[0].mxu0
  %v1183 = vadd.f32 %v167, %v1182
  %v1184 = vpop.f32.mrb[0].mxu0
  %1185 = vmatprep.mubr.f32.mxu0 0.0
  %1186 = vmatmul.mubr.f32.gmra.mrb[0].mxu0 %v480
  %v1187 = vpop.f32.mrb[0].mxu0
  %v1188 = vadd.f32 %v167, %v1187
  %v1189 = vpop.f32.mrb[0].mxu0
  %1190 = vmatprep.mubr.f32.mxu0 0.0
  %1191 = vmatmul.mubr.f32.gmra.mrb[0].mxu0 %v483
  %v1192 = vpop.f32.mrb[0].mxu0
  %v1193 = vadd.f32 %v167, %v1192
  %v1194 = vpop.f32.mrb[0].mxu0
  %1195 = vmatprep.mubr.f32.mxu0 0.0
  %1196 = vmatmul.mubr.f32.gmra.mrb[0].mxu0 %v486
  %v1197 = vpop.f32.mrb[0].mxu0
  %v1198 = vadd.f32 %v167, %v1197
  %v1199 = vpop.f32.mrb[0].mxu0
  %1200 = vmatprep.mubr.f32.mxu0 0.0
  %1201 = vmatmul.mubr.f32.gmra.mrb[0].mxu0 %v489
  %v1202 = vpop.f32.mrb[0].mxu0
  %v1203 = vadd.f32 %v167, %v1202
  %v1204 = vpop.f32.mrb[0].mxu0
  %1205 = vmatprep.mubr.f32.mxu0 0.0
  %1206 = vmatmul.mubr.f32.gmra.mrb[0].mxu0 %v492
  %v1207 = vpop.f32.mrb[0].mxu0
  %v1208 = vadd.f32 %v167, %v1207
  %v1209 = vpop.f32.mrb[0].mxu0
  %1210 = vmatprep.mubr.f32.mxu0 0.0
  %1211 = vmatmul.mubr.f32.gmra.mrb[0].mxu0 %v495
  %v1212 = vpop.f32.mrb[0].mxu0
  %v1213 = vadd.f32 %v167, %v1212
  %v1214 = vpop.f32.mrb[0].mxu0
  %1215 = vmatprep.mubr.f32.mxu0 0.0
  %1216 = vmatmul.mubr.f32.gmra.mrb[0].mxu0 %v498
  %v1217 = vpop.f32.mrb[0].mxu0
  %v1218 = vadd.f32 %v167, %v1217
  %v1219 = vpop.f32.mrb[0].mxu0
  %1220 = vmatprep.mubr.f32.mxu0 0.0
  %1221 = vmatmul.mubr.f32.gmra.mrb[0].mxu0 %v501
  %v1222 = vpop.f32.mrb[0].mxu0
  %v1223 = vadd.f32 %v167, %v1222
  %v1224 = vpop.f32.mrb[0].mxu0
  %1225 = vmatprep.mubr.f32.mxu0 0.0
  %1226 = vmatmul.mubr.f32.gmra.mrb[0].mxu0 %v504
  %v1227 = vpop.f32.mrb[0].mxu0
  %v1228 = vadd.f32 %v167, %v1227
  %v1229 = vpop.f32.mrb[0].mxu0
  %1230 = vmatprep.mubr.f32.mxu0 0.0
  %1231 = vmatmul.mubr.f32.gmra.mrb[0].mxu0 %v507
  %v1232 = vpop.f32.mrb[0].mxu0
  %v1233 = vadd.f32 %v167, %v1232
  %v1234 = vpop.f32.mrb[0].mxu0
  %1235 = vmatprep.mubr.f32.mxu0 0.0
  %1236 = vmatmul.mubr.f32.gmra.mrb[0].mxu0 %v510
  %v1237 = vpop.f32.mrb[0].mxu0
  %v1238 = vadd.f32 %v167, %v1237
  %v1239 = vpop.f32.mrb[0].mxu0
  %1240 = vmatprep.mubr.f32.mxu0 0.0
  %1241 = vmatmul.mubr.f32.gmra.mrb[0].mxu0 %v513
  %v1242 = vpop.f32.mrb[0].mxu0
  %v1243 = vadd.f32 %v167, %v1242
  %v1244 = vpop.f32.mrb[0].mxu0
  %1245 = vmatprep.mubr.f32.mxu0 0.0
  %1246 = vmatmul.mubr.f32.gmra.mrb[0].mxu0 %v516
  %v1247 = vpop.f32.mrb[0].mxu0
  %v1248 = vadd.f32 %v167, %v1247
  %v1249 = vpop.f32.mrb[0].mxu0
  %1250 = vmatprep.mubr.f32.mxu0 0.0
  %1251 = vmatmul.mubr.f32.gmra.mrb[0].mxu0 %v519
  %v1252 = vpop.f32.mrb[0].mxu0
  %v1253 = vadd.f32 %v167, %v1252
  %v1254 = vpop.f32.mrb[0].mxu0
  %1255 = vmatprep.mubr.f32.mxu0 0.0
  %1256 = vmatmul.mubr.f32.gmra.mrb[0].mxu0 %v522
  %v1257 = vpop.f32.mrb[0].mxu0
  %v1258 = vadd.f32 %v167, %v1257
  %v1259 = vpop.f32.mrb[0].mxu0
  %1260 = vmatprep.mubr.f32.mxu0 0.0
  %1261 = vmatmul.mubr.f32.gmra.mrb[0].mxu0 %v525
  %v1262 = vpop.f32.mrb[0].mxu0
  %v1263 = vadd.f32 %v167, %v1262
  %v1264 = vpop.f32.mrb[0].mxu0
  %1265 = vmatprep.mubr.f32.mxu0 0.0
  %1266 = vmatmul.mubr.f32.gmra.mrb[0].mxu0 %v528
  %v1267 = vpop.f32.mrb[0].mxu0
  %v1268 = vadd.f32 %v167, %v1267
  %v1269 = vpop.f32.mrb[0].mxu0
  %1270 = vmatprep.mubr.f32.mxu0 0.0
  %1271 = vmatmul.mubr.f32.gmra.mrb[0].mxu0 %v531
  %v1272 = vpop.f32.mrb[0].mxu0
  %v1273 = vadd.f32 %v167, %v1272
  %v1274 = vpop.f32.mrb[0].mxu0
  %1275 = vmatprep.mubr.f32.mxu0 0.0
  %1276 = vmatmul.mubr.f32.gmra.mrb[0].mxu0 %v534
  %v1277 = vpop.f32.mrb[0].mxu0
  %v1278 = vadd.f32 %v167, %v1277
  %v1279 = vpop.f32.mrb[0].mxu0
  %1280 = vmatprep.mubr.f32.mxu0 0.0
  %1281 = vmatmul.mubr.f32.gmra.mrb[0].mxu0 %v537
  %v1282 = vpop.f32.mrb[0].mxu0
  %v1283 = vadd.f32 %v167, %v1282
  %v1284 = vpop.f32.mrb[0].mxu0
  %1285 = vmatprep.mubr.f32.mxu0 0.0
  %1286 = vmatmul.mubr.f32.gmra.mrb[0].mxu0 %v540
  %v1287 = vpop.f32.mrb[0].mxu0
  %v1288 = vadd.f32 %v167, %v1287
  %v1289 = vpop.f32.mrb[0].mxu0
  %1290 = vmatprep.mubr.f32.mxu0 0.0
  %1291 = vmatmul.mubr.f32.gmra.mrb[0].mxu0 %v543
  %v1292 = vpop.f32.mrb[0].mxu0
  %v1293 = vadd.f32 %v167, %v1292
  %v1294 = vpop.f32.mrb[0].mxu0
  %1295 = vmatprep.mubr.f32.mxu0 0.0
  %1296 = vmatmul.mubr.f32.gmra.mrb[0].mxu0 %v546
  %v1297 = vpop.f32.mrb[0].mxu0
  %v1298 = vadd.f32 %v167, %v1297
  %v1299 = vpop.f32.mrb[0].mxu0
  %1300 = vmatprep.mubr.f32.mxu0 0.0
  %1301 = vmatmul.mubr.f32.gmra.mrb[0].mxu0 %v549
  %v1302 = vpop.f32.mrb[0].mxu0
  %v1303 = vadd.f32 %v167, %v1302
  %v1304 = vpop.f32.mrb[0].mxu0
  %1305 = vmatprep.mubr.f32.mxu0 0.0
  %1306 = vmatmul.mubr.f32.gmra.mrb[0].mxu0 %v552
  %v1307 = vpop.f32.mrb[0].mxu0
  %v1308 = vadd.f32 %v167, %v1307
  %v1309 = vpop.f32.mrb[0].mxu0
  %1310 = vmatprep.mubr.f32.mxu0 0.0
  %1311 = vmatmul.mubr.f32.gmra.mrb[0].mxu0 %v555
  %v1312 = vpop.f32.mrb[0].mxu0
  %v1313 = vadd.f32 %v167, %v1312
  %v1314 = vpop.f32.mrb[0].mxu0
  %1315 = vmatprep.mubr.f32.mxu0 0.0
  %1316 = vmatmul.mubr.f32.gmra.mrb[0].mxu0 %v558
  %v1317 = vpop.f32.mrb[0].mxu0
  %v1318 = vadd.f32 %v167, %v1317
  %v1319 = vpop.f32.mrb[0].mxu0
  %1320 = vmatprep.mubr.f32.mxu0 0.0
  %1321 = vmatmul.mubr.f32.gmra.mrb[0].mxu0 %v561
  %v1322 = vpop.f32.mrb[0].mxu0
  %v1323 = vadd.f32 %v167, %v1322
  %v1324 = vpop.f32.mrb[0].mxu0
  %1325 = vmatprep.mubr.f32.mxu0 0.0
  %1326 = vmatmul.mubr.f32.gmra.mrb[0].mxu0 %v564
  %v1327 = vpop.f32.mrb[0].mxu0
  %v1328 = vadd.f32 %v167, %v1327
  %v1329 = vpop.f32.mrb[0].mxu0
  %1330 = vmatprep.mubr.f32.mxu0 0.0
  %1331 = vmatmul.mubr.f32.gmra.mrb[0].mxu0 %v567
  %v1332 = vpop.f32.mrb[0].mxu0
  %v1333 = vadd.f32 %v167, %v1332
  %v1334 = vpop.f32.mrb[0].mxu0
  %1335 = vmatprep.mubr.f32.mxu0 0.0
  %1336 = vmatmul.mubr.f32.gmra.mrb[0].mxu0 %v570
  %v1337 = vpop.f32.mrb[0].mxu0
  %v1338 = vadd.f32 %v167, %v1337
  %v1339 = vpop.f32.mrb[0].mxu0
  %1340 = vmatprep.mubr.f32.mxu0 0.0
  %1341 = vmatmul.mubr.f32.gmra.mrb[0].mxu0 %v573
  %v1342 = vpop.f32.mrb[0].mxu0
  %v1343 = vadd.f32 %v167, %v1342
  %v1344 = vpop.f32.mrb[0].mxu0
  %1345 = vmatprep.mubr.f32.mxu0 0.0
  %1346 = vmatmul.mubr.f32.gmra.mrb[0].mxu0 %v576
  %v1347 = vpop.f32.mrb[0].mxu0
  %v1348 = vadd.f32 %v167, %v1347
  %v1349 = vpop.f32.mrb[0].mxu0
  %1350 = vmatprep.mubr.f32.mxu0 0.0
  %1351 = vmatmul.mubr.f32.gmra.mrb[0].mxu0 %v579
  %v1352 = vpop.f32.mrb[0].mxu0
  %v1353 = vadd.f32 %v167, %v1352
  %v1354 = vpop.f32.mrb[0].mxu0
  %1355 = vmatprep.mubr.f32.mxu0 0.0
  %1356 = vmatmul.mubr.f32.gmra.mrb[0].mxu0 %v582
  %v1357 = vpop.f32.mrb[0].mxu0
  %v1358 = vadd.f32 %v167, %v1357
  %v1359 = vpop.f32.mrb[0].mxu0
  %1360 = vmatprep.mubr.f32.mxu0 0.0
  %1361 = vmatmul.mubr.f32.gmra.mrb[0].mxu0 %v585
  %v1362 = vpop.f32.mrb[0].mxu0
  %v1363 = vadd.f32 %v167, %v1362
  %v1364 = vpop.f32.mrb[0].mxu0
  %1365 = vmatprep.mubr.f32.mxu0 0.0
  %1366 = vmatmul.mubr.f32.gmra.mrb[0].mxu0 %v588
  %v1367 = vpop.f32.mrb[0].mxu0
  %v1368 = vadd.f32 %v167, %v1367
  %v1369 = vpop.f32.mrb[0].mxu0
  %1370 = vmatprep.mubr.f32.mxu0 0.0
  %1371 = vmatmul.mubr.f32.gmra.mrb[0].mxu0 %v591
  %v1372 = vpop.f32.mrb[0].mxu0
  %v1373 = vadd.f32 %v167, %v1372
  %v1374 = vpop.f32.mrb[0].mxu0
  %1375 = vmatprep.mubr.f32.mxu0 0.0
  %1376 = vmatmul.mubr.f32.gmra.mrb[0].mxu0 %v594
  %v1377 = vpop.f32.mrb[0].mxu0
  %v1378 = vadd.f32 %v167, %v1377
  %v1379 = vpop.f32.mrb[0].mxu0
  %1380 = vmatprep.mubr.f32.mxu0 0.0
  %1381 = vmatmul.mubr.f32.gmra.mrb[0].mxu0 %v597
  %v1382 = vpop.f32.mrb[0].mxu0
  %v1383 = vadd.f32 %v167, %v1382
  %v1384 = vpop.f32.mrb[0].mxu0
  %1385 = vmatprep.mubr.f32.mxu0 0.0
  %1386 = vmatmul.mubr.f32.gmra.mrb[0].mxu0 %v600
  %v1387 = vpop.f32.mrb[0].mxu0
  %v1388 = vadd.f32 %v167, %v1387
  %v1389 = vpop.f32.mrb[0].mxu0
  %1390 = vdwg.mxu0
  %v1391 = vmax.f32 %v673, 0.0
  %v1392 = vmax.f32 %v678, 0.0
  %v1393 = vmax.f32 %v683, 0.0
  %v1394 = vmax.f32 %v688, 0.0
  %v1395 = vmax.f32 %v693, 0.0
  %v1396 = vmax.f32 %v698, 0.0
  %v1397 = vmax.f32 %v703, 0.0
  %v1398 = vmax.f32 %v708, 0.0
  %v1399 = vmax.f32 %v713, 0.0
  %v1400 = vmax.f32 %v718, 0.0
  %v1401 = vmax.f32 %v723, 0.0
  %v1402 = vmax.f32 %v728, 0.0
  %v1403 = vmax.f32 %v733, 0.0
  %v1404 = vmax.f32 %v738, 0.0
  %v1405 = vmax.f32 %v743, 0.0
  %v1406 = vmax.f32 %v748, 0.0
  %v1407 = vmax.f32 %v753, 0.0
  %v1408 = vmax.f32 %v758, 0.0
  %v1409 = vmax.f32 %v763, 0.0
  %v1410 = vmax.f32 %v768, 0.0
  %v1411 = vmax.f32 %v773, 0.0
  %v1412 = vmax.f32 %v778, 0.0
  %v1413 = vmax.f32 %v783, 0.0
  %v1414 = vmax.f32 %v788, 0.0
  %v1415 = vmax.f32 %v793, 0.0
  %v1416 = vmax.f32 %v798, 0.0
  %v1417 = vmax.f32 %v803, 0.0
  %v1418 = vmax.f32 %v808, 0.0
  %v1419 = vmax.f32 %v813, 0.0
  %v1420 = vmax.f32 %v818, 0.0
  %v1421 = vmax.f32 %v823, 0.0
  %v1422 = vmax.f32 %v828, 0.0
  %v1423 = vmax.f32 %v833, 0.0
  %v1424 = vmax.f32 %v838, 0.0
  %v1425 = vmax.f32 %v843, 0.0
  %v1426 = vmax.f32 %v848, 0.0
  %v1427 = vmax.f32 %v853, 0.0
  %v1428 = vmax.f32 %v858, 0.0
  %v1429 = vmax.f32 %v863, 0.0
  %v1430 = vmax.f32 %v868, 0.0
  %v1431 = vmax.f32 %v873, 0.0
  %v1432 = vmax.f32 %v878, 0.0
  %v1433 = vmax.f32 %v883, 0.0
  %v1434 = vmax.f32 %v888, 0.0
  %v1435 = vmax.f32 %v893, 0.0
  %v1436 = vmax.f32 %v898, 0.0
  %v1437 = vmax.f32 %v903, 0.0
  %v1438 = vmax.f32 %v908, 0.0
  %v1439 = vmax.f32 %v913, 0.0
  %v1440 = vmax.f32 %v918, 0.0
  %v1441 = vmax.f32 %v923, 0.0
  %v1442 = vmax.f32 %v928, 0.0
  %v1443 = vmax.f32 %v933, 0.0
  %v1444 = vmax.f32 %v938, 0.0
  %v1445 = vmax.f32 %v943, 0.0
  %v1446 = vmax.f32 %v948, 0.0
  %v1447 = vmax.f32 %v953, 0.0
  %v1448 = vmax.f32 %v958, 0.0
  %v1449 = vmax.f32 %v963, 0.0
  %v1450 = vmax.f32 %v968, 0.0
  %v1451 = vmax.f32 %v973, 0.0
  %v1452 = vmax.f32 %v978, 0.0
  %v1453 = vmax.f32 %v983, 0.0
  %v1454 = vmax.f32 %v988, 0.0
  %v1455 = vmax.f32 %v993, 0.0
  %v1456 = vmax.f32 %v998, 0.0
  %v1457 = vmax.f32 %v1003, 0.0
  %v1458 = vmax.f32 %v1008, 0.0
  %v1459 = vmax.f32 %v1013, 0.0
  %v1460 = vmax.f32 %v1018, 0.0
  %v1461 = vmax.f32 %v1023, 0.0
  %v1462 = vmax.f32 %v1028, 0.0
  %v1463 = vmax.f32 %v1033, 0.0
  %v1464 = vmax.f32 %v1038, 0.0
  %v1465 = vmax.f32 %v1043, 0.0
  %v1466 = vmax.f32 %v1048, 0.0
  %v1467 = vmax.f32 %v1053, 0.0
  %v1468 = vmax.f32 %v1058, 0.0
  %v1469 = vmax.f32 %v1063, 0.0
  %v1470 = vmax.f32 %v1068, 0.0
  %v1471 = vmax.f32 %v1073, 0.0
  %v1472 = vmax.f32 %v1078, 0.0
  %v1473 = vmax.f32 %v1083, 0.0
  %v1474 = vmax.f32 %v1088, 0.0
  %v1475 = vmax.f32 %v1093, 0.0
  %v1476 = vmax.f32 %v1098, 0.0
  %v1477 = vmax.f32 %v1103, 0.0
  %v1478 = vmax.f32 %v1108, 0.0
  %v1479 = vmax.f32 %v1113, 0.0
  %v1480 = vmax.f32 %v1118, 0.0
  %v1481 = vmax.f32 %v1123, 0.0
  %v1482 = vmax.f32 %v1128, 0.0
  %v1483 = vmax.f32 %v1133, 0.0
  %v1484 = vmax.f32 %v1138, 0.0
  %v1485 = vmax.f32 %v1143, 0.0
  %v1486 = vmax.f32 %v1148, 0.0
  %v1487 = vmax.f32 %v1153, 0.0
  %v1488 = vmax.f32 %v1158, 0.0
  %v1489 = vmax.f32 %v1163, 0.0
  %v1490 = vmax.f32 %v1168, 0.0
  %v1491 = vmax.f32 %v1173, 0.0
  %v1492 = vmax.f32 %v1178, 0.0
  %v1493 = vmax.f32 %v1183, 0.0
  %v1494 = vmax.f32 %v1188, 0.0
  %v1495 = vmax.f32 %v1193, 0.0
  %v1496 = vmax.f32 %v1198, 0.0
  %v1497 = vmax.f32 %v1203, 0.0
  %v1498 = vmax.f32 %v1208, 0.0
  %v1499 = vmax.f32 %v1213, 0.0
  %v1500 = vmax.f32 %v1218, 0.0
  %v1501 = vmax.f32 %v1223, 0.0
  %v1502 = vmax.f32 %v1228, 0.0
  %v1503 = vmax.f32 %v1233, 0.0
  %v1504 = vmax.f32 %v1238, 0.0
  %v1505 = vmax.f32 %v1243, 0.0
  %v1506 = vmax.f32 %v1248, 0.0
  %v1507 = vmax.f32 %v1253, 0.0
  %v1508 = vmax.f32 %v1258, 0.0
  %v1509 = vmax.f32 %v1263, 0.0
  %v1510 = vmax.f32 %v1268, 0.0
  %v1511 = vmax.f32 %v1273, 0.0
  %v1512 = vmax.f32 %v1278, 0.0
  %v1513 = vmax.f32 %v1283, 0.0
  %v1514 = vmax.f32 %v1288, 0.0
  %v1515 = vmax.f32 %v1293, 0.0
  %v1516 = vmax.f32 %v1298, 0.0
  %v1517 = vmax.f32 %v1303, 0.0
  %v1518 = vmax.f32 %v1308, 0.0
  %v1519 = vmax.f32 %v1313, 0.0
  %v1520 = vmax.f32 %v1318, 0.0
  %v1521 = vmax.f32 %v1323, 0.0
  %v1522 = vmax.f32 %v1328, 0.0
  %v1523 = vmax.f32 %v1333, 0.0
  %v1524 = vmax.f32 %v1338, 0.0
  %v1525 = vmax.f32 %v1343, 0.0
  %v1526 = vmax.f32 %v1348, 0.0
  %v1527 = vmax.f32 %v1353, 0.0
  %v1528 = vmax.f32 %v1358, 0.0
  %v1529 = vmax.f32 %v1363, 0.0
  %v1530 = vmax.f32 %v1368, 0.0
  %v1531 = vmax.f32 %v1373, 0.0
  %v1532 = vmax.f32 %v1378, 0.0
  %v1533 = vmax.f32 %v1383, 0.0
  %v1534 = vmax.f32 %v1388, 0.0
  %s1535 = scalar_lea.vmem %s0, 1152
  %v1536 = vld [vmem:[%s1535] sm:$0xff]
  %v1537 = vld [vmem:[%s1535 + $0x8] sm:$0xff]
  %v1538 = vld [vmem:[%s1535 + $0x10] sm:$0xff]
  %v1539 = vld [vmem:[%s1535 + $0x18] sm:$0xff]
  %v1540 = vld [vmem:[%s1535 + $0x20] sm:$0xff]
  %v1541 = vld [vmem:[%s1535 + $0x28] sm:$0xff]
  %v1542 = vld [vmem:[%s1535 + $0x30] sm:$0xff]
  %v1543 = vld [vmem:[%s1535 + $0x38] sm:$0xff]
  %v1544 = vld [vmem:[%s1535 + $0x40] sm:$0xff]
  %v1545 = vld [vmem:[%s1535 + $0x48] sm:$0xff]
  %v1546 = vld [vmem:[%s1535 + $0x50] sm:$0xff]
  %v1547 = vld [vmem:[%s1535 + $0x58] sm:$0xff]
  %v1548 = vld [vmem:[%s1535 + $0x60] sm:$0xff]
  %v1549 = vld [vmem:[%s1535 + $0x68] sm:$0xff]
  %v1550 = vld [vmem:[%s1535 + $0x70] sm:$0xff]
  %v1551 = vld [vmem:[%s1535 + $0x78] sm:$0xff]
  %v1552 = vld [vmem:[%s1535 + $0x80] sm:$0xff]
  %v1553 = vld [vmem:[%s1535 + $0x88] sm:$0xff]
  %v1554 = vld [vmem:[%s1535 + $0x90] sm:$0xff]
  %v1555 = vld [vmem:[%s1535 + $0x98] sm:$0xff]
  %v1556 = vld [vmem:[%s1535 + $0xa0] sm:$0xff]
  %v1557 = vld [vmem:[%s1535 + $0xa8] sm:$0xff]
  %v1558 = vld [vmem:[%s1535 + $0xb0] sm:$0xff]
  %v1559 = vld [vmem:[%s1535 + $0xb8] sm:$0xff]
  %v1560 = vld [vmem:[%s1535 + $0xc0] sm:$0xff]
  %v1561 = vld [vmem:[%s1535 + $0xc8] sm:$0xff]
  %v1562 = vld [vmem:[%s1535 + $0xd0] sm:$0xff]
  %v1563 = vld [vmem:[%s1535 + $0xd8] sm:$0xff]
  %v1564 = vld [vmem:[%s1535 + $0xe0] sm:$0xff]
  %v1565 = vld [vmem:[%s1535 + $0xe8] sm:$0xff]
  %v1566 = vld [vmem:[%s1535 + $0xf0] sm:$0xff]
  %v1567 = vld [vmem:[%s1535 + $0xf8] sm:$0xff]
  %v1568 = vld [vmem:[%s1535 + $0x100] sm:$0xff]
  %v1569 = vld [vmem:[%s1535 + $0x108] sm:$0xff]
  %v1570 = vld [vmem:[%s1535 + $0x110] sm:$0xff]
  %v1571 = vld [vmem:[%s1535 + $0x118] sm:$0xff]
  %v1572 = vld [vmem:[%s1535 + $0x120] sm:$0xff]
  %v1573 = vld [vmem:[%s1535 + $0x128] sm:$0xff]
  %v1574 = vld [vmem:[%s1535 + $0x130] sm:$0xff]
  %v1575 = vld [vmem:[%s1535 + $0x138] sm:$0xff]
  %v1576 = vld [vmem:[%s1535 + $0x140] sm:$0xff]
  %v1577 = vld [vmem:[%s1535 + $0x148] sm:$0xff]
  %v1578 = vld [vmem:[%s1535 + $0x150] sm:$0xff]
  %v1579 = vld [vmem:[%s1535 + $0x158] sm:$0xff]
  %v1580 = vld [vmem:[%s1535 + $0x160] sm:$0xff]
  %v1581 = vld [vmem:[%s1535 + $0x168] sm:$0xff]
  %v1582 = vld [vmem:[%s1535 + $0x170] sm:$0xff]
  %v1583 = vld [vmem:[%s1535 + $0x178] sm:$0xff]
  %v1584 = vld [vmem:[%s1535 + $0x180] sm:$0xff]
  %v1585 = vld [vmem:[%s1535 + $0x188] sm:$0xff]
  %v1586 = vld [vmem:[%s1535 + $0x190] sm:$0xff]
  %v1587 = vld [vmem:[%s1535 + $0x198] sm:$0xff]
  %v1588 = vld [vmem:[%s1535 + $0x1a0] sm:$0xff]
  %v1589 = vld [vmem:[%s1535 + $0x1a8] sm:$0xff]
  %v1590 = vld [vmem:[%s1535 + $0x1b0] sm:$0xff]
  %v1591 = vld [vmem:[%s1535 + $0x1b8] sm:$0xff]
  %v1592 = vld [vmem:[%s1535 + $0x1c0] sm:$0xff]
  %v1593 = vld [vmem:[%s1535 + $0x1c8] sm:$0xff]
  %v1594 = vld [vmem:[%s1535 + $0x1d0] sm:$0xff]
  %v1595 = vld [vmem:[%s1535 + $0x1d8] sm:$0xff]
  %v1596 = vld [vmem:[%s1535 + $0x1e0] sm:$0xff]
  %v1597 = vld [vmem:[%s1535 + $0x1e8] sm:$0xff]
  %v1598 = vld [vmem:[%s1535 + $0x1f0] sm:$0xff]
  %v1599 = vld [vmem:[%s1535 + $0x1f8] sm:$0xff]
  %v1600 = vld [vmem:[%s1535 + $0x200] sm:$0xff]
  %v1601 = vld [vmem:[%s1535 + $0x208] sm:$0xff]
  %v1602 = vld [vmem:[%s1535 + $0x210] sm:$0xff]
  %v1603 = vld [vmem:[%s1535 + $0x218] sm:$0xff]
  %v1604 = vld [vmem:[%s1535 + $0x220] sm:$0xff]
  %v1605 = vld [vmem:[%s1535 + $0x228] sm:$0xff]
  %v1606 = vld [vmem:[%s1535 + $0x230] sm:$0xff]
  %v1607 = vld [vmem:[%s1535 + $0x238] sm:$0xff]
  %v1608 = vld [vmem:[%s1535 + $0x240] sm:$0xff]
  %v1609 = vld [vmem:[%s1535 + $0x248] sm:$0xff]
  %v1610 = vld [vmem:[%s1535 + $0x250] sm:$0xff]
  %v1611 = vld [vmem:[%s1535 + $0x258] sm:$0xff]
  %v1612 = vld [vmem:[%s1535 + $0x260] sm:$0xff]
  %v1613 = vld [vmem:[%s1535 + $0x268] sm:$0xff]
  %v1614 = vld [vmem:[%s1535 + $0x270] sm:$0xff]
  %v1615 = vld [vmem:[%s1535 + $0x278] sm:$0xff]
  %v1616 = vld [vmem:[%s1535 + $0x280] sm:$0xff]
  %v1617 = vld [vmem:[%s1535 + $0x288] sm:$0xff]
  %v1618 = vld [vmem:[%s1535 + $0x290] sm:$0xff]
  %v1619 = vld [vmem:[%s1535 + $0x298] sm:$0xff]
  %v1620 = vld [vmem:[%s1535 + $0x2a0] sm:$0xff]
  %v1621 = vld [vmem:[%s1535 + $0x2a8] sm:$0xff]
  %v1622 = vld [vmem:[%s1535 + $0x2b0] sm:$0xff]
  %v1623 = vld [vmem:[%s1535 + $0x2b8] sm:$0xff]
  %v1624 = vld [vmem:[%s1535 + $0x2c0] sm:$0xff]
  %v1625 = vld [vmem:[%s1535 + $0x2c8] sm:$0xff]
  %v1626 = vld [vmem:[%s1535 + $0x2d0] sm:$0xff]
  %v1627 = vld [vmem:[%s1535 + $0x2d8] sm:$0xff]
  %v1628 = vld [vmem:[%s1535 + $0x2e0] sm:$0xff]
  %v1629 = vld [vmem:[%s1535 + $0x2e8] sm:$0xff]
  %v1630 = vld [vmem:[%s1535 + $0x2f0] sm:$0xff]
  %v1631 = vld [vmem:[%s1535 + $0x2f8] sm:$0xff]
  %v1632 = vld [vmem:[%s1535 + $0x300] sm:$0xff]
  %v1633 = vld [vmem:[%s1535 + $0x308] sm:$0xff]
  %v1634 = vld [vmem:[%s1535 + $0x310] sm:$0xff]
  %v1635 = vld [vmem:[%s1535 + $0x318] sm:$0xff]
  %v1636 = vld [vmem:[%s1535 + $0x320] sm:$0xff]
  %v1637 = vld [vmem:[%s1535 + $0x328] sm:$0xff]
  %v1638 = vld [vmem:[%s1535 + $0x330] sm:$0xff]
  %v1639 = vld [vmem:[%s1535 + $0x338] sm:$0xff]
  %v1640 = vld [vmem:[%s1535 + $0x340] sm:$0xff]
  %v1641 = vld [vmem:[%s1535 + $0x348] sm:$0xff]
  %v1642 = vld [vmem:[%s1535 + $0x350] sm:$0xff]
  %v1643 = vld [vmem:[%s1535 + $0x358] sm:$0xff]
  %v1644 = vld [vmem:[%s1535 + $0x360] sm:$0xff]
  %v1645 = vld [vmem:[%s1535 + $0x368] sm:$0xff]
  %v1646 = vld [vmem:[%s1535 + $0x370] sm:$0xff]
  %v1647 = vld [vmem:[%s1535 + $0x378] sm:$0xff]
  %v1648 = vld [vmem:[%s1535 + $0x380] sm:$0xff]
  %v1649 = vld [vmem:[%s1535 + $0x388] sm:$0xff]
  %v1650 = vld [vmem:[%s1535 + $0x390] sm:$0xff]
  %v1651 = vld [vmem:[%s1535 + $0x398] sm:$0xff]
  %v1652 = vld [vmem:[%s1535 + $0x3a0] sm:$0xff]
  %v1653 = vld [vmem:[%s1535 + $0x3a8] sm:$0xff]
  %v1654 = vld [vmem:[%s1535 + $0x3b0] sm:$0xff]
  %v1655 = vld [vmem:[%s1535 + $0x3b8] sm:$0xff]
  %v1656 = vld [vmem:[%s1535 + $0x3c0] sm:$0xff]
  %v1657 = vld [vmem:[%s1535 + $0x3c8] sm:$0xff]
  %v1658 = vld [vmem:[%s1535 + $0x3d0] sm:$0xff]
  %v1659 = vld [vmem:[%s1535 + $0x3d8] sm:$0xff]
  %v1660 = vld [vmem:[%s1535 + $0x3e0] sm:$0xff]
  %v1661 = vld [vmem:[%s1535 + $0x3e8] sm:$0xff]
  %v1662 = vld [vmem:[%s1535 + $0x3f0] sm:$0xff]
  %v1663 = vld [vmem:[%s1535 + $0x3f8] sm:$0xff]
  %v1664 = vld [vmem:[%s1535 + $0x400] sm:$0xff]
  %v1665 = vld [vmem:[%s1535 + $0x408] sm:$0xff]
  %v1666 = vld [vmem:[%s1535 + $0x410] sm:$0xff]
  %v1667 = vld [vmem:[%s1535 + $0x418] sm:$0xff]
  %v1668 = vld [vmem:[%s1535 + $0x420] sm:$0xff]
  %v1669 = vld [vmem:[%s1535 + $0x428] sm:$0xff]
  %v1670 = vld [vmem:[%s1535 + $0x430] sm:$0xff]
  %v1671 = vld [vmem:[%s1535 + $0x438] sm:$0xff]
  %v1672 = vld [vmem:[%s1535 + $0x440] sm:$0xff]
  %v1673 = vld [vmem:[%s1535 + $0x448] sm:$0xff]
  %v1674 = vld [vmem:[%s1535 + $0x450] sm:$0xff]
  %v1675 = vld [vmem:[%s1535 + $0x458] sm:$0xff]
  %v1676 = vld [vmem:[%s1535 + $0x460] sm:$0xff]
  %v1677 = vld [vmem:[%s1535 + $0x468] sm:$0xff]
  %v1678 = vld [vmem:[%s1535 + $0x470] sm:$0xff]
  %v1679 = vld [vmem:[%s1535 + $0x478] sm:$0xff]
  %v1681 = vsel %vm169, %v1536, 0
  %v1684 = vsel %vm169, %v1537, 0
  %v1687 = vsel %vm169, %v1538, 0
  %v1690 = vsel %vm169, %v1539, 0
  %v1693 = vsel %vm169, %v1540, 0
  %v1696 = vsel %vm169, %v1541, 0
  %v1699 = vsel %vm169, %v1542, 0
  %v1702 = vsel %vm169, %v1543, 0
  %v1705 = vsel %vm169, %v1544, 0
  %v1708 = vsel %vm169, %v1545, 0
  %v1711 = vsel %vm169, %v1546, 0
  %v1714 = vsel %vm169, %v1547, 0
  %v1717 = vsel %vm169, %v1548, 0
  %v1720 = vsel %vm169, %v1549, 0
  %v1723 = vsel %vm169, %v1550, 0
  %v1726 = vsel %vm169, %v1551, 0
  %v1729 = vsel %vm169, %v1552, 0
  %v1732 = vsel %vm169, %v1553, 0
  %v1735 = vsel %vm169, %v1554, 0
  %v1738 = vsel %vm169, %v1555, 0
  %v1741 = vsel %vm169, %v1556, 0
  %v1744 = vsel %vm169, %v1557, 0
  %v1747 = vsel %vm169, %v1558, 0
  %v1750 = vsel %vm169, %v1559, 0
  %v1753 = vsel %vm169, %v1560, 0
  %v1756 = vsel %vm169, %v1561, 0
  %v1759 = vsel %vm169, %v1562, 0
  %v1762 = vsel %vm169, %v1563, 0
  %v1765 = vsel %vm169, %v1564, 0
  %v1768 = vsel %vm169, %v1565, 0
  %v1771 = vsel %vm169, %v1566, 0
  %v1774 = vsel %vm169, %v1567, 0
  %v1777 = vsel %vm169, %v1568, 0
  %v1780 = vsel %vm169, %v1569, 0
  %v1783 = vsel %vm169, %v1570, 0
  %v1786 = vsel %vm169, %v1571, 0
  %v1789 = vsel %vm169, %v1572, 0
  %v1792 = vsel %vm169, %v1573, 0
  %v1795 = vsel %vm169, %v1574, 0
  %v1798 = vsel %vm169, %v1575, 0
  %v1801 = vsel %vm169, %v1576, 0
  %v1804 = vsel %vm169, %v1577, 0
  %v1807 = vsel %vm169, %v1578, 0
  %v1810 = vsel %vm169, %v1579, 0
  %v1813 = vsel %vm169, %v1580, 0
  %v1816 = vsel %vm169, %v1581, 0
  %v1819 = vsel %vm169, %v1582, 0
  %v1822 = vsel %vm169, %v1583, 0
  %v1825 = vsel %vm169, %v1584, 0
  %v1828 = vsel %vm169, %v1585, 0
  %v1831 = vsel %vm169, %v1586, 0
  %v1834 = vsel %vm169, %v1587, 0
  %v1837 = vsel %vm169, %v1588, 0
  %v1840 = vsel %vm169, %v1589, 0
  %v1843 = vsel %vm169, %v1590, 0
  %v1846 = vsel %vm169, %v1591, 0
  %v1849 = vsel %vm169, %v1592, 0
  %v1852 = vsel %vm169, %v1593, 0
  %v1855 = vsel %vm169, %v1594, 0
  %v1858 = vsel %vm169, %v1595, 0
  %v1861 = vsel %vm169, %v1596, 0
  %v1864 = vsel %vm169, %v1597, 0
  %v1867 = vsel %vm169, %v1598, 0
  %v1870 = vsel %vm169, %v1599, 0
  %v1873 = vsel %vm169, %v1600, 0
  %v1876 = vsel %vm169, %v1601, 0
  %v1879 = vsel %vm169, %v1602, 0
  %v1882 = vsel %vm169, %v1603, 0
  %v1885 = vsel %vm169, %v1604, 0
  %v1888 = vsel %vm169, %v1605, 0
  %v1891 = vsel %vm169, %v1606, 0
  %v1894 = vsel %vm169, %v1607, 0
  %v1897 = vsel %vm169, %v1608, 0
  %v1900 = vsel %vm169, %v1609, 0
  %v1903 = vsel %vm169, %v1610, 0
  %v1906 = vsel %vm169, %v1611, 0
  %v1909 = vsel %vm169, %v1612, 0
  %v1912 = vsel %vm169, %v1613, 0
  %v1915 = vsel %vm169, %v1614, 0
  %v1918 = vsel %vm169, %v1615, 0
  %v1921 = vsel %vm169, %v1616, 0
  %v1924 = vsel %vm169, %v1617, 0
  %v1927 = vsel %vm169, %v1618, 0
  %v1930 = vsel %vm169, %v1619, 0
  %v1933 = vsel %vm169, %v1620, 0
  %v1936 = vsel %vm169, %v1621, 0
  %v1939 = vsel %vm169, %v1622, 0
  %v1942 = vsel %vm169, %v1623, 0
  %v1945 = vsel %vm169, %v1624, 0
  %v1948 = vsel %vm169, %v1625, 0
  %v1951 = vsel %vm169, %v1626, 0
  %v1954 = vsel %vm169, %v1627, 0
  %v1957 = vsel %vm169, %v1628, 0
  %v1960 = vsel %vm169, %v1629, 0
  %v1963 = vsel %vm169, %v1630, 0
  %v1966 = vsel %vm169, %v1631, 0
  %v1969 = vsel %vm169, %v1632, 0
  %v1972 = vsel %vm169, %v1633, 0
  %v1975 = vsel %vm169, %v1634, 0
  %v1978 = vsel %vm169, %v1635, 0
  %v1981 = vsel %vm169, %v1636, 0
  %v1984 = vsel %vm169, %v1637, 0
  %v1987 = vsel %vm169, %v1638, 0
  %v1990 = vsel %vm169, %v1639, 0
  %v1993 = vsel %vm169, %v1640, 0
  %v1996 = vsel %vm169, %v1641, 0
  %v1999 = vsel %vm169, %v1642, 0
  %v2002 = vsel %vm169, %v1643, 0
  %v2005 = vsel %vm169, %v1644, 0
  %v2008 = vsel %vm169, %v1645, 0
  %v2011 = vsel %vm169, %v1646, 0
  %v2014 = vsel %vm169, %v1647, 0
  %v2017 = vsel %vm169, %v1648, 0
  %v2020 = vsel %vm169, %v1649, 0
  %v2023 = vsel %vm169, %v1650, 0
  %v2026 = vsel %vm169, %v1651, 0
  %v2029 = vsel %vm169, %v1652, 0
  %v2032 = vsel %vm169, %v1653, 0
  %v2035 = vsel %vm169, %v1654, 0
  %v2038 = vsel %vm169, %v1655, 0
  %v2041 = vsel %vm169, %v1656, 0
  %v2044 = vsel %vm169, %v1657, 0
  %v2047 = vsel %vm169, %v1658, 0
  %v2050 = vsel %vm169, %v1659, 0
  %v2053 = vsel %vm169, %v1660, 0
  %v2056 = vsel %vm169, %v1661, 0
  %v2059 = vsel %vm169, %v1662, 0
  %v2062 = vsel %vm169, %v1663, 0
  %v2065 = vsel %vm169, %v1664, 0
  %v2068 = vsel %vm169, %v1665, 0
  %v2071 = vsel %vm169, %v1666, 0
  %v2074 = vsel %vm169, %v1667, 0
  %v2077 = vsel %vm169, %v1668, 0
  %v2080 = vsel %vm169, %v1669, 0
  %v2083 = vsel %vm169, %v1670, 0
  %v2086 = vsel %vm169, %v1671, 0
  %v2089 = vsel %vm169, %v1672, 0
  %v2092 = vsel %vm169, %v1673, 0
  %v2095 = vsel %vm169, %v1674, 0
  %v2098 = vsel %vm169, %v1675, 0
  %v2101 = vsel %vm169, %v1676, 0
  %v2104 = vsel %vm169, %v1677, 0
  %v2107 = vsel %vm169, %v1678, 0
  %v2110 = vsel %vm169, %v1679, 0
  %2112 = vmatprep.subr.mxu0 0.0
  %2113 = vmatpush1.msra.mxu0 %v158
  %2114 = vmatprep.subr.mxu0 0.0
  %2115 = vmatpush1.msra.mxu0 %v159
  %2116 = vmatprep.subr.mxu0 0.0
  %2117 = vmatpush1.msra.mxu0 %v160
  %2118 = vmatprep.subr.mxu0 0.0
  %2119 = vmatpush1.msra.mxu0 %v604
  %2120 = vmatprep.subr.mxu0 0.0
  %2121 = vmatpush1.msra.mxu0 0.0
  %2122 = vmatprep.subr.mxu0 0.0
  %2123 = vmatpush1.msra.mxu0 0.0
  %2124 = vmatprep.subr.mxu0 0.0
  %2125 = vmatpush1.msra.mxu0 0.0
  %2126 = vmatprep.subr.mxu0 0.0
  %2127 = vmatpush1.msra.mxu0 0.0
  %2128 = vmatprep.subr.mxu0 0.0
  %2129 = vmatpush1.msra.mxu0 0.0
  %2130 = vmatprep.subr.mxu0 0.0
  %2131 = vmatpush1.msra.mxu0 0.0
  %2132 = vmatprep.subr.mxu0 0.0
  %2133 = vmatpush1.msra.mxu0 0.0
  %2134 = vmatprep.subr.mxu0 0.0
  %2135 = vmatpush1.msra.mxu0 0.0
  %2136 = vmatprep.subr.mxu0 0.0
  %2137 = vmatpush1.msra.mxu0 0.0
  %2138 = vmatprep.subr.mxu0 0.0
  %2139 = vmatpush1.msra.mxu0 0.0
  %2140 = vmatprep.subr.mxu0 0.0
  %2141 = vmatpush1.msra.mxu0 0.0
  %2142 = vmatprep.subr.mxu0 0.0
  %2143 = vmatpush1.msra.mxu0 0.0
  %2144 = vmatprep.subr.mxu0 0.0
  %2145 = vmatpush1.msra.mxu0 0.0
  %2146 = vmatprep.subr.mxu0 0.0
  %2147 = vmatpush1.msra.mxu0 0.0
  %2148 = vmatprep.subr.mxu0 0.0
  %2149 = vmatpush1.msra.mxu0 0.0
  %2150 = vmatprep.subr.mxu0 0.0
  %2151 = vmatpush1.msra.mxu0 0.0
  %2152 = vmatprep.subr.mxu0 0.0
  %2153 = vmatpush1.msra.mxu0 0.0
  %2154 = vmatprep.subr.mxu0 0.0
  %2155 = vmatpush1.msra.mxu0 0.0
  %2156 = vmatprep.subr.mxu0 0.0
  %2157 = vmatpush1.msra.mxu0 0.0
  %2158 = vmatprep.subr.mxu0 0.0
  %2159 = vmatpush1.msra.mxu0 0.0
  %2160 = vmatprep.subr.mxu0 0.0
  %2161 = vmatpush1.msra.mxu0 0.0
  %2162 = vmatprep.subr.mxu0 0.0
  %2163 = vmatpush1.msra.mxu0 0.0
  %2164 = vmatprep.subr.mxu0 0.0
  %2165 = vmatpush1.msra.mxu0 0.0
  %2166 = vmatprep.subr.mxu0 0.0
  %2167 = vmatpush1.msra.mxu0 0.0
  %2168 = vmatprep.subr.mxu0 0.0
  %2169 = vmatpush1.msra.mxu0 0.0
  %2170 = vmatprep.subr.mxu0 0.0
  %2171 = vmatpush1.msra.mxu0 0.0
  %2172 = vmatprep.subr.mxu0 0.0
  %2173 = vmatpush1.msra.mxu0 0.0
  %2174 = vmatprep.subr.mxu0 0.0
  %2175 = vmatpush1.msra.mxu0 0.0
  %2176 = vmatprep.mubr.f32.mxu0 0.0
  %2177 = vmatmul.mubr.f32.gmra.mrb[0].mxu0 %v1681
  %v2178 = vpop.f32.mrb[0].mxu0
  %v2179 = vadd.f32 %v167, %v2178
  %v2180 = vpop.f32.mrb[0].mxu0
  %2181 = vmatprep.mubr.f32.mxu0 0.0
  %2182 = vmatmul.mubr.f32.gmra.mrb[0].mxu0 %v1684
  %v2183 = vpop.f32.mrb[0].mxu0
  %v2184 = vadd.f32 %v167, %v2183
  %v2185 = vpop.f32.mrb[0].mxu0
  %2186 = vmatprep.mubr.f32.mxu0 0.0
  %2187 = vmatmul.mubr.f32.gmra.mrb[0].mxu0 %v1687
  %v2188 = vpop.f32.mrb[0].mxu0
  %v2189 = vadd.f32 %v167, %v2188
  %v2190 = vpop.f32.mrb[0].mxu0
  %2191 = vmatprep.mubr.f32.mxu0 0.0
  %2192 = vmatmul.mubr.f32.gmra.mrb[0].mxu0 %v1690
  %v2193 = vpop.f32.mrb[0].mxu0
  %v2194 = vadd.f32 %v167, %v2193
  %v2195 = vpop.f32.mrb[0].mxu0
  %2196 = vmatprep.mubr.f32.mxu0 0.0
  %2197 = vmatmul.mubr.f32.gmra.mrb[0].mxu0 %v1693
  %v2198 = vpop.f32.mrb[0].mxu0
  %v2199 = vadd.f32 %v167, %v2198
  %v2200 = vpop.f32.mrb[0].mxu0
  %2201 = vmatprep.mubr.f32.mxu0 0.0
  %2202 = vmatmul.mubr.f32.gmra.mrb[0].mxu0 %v1696
  %v2203 = vpop.f32.mrb[0].mxu0
  %v2204 = vadd.f32 %v167, %v2203
  %v2205 = vpop.f32.mrb[0].mxu0
  %2206 = vmatprep.mubr.f32.mxu0 0.0
  %2207 = vmatmul.mubr.f32.gmra.mrb[0].mxu0 %v1699
  %v2208 = vpop.f32.mrb[0].mxu0
  %v2209 = vadd.f32 %v167, %v2208
  %v2210 = vpop.f32.mrb[0].mxu0
  %2211 = vmatprep.mubr.f32.mxu0 0.0
  %2212 = vmatmul.mubr.f32.gmra.mrb[0].mxu0 %v1702
  %v2213 = vpop.f32.mrb[0].mxu0
  %v2214 = vadd.f32 %v167, %v2213
  %v2215 = vpop.f32.mrb[0].mxu0
  %2216 = vmatprep.mubr.f32.mxu0 0.0
  %2217 = vmatmul.mubr.f32.gmra.mrb[0].mxu0 %v1705
  %v2218 = vpop.f32.mrb[0].mxu0
  %v2219 = vadd.f32 %v167, %v2218
  %v2220 = vpop.f32.mrb[0].mxu0
  %2221 = vmatprep.mubr.f32.mxu0 0.0
  %2222 = vmatmul.mubr.f32.gmra.mrb[0].mxu0 %v1708
  %v2223 = vpop.f32.mrb[0].mxu0
  %v2224 = vadd.f32 %v167, %v2223
  %v2225 = vpop.f32.mrb[0].mxu0
  %2226 = vmatprep.mubr.f32.mxu0 0.0
  %2227 = vmatmul.mubr.f32.gmra.mrb[0].mxu0 %v1711
  %v2228 = vpop.f32.mrb[0].mxu0
  %v2229 = vadd.f32 %v167, %v2228
  %v2230 = vpop.f32.mrb[0].mxu0
  %2231 = vmatprep.mubr.f32.mxu0 0.0
  %2232 = vmatmul.mubr.f32.gmra.mrb[0].mxu0 %v1714
  %v2233 = vpop.f32.mrb[0].mxu0
  %v2234 = vadd.f32 %v167, %v2233
  %v2235 = vpop.f32.mrb[0].mxu0
  %2236 = vmatprep.mubr.f32.mxu0 0.0
  %2237 = vmatmul.mubr.f32.gmra.mrb[0].mxu0 %v1717
  %v2238 = vpop.f32.mrb[0].mxu0
  %v2239 = vadd.f32 %v167, %v2238
  %v2240 = vpop.f32.mrb[0].mxu0
  %2241 = vmatprep.mubr.f32.mxu0 0.0
  %2242 = vmatmul.mubr.f32.gmra.mrb[0].mxu0 %v1720
  %v2243 = vpop.f32.mrb[0].mxu0
  %v2244 = vadd.f32 %v167, %v2243
  %v2245 = vpop.f32.mrb[0].mxu0
  %2246 = vmatprep.mubr.f32.mxu0 0.0
  %2247 = vmatmul.mubr.f32.gmra.mrb[0].mxu0 %v1723
  %v2248 = vpop.f32.mrb[0].mxu0
  %v2249 = vadd.f32 %v167, %v2248
  %v2250 = vpop.f32.mrb[0].mxu0
  %2251 = vmatprep.mubr.f32.mxu0 0.0
  %2252 = vmatmul.mubr.f32.gmra.mrb[0].mxu0 %v1726
  %v2253 = vpop.f32.mrb[0].mxu0
  %v2254 = vadd.f32 %v167, %v2253
  %v2255 = vpop.f32.mrb[0].mxu0
  %2256 = vmatprep.mubr.f32.mxu0 0.0
  %2257 = vmatmul.mubr.f32.gmra.mrb[0].mxu0 %v1729
  %v2258 = vpop.f32.mrb[0].mxu0
  %v2259 = vadd.f32 %v167, %v2258
  %v2260 = vpop.f32.mrb[0].mxu0
  %2261 = vmatprep.mubr.f32.mxu0 0.0
  %2262 = vmatmul.mubr.f32.gmra.mrb[0].mxu0 %v1732
  %v2263 = vpop.f32.mrb[0].mxu0
  %v2264 = vadd.f32 %v167, %v2263
  %v2265 = vpop.f32.mrb[0].mxu0
  %2266 = vmatprep.mubr.f32.mxu0 0.0
  %2267 = vmatmul.mubr.f32.gmra.mrb[0].mxu0 %v1735
  %v2268 = vpop.f32.mrb[0].mxu0
  %v2269 = vadd.f32 %v167, %v2268
  %v2270 = vpop.f32.mrb[0].mxu0
  %2271 = vmatprep.mubr.f32.mxu0 0.0
  %2272 = vmatmul.mubr.f32.gmra.mrb[0].mxu0 %v1738
  %v2273 = vpop.f32.mrb[0].mxu0
  %v2274 = vadd.f32 %v167, %v2273
  %v2275 = vpop.f32.mrb[0].mxu0
  %2276 = vmatprep.mubr.f32.mxu0 0.0
  %2277 = vmatmul.mubr.f32.gmra.mrb[0].mxu0 %v1741
  %v2278 = vpop.f32.mrb[0].mxu0
  %v2279 = vadd.f32 %v167, %v2278
  %v2280 = vpop.f32.mrb[0].mxu0
  %2281 = vmatprep.mubr.f32.mxu0 0.0
  %2282 = vmatmul.mubr.f32.gmra.mrb[0].mxu0 %v1744
  %v2283 = vpop.f32.mrb[0].mxu0
  %v2284 = vadd.f32 %v167, %v2283
  %v2285 = vpop.f32.mrb[0].mxu0
  %2286 = vmatprep.mubr.f32.mxu0 0.0
  %2287 = vmatmul.mubr.f32.gmra.mrb[0].mxu0 %v1747
  %v2288 = vpop.f32.mrb[0].mxu0
  %v2289 = vadd.f32 %v167, %v2288
  %v2290 = vpop.f32.mrb[0].mxu0
  %2291 = vmatprep.mubr.f32.mxu0 0.0
  %2292 = vmatmul.mubr.f32.gmra.mrb[0].mxu0 %v1750
  %v2293 = vpop.f32.mrb[0].mxu0
  %v2294 = vadd.f32 %v167, %v2293
  %v2295 = vpop.f32.mrb[0].mxu0
  %2296 = vmatprep.mubr.f32.mxu0 0.0
  %2297 = vmatmul.mubr.f32.gmra.mrb[0].mxu0 %v1753
  %v2298 = vpop.f32.mrb[0].mxu0
  %v2299 = vadd.f32 %v167, %v2298
  %v2300 = vpop.f32.mrb[0].mxu0
  %2301 = vmatprep.mubr.f32.mxu0 0.0
  %2302 = vmatmul.mubr.f32.gmra.mrb[0].mxu0 %v1756
  %v2303 = vpop.f32.mrb[0].mxu0
  %v2304 = vadd.f32 %v167, %v2303
  %v2305 = vpop.f32.mrb[0].mxu0
  %2306 = vmatprep.mubr.f32.mxu0 0.0
  %2307 = vmatmul.mubr.f32.gmra.mrb[0].mxu0 %v1759
  %v2308 = vpop.f32.mrb[0].mxu0
  %v2309 = vadd.f32 %v167, %v2308
  %v2310 = vpop.f32.mrb[0].mxu0
  %2311 = vmatprep.mubr.f32.mxu0 0.0
  %2312 = vmatmul.mubr.f32.gmra.mrb[0].mxu0 %v1762
  %v2313 = vpop.f32.mrb[0].mxu0
  %v2314 = vadd.f32 %v167, %v2313
  %v2315 = vpop.f32.mrb[0].mxu0
  %2316 = vmatprep.mubr.f32.mxu0 0.0
  %2317 = vmatmul.mubr.f32.gmra.mrb[0].mxu0 %v1765
  %v2318 = vpop.f32.mrb[0].mxu0
  %v2319 = vadd.f32 %v167, %v2318
  %v2320 = vpop.f32.mrb[0].mxu0
  %2321 = vmatprep.mubr.f32.mxu0 0.0
  %2322 = vmatmul.mubr.f32.gmra.mrb[0].mxu0 %v1768
  %v2323 = vpop.f32.mrb[0].mxu0
  %v2324 = vadd.f32 %v167, %v2323
  %v2325 = vpop.f32.mrb[0].mxu0
  %2326 = vmatprep.mubr.f32.mxu0 0.0
  %2327 = vmatmul.mubr.f32.gmra.mrb[0].mxu0 %v1771
  %v2328 = vpop.f32.mrb[0].mxu0
  %v2329 = vadd.f32 %v167, %v2328
  %v2330 = vpop.f32.mrb[0].mxu0
  %2331 = vmatprep.mubr.f32.mxu0 0.0
  %2332 = vmatmul.mubr.f32.gmra.mrb[0].mxu0 %v1774
  %v2333 = vpop.f32.mrb[0].mxu0
  %v2334 = vadd.f32 %v167, %v2333
  %v2335 = vpop.f32.mrb[0].mxu0
  %2336 = vmatprep.mubr.f32.mxu0 0.0
  %2337 = vmatmul.mubr.f32.gmra.mrb[0].mxu0 %v1777
  %v2338 = vpop.f32.mrb[0].mxu0
  %v2339 = vadd.f32 %v167, %v2338
  %v2340 = vpop.f32.mrb[0].mxu0
  %2341 = vmatprep.mubr.f32.mxu0 0.0
  %2342 = vmatmul.mubr.f32.gmra.mrb[0].mxu0 %v1780
  %v2343 = vpop.f32.mrb[0].mxu0
  %v2344 = vadd.f32 %v167, %v2343
  %v2345 = vpop.f32.mrb[0].mxu0
  %2346 = vmatprep.mubr.f32.mxu0 0.0
  %2347 = vmatmul.mubr.f32.gmra.mrb[0].mxu0 %v1783
  %v2348 = vpop.f32.mrb[0].mxu0
  %v2349 = vadd.f32 %v167, %v2348
  %v2350 = vpop.f32.mrb[0].mxu0
  %2351 = vmatprep.mubr.f32.mxu0 0.0
  %2352 = vmatmul.mubr.f32.gmra.mrb[0].mxu0 %v1786
  %v2353 = vpop.f32.mrb[0].mxu0
  %v2354 = vadd.f32 %v167, %v2353
  %v2355 = vpop.f32.mrb[0].mxu0
  %2356 = vmatprep.mubr.f32.mxu0 0.0
  %2357 = vmatmul.mubr.f32.gmra.mrb[0].mxu0 %v1789
  %v2358 = vpop.f32.mrb[0].mxu0
  %v2359 = vadd.f32 %v167, %v2358
  %v2360 = vpop.f32.mrb[0].mxu0
  %2361 = vmatprep.mubr.f32.mxu0 0.0
  %2362 = vmatmul.mubr.f32.gmra.mrb[0].mxu0 %v1792
  %v2363 = vpop.f32.mrb[0].mxu0
  %v2364 = vadd.f32 %v167, %v2363
  %v2365 = vpop.f32.mrb[0].mxu0
  %2366 = vmatprep.mubr.f32.mxu0 0.0
  %2367 = vmatmul.mubr.f32.gmra.mrb[0].mxu0 %v1795
  %v2368 = vpop.f32.mrb[0].mxu0
  %v2369 = vadd.f32 %v167, %v2368
  %v2370 = vpop.f32.mrb[0].mxu0
  %2371 = vmatprep.mubr.f32.mxu0 0.0
  %2372 = vmatmul.mubr.f32.gmra.mrb[0].mxu0 %v1798
  %v2373 = vpop.f32.mrb[0].mxu0
  %v2374 = vadd.f32 %v167, %v2373
  %v2375 = vpop.f32.mrb[0].mxu0
  %2376 = vmatprep.mubr.f32.mxu0 0.0
  %2377 = vmatmul.mubr.f32.gmra.mrb[0].mxu0 %v1801
  %v2378 = vpop.f32.mrb[0].mxu0
  %v2379 = vadd.f32 %v167, %v2378
  %v2380 = vpop.f32.mrb[0].mxu0
  %2381 = vmatprep.mubr.f32.mxu0 0.0
  %2382 = vmatmul.mubr.f32.gmra.mrb[0].mxu0 %v1804
  %v2383 = vpop.f32.mrb[0].mxu0
  %v2384 = vadd.f32 %v167, %v2383
  %v2385 = vpop.f32.mrb[0].mxu0
  %2386 = vmatprep.mubr.f32.mxu0 0.0
  %2387 = vmatmul.mubr.f32.gmra.mrb[0].mxu0 %v1807
  %v2388 = vpop.f32.mrb[0].mxu0
  %v2389 = vadd.f32 %v167, %v2388
  %v2390 = vpop.f32.mrb[0].mxu0
  %2391 = vmatprep.mubr.f32.mxu0 0.0
  %2392 = vmatmul.mubr.f32.gmra.mrb[0].mxu0 %v1810
  %v2393 = vpop.f32.mrb[0].mxu0
  %v2394 = vadd.f32 %v167, %v2393
  %v2395 = vpop.f32.mrb[0].mxu0
  %2396 = vmatprep.mubr.f32.mxu0 0.0
  %2397 = vmatmul.mubr.f32.gmra.mrb[0].mxu0 %v1813
  %v2398 = vpop.f32.mrb[0].mxu0
  %v2399 = vadd.f32 %v167, %v2398
  %v2400 = vpop.f32.mrb[0].mxu0
  %2401 = vmatprep.mubr.f32.mxu0 0.0
  %2402 = vmatmul.mubr.f32.gmra.mrb[0].mxu0 %v1816
  %v2403 = vpop.f32.mrb[0].mxu0
  %v2404 = vadd.f32 %v167, %v2403
  %v2405 = vpop.f32.mrb[0].mxu0
  %2406 = vmatprep.mubr.f32.mxu0 0.0
  %2407 = vmatmul.mubr.f32.gmra.mrb[0].mxu0 %v1819
  %v2408 = vpop.f32.mrb[0].mxu0
  %v2409 = vadd.f32 %v167, %v2408
  %v2410 = vpop.f32.mrb[0].mxu0
  %2411 = vmatprep.mubr.f32.mxu0 0.0
  %2412 = vmatmul.mubr.f32.gmra.mrb[0].mxu0 %v1822
  %v2413 = vpop.f32.mrb[0].mxu0
  %v2414 = vadd.f32 %v167, %v2413
  %v2415 = vpop.f32.mrb[0].mxu0
  %2416 = vmatprep.mubr.f32.mxu0 0.0
  %2417 = vmatmul.mubr.f32.gmra.mrb[0].mxu0 %v1825
  %v2418 = vpop.f32.mrb[0].mxu0
  %v2419 = vadd.f32 %v167, %v2418
  %v2420 = vpop.f32.mrb[0].mxu0
  %2421 = vmatprep.mubr.f32.mxu0 0.0
  %2422 = vmatmul.mubr.f32.gmra.mrb[0].mxu0 %v1828
  %v2423 = vpop.f32.mrb[0].mxu0
  %v2424 = vadd.f32 %v167, %v2423
  %v2425 = vpop.f32.mrb[0].mxu0
  %2426 = vmatprep.mubr.f32.mxu0 0.0
  %2427 = vmatmul.mubr.f32.gmra.mrb[0].mxu0 %v1831
  %v2428 = vpop.f32.mrb[0].mxu0
  %v2429 = vadd.f32 %v167, %v2428
  %v2430 = vpop.f32.mrb[0].mxu0
  %2431 = vmatprep.mubr.f32.mxu0 0.0
  %2432 = vmatmul.mubr.f32.gmra.mrb[0].mxu0 %v1834
  %v2433 = vpop.f32.mrb[0].mxu0
  %v2434 = vadd.f32 %v167, %v2433
  %v2435 = vpop.f32.mrb[0].mxu0
  %2436 = vmatprep.mubr.f32.mxu0 0.0
  %2437 = vmatmul.mubr.f32.gmra.mrb[0].mxu0 %v1837
  %v2438 = vpop.f32.mrb[0].mxu0
  %v2439 = vadd.f32 %v167, %v2438
  %v2440 = vpop.f32.mrb[0].mxu0
  %2441 = vmatprep.mubr.f32.mxu0 0.0
  %2442 = vmatmul.mubr.f32.gmra.mrb[0].mxu0 %v1840
  %v2443 = vpop.f32.mrb[0].mxu0
  %v2444 = vadd.f32 %v167, %v2443
  %v2445 = vpop.f32.mrb[0].mxu0
  %2446 = vmatprep.mubr.f32.mxu0 0.0
  %2447 = vmatmul.mubr.f32.gmra.mrb[0].mxu0 %v1843
  %v2448 = vpop.f32.mrb[0].mxu0
  %v2449 = vadd.f32 %v167, %v2448
  %v2450 = vpop.f32.mrb[0].mxu0
  %2451 = vmatprep.mubr.f32.mxu0 0.0
  %2452 = vmatmul.mubr.f32.gmra.mrb[0].mxu0 %v1846
  %v2453 = vpop.f32.mrb[0].mxu0
  %v2454 = vadd.f32 %v167, %v2453
  %v2455 = vpop.f32.mrb[0].mxu0
  %2456 = vmatprep.mubr.f32.mxu0 0.0
  %2457 = vmatmul.mubr.f32.gmra.mrb[0].mxu0 %v1849
  %v2458 = vpop.f32.mrb[0].mxu0
  %v2459 = vadd.f32 %v167, %v2458
  %v2460 = vpop.f32.mrb[0].mxu0
  %2461 = vmatprep.mubr.f32.mxu0 0.0
  %2462 = vmatmul.mubr.f32.gmra.mrb[0].mxu0 %v1852
  %v2463 = vpop.f32.mrb[0].mxu0
  %v2464 = vadd.f32 %v167, %v2463
  %v2465 = vpop.f32.mrb[0].mxu0
  %2466 = vmatprep.mubr.f32.mxu0 0.0
  %2467 = vmatmul.mubr.f32.gmra.mrb[0].mxu0 %v1855
  %v2468 = vpop.f32.mrb[0].mxu0
  %v2469 = vadd.f32 %v167, %v2468
  %v2470 = vpop.f32.mrb[0].mxu0
  %2471 = vmatprep.mubr.f32.mxu0 0.0
  %2472 = vmatmul.mubr.f32.gmra.mrb[0].mxu0 %v1858
  %v2473 = vpop.f32.mrb[0].mxu0
  %v2474 = vadd.f32 %v167, %v2473
  %v2475 = vpop.f32.mrb[0].mxu0
  %2476 = vmatprep.mubr.f32.mxu0 0.0
  %2477 = vmatmul.mubr.f32.gmra.mrb[0].mxu0 %v1861
  %v2478 = vpop.f32.mrb[0].mxu0
  %v2479 = vadd.f32 %v167, %v2478
  %v2480 = vpop.f32.mrb[0].mxu0
  %2481 = vmatprep.mubr.f32.mxu0 0.0
  %2482 = vmatmul.mubr.f32.gmra.mrb[0].mxu0 %v1864
  %v2483 = vpop.f32.mrb[0].mxu0
  %v2484 = vadd.f32 %v167, %v2483
  %v2485 = vpop.f32.mrb[0].mxu0
  %2486 = vmatprep.mubr.f32.mxu0 0.0
  %2487 = vmatmul.mubr.f32.gmra.mrb[0].mxu0 %v1867
  %v2488 = vpop.f32.mrb[0].mxu0
  %v2489 = vadd.f32 %v167, %v2488
  %v2490 = vpop.f32.mrb[0].mxu0
  %2491 = vmatprep.mubr.f32.mxu0 0.0
  %2492 = vmatmul.mubr.f32.gmra.mrb[0].mxu0 %v1870
  %v2493 = vpop.f32.mrb[0].mxu0
  %v2494 = vadd.f32 %v167, %v2493
  %v2495 = vpop.f32.mrb[0].mxu0
  %2496 = vmatprep.mubr.f32.mxu0 0.0
  %2497 = vmatmul.mubr.f32.gmra.mrb[0].mxu0 %v1873
  %v2498 = vpop.f32.mrb[0].mxu0
  %v2499 = vadd.f32 %v167, %v2498
  %v2500 = vpop.f32.mrb[0].mxu0
  %2501 = vmatprep.mubr.f32.mxu0 0.0
  %2502 = vmatmul.mubr.f32.gmra.mrb[0].mxu0 %v1876
  %v2503 = vpop.f32.mrb[0].mxu0
  %v2504 = vadd.f32 %v167, %v2503
  %v2505 = vpop.f32.mrb[0].mxu0
  %2506 = vmatprep.mubr.f32.mxu0 0.0
  %2507 = vmatmul.mubr.f32.gmra.mrb[0].mxu0 %v1879
  %v2508 = vpop.f32.mrb[0].mxu0
  %v2509 = vadd.f32 %v167, %v2508
  %v2510 = vpop.f32.mrb[0].mxu0
  %2511 = vmatprep.mubr.f32.mxu0 0.0
  %2512 = vmatmul.mubr.f32.gmra.mrb[0].mxu0 %v1882
  %v2513 = vpop.f32.mrb[0].mxu0
  %v2514 = vadd.f32 %v167, %v2513
  %v2515 = vpop.f32.mrb[0].mxu0
  %2516 = vmatprep.mubr.f32.mxu0 0.0
  %2517 = vmatmul.mubr.f32.gmra.mrb[0].mxu0 %v1885
  %v2518 = vpop.f32.mrb[0].mxu0
  %v2519 = vadd.f32 %v167, %v2518
  %v2520 = vpop.f32.mrb[0].mxu0
  %2521 = vmatprep.mubr.f32.mxu0 0.0
  %2522 = vmatmul.mubr.f32.gmra.mrb[0].mxu0 %v1888
  %v2523 = vpop.f32.mrb[0].mxu0
  %v2524 = vadd.f32 %v167, %v2523
  %v2525 = vpop.f32.mrb[0].mxu0
  %2526 = vmatprep.mubr.f32.mxu0 0.0
  %2527 = vmatmul.mubr.f32.gmra.mrb[0].mxu0 %v1891
  %v2528 = vpop.f32.mrb[0].mxu0
  %v2529 = vadd.f32 %v167, %v2528
  %v2530 = vpop.f32.mrb[0].mxu0
  %2531 = vmatprep.mubr.f32.mxu0 0.0
  %2532 = vmatmul.mubr.f32.gmra.mrb[0].mxu0 %v1894
  %v2533 = vpop.f32.mrb[0].mxu0
  %v2534 = vadd.f32 %v167, %v2533
  %v2535 = vpop.f32.mrb[0].mxu0
  %2536 = vmatprep.mubr.f32.mxu0 0.0
  %2537 = vmatmul.mubr.f32.gmra.mrb[0].mxu0 %v1897
  %v2538 = vpop.f32.mrb[0].mxu0
  %v2539 = vadd.f32 %v167, %v2538
  %v2540 = vpop.f32.mrb[0].mxu0
  %2541 = vmatprep.mubr.f32.mxu0 0.0
  %2542 = vmatmul.mubr.f32.gmra.mrb[0].mxu0 %v1900
  %v2543 = vpop.f32.mrb[0].mxu0
  %v2544 = vadd.f32 %v167, %v2543
  %v2545 = vpop.f32.mrb[0].mxu0
  %2546 = vmatprep.mubr.f32.mxu0 0.0
  %2547 = vmatmul.mubr.f32.gmra.mrb[0].mxu0 %v1903
  %v2548 = vpop.f32.mrb[0].mxu0
  %v2549 = vadd.f32 %v167, %v2548
  %v2550 = vpop.f32.mrb[0].mxu0
  %2551 = vmatprep.mubr.f32.mxu0 0.0
  %2552 = vmatmul.mubr.f32.gmra.mrb[0].mxu0 %v1906
  %v2553 = vpop.f32.mrb[0].mxu0
  %v2554 = vadd.f32 %v167, %v2553
  %v2555 = vpop.f32.mrb[0].mxu0
  %2556 = vmatprep.mubr.f32.mxu0 0.0
  %2557 = vmatmul.mubr.f32.gmra.mrb[0].mxu0 %v1909
  %v2558 = vpop.f32.mrb[0].mxu0
  %v2559 = vadd.f32 %v167, %v2558
  %v2560 = vpop.f32.mrb[0].mxu0
  %2561 = vmatprep.mubr.f32.mxu0 0.0
  %2562 = vmatmul.mubr.f32.gmra.mrb[0].mxu0 %v1912
  %v2563 = vpop.f32.mrb[0].mxu0
  %v2564 = vadd.f32 %v167, %v2563
  %v2565 = vpop.f32.mrb[0].mxu0
  %2566 = vmatprep.mubr.f32.mxu0 0.0
  %2567 = vmatmul.mubr.f32.gmra.mrb[0].mxu0 %v1915
  %v2568 = vpop.f32.mrb[0].mxu0
  %v2569 = vadd.f32 %v167, %v2568
  %v2570 = vpop.f32.mrb[0].mxu0
  %2571 = vmatprep.mubr.f32.mxu0 0.0
  %2572 = vmatmul.mubr.f32.gmra.mrb[0].mxu0 %v1918
  %v2573 = vpop.f32.mrb[0].mxu0
  %v2574 = vadd.f32 %v167, %v2573
  %v2575 = vpop.f32.mrb[0].mxu0
  %2576 = vmatprep.mubr.f32.mxu0 0.0
  %2577 = vmatmul.mubr.f32.gmra.mrb[0].mxu0 %v1921
  %v2578 = vpop.f32.mrb[0].mxu0
  %v2579 = vadd.f32 %v167, %v2578
  %v2580 = vpop.f32.mrb[0].mxu0
  %2581 = vmatprep.mubr.f32.mxu0 0.0
  %2582 = vmatmul.mubr.f32.gmra.mrb[0].mxu0 %v1924
  %v2583 = vpop.f32.mrb[0].mxu0
  %v2584 = vadd.f32 %v167, %v2583
  %v2585 = vpop.f32.mrb[0].mxu0
  %2586 = vmatprep.mubr.f32.mxu0 0.0
  %2587 = vmatmul.mubr.f32.gmra.mrb[0].mxu0 %v1927
  %v2588 = vpop.f32.mrb[0].mxu0
  %v2589 = vadd.f32 %v167, %v2588
  %v2590 = vpop.f32.mrb[0].mxu0
  %2591 = vmatprep.mubr.f32.mxu0 0.0
  %2592 = vmatmul.mubr.f32.gmra.mrb[0].mxu0 %v1930
  %v2593 = vpop.f32.mrb[0].mxu0
  %v2594 = vadd.f32 %v167, %v2593
  %v2595 = vpop.f32.mrb[0].mxu0
  %2596 = vmatprep.mubr.f32.mxu0 0.0
  %2597 = vmatmul.mubr.f32.gmra.mrb[0].mxu0 %v1933
  %v2598 = vpop.f32.mrb[0].mxu0
  %v2599 = vadd.f32 %v167, %v2598
  %v2600 = vpop.f32.mrb[0].mxu0
  %2601 = vmatprep.mubr.f32.mxu0 0.0
  %2602 = vmatmul.mubr.f32.gmra.mrb[0].mxu0 %v1936
  %v2603 = vpop.f32.mrb[0].mxu0
  %v2604 = vadd.f32 %v167, %v2603
  %v2605 = vpop.f32.mrb[0].mxu0
  %2606 = vmatprep.mubr.f32.mxu0 0.0
  %2607 = vmatmul.mubr.f32.gmra.mrb[0].mxu0 %v1939
  %v2608 = vpop.f32.mrb[0].mxu0
  %v2609 = vadd.f32 %v167, %v2608
  %v2610 = vpop.f32.mrb[0].mxu0
  %2611 = vmatprep.mubr.f32.mxu0 0.0
  %2612 = vmatmul.mubr.f32.gmra.mrb[0].mxu0 %v1942
  %v2613 = vpop.f32.mrb[0].mxu0
  %v2614 = vadd.f32 %v167, %v2613
  %v2615 = vpop.f32.mrb[0].mxu0
  %2616 = vmatprep.mubr.f32.mxu0 0.0
  %2617 = vmatmul.mubr.f32.gmra.mrb[0].mxu0 %v1945
  %v2618 = vpop.f32.mrb[0].mxu0
  %v2619 = vadd.f32 %v167, %v2618
  %v2620 = vpop.f32.mrb[0].mxu0
  %2621 = vmatprep.mubr.f32.mxu0 0.0
  %2622 = vmatmul.mubr.f32.gmra.mrb[0].mxu0 %v1948
  %v2623 = vpop.f32.mrb[0].mxu0
  %v2624 = vadd.f32 %v167, %v2623
  %v2625 = vpop.f32.mrb[0].mxu0
  %2626 = vmatprep.mubr.f32.mxu0 0.0
  %2627 = vmatmul.mubr.f32.gmra.mrb[0].mxu0 %v1951
  %v2628 = vpop.f32.mrb[0].mxu0
  %v2629 = vadd.f32 %v167, %v2628
  %v2630 = vpop.f32.mrb[0].mxu0
  %2631 = vmatprep.mubr.f32.mxu0 0.0
  %2632 = vmatmul.mubr.f32.gmra.mrb[0].mxu0 %v1954
  %v2633 = vpop.f32.mrb[0].mxu0
  %v2634 = vadd.f32 %v167, %v2633
  %v2635 = vpop.f32.mrb[0].mxu0
  %2636 = vmatprep.mubr.f32.mxu0 0.0
  %2637 = vmatmul.mubr.f32.gmra.mrb[0].mxu0 %v1957
  %v2638 = vpop.f32.mrb[0].mxu0
  %v2639 = vadd.f32 %v167, %v2638
  %v2640 = vpop.f32.mrb[0].mxu0
  %2641 = vmatprep.mubr.f32.mxu0 0.0
  %2642 = vmatmul.mubr.f32.gmra.mrb[0].mxu0 %v1960
  %v2643 = vpop.f32.mrb[0].mxu0
  %v2644 = vadd.f32 %v167, %v2643
  %v2645 = vpop.f32.mrb[0].mxu0
  %2646 = vmatprep.mubr.f32.mxu0 0.0
  %2647 = vmatmul.mubr.f32.gmra.mrb[0].mxu0 %v1963
  %v2648 = vpop.f32.mrb[0].mxu0
  %v2649 = vadd.f32 %v167, %v2648
  %v2650 = vpop.f32.mrb[0].mxu0
  %2651 = vmatprep.mubr.f32.mxu0 0.0
  %2652 = vmatmul.mubr.f32.gmra.mrb[0].mxu0 %v1966
  %v2653 = vpop.f32.mrb[0].mxu0
  %v2654 = vadd.f32 %v167, %v2653
  %v2655 = vpop.f32.mrb[0].mxu0
  %2656 = vmatprep.mubr.f32.mxu0 0.0
  %2657 = vmatmul.mubr.f32.gmra.mrb[0].mxu0 %v1969
  %v2658 = vpop.f32.mrb[0].mxu0
  %v2659 = vadd.f32 %v167, %v2658
  %v2660 = vpop.f32.mrb[0].mxu0
  %2661 = vmatprep.mubr.f32.mxu0 0.0
  %2662 = vmatmul.mubr.f32.gmra.mrb[0].mxu0 %v1972
  %v2663 = vpop.f32.mrb[0].mxu0
  %v2664 = vadd.f32 %v167, %v2663
  %v2665 = vpop.f32.mrb[0].mxu0
  %2666 = vmatprep.mubr.f32.mxu0 0.0
  %2667 = vmatmul.mubr.f32.gmra.mrb[0].mxu0 %v1975
  %v2668 = vpop.f32.mrb[0].mxu0
  %v2669 = vadd.f32 %v167, %v2668
  %v2670 = vpop.f32.mrb[0].mxu0
  %2671 = vmatprep.mubr.f32.mxu0 0.0
  %2672 = vmatmul.mubr.f32.gmra.mrb[0].mxu0 %v1978
  %v2673 = vpop.f32.mrb[0].mxu0
  %v2674 = vadd.f32 %v167, %v2673
  %v2675 = vpop.f32.mrb[0].mxu0
  %2676 = vmatprep.mubr.f32.mxu0 0.0
  %2677 = vmatmul.mubr.f32.gmra.mrb[0].mxu0 %v1981
  %v2678 = vpop.f32.mrb[0].mxu0
  %v2679 = vadd.f32 %v167, %v2678
  %v2680 = vpop.f32.mrb[0].mxu0
  %2681 = vmatprep.mubr.f32.mxu0 0.0
  %2682 = vmatmul.mubr.f32.gmra.mrb[0].mxu0 %v1984
  %v2683 = vpop.f32.mrb[0].mxu0
  %v2684 = vadd.f32 %v167, %v2683
  %v2685 = vpop.f32.mrb[0].mxu0
  %2686 = vmatprep.mubr.f32.mxu0 0.0
  %2687 = vmatmul.mubr.f32.gmra.mrb[0].mxu0 %v1987
  %v2688 = vpop.f32.mrb[0].mxu0
  %v2689 = vadd.f32 %v167, %v2688
  %v2690 = vpop.f32.mrb[0].mxu0
  %2691 = vmatprep.mubr.f32.mxu0 0.0
  %2692 = vmatmul.mubr.f32.gmra.mrb[0].mxu0 %v1990
  %v2693 = vpop.f32.mrb[0].mxu0
  %v2694 = vadd.f32 %v167, %v2693
  %v2695 = vpop.f32.mrb[0].mxu0
  %2696 = vmatprep.mubr.f32.mxu0 0.0
  %2697 = vmatmul.mubr.f32.gmra.mrb[0].mxu0 %v1993
  %v2698 = vpop.f32.mrb[0].mxu0
  %v2699 = vadd.f32 %v167, %v2698
  %v2700 = vpop.f32.mrb[0].mxu0
  %2701 = vmatprep.mubr.f32.mxu0 0.0
  %2702 = vmatmul.mubr.f32.gmra.mrb[0].mxu0 %v1996
  %v2703 = vpop.f32.mrb[0].mxu0
  %v2704 = vadd.f32 %v167, %v2703
  %v2705 = vpop.f32.mrb[0].mxu0
  %2706 = vmatprep.mubr.f32.mxu0 0.0
  %2707 = vmatmul.mubr.f32.gmra.mrb[0].mxu0 %v1999
  %v2708 = vpop.f32.mrb[0].mxu0
  %v2709 = vadd.f32 %v167, %v2708
  %v2710 = vpop.f32.mrb[0].mxu0
  %2711 = vmatprep.mubr.f32.mxu0 0.0
  %2712 = vmatmul.mubr.f32.gmra.mrb[0].mxu0 %v2002
  %v2713 = vpop.f32.mrb[0].mxu0
  %v2714 = vadd.f32 %v167, %v2713
  %v2715 = vpop.f32.mrb[0].mxu0
  %2716 = vmatprep.mubr.f32.mxu0 0.0
  %2717 = vmatmul.mubr.f32.gmra.mrb[0].mxu0 %v2005
  %v2718 = vpop.f32.mrb[0].mxu0
  %v2719 = vadd.f32 %v167, %v2718
  %v2720 = vpop.f32.mrb[0].mxu0
  %2721 = vmatprep.mubr.f32.mxu0 0.0
  %2722 = vmatmul.mubr.f32.gmra.mrb[0].mxu0 %v2008
  %v2723 = vpop.f32.mrb[0].mxu0
  %v2724 = vadd.f32 %v167, %v2723
  %v2725 = vpop.f32.mrb[0].mxu0
  %2726 = vmatprep.mubr.f32.mxu0 0.0
  %2727 = vmatmul.mubr.f32.gmra.mrb[0].mxu0 %v2011
  %v2728 = vpop.f32.mrb[0].mxu0
  %v2729 = vadd.f32 %v167, %v2728
  %v2730 = vpop.f32.mrb[0].mxu0
  %2731 = vmatprep.mubr.f32.mxu0 0.0
  %2732 = vmatmul.mubr.f32.gmra.mrb[0].mxu0 %v2014
  %v2733 = vpop.f32.mrb[0].mxu0
  %v2734 = vadd.f32 %v167, %v2733
  %v2735 = vpop.f32.mrb[0].mxu0
  %2736 = vmatprep.mubr.f32.mxu0 0.0
  %2737 = vmatmul.mubr.f32.gmra.mrb[0].mxu0 %v2017
  %v2738 = vpop.f32.mrb[0].mxu0
  %v2739 = vadd.f32 %v167, %v2738
  %v2740 = vpop.f32.mrb[0].mxu0
  %2741 = vmatprep.mubr.f32.mxu0 0.0
  %2742 = vmatmul.mubr.f32.gmra.mrb[0].mxu0 %v2020
  %v2743 = vpop.f32.mrb[0].mxu0
  %v2744 = vadd.f32 %v167, %v2743
  %v2745 = vpop.f32.mrb[0].mxu0
  %2746 = vmatprep.mubr.f32.mxu0 0.0
  %2747 = vmatmul.mubr.f32.gmra.mrb[0].mxu0 %v2023
  %v2748 = vpop.f32.mrb[0].mxu0
  %v2749 = vadd.f32 %v167, %v2748
  %v2750 = vpop.f32.mrb[0].mxu0
  %2751 = vmatprep.mubr.f32.mxu0 0.0
  %2752 = vmatmul.mubr.f32.gmra.mrb[0].mxu0 %v2026
  %v2753 = vpop.f32.mrb[0].mxu0
  %v2754 = vadd.f32 %v167, %v2753
  %v2755 = vpop.f32.mrb[0].mxu0
  %2756 = vmatprep.mubr.f32.mxu0 0.0
  %2757 = vmatmul.mubr.f32.gmra.mrb[0].mxu0 %v2029
  %v2758 = vpop.f32.mrb[0].mxu0
  %v2759 = vadd.f32 %v167, %v2758
  %v2760 = vpop.f32.mrb[0].mxu0
  %2761 = vmatprep.mubr.f32.mxu0 0.0
  %2762 = vmatmul.mubr.f32.gmra.mrb[0].mxu0 %v2032
  %v2763 = vpop.f32.mrb[0].mxu0
  %v2764 = vadd.f32 %v167, %v2763
  %v2765 = vpop.f32.mrb[0].mxu0
  %2766 = vmatprep.mubr.f32.mxu0 0.0
  %2767 = vmatmul.mubr.f32.gmra.mrb[0].mxu0 %v2035
  %v2768 = vpop.f32.mrb[0].mxu0
  %v2769 = vadd.f32 %v167, %v2768
  %v2770 = vpop.f32.mrb[0].mxu0
  %2771 = vmatprep.mubr.f32.mxu0 0.0
  %2772 = vmatmul.mubr.f32.gmra.mrb[0].mxu0 %v2038
  %v2773 = vpop.f32.mrb[0].mxu0
  %v2774 = vadd.f32 %v167, %v2773
  %v2775 = vpop.f32.mrb[0].mxu0
  %2776 = vmatprep.mubr.f32.mxu0 0.0
  %2777 = vmatmul.mubr.f32.gmra.mrb[0].mxu0 %v2041
  %v2778 = vpop.f32.mrb[0].mxu0
  %v2779 = vadd.f32 %v167, %v2778
  %v2780 = vpop.f32.mrb[0].mxu0
  %2781 = vmatprep.mubr.f32.mxu0 0.0
  %2782 = vmatmul.mubr.f32.gmra.mrb[0].mxu0 %v2044
  %v2783 = vpop.f32.mrb[0].mxu0
  %v2784 = vadd.f32 %v167, %v2783
  %v2785 = vpop.f32.mrb[0].mxu0
  %2786 = vmatprep.mubr.f32.mxu0 0.0
  %2787 = vmatmul.mubr.f32.gmra.mrb[0].mxu0 %v2047
  %v2788 = vpop.f32.mrb[0].mxu0
  %v2789 = vadd.f32 %v167, %v2788
  %v2790 = vpop.f32.mrb[0].mxu0
  %2791 = vmatprep.mubr.f32.mxu0 0.0
  %2792 = vmatmul.mubr.f32.gmra.mrb[0].mxu0 %v2050
  %v2793 = vpop.f32.mrb[0].mxu0
  %v2794 = vadd.f32 %v167, %v2793
  %v2795 = vpop.f32.mrb[0].mxu0
  %2796 = vmatprep.mubr.f32.mxu0 0.0
  %2797 = vmatmul.mubr.f32.gmra.mrb[0].mxu0 %v2053
  %v2798 = vpop.f32.mrb[0].mxu0
  %v2799 = vadd.f32 %v167, %v2798
  %v2800 = vpop.f32.mrb[0].mxu0
  %2801 = vmatprep.mubr.f32.mxu0 0.0
  %2802 = vmatmul.mubr.f32.gmra.mrb[0].mxu0 %v2056
  %v2803 = vpop.f32.mrb[0].mxu0
  %v2804 = vadd.f32 %v167, %v2803
  %v2805 = vpop.f32.mrb[0].mxu0
  %2806 = vmatprep.mubr.f32.mxu0 0.0
  %2807 = vmatmul.mubr.f32.gmra.mrb[0].mxu0 %v2059
  %v2808 = vpop.f32.mrb[0].mxu0
  %v2809 = vadd.f32 %v167, %v2808
  %v2810 = vpop.f32.mrb[0].mxu0
  %2811 = vmatprep.mubr.f32.mxu0 0.0
  %2812 = vmatmul.mubr.f32.gmra.mrb[0].mxu0 %v2062
  %v2813 = vpop.f32.mrb[0].mxu0
  %v2814 = vadd.f32 %v167, %v2813
  %v2815 = vpop.f32.mrb[0].mxu0
  %2816 = vmatprep.mubr.f32.mxu0 0.0
  %2817 = vmatmul.mubr.f32.gmra.mrb[0].mxu0 %v2065
  %v2818 = vpop.f32.mrb[0].mxu0
  %v2819 = vadd.f32 %v167, %v2818
  %v2820 = vpop.f32.mrb[0].mxu0
  %2821 = vmatprep.mubr.f32.mxu0 0.0
  %2822 = vmatmul.mubr.f32.gmra.mrb[0].mxu0 %v2068
  %v2823 = vpop.f32.mrb[0].mxu0
  %v2824 = vadd.f32 %v167, %v2823
  %v2825 = vpop.f32.mrb[0].mxu0
  %2826 = vmatprep.mubr.f32.mxu0 0.0
  %2827 = vmatmul.mubr.f32.gmra.mrb[0].mxu0 %v2071
  %v2828 = vpop.f32.mrb[0].mxu0
  %v2829 = vadd.f32 %v167, %v2828
  %v2830 = vpop.f32.mrb[0].mxu0
  %2831 = vmatprep.mubr.f32.mxu0 0.0
  %2832 = vmatmul.mubr.f32.gmra.mrb[0].mxu0 %v2074
  %v2833 = vpop.f32.mrb[0].mxu0
  %v2834 = vadd.f32 %v167, %v2833
  %v2835 = vpop.f32.mrb[0].mxu0
  %2836 = vmatprep.mubr.f32.mxu0 0.0
  %2837 = vmatmul.mubr.f32.gmra.mrb[0].mxu0 %v2077
  %v2838 = vpop.f32.mrb[0].mxu0
  %v2839 = vadd.f32 %v167, %v2838
  %v2840 = vpop.f32.mrb[0].mxu0
  %2841 = vmatprep.mubr.f32.mxu0 0.0
  %2842 = vmatmul.mubr.f32.gmra.mrb[0].mxu0 %v2080
  %v2843 = vpop.f32.mrb[0].mxu0
  %v2844 = vadd.f32 %v167, %v2843
  %v2845 = vpop.f32.mrb[0].mxu0
  %2846 = vmatprep.mubr.f32.mxu0 0.0
  %2847 = vmatmul.mubr.f32.gmra.mrb[0].mxu0 %v2083
  %v2848 = vpop.f32.mrb[0].mxu0
  %v2849 = vadd.f32 %v167, %v2848
  %v2850 = vpop.f32.mrb[0].mxu0
  %2851 = vmatprep.mubr.f32.mxu0 0.0
  %2852 = vmatmul.mubr.f32.gmra.mrb[0].mxu0 %v2086
  %v2853 = vpop.f32.mrb[0].mxu0
  %v2854 = vadd.f32 %v167, %v2853
  %v2855 = vpop.f32.mrb[0].mxu0
  %2856 = vmatprep.mubr.f32.mxu0 0.0
  %2857 = vmatmul.mubr.f32.gmra.mrb[0].mxu0 %v2089
  %v2858 = vpop.f32.mrb[0].mxu0
  %v2859 = vadd.f32 %v167, %v2858
  %v2860 = vpop.f32.mrb[0].mxu0
  %2861 = vmatprep.mubr.f32.mxu0 0.0
  %2862 = vmatmul.mubr.f32.gmra.mrb[0].mxu0 %v2092
  %v2863 = vpop.f32.mrb[0].mxu0
  %v2864 = vadd.f32 %v167, %v2863
  %v2865 = vpop.f32.mrb[0].mxu0
  %2866 = vmatprep.mubr.f32.mxu0 0.0
  %2867 = vmatmul.mubr.f32.gmra.mrb[0].mxu0 %v2095
  %v2868 = vpop.f32.mrb[0].mxu0
  %v2869 = vadd.f32 %v167, %v2868
  %v2870 = vpop.f32.mrb[0].mxu0
  %2871 = vmatprep.mubr.f32.mxu0 0.0
  %2872 = vmatmul.mubr.f32.gmra.mrb[0].mxu0 %v2098
  %v2873 = vpop.f32.mrb[0].mxu0
  %v2874 = vadd.f32 %v167, %v2873
  %v2875 = vpop.f32.mrb[0].mxu0
  %2876 = vmatprep.mubr.f32.mxu0 0.0
  %2877 = vmatmul.mubr.f32.gmra.mrb[0].mxu0 %v2101
  %v2878 = vpop.f32.mrb[0].mxu0
  %v2879 = vadd.f32 %v167, %v2878
  %v2880 = vpop.f32.mrb[0].mxu0
  %2881 = vmatprep.mubr.f32.mxu0 0.0
  %2882 = vmatmul.mubr.f32.gmra.mrb[0].mxu0 %v2104
  %v2883 = vpop.f32.mrb[0].mxu0
  %v2884 = vadd.f32 %v167, %v2883
  %v2885 = vpop.f32.mrb[0].mxu0
  %2886 = vmatprep.mubr.f32.mxu0 0.0
  %2887 = vmatmul.mubr.f32.gmra.mrb[0].mxu0 %v2107
  %v2888 = vpop.f32.mrb[0].mxu0
  %v2889 = vadd.f32 %v167, %v2888
  %v2890 = vpop.f32.mrb[0].mxu0
  %2891 = vmatprep.mubr.f32.mxu0 0.0
  %2892 = vmatmul.mubr.f32.gmra.mrb[0].mxu0 %v2110
  %v2893 = vpop.f32.mrb[0].mxu0
  %v2894 = vadd.f32 %v167, %v2893
  %v2895 = vpop.f32.mrb[0].mxu0
  %2896 = vdwg.mxu0
  %v2897 = vmax.f32 %v2179, 0.0
  %v2898 = vmax.f32 %v2184, 0.0
  %v2899 = vmax.f32 %v2189, 0.0
  %v2900 = vmax.f32 %v2194, 0.0
  %v2901 = vmax.f32 %v2199, 0.0
  %v2902 = vmax.f32 %v2204, 0.0
  %v2903 = vmax.f32 %v2209, 0.0
  %v2904 = vmax.f32 %v2214, 0.0
  %v2905 = vmax.f32 %v2219, 0.0
  %v2906 = vmax.f32 %v2224, 0.0
  %v2907 = vmax.f32 %v2229, 0.0
  %v2908 = vmax.f32 %v2234, 0.0
  %v2909 = vmax.f32 %v2239, 0.0
  %v2910 = vmax.f32 %v2244, 0.0
  %v2911 = vmax.f32 %v2249, 0.0
  %v2912 = vmax.f32 %v2254, 0.0
  %v2913 = vmax.f32 %v2259, 0.0
  %v2914 = vmax.f32 %v2264, 0.0
  %v2915 = vmax.f32 %v2269, 0.0
  %v2916 = vmax.f32 %v2274, 0.0
  %v2917 = vmax.f32 %v2279, 0.0
  %v2918 = vmax.f32 %v2284, 0.0
  %v2919 = vmax.f32 %v2289, 0.0
  %v2920 = vmax.f32 %v2294, 0.0
  %v2921 = vmax.f32 %v2299, 0.0
  %v2922 = vmax.f32 %v2304, 0.0
  %v2923 = vmax.f32 %v2309, 0.0
  %v2924 = vmax.f32 %v2314, 0.0
  %v2925 = vmax.f32 %v2319, 0.0
  %v2926 = vmax.f32 %v2324, 0.0
  %v2927 = vmax.f32 %v2329, 0.0
  %v2928 = vmax.f32 %v2334, 0.0
  %v2929 = vmax.f32 %v2339, 0.0
  %v2930 = vmax.f32 %v2344, 0.0
  %v2931 = vmax.f32 %v2349, 0.0
  %v2932 = vmax.f32 %v2354, 0.0
  %v2933 = vmax.f32 %v2359, 0.0
  %v2934 = vmax.f32 %v2364, 0.0
  %v2935 = vmax.f32 %v2369, 0.0
  %v2936 = vmax.f32 %v2374, 0.0
  %v2937 = vmax.f32 %v2379, 0.0
  %v2938 = vmax.f32 %v2384, 0.0
  %v2939 = vmax.f32 %v2389, 0.0
  %v2940 = vmax.f32 %v2394, 0.0
  %v2941 = vmax.f32 %v2399, 0.0
  %v2942 = vmax.f32 %v2404, 0.0
  %v2943 = vmax.f32 %v2409, 0.0
  %v2944 = vmax.f32 %v2414, 0.0
  %v2945 = vmax.f32 %v2419, 0.0
  %v2946 = vmax.f32 %v2424, 0.0
  %v2947 = vmax.f32 %v2429, 0.0
  %v2948 = vmax.f32 %v2434, 0.0
  %v2949 = vmax.f32 %v2439, 0.0
  %v2950 = vmax.f32 %v2444, 0.0
  %v2951 = vmax.f32 %v2449, 0.0
  %v2952 = vmax.f32 %v2454, 0.0
  %v2953 = vmax.f32 %v2459, 0.0
  %v2954 = vmax.f32 %v2464, 0.0
  %v2955 = vmax.f32 %v2469, 0.0
  %v2956 = vmax.f32 %v2474, 0.0
  %v2957 = vmax.f32 %v2479, 0.0
  %v2958 = vmax.f32 %v2484, 0.0
  %v2959 = vmax.f32 %v2489, 0.0
  %v2960 = vmax.f32 %v2494, 0.0
  %v2961 = vmax.f32 %v2499, 0.0
  %v2962 = vmax.f32 %v2504, 0.0
  %v2963 = vmax.f32 %v2509, 0.0
  %v2964 = vmax.f32 %v2514, 0.0
  %v2965 = vmax.f32 %v2519, 0.0
  %v2966 = vmax.f32 %v2524, 0.0
  %v2967 = vmax.f32 %v2529, 0.0
  %v2968 = vmax.f32 %v2534, 0.0
  %v2969 = vmax.f32 %v2539, 0.0
  %v2970 = vmax.f32 %v2544, 0.0
  %v2971 = vmax.f32 %v2549, 0.0
  %v2972 = vmax.f32 %v2554, 0.0
  %v2973 = vmax.f32 %v2559, 0.0
  %v2974 = vmax.f32 %v2564, 0.0
  %v2975 = vmax.f32 %v2569, 0.0
  %v2976 = vmax.f32 %v2574, 0.0
  %v2977 = vmax.f32 %v2579, 0.0
  %v2978 = vmax.f32 %v2584, 0.0
  %v2979 = vmax.f32 %v2589, 0.0
  %v2980 = vmax.f32 %v2594, 0.0
  %v2981 = vmax.f32 %v2599, 0.0
  %v2982 = vmax.f32 %v2604, 0.0
  %v2983 = vmax.f32 %v2609, 0.0
  %v2984 = vmax.f32 %v2614, 0.0
  %v2985 = vmax.f32 %v2619, 0.0
  %v2986 = vmax.f32 %v2624, 0.0
  %v2987 = vmax.f32 %v2629, 0.0
  %v2988 = vmax.f32 %v2634, 0.0
  %v2989 = vmax.f32 %v2639, 0.0
  %v2990 = vmax.f32 %v2644, 0.0
  %v2991 = vmax.f32 %v2649, 0.0
  %v2992 = vmax.f32 %v2654, 0.0
  %v2993 = vmax.f32 %v2659, 0.0
  %v2994 = vmax.f32 %v2664, 0.0
  %v2995 = vmax.f32 %v2669, 0.0
  %v2996 = vmax.f32 %v2674, 0.0
  %v2997 = vmax.f32 %v2679, 0.0
  %v2998 = vmax.f32 %v2684, 0.0
  %v2999 = vmax.f32 %v2689, 0.0
  %v3000 = vmax.f32 %v2694, 0.0
  %v3001 = vmax.f32 %v2699, 0.0
  %v3002 = vmax.f32 %v2704, 0.0
  %v3003 = vmax.f32 %v2709, 0.0
  %v3004 = vmax.f32 %v2714, 0.0
  %v3005 = vmax.f32 %v2719, 0.0
  %v3006 = vmax.f32 %v2724, 0.0
  %v3007 = vmax.f32 %v2729, 0.0
  %v3008 = vmax.f32 %v2734, 0.0
  %v3009 = vmax.f32 %v2739, 0.0
  %v3010 = vmax.f32 %v2744, 0.0
  %v3011 = vmax.f32 %v2749, 0.0
  %v3012 = vmax.f32 %v2754, 0.0
  %v3013 = vmax.f32 %v2759, 0.0
  %v3014 = vmax.f32 %v2764, 0.0
  %v3015 = vmax.f32 %v2769, 0.0
  %v3016 = vmax.f32 %v2774, 0.0
  %v3017 = vmax.f32 %v2779, 0.0
  %v3018 = vmax.f32 %v2784, 0.0
  %v3019 = vmax.f32 %v2789, 0.0
  %v3020 = vmax.f32 %v2794, 0.0
  %v3021 = vmax.f32 %v2799, 0.0
  %v3022 = vmax.f32 %v2804, 0.0
  %v3023 = vmax.f32 %v2809, 0.0
  %v3024 = vmax.f32 %v2814, 0.0
  %v3025 = vmax.f32 %v2819, 0.0
  %v3026 = vmax.f32 %v2824, 0.0
  %v3027 = vmax.f32 %v2829, 0.0
  %v3028 = vmax.f32 %v2834, 0.0
  %v3029 = vmax.f32 %v2839, 0.0
  %v3030 = vmax.f32 %v2844, 0.0
  %v3031 = vmax.f32 %v2849, 0.0
  %v3032 = vmax.f32 %v2854, 0.0
  %v3033 = vmax.f32 %v2859, 0.0
  %v3034 = vmax.f32 %v2864, 0.0
  %v3035 = vmax.f32 %v2869, 0.0
  %v3036 = vmax.f32 %v2874, 0.0
  %v3037 = vmax.f32 %v2879, 0.0
  %v3038 = vmax.f32 %v2884, 0.0
  %v3039 = vmax.f32 %v2889, 0.0
  %v3040 = vmax.f32 %v2894, 0.0
  %v3041 = vmax.f32 %v1391, %v2897
  %v3042 = vmax.f32 %v1392, %v2898
  %v3043 = vmax.f32 %v1393, %v2899
  %v3044 = vmax.f32 %v1394, %v2900
  %v3045 = vmax.f32 %v1395, %v2901
  %v3046 = vmax.f32 %v1396, %v2902
  %v3047 = vmax.f32 %v1397, %v2903
  %v3048 = vmax.f32 %v1398, %v2904
  %v3049 = vmax.f32 %v1399, %v2905
  %v3050 = vmax.f32 %v1400, %v2906
  %v3051 = vmax.f32 %v1401, %v2907
  %v3052 = vmax.f32 %v1402, %v2908
  %v3053 = vmax.f32 %v1403, %v2909
  %v3054 = vmax.f32 %v1404, %v2910
  %v3055 = vmax.f32 %v1405, %v2911
  %v3056 = vmax.f32 %v1406, %v2912
  %v3057 = vmax.f32 %v1407, %v2913
  %v3058 = vmax.f32 %v1408, %v2914
  %v3059 = vmax.f32 %v1409, %v2915
  %v3060 = vmax.f32 %v1410, %v2916
  %v3061 = vmax.f32 %v1411, %v2917
  %v3062 = vmax.f32 %v1412, %v2918
  %v3063 = vmax.f32 %v1413, %v2919
  %v3064 = vmax.f32 %v1414, %v2920
  %v3065 = vmax.f32 %v1415, %v2921
  %v3066 = vmax.f32 %v1416, %v2922
  %v3067 = vmax.f32 %v1417, %v2923
  %v3068 = vmax.f32 %v1418, %v2924
  %v3069 = vmax.f32 %v1419, %v2925
  %v3070 = vmax.f32 %v1420, %v2926
  %v3071 = vmax.f32 %v1421, %v2927
  %v3072 = vmax.f32 %v1422, %v2928
  %v3073 = vmax.f32 %v1423, %v2929
  %v3074 = vmax.f32 %v1424, %v2930
  %v3075 = vmax.f32 %v1425, %v2931
  %v3076 = vmax.f32 %v1426, %v2932
  %v3077 = vmax.f32 %v1427, %v2933
  %v3078 = vmax.f32 %v1428, %v2934
  %v3079 = vmax.f32 %v1429, %v2935
  %v3080 = vmax.f32 %v1430, %v2936
  %v3081 = vmax.f32 %v1431, %v2937
  %v3082 = vmax.f32 %v1432, %v2938
  %v3083 = vmax.f32 %v1433, %v2939
  %v3084 = vmax.f32 %v1434, %v2940
  %v3085 = vmax.f32 %v1435, %v2941
  %v3086 = vmax.f32 %v1436, %v2942
  %v3087 = vmax.f32 %v1437, %v2943
  %v3088 = vmax.f32 %v1438, %v2944
  %v3089 = vmax.f32 %v1439, %v2945
  %v3090 = vmax.f32 %v1440, %v2946
  %v3091 = vmax.f32 %v1441, %v2947
  %v3092 = vmax.f32 %v1442, %v2948
  %v3093 = vmax.f32 %v1443, %v2949
  %v3094 = vmax.f32 %v1444, %v2950
  %v3095 = vmax.f32 %v1445, %v2951
  %v3096 = vmax.f32 %v1446, %v2952
  %v3097 = vmax.f32 %v1447, %v2953
  %v3098 = vmax.f32 %v1448, %v2954
  %v3099 = vmax.f32 %v1449, %v2955
  %v3100 = vmax.f32 %v1450, %v2956
  %v3101 = vmax.f32 %v1451, %v2957
  %v3102 = vmax.f32 %v1452, %v2958
  %v3103 = vmax.f32 %v1453, %v2959
  %v3104 = vmax.f32 %v1454, %v2960
  %v3105 = vmax.f32 %v1455, %v2961
  %v3106 = vmax.f32 %v1456, %v2962
  %v3107 = vmax.f32 %v1457, %v2963
  %v3108 = vmax.f32 %v1458, %v2964
  %v3109 = vmax.f32 %v1459, %v2965
  %v3110 = vmax.f32 %v1460, %v2966
  %v3111 = vmax.f32 %v1461, %v2967
  %v3112 = vmax.f32 %v1462, %v2968
  %v3113 = vmax.f32 %v1463, %v2969
  %v3114 = vmax.f32 %v1464, %v2970
  %v3115 = vmax.f32 %v1465, %v2971
  %v3116 = vmax.f32 %v1466, %v2972
  %v3117 = vmax.f32 %v1467, %v2973
  %v3118 = vmax.f32 %v1468, %v2974
  %v3119 = vmax.f32 %v1469, %v2975
  %v3120 = vmax.f32 %v1470, %v2976
  %v3121 = vmax.f32 %v1471, %v2977
  %v3122 = vmax.f32 %v1472, %v2978
  %v3123 = vmax.f32 %v1473, %v2979
  %v3124 = vmax.f32 %v1474, %v2980
  %v3125 = vmax.f32 %v1475, %v2981
  %v3126 = vmax.f32 %v1476, %v2982
  %v3127 = vmax.f32 %v1477, %v2983
  %v3128 = vmax.f32 %v1478, %v2984
  %v3129 = vmax.f32 %v1479, %v2985
  %v3130 = vmax.f32 %v1480, %v2986
  %v3131 = vmax.f32 %v1481, %v2987
  %v3132 = vmax.f32 %v1482, %v2988
  %v3133 = vmax.f32 %v1483, %v2989
  %v3134 = vmax.f32 %v1484, %v2990
  %v3135 = vmax.f32 %v1485, %v2991
  %v3136 = vmax.f32 %v1486, %v2992
  %v3137 = vmax.f32 %v1487, %v2993
  %v3138 = vmax.f32 %v1488, %v2994
  %v3139 = vmax.f32 %v1489, %v2995
  %v3140 = vmax.f32 %v1490, %v2996
  %v3141 = vmax.f32 %v1491, %v2997
  %v3142 = vmax.f32 %v1492, %v2998
  %v3143 = vmax.f32 %v1493, %v2999
  %v3144 = vmax.f32 %v1494, %v3000
  %v3145 = vmax.f32 %v1495, %v3001
  %v3146 = vmax.f32 %v1496, %v3002
  %v3147 = vmax.f32 %v1497, %v3003
  %v3148 = vmax.f32 %v1498, %v3004
  %v3149 = vmax.f32 %v1499, %v3005
  %v3150 = vmax.f32 %v1500, %v3006
  %v3151 = vmax.f32 %v1501, %v3007
  %v3152 = vmax.f32 %v1502, %v3008
  %v3153 = vmax.f32 %v1503, %v3009
  %v3154 = vmax.f32 %v1504, %v3010
  %v3155 = vmax.f32 %v1505, %v3011
  %v3156 = vmax.f32 %v1506, %v3012
  %v3157 = vmax.f32 %v1507, %v3013
  %v3158 = vmax.f32 %v1508, %v3014
  %v3159 = vmax.f32 %v1509, %v3015
  %v3160 = vmax.f32 %v1510, %v3016
  %v3161 = vmax.f32 %v1511, %v3017
  %v3162 = vmax.f32 %v1512, %v3018
  %v3163 = vmax.f32 %v1513, %v3019
  %v3164 = vmax.f32 %v1514, %v3020
  %v3165 = vmax.f32 %v1515, %v3021
  %v3166 = vmax.f32 %v1516, %v3022
  %v3167 = vmax.f32 %v1517, %v3023
  %v3168 = vmax.f32 %v1518, %v3024
  %v3169 = vmax.f32 %v1519, %v3025
  %v3170 = vmax.f32 %v1520, %v3026
  %v3171 = vmax.f32 %v1521, %v3027
  %v3172 = vmax.f32 %v1522, %v3028
  %v3173 = vmax.f32 %v1523, %v3029
  %v3174 = vmax.f32 %v1524, %v3030
  %v3175 = vmax.f32 %v1525, %v3031
  %v3176 = vmax.f32 %v1526, %v3032
  %v3177 = vmax.f32 %v1527, %v3033
  %v3178 = vmax.f32 %v1528, %v3034
  %v3179 = vmax.f32 %v1529, %v3035
  %v3180 = vmax.f32 %v1530, %v3036
  %v3181 = vmax.f32 %v1531, %v3037
  %v3182 = vmax.f32 %v1532, %v3038
  %v3183 = vmax.f32 %v1533, %v3039
  %v3184 = vmax.f32 %v1534, %v3040
  %s3185 = scalar_lea.vmem %s0, 2304
  %v3186 = vld [vmem:[%s3185] sm:$0xff]
  %v3187 = vld [vmem:[%s3185 + $0x8] sm:$0xff]
  %v3188 = vld [vmem:[%s3185 + $0x10] sm:$0xff]
  %v3189 = vld [vmem:[%s3185 + $0x18] sm:$0xff]
  %v3190 = vld [vmem:[%s3185 + $0x20] sm:$0xff]
  %v3191 = vld [vmem:[%s3185 + $0x28] sm:$0xff]
  %v3192 = vld [vmem:[%s3185 + $0x30] sm:$0xff]
  %v3193 = vld [vmem:[%s3185 + $0x38] sm:$0xff]
  %v3194 = vld [vmem:[%s3185 + $0x40] sm:$0xff]
  %v3195 = vld [vmem:[%s3185 + $0x48] sm:$0xff]
  %v3196 = vld [vmem:[%s3185 + $0x50] sm:$0xff]
  %v3197 = vld [vmem:[%s3185 + $0x58] sm:$0xff]
  %v3198 = vld [vmem:[%s3185 + $0x60] sm:$0xff]
  %v3199 = vld [vmem:[%s3185 + $0x68] sm:$0xff]
  %v3200 = vld [vmem:[%s3185 + $0x70] sm:$0xff]
  %v3201 = vld [vmem:[%s3185 + $0x78] sm:$0xff]
  %v3202 = vld [vmem:[%s3185 + $0x80] sm:$0xff]
  %v3203 = vld [vmem:[%s3185 + $0x88] sm:$0xff]
  %v3204 = vld [vmem:[%s3185 + $0x90] sm:$0xff]
  %v3205 = vld [vmem:[%s3185 + $0x98] sm:$0xff]
  %v3206 = vld [vmem:[%s3185 + $0xa0] sm:$0xff]
  %v3207 = vld [vmem:[%s3185 + $0xa8] sm:$0xff]
  %v3208 = vld [vmem:[%s3185 + $0xb0] sm:$0xff]
  %v3209 = vld [vmem:[%s3185 + $0xb8] sm:$0xff]
  %v3210 = vld [vmem:[%s3185 + $0xc0] sm:$0xff]
  %v3211 = vld [vmem:[%s3185 + $0xc8] sm:$0xff]
  %v3212 = vld [vmem:[%s3185 + $0xd0] sm:$0xff]
  %v3213 = vld [vmem:[%s3185 + $0xd8] sm:$0xff]
  %v3214 = vld [vmem:[%s3185 + $0xe0] sm:$0xff]
  %v3215 = vld [vmem:[%s3185 + $0xe8] sm:$0xff]
  %v3216 = vld [vmem:[%s3185 + $0xf0] sm:$0xff]
  %v3217 = vld [vmem:[%s3185 + $0xf8] sm:$0xff]
  %v3218 = vld [vmem:[%s3185 + $0x100] sm:$0xff]
  %v3219 = vld [vmem:[%s3185 + $0x108] sm:$0xff]
  %v3220 = vld [vmem:[%s3185 + $0x110] sm:$0xff]
  %v3221 = vld [vmem:[%s3185 + $0x118] sm:$0xff]
  %v3222 = vld [vmem:[%s3185 + $0x120] sm:$0xff]
  %v3223 = vld [vmem:[%s3185 + $0x128] sm:$0xff]
  %v3224 = vld [vmem:[%s3185 + $0x130] sm:$0xff]
  %v3225 = vld [vmem:[%s3185 + $0x138] sm:$0xff]
  %v3226 = vld [vmem:[%s3185 + $0x140] sm:$0xff]
  %v3227 = vld [vmem:[%s3185 + $0x148] sm:$0xff]
  %v3228 = vld [vmem:[%s3185 + $0x150] sm:$0xff]
  %v3229 = vld [vmem:[%s3185 + $0x158] sm:$0xff]
  %v3230 = vld [vmem:[%s3185 + $0x160] sm:$0xff]
  %v3231 = vld [vmem:[%s3185 + $0x168] sm:$0xff]
  %v3232 = vld [vmem:[%s3185 + $0x170] sm:$0xff]
  %v3233 = vld [vmem:[%s3185 + $0x178] sm:$0xff]
  %v3234 = vld [vmem:[%s3185 + $0x180] sm:$0xff]
  %v3235 = vld [vmem:[%s3185 + $0x188] sm:$0xff]
  %v3236 = vld [vmem:[%s3185 + $0x190] sm:$0xff]
  %v3237 = vld [vmem:[%s3185 + $0x198] sm:$0xff]
  %v3238 = vld [vmem:[%s3185 + $0x1a0] sm:$0xff]
  %v3239 = vld [vmem:[%s3185 + $0x1a8] sm:$0xff]
  %v3240 = vld [vmem:[%s3185 + $0x1b0] sm:$0xff]
  %v3241 = vld [vmem:[%s3185 + $0x1b8] sm:$0xff]
  %v3242 = vld [vmem:[%s3185 + $0x1c0] sm:$0xff]
  %v3243 = vld [vmem:[%s3185 + $0x1c8] sm:$0xff]
  %v3244 = vld [vmem:[%s3185 + $0x1d0] sm:$0xff]
  %v3245 = vld [vmem:[%s3185 + $0x1d8] sm:$0xff]
  %v3246 = vld [vmem:[%s3185 + $0x1e0] sm:$0xff]
  %v3247 = vld [vmem:[%s3185 + $0x1e8] sm:$0xff]
  %v3248 = vld [vmem:[%s3185 + $0x1f0] sm:$0xff]
  %v3249 = vld [vmem:[%s3185 + $0x1f8] sm:$0xff]
  %v3250 = vld [vmem:[%s3185 + $0x200] sm:$0xff]
  %v3251 = vld [vmem:[%s3185 + $0x208] sm:$0xff]
  %v3252 = vld [vmem:[%s3185 + $0x210] sm:$0xff]
  %v3253 = vld [vmem:[%s3185 + $0x218] sm:$0xff]
  %v3254 = vld [vmem:[%s3185 + $0x220] sm:$0xff]
  %v3255 = vld [vmem:[%s3185 + $0x228] sm:$0xff]
  %v3256 = vld [vmem:[%s3185 + $0x230] sm:$0xff]
  %v3257 = vld [vmem:[%s3185 + $0x238] sm:$0xff]
  %v3258 = vld [vmem:[%s3185 + $0x240] sm:$0xff]
  %v3259 = vld [vmem:[%s3185 + $0x248] sm:$0xff]
  %v3260 = vld [vmem:[%s3185 + $0x250] sm:$0xff]
  %v3261 = vld [vmem:[%s3185 + $0x258] sm:$0xff]
  %v3262 = vld [vmem:[%s3185 + $0x260] sm:$0xff]
  %v3263 = vld [vmem:[%s3185 + $0x268] sm:$0xff]
  %v3264 = vld [vmem:[%s3185 + $0x270] sm:$0xff]
  %v3265 = vld [vmem:[%s3185 + $0x278] sm:$0xff]
  %v3266 = vld [vmem:[%s3185 + $0x280] sm:$0xff]
  %v3267 = vld [vmem:[%s3185 + $0x288] sm:$0xff]
  %v3268 = vld [vmem:[%s3185 + $0x290] sm:$0xff]
  %v3269 = vld [vmem:[%s3185 + $0x298] sm:$0xff]
  %v3270 = vld [vmem:[%s3185 + $0x2a0] sm:$0xff]
  %v3271 = vld [vmem:[%s3185 + $0x2a8] sm:$0xff]
  %v3272 = vld [vmem:[%s3185 + $0x2b0] sm:$0xff]
  %v3273 = vld [vmem:[%s3185 + $0x2b8] sm:$0xff]
  %v3274 = vld [vmem:[%s3185 + $0x2c0] sm:$0xff]
  %v3275 = vld [vmem:[%s3185 + $0x2c8] sm:$0xff]
  %v3276 = vld [vmem:[%s3185 + $0x2d0] sm:$0xff]
  %v3277 = vld [vmem:[%s3185 + $0x2d8] sm:$0xff]
  %v3278 = vld [vmem:[%s3185 + $0x2e0] sm:$0xff]
  %v3279 = vld [vmem:[%s3185 + $0x2e8] sm:$0xff]
  %v3280 = vld [vmem:[%s3185 + $0x2f0] sm:$0xff]
  %v3281 = vld [vmem:[%s3185 + $0x2f8] sm:$0xff]
  %v3282 = vld [vmem:[%s3185 + $0x300] sm:$0xff]
  %v3283 = vld [vmem:[%s3185 + $0x308] sm:$0xff]
  %v3284 = vld [vmem:[%s3185 + $0x310] sm:$0xff]
  %v3285 = vld [vmem:[%s3185 + $0x318] sm:$0xff]
  %v3286 = vld [vmem:[%s3185 + $0x320] sm:$0xff]
  %v3287 = vld [vmem:[%s3185 + $0x328] sm:$0xff]
  %v3288 = vld [vmem:[%s3185 + $0x330] sm:$0xff]
  %v3289 = vld [vmem:[%s3185 + $0x338] sm:$0xff]
  %v3290 = vld [vmem:[%s3185 + $0x340] sm:$0xff]
  %v3291 = vld [vmem:[%s3185 + $0x348] sm:$0xff]
  %v3292 = vld [vmem:[%s3185 + $0x350] sm:$0xff]
  %v3293 = vld [vmem:[%s3185 + $0x358] sm:$0xff]
  %v3294 = vld [vmem:[%s3185 + $0x360] sm:$0xff]
  %v3295 = vld [vmem:[%s3185 + $0x368] sm:$0xff]
  %v3296 = vld [vmem:[%s3185 + $0x370] sm:$0xff]
  %v3297 = vld [vmem:[%s3185 + $0x378] sm:$0xff]
  %v3298 = vld [vmem:[%s3185 + $0x380] sm:$0xff]
  %v3299 = vld [vmem:[%s3185 + $0x388] sm:$0xff]
  %v3300 = vld [vmem:[%s3185 + $0x390] sm:$0xff]
  %v3301 = vld [vmem:[%s3185 + $0x398] sm:$0xff]
  %v3302 = vld [vmem:[%s3185 + $0x3a0] sm:$0xff]
  %v3303 = vld [vmem:[%s3185 + $0x3a8] sm:$0xff]
  %v3304 = vld [vmem:[%s3185 + $0x3b0] sm:$0xff]
  %v3305 = vld [vmem:[%s3185 + $0x3b8] sm:$0xff]
  %v3306 = vld [vmem:[%s3185 + $0x3c0] sm:$0xff]
  %v3307 = vld [vmem:[%s3185 + $0x3c8] sm:$0xff]
  %v3308 = vld [vmem:[%s3185 + $0x3d0] sm:$0xff]
  %v3309 = vld [vmem:[%s3185 + $0x3d8] sm:$0xff]
  %v3310 = vld [vmem:[%s3185 + $0x3e0] sm:$0xff]
  %v3311 = vld [vmem:[%s3185 + $0x3e8] sm:$0xff]
  %v3312 = vld [vmem:[%s3185 + $0x3f0] sm:$0xff]
  %v3313 = vld [vmem:[%s3185 + $0x3f8] sm:$0xff]
  %v3314 = vld [vmem:[%s3185 + $0x400] sm:$0xff]
  %v3315 = vld [vmem:[%s3185 + $0x408] sm:$0xff]
  %v3316 = vld [vmem:[%s3185 + $0x410] sm:$0xff]
  %v3317 = vld [vmem:[%s3185 + $0x418] sm:$0xff]
  %v3318 = vld [vmem:[%s3185 + $0x420] sm:$0xff]
  %v3319 = vld [vmem:[%s3185 + $0x428] sm:$0xff]
  %v3320 = vld [vmem:[%s3185 + $0x430] sm:$0xff]
  %v3321 = vld [vmem:[%s3185 + $0x438] sm:$0xff]
  %v3322 = vld [vmem:[%s3185 + $0x440] sm:$0xff]
  %v3323 = vld [vmem:[%s3185 + $0x448] sm:$0xff]
  %v3324 = vld [vmem:[%s3185 + $0x450] sm:$0xff]
  %v3325 = vld [vmem:[%s3185 + $0x458] sm:$0xff]
  %v3326 = vld [vmem:[%s3185 + $0x460] sm:$0xff]
  %v3327 = vld [vmem:[%s3185 + $0x468] sm:$0xff]
  %v3328 = vld [vmem:[%s3185 + $0x470] sm:$0xff]
  %v3329 = vld [vmem:[%s3185 + $0x478] sm:$0xff]
  %v3331 = vsel %vm169, %v3186, 0
  %v3334 = vsel %vm169, %v3187, 0
  %v3337 = vsel %vm169, %v3188, 0
  %v3340 = vsel %vm169, %v3189, 0
  %v3343 = vsel %vm169, %v3190, 0
  %v3346 = vsel %vm169, %v3191, 0
  %v3349 = vsel %vm169, %v3192, 0
  %v3352 = vsel %vm169, %v3193, 0
  %v3355 = vsel %vm169, %v3194, 0
  %v3358 = vsel %vm169, %v3195, 0
  %v3361 = vsel %vm169, %v3196, 0
  %v3364 = vsel %vm169, %v3197, 0
  %v3367 = vsel %vm169, %v3198, 0
  %v3370 = vsel %vm169, %v3199, 0
  %v3373 = vsel %vm169, %v3200, 0
  %v3376 = vsel %vm169, %v3201, 0
  %v3379 = vsel %vm169, %v3202, 0
  %v3382 = vsel %vm169, %v3203, 0
  %v3385 = vsel %vm169, %v3204, 0
  %v3388 = vsel %vm169, %v3205, 0
  %v3391 = vsel %vm169, %v3206, 0
  %v3394 = vsel %vm169, %v3207, 0
  %v3397 = vsel %vm169, %v3208, 0
  %v3400 = vsel %vm169, %v3209, 0
  %v3403 = vsel %vm169, %v3210, 0
  %v3406 = vsel %vm169, %v3211, 0
  %v3409 = vsel %vm169, %v3212, 0
  %v3412 = vsel %vm169, %v3213, 0
  %v3415 = vsel %vm169, %v3214, 0
  %v3418 = vsel %vm169, %v3215, 0
  %v3421 = vsel %vm169, %v3216, 0
  %v3424 = vsel %vm169, %v3217, 0
  %v3427 = vsel %vm169, %v3218, 0
  %v3430 = vsel %vm169, %v3219, 0
  %v3433 = vsel %vm169, %v3220, 0
  %v3436 = vsel %vm169, %v3221, 0
  %v3439 = vsel %vm169, %v3222, 0
  %v3442 = vsel %vm169, %v3223, 0
  %v3445 = vsel %vm169, %v3224, 0
  %v3448 = vsel %vm169, %v3225, 0
  %v3451 = vsel %vm169, %v3226, 0
  %v3454 = vsel %vm169, %v3227, 0
  %v3457 = vsel %vm169, %v3228, 0
  %v3460 = vsel %vm169, %v3229, 0
  %v3463 = vsel %vm169, %v3230, 0
  %v3466 = vsel %vm169, %v3231, 0
  %v3469 = vsel %vm169, %v3232, 0
  %v3472 = vsel %vm169, %v3233, 0
  %v3475 = vsel %vm169, %v3234, 0
  %v3478 = vsel %vm169, %v3235, 0
  %v3481 = vsel %vm169, %v3236, 0
  %v3484 = vsel %vm169, %v3237, 0
  %v3487 = vsel %vm169, %v3238, 0
  %v3490 = vsel %vm169, %v3239, 0
  %v3493 = vsel %vm169, %v3240, 0
  %v3496 = vsel %vm169, %v3241, 0
  %v3499 = vsel %vm169, %v3242, 0
  %v3502 = vsel %vm169, %v3243, 0
  %v3505 = vsel %vm169, %v3244, 0
  %v3508 = vsel %vm169, %v3245, 0
  %v3511 = vsel %vm169, %v3246, 0
  %v3514 = vsel %vm169, %v3247, 0
  %v3517 = vsel %vm169, %v3248, 0
  %v3520 = vsel %vm169, %v3249, 0
  %v3523 = vsel %vm169, %v3250, 0
  %v3526 = vsel %vm169, %v3251, 0
  %v3529 = vsel %vm169, %v3252, 0
  %v3532 = vsel %vm169, %v3253, 0
  %v3535 = vsel %vm169, %v3254, 0
  %v3538 = vsel %vm169, %v3255, 0
  %v3541 = vsel %vm169, %v3256, 0
  %v3544 = vsel %vm169, %v3257, 0
  %v3547 = vsel %vm169, %v3258, 0
  %v3550 = vsel %vm169, %v3259, 0
  %v3553 = vsel %vm169, %v3260, 0
  %v3556 = vsel %vm169, %v3261, 0
  %v3559 = vsel %vm169, %v3262, 0
  %v3562 = vsel %vm169, %v3263, 0
  %v3565 = vsel %vm169, %v3264, 0
  %v3568 = vsel %vm169, %v3265, 0
  %v3571 = vsel %vm169, %v3266, 0
  %v3574 = vsel %vm169, %v3267, 0
  %v3577 = vsel %vm169, %v3268, 0
  %v3580 = vsel %vm169, %v3269, 0
  %v3583 = vsel %vm169, %v3270, 0
  %v3586 = vsel %vm169, %v3271, 0
  %v3589 = vsel %vm169, %v3272, 0
  %v3592 = vsel %vm169, %v3273, 0
  %v3595 = vsel %vm169, %v3274, 0
  %v3598 = vsel %vm169, %v3275, 0
  %v3601 = vsel %vm169, %v3276, 0
  %v3604 = vsel %vm169, %v3277, 0
  %v3607 = vsel %vm169, %v3278, 0
  %v3610 = vsel %vm169, %v3279, 0
  %v3613 = vsel %vm169, %v3280, 0
  %v3616 = vsel %vm169, %v3281, 0
  %v3619 = vsel %vm169, %v3282, 0
  %v3622 = vsel %vm169, %v3283, 0
  %v3625 = vsel %vm169, %v3284, 0
  %v3628 = vsel %vm169, %v3285, 0
  %v3631 = vsel %vm169, %v3286, 0
  %v3634 = vsel %vm169, %v3287, 0
  %v3637 = vsel %vm169, %v3288, 0
  %v3640 = vsel %vm169, %v3289, 0
  %v3643 = vsel %vm169, %v3290, 0
  %v3646 = vsel %vm169, %v3291, 0
  %v3649 = vsel %vm169, %v3292, 0
  %v3652 = vsel %vm169, %v3293, 0
  %v3655 = vsel %vm169, %v3294, 0
  %v3658 = vsel %vm169, %v3295, 0
  %v3661 = vsel %vm169, %v3296, 0
  %v3664 = vsel %vm169, %v3297, 0
  %v3667 = vsel %vm169, %v3298, 0
  %v3670 = vsel %vm169, %v3299, 0
  %v3673 = vsel %vm169, %v3300, 0
  %v3676 = vsel %vm169, %v3301, 0
  %v3679 = vsel %vm169, %v3302, 0
  %v3682 = vsel %vm169, %v3303, 0
  %v3685 = vsel %vm169, %v3304, 0
  %v3688 = vsel %vm169, %v3305, 0
  %v3691 = vsel %vm169, %v3306, 0
  %v3694 = vsel %vm169, %v3307, 0
  %v3697 = vsel %vm169, %v3308, 0
  %v3700 = vsel %vm169, %v3309, 0
  %v3703 = vsel %vm169, %v3310, 0
  %v3706 = vsel %vm169, %v3311, 0
  %v3709 = vsel %vm169, %v3312, 0
  %v3712 = vsel %vm169, %v3313, 0
  %v3715 = vsel %vm169, %v3314, 0
  %v3718 = vsel %vm169, %v3315, 0
  %v3721 = vsel %vm169, %v3316, 0
  %v3724 = vsel %vm169, %v3317, 0
  %v3727 = vsel %vm169, %v3318, 0
  %v3730 = vsel %vm169, %v3319, 0
  %v3733 = vsel %vm169, %v3320, 0
  %v3736 = vsel %vm169, %v3321, 0
  %v3739 = vsel %vm169, %v3322, 0
  %v3742 = vsel %vm169, %v3323, 0
  %v3745 = vsel %vm169, %v3324, 0
  %v3748 = vsel %vm169, %v3325, 0
  %v3751 = vsel %vm169, %v3326, 0
  %v3754 = vsel %vm169, %v3327, 0
  %v3757 = vsel %vm169, %v3328, 0
  %v3760 = vsel %vm169, %v3329, 0
  %3762 = vmatprep.subr.mxu0 0.0
  %3763 = vmatpush1.msra.mxu0 %v158
  %3764 = vmatprep.subr.mxu0 0.0
  %3765 = vmatpush1.msra.mxu0 %v159
  %3766 = vmatprep.subr.mxu0 0.0
  %3767 = vmatpush1.msra.mxu0 %v160
  %3768 = vmatprep.subr.mxu0 0.0
  %3769 = vmatpush1.msra.mxu0 %v604
  %3770 = vmatprep.subr.mxu0 0.0
  %3771 = vmatpush1.msra.mxu0 0.0
  %3772 = vmatprep.subr.mxu0 0.0
  %3773 = vmatpush1.msra.mxu0 0.0
  %3774 = vmatprep.subr.mxu0 0.0
  %3775 = vmatpush1.msra.mxu0 0.0
  %3776 = vmatprep.subr.mxu0 0.0
  %3777 = vmatpush1.msra.mxu0 0.0
  %3778 = vmatprep.subr.mxu0 0.0
  %3779 = vmatpush1.msra.mxu0 0.0
  %3780 = vmatprep.subr.mxu0 0.0
  %3781 = vmatpush1.msra.mxu0 0.0
  %3782 = vmatprep.subr.mxu0 0.0
  %3783 = vmatpush1.msra.mxu0 0.0
  %3784 = vmatprep.subr.mxu0 0.0
  %3785 = vmatpush1.msra.mxu0 0.0
  %3786 = vmatprep.subr.mxu0 0.0
  %3787 = vmatpush1.msra.mxu0 0.0
  %3788 = vmatprep.subr.mxu0 0.0
  %3789 = vmatpush1.msra.mxu0 0.0
  %3790 = vmatprep.subr.mxu0 0.0
  %3791 = vmatpush1.msra.mxu0 0.0
  %3792 = vmatprep.subr.mxu0 0.0
  %3793 = vmatpush1.msra.mxu0 0.0
  %3794 = vmatprep.subr.mxu0 0.0
  %3795 = vmatpush1.msra.mxu0 0.0
  %3796 = vmatprep.subr.mxu0 0.0
  %3797 = vmatpush1.msra.mxu0 0.0
  %3798 = vmatprep.subr.mxu0 0.0
  %3799 = vmatpush1.msra.mxu0 0.0
  %3800 = vmatprep.subr.mxu0 0.0
  %3801 = vmatpush1.msra.mxu0 0.0
  %3802 = vmatprep.subr.mxu0 0.0
  %3803 = vmatpush1.msra.mxu0 0.0
  %3804 = vmatprep.subr.mxu0 0.0
  %3805 = vmatpush1.msra.mxu0 0.0
  %3806 = vmatprep.subr.mxu0 0.0
  %3807 = vmatpush1.msra.mxu0 0.0
  %3808 = vmatprep.subr.mxu0 0.0
  %3809 = vmatpush1.msra.mxu0 0.0
  %3810 = vmatprep.subr.mxu0 0.0
  %3811 = vmatpush1.msra.mxu0 0.0
  %3812 = vmatprep.subr.mxu0 0.0
  %3813 = vmatpush1.msra.mxu0 0.0
  %3814 = vmatprep.subr.mxu0 0.0
  %3815 = vmatpush1.msra.mxu0 0.0
  %3816 = vmatprep.subr.mxu0 0.0
  %3817 = vmatpush1.msra.mxu0 0.0
  %3818 = vmatprep.subr.mxu0 0.0
  %3819 = vmatpush1.msra.mxu0 0.0
  %3820 = vmatprep.subr.mxu0 0.0
  %3821 = vmatpush1.msra.mxu0 0.0
  %3822 = vmatprep.subr.mxu0 0.0
  %3823 = vmatpush1.msra.mxu0 0.0
  %3824 = vmatprep.subr.mxu0 0.0
  %3825 = vmatpush1.msra.mxu0 0.0
  %3826 = vmatprep.mubr.f32.mxu0 0.0
  %3827 = vmatmul.mubr.f32.gmra.mrb[0].mxu0 %v3331
  %v3828 = vpop.f32.mrb[0].mxu0
  %v3829 = vadd.f32 %v167, %v3828
  %v3830 = vpop.f32.mrb[0].mxu0
  %3831 = vmatprep.mubr.f32.mxu0 0.0
  %3832 = vmatmul.mubr.f32.gmra.mrb[0].mxu0 %v3334
  %v3833 = vpop.f32.mrb[0].mxu0
  %v3834 = vadd.f32 %v167, %v3833
  %v3835 = vpop.f32.mrb[0].mxu0
  %3836 = vmatprep.mubr.f32.mxu0 0.0
  %3837 = vmatmul.mubr.f32.gmra.mrb[0].mxu0 %v3337
  %v3838 = vpop.f32.mrb[0].mxu0
  %v3839 = vadd.f32 %v167, %v3838
  %v3840 = vpop.f32.mrb[0].mxu0
  %3841 = vmatprep.mubr.f32.mxu0 0.0
  %3842 = vmatmul.mubr.f32.gmra.mrb[0].mxu0 %v3340
  %v3843 = vpop.f32.mrb[0].mxu0
  %v3844 = vadd.f32 %v167, %v3843
  %v3845 = vpop.f32.mrb[0].mxu0
  %3846 = vmatprep.mubr.f32.mxu0 0.0
  %3847 = vmatmul.mubr.f32.gmra.mrb[0].mxu0 %v3343
  %v3848 = vpop.f32.mrb[0].mxu0
  %v3849 = vadd.f32 %v167, %v3848
  %v3850 = vpop.f32.mrb[0].mxu0
  %3851 = vmatprep.mubr.f32.mxu0 0.0
  %3852 = vmatmul.mubr.f32.gmra.mrb[0].mxu0 %v3346
  %v3853 = vpop.f32.mrb[0].mxu0
  %v3854 = vadd.f32 %v167, %v3853
  %v3855 = vpop.f32.mrb[0].mxu0
  %3856 = vmatprep.mubr.f32.mxu0 0.0
  %3857 = vmatmul.mubr.f32.gmra.mrb[0].mxu0 %v3349
  %v3858 = vpop.f32.mrb[0].mxu0
  %v3859 = vadd.f32 %v167, %v3858
  %v3860 = vpop.f32.mrb[0].mxu0
  %3861 = vmatprep.mubr.f32.mxu0 0.0
  %3862 = vmatmul.mubr.f32.gmra.mrb[0].mxu0 %v3352
  %v3863 = vpop.f32.mrb[0].mxu0
  %v3864 = vadd.f32 %v167, %v3863
  %v3865 = vpop.f32.mrb[0].mxu0
  %3866 = vmatprep.mubr.f32.mxu0 0.0
  %3867 = vmatmul.mubr.f32.gmra.mrb[0].mxu0 %v3355
  %v3868 = vpop.f32.mrb[0].mxu0
  %v3869 = vadd.f32 %v167, %v3868
  %v3870 = vpop.f32.mrb[0].mxu0
  %3871 = vmatprep.mubr.f32.mxu0 0.0
  %3872 = vmatmul.mubr.f32.gmra.mrb[0].mxu0 %v3358
  %v3873 = vpop.f32.mrb[0].mxu0
  %v3874 = vadd.f32 %v167, %v3873
  %v3875 = vpop.f32.mrb[0].mxu0
  %3876 = vmatprep.mubr.f32.mxu0 0.0
  %3877 = vmatmul.mubr.f32.gmra.mrb[0].mxu0 %v3361
  %v3878 = vpop.f32.mrb[0].mxu0
  %v3879 = vadd.f32 %v167, %v3878
  %v3880 = vpop.f32.mrb[0].mxu0
  %3881 = vmatprep.mubr.f32.mxu0 0.0
  %3882 = vmatmul.mubr.f32.gmra.mrb[0].mxu0 %v3364
  %v3883 = vpop.f32.mrb[0].mxu0
  %v3884 = vadd.f32 %v167, %v3883
  %v3885 = vpop.f32.mrb[0].mxu0
  %3886 = vmatprep.mubr.f32.mxu0 0.0
  %3887 = vmatmul.mubr.f32.gmra.mrb[0].mxu0 %v3367
  %v3888 = vpop.f32.mrb[0].mxu0
  %v3889 = vadd.f32 %v167, %v3888
  %v3890 = vpop.f32.mrb[0].mxu0
  %3891 = vmatprep.mubr.f32.mxu0 0.0
  %3892 = vmatmul.mubr.f32.gmra.mrb[0].mxu0 %v3370
  %v3893 = vpop.f32.mrb[0].mxu0
  %v3894 = vadd.f32 %v167, %v3893
  %v3895 = vpop.f32.mrb[0].mxu0
  %3896 = vmatprep.mubr.f32.mxu0 0.0
  %3897 = vmatmul.mubr.f32.gmra.mrb[0].mxu0 %v3373
  %v3898 = vpop.f32.mrb[0].mxu0
  %v3899 = vadd.f32 %v167, %v3898
  %v3900 = vpop.f32.mrb[0].mxu0
  %3901 = vmatprep.mubr.f32.mxu0 0.0
  %3902 = vmatmul.mubr.f32.gmra.mrb[0].mxu0 %v3376
  %v3903 = vpop.f32.mrb[0].mxu0
  %v3904 = vadd.f32 %v167, %v3903
  %v3905 = vpop.f32.mrb[0].mxu0
  %3906 = vmatprep.mubr.f32.mxu0 0.0
  %3907 = vmatmul.mubr.f32.gmra.mrb[0].mxu0 %v3379
  %v3908 = vpop.f32.mrb[0].mxu0
  %v3909 = vadd.f32 %v167, %v3908
  %v3910 = vpop.f32.mrb[0].mxu0
  %3911 = vmatprep.mubr.f32.mxu0 0.0
  %3912 = vmatmul.mubr.f32.gmra.mrb[0].mxu0 %v3382
  %v3913 = vpop.f32.mrb[0].mxu0
  %v3914 = vadd.f32 %v167, %v3913
  %v3915 = vpop.f32.mrb[0].mxu0
  %3916 = vmatprep.mubr.f32.mxu0 0.0
  %3917 = vmatmul.mubr.f32.gmra.mrb[0].mxu0 %v3385
  %v3918 = vpop.f32.mrb[0].mxu0
  %v3919 = vadd.f32 %v167, %v3918
  %v3920 = vpop.f32.mrb[0].mxu0
  %3921 = vmatprep.mubr.f32.mxu0 0.0
  %3922 = vmatmul.mubr.f32.gmra.mrb[0].mxu0 %v3388
  %v3923 = vpop.f32.mrb[0].mxu0
  %v3924 = vadd.f32 %v167, %v3923
  %v3925 = vpop.f32.mrb[0].mxu0
  %3926 = vmatprep.mubr.f32.mxu0 0.0
  %3927 = vmatmul.mubr.f32.gmra.mrb[0].mxu0 %v3391
  %v3928 = vpop.f32.mrb[0].mxu0
  %v3929 = vadd.f32 %v167, %v3928
  %v3930 = vpop.f32.mrb[0].mxu0
  %3931 = vmatprep.mubr.f32.mxu0 0.0
  %3932 = vmatmul.mubr.f32.gmra.mrb[0].mxu0 %v3394
  %v3933 = vpop.f32.mrb[0].mxu0
  %v3934 = vadd.f32 %v167, %v3933
  %v3935 = vpop.f32.mrb[0].mxu0
  %3936 = vmatprep.mubr.f32.mxu0 0.0
  %3937 = vmatmul.mubr.f32.gmra.mrb[0].mxu0 %v3397
  %v3938 = vpop.f32.mrb[0].mxu0
  %v3939 = vadd.f32 %v167, %v3938
  %v3940 = vpop.f32.mrb[0].mxu0
  %3941 = vmatprep.mubr.f32.mxu0 0.0
  %3942 = vmatmul.mubr.f32.gmra.mrb[0].mxu0 %v3400
  %v3943 = vpop.f32.mrb[0].mxu0
  %v3944 = vadd.f32 %v167, %v3943
  %v3945 = vpop.f32.mrb[0].mxu0
  %3946 = vmatprep.mubr.f32.mxu0 0.0
  %3947 = vmatmul.mubr.f32.gmra.mrb[0].mxu0 %v3403
  %v3948 = vpop.f32.mrb[0].mxu0
  %v3949 = vadd.f32 %v167, %v3948
  %v3950 = vpop.f32.mrb[0].mxu0
  %3951 = vmatprep.mubr.f32.mxu0 0.0
  %3952 = vmatmul.mubr.f32.gmra.mrb[0].mxu0 %v3406
  %v3953 = vpop.f32.mrb[0].mxu0
  %v3954 = vadd.f32 %v167, %v3953
  %v3955 = vpop.f32.mrb[0].mxu0
  %3956 = vmatprep.mubr.f32.mxu0 0.0
  %3957 = vmatmul.mubr.f32.gmra.mrb[0].mxu0 %v3409
  %v3958 = vpop.f32.mrb[0].mxu0
  %v3959 = vadd.f32 %v167, %v3958
  %v3960 = vpop.f32.mrb[0].mxu0
  %3961 = vmatprep.mubr.f32.mxu0 0.0
  %3962 = vmatmul.mubr.f32.gmra.mrb[0].mxu0 %v3412
  %v3963 = vpop.f32.mrb[0].mxu0
  %v3964 = vadd.f32 %v167, %v3963
  %v3965 = vpop.f32.mrb[0].mxu0
  %3966 = vmatprep.mubr.f32.mxu0 0.0
  %3967 = vmatmul.mubr.f32.gmra.mrb[0].mxu0 %v3415
  %v3968 = vpop.f32.mrb[0].mxu0
  %v3969 = vadd.f32 %v167, %v3968
  %v3970 = vpop.f32.mrb[0].mxu0
  %3971 = vmatprep.mubr.f32.mxu0 0.0
  %3972 = vmatmul.mubr.f32.gmra.mrb[0].mxu0 %v3418
  %v3973 = vpop.f32.mrb[0].mxu0
  %v3974 = vadd.f32 %v167, %v3973
  %v3975 = vpop.f32.mrb[0].mxu0
  %3976 = vmatprep.mubr.f32.mxu0 0.0
  %3977 = vmatmul.mubr.f32.gmra.mrb[0].mxu0 %v3421
  %v3978 = vpop.f32.mrb[0].mxu0
  %v3979 = vadd.f32 %v167, %v3978
  %v3980 = vpop.f32.mrb[0].mxu0
  %3981 = vmatprep.mubr.f32.mxu0 0.0
  %3982 = vmatmul.mubr.f32.gmra.mrb[0].mxu0 %v3424
  %v3983 = vpop.f32.mrb[0].mxu0
  %v3984 = vadd.f32 %v167, %v3983
  %v3985 = vpop.f32.mrb[0].mxu0
  %3986 = vmatprep.mubr.f32.mxu0 0.0
  %3987 = vmatmul.mubr.f32.gmra.mrb[0].mxu0 %v3427
  %v3988 = vpop.f32.mrb[0].mxu0
  %v3989 = vadd.f32 %v167, %v3988
  %v3990 = vpop.f32.mrb[0].mxu0
  %3991 = vmatprep.mubr.f32.mxu0 0.0
  %3992 = vmatmul.mubr.f32.gmra.mrb[0].mxu0 %v3430
  %v3993 = vpop.f32.mrb[0].mxu0
  %v3994 = vadd.f32 %v167, %v3993
  %v3995 = vpop.f32.mrb[0].mxu0
  %3996 = vmatprep.mubr.f32.mxu0 0.0
  %3997 = vmatmul.mubr.f32.gmra.mrb[0].mxu0 %v3433
  %v3998 = vpop.f32.mrb[0].mxu0
  %v3999 = vadd.f32 %v167, %v3998
  %v4000 = vpop.f32.mrb[0].mxu0
  %4001 = vmatprep.mubr.f32.mxu0 0.0
  %4002 = vmatmul.mubr.f32.gmra.mrb[0].mxu0 %v3436
  %v4003 = vpop.f32.mrb[0].mxu0
  %v4004 = vadd.f32 %v167, %v4003
  %v4005 = vpop.f32.mrb[0].mxu0
  %4006 = vmatprep.mubr.f32.mxu0 0.0
  %4007 = vmatmul.mubr.f32.gmra.mrb[0].mxu0 %v3439
  %v4008 = vpop.f32.mrb[0].mxu0
  %v4009 = vadd.f32 %v167, %v4008
  %v4010 = vpop.f32.mrb[0].mxu0
  %4011 = vmatprep.mubr.f32.mxu0 0.0
  %4012 = vmatmul.mubr.f32.gmra.mrb[0].mxu0 %v3442
  %v4013 = vpop.f32.mrb[0].mxu0
  %v4014 = vadd.f32 %v167, %v4013
  %v4015 = vpop.f32.mrb[0].mxu0
  %4016 = vmatprep.mubr.f32.mxu0 0.0
  %4017 = vmatmul.mubr.f32.gmra.mrb[0].mxu0 %v3445
  %v4018 = vpop.f32.mrb[0].mxu0
  %v4019 = vadd.f32 %v167, %v4018
  %v4020 = vpop.f32.mrb[0].mxu0
  %4021 = vmatprep.mubr.f32.mxu0 0.0
  %4022 = vmatmul.mubr.f32.gmra.mrb[0].mxu0 %v3448
  %v4023 = vpop.f32.mrb[0].mxu0
  %v4024 = vadd.f32 %v167, %v4023
  %v4025 = vpop.f32.mrb[0].mxu0
  %4026 = vmatprep.mubr.f32.mxu0 0.0
  %4027 = vmatmul.mubr.f32.gmra.mrb[0].mxu0 %v3451
  %v4028 = vpop.f32.mrb[0].mxu0
  %v4029 = vadd.f32 %v167, %v4028
  %v4030 = vpop.f32.mrb[0].mxu0
  %4031 = vmatprep.mubr.f32.mxu0 0.0
  %4032 = vmatmul.mubr.f32.gmra.mrb[0].mxu0 %v3454
  %v4033 = vpop.f32.mrb[0].mxu0
  %v4034 = vadd.f32 %v167, %v4033
  %v4035 = vpop.f32.mrb[0].mxu0
  %4036 = vmatprep.mubr.f32.mxu0 0.0
  %4037 = vmatmul.mubr.f32.gmra.mrb[0].mxu0 %v3457
  %v4038 = vpop.f32.mrb[0].mxu0
  %v4039 = vadd.f32 %v167, %v4038
  %v4040 = vpop.f32.mrb[0].mxu0
  %4041 = vmatprep.mubr.f32.mxu0 0.0
  %4042 = vmatmul.mubr.f32.gmra.mrb[0].mxu0 %v3460
  %v4043 = vpop.f32.mrb[0].mxu0
  %v4044 = vadd.f32 %v167, %v4043
  %v4045 = vpop.f32.mrb[0].mxu0
  %4046 = vmatprep.mubr.f32.mxu0 0.0
  %4047 = vmatmul.mubr.f32.gmra.mrb[0].mxu0 %v3463
  %v4048 = vpop.f32.mrb[0].mxu0
  %v4049 = vadd.f32 %v167, %v4048
  %v4050 = vpop.f32.mrb[0].mxu0
  %4051 = vmatprep.mubr.f32.mxu0 0.0
  %4052 = vmatmul.mubr.f32.gmra.mrb[0].mxu0 %v3466
  %v4053 = vpop.f32.mrb[0].mxu0
  %v4054 = vadd.f32 %v167, %v4053
  %v4055 = vpop.f32.mrb[0].mxu0
  %4056 = vmatprep.mubr.f32.mxu0 0.0
  %4057 = vmatmul.mubr.f32.gmra.mrb[0].mxu0 %v3469
  %v4058 = vpop.f32.mrb[0].mxu0
  %v4059 = vadd.f32 %v167, %v4058
  %v4060 = vpop.f32.mrb[0].mxu0
  %4061 = vmatprep.mubr.f32.mxu0 0.0
  %4062 = vmatmul.mubr.f32.gmra.mrb[0].mxu0 %v3472
  %v4063 = vpop.f32.mrb[0].mxu0
  %v4064 = vadd.f32 %v167, %v4063
  %v4065 = vpop.f32.mrb[0].mxu0
  %4066 = vmatprep.mubr.f32.mxu0 0.0
  %4067 = vmatmul.mubr.f32.gmra.mrb[0].mxu0 %v3475
  %v4068 = vpop.f32.mrb[0].mxu0
  %v4069 = vadd.f32 %v167, %v4068
  %v4070 = vpop.f32.mrb[0].mxu0
  %4071 = vmatprep.mubr.f32.mxu0 0.0
  %4072 = vmatmul.mubr.f32.gmra.mrb[0].mxu0 %v3478
  %v4073 = vpop.f32.mrb[0].mxu0
  %v4074 = vadd.f32 %v167, %v4073
  %v4075 = vpop.f32.mrb[0].mxu0
  %4076 = vmatprep.mubr.f32.mxu0 0.0
  %4077 = vmatmul.mubr.f32.gmra.mrb[0].mxu0 %v3481
  %v4078 = vpop.f32.mrb[0].mxu0
  %v4079 = vadd.f32 %v167, %v4078
  %v4080 = vpop.f32.mrb[0].mxu0
  %4081 = vmatprep.mubr.f32.mxu0 0.0
  %4082 = vmatmul.mubr.f32.gmra.mrb[0].mxu0 %v3484
  %v4083 = vpop.f32.mrb[0].mxu0
  %v4084 = vadd.f32 %v167, %v4083
  %v4085 = vpop.f32.mrb[0].mxu0
  %4086 = vmatprep.mubr.f32.mxu0 0.0
  %4087 = vmatmul.mubr.f32.gmra.mrb[0].mxu0 %v3487
  %v4088 = vpop.f32.mrb[0].mxu0
  %v4089 = vadd.f32 %v167, %v4088
  %v4090 = vpop.f32.mrb[0].mxu0
  %4091 = vmatprep.mubr.f32.mxu0 0.0
  %4092 = vmatmul.mubr.f32.gmra.mrb[0].mxu0 %v3490
  %v4093 = vpop.f32.mrb[0].mxu0
  %v4094 = vadd.f32 %v167, %v4093
  %v4095 = vpop.f32.mrb[0].mxu0
  %4096 = vmatprep.mubr.f32.mxu0 0.0
  %4097 = vmatmul.mubr.f32.gmra.mrb[0].mxu0 %v3493
  %v4098 = vpop.f32.mrb[0].mxu0
  %v4099 = vadd.f32 %v167, %v4098
  %v4100 = vpop.f32.mrb[0].mxu0
  %4101 = vmatprep.mubr.f32.mxu0 0.0
  %4102 = vmatmul.mubr.f32.gmra.mrb[0].mxu0 %v3496
  %v4103 = vpop.f32.mrb[0].mxu0
  %v4104 = vadd.f32 %v167, %v4103
  %v4105 = vpop.f32.mrb[0].mxu0
  %4106 = vmatprep.mubr.f32.mxu0 0.0
  %4107 = vmatmul.mubr.f32.gmra.mrb[0].mxu0 %v3499
  %v4108 = vpop.f32.mrb[0].mxu0
  %v4109 = vadd.f32 %v167, %v4108
  %v4110 = vpop.f32.mrb[0].mxu0
  %4111 = vmatprep.mubr.f32.mxu0 0.0
  %4112 = vmatmul.mubr.f32.gmra.mrb[0].mxu0 %v3502
  %v4113 = vpop.f32.mrb[0].mxu0
  %v4114 = vadd.f32 %v167, %v4113
  %v4115 = vpop.f32.mrb[0].mxu0
  %4116 = vmatprep.mubr.f32.mxu0 0.0
  %4117 = vmatmul.mubr.f32.gmra.mrb[0].mxu0 %v3505
  %v4118 = vpop.f32.mrb[0].mxu0
  %v4119 = vadd.f32 %v167, %v4118
  %v4120 = vpop.f32.mrb[0].mxu0
  %4121 = vmatprep.mubr.f32.mxu0 0.0
  %4122 = vmatmul.mubr.f32.gmra.mrb[0].mxu0 %v3508
  %v4123 = vpop.f32.mrb[0].mxu0
  %v4124 = vadd.f32 %v167, %v4123
  %v4125 = vpop.f32.mrb[0].mxu0
  %4126 = vmatprep.mubr.f32.mxu0 0.0
  %4127 = vmatmul.mubr.f32.gmra.mrb[0].mxu0 %v3511
  %v4128 = vpop.f32.mrb[0].mxu0
  %v4129 = vadd.f32 %v167, %v4128
  %v4130 = vpop.f32.mrb[0].mxu0
  %4131 = vmatprep.mubr.f32.mxu0 0.0
  %4132 = vmatmul.mubr.f32.gmra.mrb[0].mxu0 %v3514
  %v4133 = vpop.f32.mrb[0].mxu0
  %v4134 = vadd.f32 %v167, %v4133
  %v4135 = vpop.f32.mrb[0].mxu0
  %4136 = vmatprep.mubr.f32.mxu0 0.0
  %4137 = vmatmul.mubr.f32.gmra.mrb[0].mxu0 %v3517
  %v4138 = vpop.f32.mrb[0].mxu0
  %v4139 = vadd.f32 %v167, %v4138
  %v4140 = vpop.f32.mrb[0].mxu0
  %4141 = vmatprep.mubr.f32.mxu0 0.0
  %4142 = vmatmul.mubr.f32.gmra.mrb[0].mxu0 %v3520
  %v4143 = vpop.f32.mrb[0].mxu0
  %v4144 = vadd.f32 %v167, %v4143
  %v4145 = vpop.f32.mrb[0].mxu0
  %4146 = vmatprep.mubr.f32.mxu0 0.0
  %4147 = vmatmul.mubr.f32.gmra.mrb[0].mxu0 %v3523
  %v4148 = vpop.f32.mrb[0].mxu0
  %v4149 = vadd.f32 %v167, %v4148
  %v4150 = vpop.f32.mrb[0].mxu0
  %4151 = vmatprep.mubr.f32.mxu0 0.0
  %4152 = vmatmul.mubr.f32.gmra.mrb[0].mxu0 %v3526
  %v4153 = vpop.f32.mrb[0].mxu0
  %v4154 = vadd.f32 %v167, %v4153
  %v4155 = vpop.f32.mrb[0].mxu0
  %4156 = vmatprep.mubr.f32.mxu0 0.0
  %4157 = vmatmul.mubr.f32.gmra.mrb[0].mxu0 %v3529
  %v4158 = vpop.f32.mrb[0].mxu0
  %v4159 = vadd.f32 %v167, %v4158
  %v4160 = vpop.f32.mrb[0].mxu0
  %4161 = vmatprep.mubr.f32.mxu0 0.0
  %4162 = vmatmul.mubr.f32.gmra.mrb[0].mxu0 %v3532
  %v4163 = vpop.f32.mrb[0].mxu0
  %v4164 = vadd.f32 %v167, %v4163
  %v4165 = vpop.f32.mrb[0].mxu0
  %4166 = vmatprep.mubr.f32.mxu0 0.0
  %4167 = vmatmul.mubr.f32.gmra.mrb[0].mxu0 %v3535
  %v4168 = vpop.f32.mrb[0].mxu0
  %v4169 = vadd.f32 %v167, %v4168
  %v4170 = vpop.f32.mrb[0].mxu0
  %4171 = vmatprep.mubr.f32.mxu0 0.0
  %4172 = vmatmul.mubr.f32.gmra.mrb[0].mxu0 %v3538
  %v4173 = vpop.f32.mrb[0].mxu0
  %v4174 = vadd.f32 %v167, %v4173
  %v4175 = vpop.f32.mrb[0].mxu0
  %4176 = vmatprep.mubr.f32.mxu0 0.0
  %4177 = vmatmul.mubr.f32.gmra.mrb[0].mxu0 %v3541
  %v4178 = vpop.f32.mrb[0].mxu0
  %v4179 = vadd.f32 %v167, %v4178
  %v4180 = vpop.f32.mrb[0].mxu0
  %4181 = vmatprep.mubr.f32.mxu0 0.0
  %4182 = vmatmul.mubr.f32.gmra.mrb[0].mxu0 %v3544
  %v4183 = vpop.f32.mrb[0].mxu0
  %v4184 = vadd.f32 %v167, %v4183
  %v4185 = vpop.f32.mrb[0].mxu0
  %4186 = vmatprep.mubr.f32.mxu0 0.0
  %4187 = vmatmul.mubr.f32.gmra.mrb[0].mxu0 %v3547
  %v4188 = vpop.f32.mrb[0].mxu0
  %v4189 = vadd.f32 %v167, %v4188
  %v4190 = vpop.f32.mrb[0].mxu0
  %4191 = vmatprep.mubr.f32.mxu0 0.0
  %4192 = vmatmul.mubr.f32.gmra.mrb[0].mxu0 %v3550
  %v4193 = vpop.f32.mrb[0].mxu0
  %v4194 = vadd.f32 %v167, %v4193
  %v4195 = vpop.f32.mrb[0].mxu0
  %4196 = vmatprep.mubr.f32.mxu0 0.0
  %4197 = vmatmul.mubr.f32.gmra.mrb[0].mxu0 %v3553
  %v4198 = vpop.f32.mrb[0].mxu0
  %v4199 = vadd.f32 %v167, %v4198
  %v4200 = vpop.f32.mrb[0].mxu0
  %4201 = vmatprep.mubr.f32.mxu0 0.0
  %4202 = vmatmul.mubr.f32.gmra.mrb[0].mxu0 %v3556
  %v4203 = vpop.f32.mrb[0].mxu0
  %v4204 = vadd.f32 %v167, %v4203
  %v4205 = vpop.f32.mrb[0].mxu0
  %4206 = vmatprep.mubr.f32.mxu0 0.0
  %4207 = vmatmul.mubr.f32.gmra.mrb[0].mxu0 %v3559
  %v4208 = vpop.f32.mrb[0].mxu0
  %v4209 = vadd.f32 %v167, %v4208
  %v4210 = vpop.f32.mrb[0].mxu0
  %4211 = vmatprep.mubr.f32.mxu0 0.0
  %4212 = vmatmul.mubr.f32.gmra.mrb[0].mxu0 %v3562
  %v4213 = vpop.f32.mrb[0].mxu0
  %v4214 = vadd.f32 %v167, %v4213
  %v4215 = vpop.f32.mrb[0].mxu0
  %4216 = vmatprep.mubr.f32.mxu0 0.0
  %4217 = vmatmul.mubr.f32.gmra.mrb[0].mxu0 %v3565
  %v4218 = vpop.f32.mrb[0].mxu0
  %v4219 = vadd.f32 %v167, %v4218
  %v4220 = vpop.f32.mrb[0].mxu0
  %4221 = vmatprep.mubr.f32.mxu0 0.0
  %4222 = vmatmul.mubr.f32.gmra.mrb[0].mxu0 %v3568
  %v4223 = vpop.f32.mrb[0].mxu0
  %v4224 = vadd.f32 %v167, %v4223
  %v4225 = vpop.f32.mrb[0].mxu0
  %4226 = vmatprep.mubr.f32.mxu0 0.0
  %4227 = vmatmul.mubr.f32.gmra.mrb[0].mxu0 %v3571
  %v4228 = vpop.f32.mrb[0].mxu0
  %v4229 = vadd.f32 %v167, %v4228
  %v4230 = vpop.f32.mrb[0].mxu0
  %4231 = vmatprep.mubr.f32.mxu0 0.0
  %4232 = vmatmul.mubr.f32.gmra.mrb[0].mxu0 %v3574
  %v4233 = vpop.f32.mrb[0].mxu0
  %v4234 = vadd.f32 %v167, %v4233
  %v4235 = vpop.f32.mrb[0].mxu0
  %4236 = vmatprep.mubr.f32.mxu0 0.0
  %4237 = vmatmul.mubr.f32.gmra.mrb[0].mxu0 %v3577
  %v4238 = vpop.f32.mrb[0].mxu0
  %v4239 = vadd.f32 %v167, %v4238
  %v4240 = vpop.f32.mrb[0].mxu0
  %4241 = vmatprep.mubr.f32.mxu0 0.0
  %4242 = vmatmul.mubr.f32.gmra.mrb[0].mxu0 %v3580
  %v4243 = vpop.f32.mrb[0].mxu0
  %v4244 = vadd.f32 %v167, %v4243
  %v4245 = vpop.f32.mrb[0].mxu0
  %4246 = vmatprep.mubr.f32.mxu0 0.0
  %4247 = vmatmul.mubr.f32.gmra.mrb[0].mxu0 %v3583
  %v4248 = vpop.f32.mrb[0].mxu0
  %v4249 = vadd.f32 %v167, %v4248
  %v4250 = vpop.f32.mrb[0].mxu0
  %4251 = vmatprep.mubr.f32.mxu0 0.0
  %4252 = vmatmul.mubr.f32.gmra.mrb[0].mxu0 %v3586
  %v4253 = vpop.f32.mrb[0].mxu0
  %v4254 = vadd.f32 %v167, %v4253
  %v4255 = vpop.f32.mrb[0].mxu0
  %4256 = vmatprep.mubr.f32.mxu0 0.0
  %4257 = vmatmul.mubr.f32.gmra.mrb[0].mxu0 %v3589
  %v4258 = vpop.f32.mrb[0].mxu0
  %v4259 = vadd.f32 %v167, %v4258
  %v4260 = vpop.f32.mrb[0].mxu0
  %4261 = vmatprep.mubr.f32.mxu0 0.0
  %4262 = vmatmul.mubr.f32.gmra.mrb[0].mxu0 %v3592
  %v4263 = vpop.f32.mrb[0].mxu0
  %v4264 = vadd.f32 %v167, %v4263
  %v4265 = vpop.f32.mrb[0].mxu0
  %4266 = vmatprep.mubr.f32.mxu0 0.0
  %4267 = vmatmul.mubr.f32.gmra.mrb[0].mxu0 %v3595
  %v4268 = vpop.f32.mrb[0].mxu0
  %v4269 = vadd.f32 %v167, %v4268
  %v4270 = vpop.f32.mrb[0].mxu0
  %4271 = vmatprep.mubr.f32.mxu0 0.0
  %4272 = vmatmul.mubr.f32.gmra.mrb[0].mxu0 %v3598
  %v4273 = vpop.f32.mrb[0].mxu0
  %v4274 = vadd.f32 %v167, %v4273
  %v4275 = vpop.f32.mrb[0].mxu0
  %4276 = vmatprep.mubr.f32.mxu0 0.0
  %4277 = vmatmul.mubr.f32.gmra.mrb[0].mxu0 %v3601
  %v4278 = vpop.f32.mrb[0].mxu0
  %v4279 = vadd.f32 %v167, %v4278
  %v4280 = vpop.f32.mrb[0].mxu0
  %4281 = vmatprep.mubr.f32.mxu0 0.0
  %4282 = vmatmul.mubr.f32.gmra.mrb[0].mxu0 %v3604
  %v4283 = vpop.f32.mrb[0].mxu0
  %v4284 = vadd.f32 %v167, %v4283
  %v4285 = vpop.f32.mrb[0].mxu0
  %4286 = vmatprep.mubr.f32.mxu0 0.0
  %4287 = vmatmul.mubr.f32.gmra.mrb[0].mxu0 %v3607
  %v4288 = vpop.f32.mrb[0].mxu0
  %v4289 = vadd.f32 %v167, %v4288
  %v4290 = vpop.f32.mrb[0].mxu0
  %4291 = vmatprep.mubr.f32.mxu0 0.0
  %4292 = vmatmul.mubr.f32.gmra.mrb[0].mxu0 %v3610
  %v4293 = vpop.f32.mrb[0].mxu0
  %v4294 = vadd.f32 %v167, %v4293
  %v4295 = vpop.f32.mrb[0].mxu0
  %4296 = vmatprep.mubr.f32.mxu0 0.0
  %4297 = vmatmul.mubr.f32.gmra.mrb[0].mxu0 %v3613
  %v4298 = vpop.f32.mrb[0].mxu0
  %v4299 = vadd.f32 %v167, %v4298
  %v4300 = vpop.f32.mrb[0].mxu0
  %4301 = vmatprep.mubr.f32.mxu0 0.0
  %4302 = vmatmul.mubr.f32.gmra.mrb[0].mxu0 %v3616
  %v4303 = vpop.f32.mrb[0].mxu0
  %v4304 = vadd.f32 %v167, %v4303
  %v4305 = vpop.f32.mrb[0].mxu0
  %4306 = vmatprep.mubr.f32.mxu0 0.0
  %4307 = vmatmul.mubr.f32.gmra.mrb[0].mxu0 %v3619
  %v4308 = vpop.f32.mrb[0].mxu0
  %v4309 = vadd.f32 %v167, %v4308
  %v4310 = vpop.f32.mrb[0].mxu0
  %4311 = vmatprep.mubr.f32.mxu0 0.0
  %4312 = vmatmul.mubr.f32.gmra.mrb[0].mxu0 %v3622
  %v4313 = vpop.f32.mrb[0].mxu0
  %v4314 = vadd.f32 %v167, %v4313
  %v4315 = vpop.f32.mrb[0].mxu0
  %4316 = vmatprep.mubr.f32.mxu0 0.0
  %4317 = vmatmul.mubr.f32.gmra.mrb[0].mxu0 %v3625
  %v4318 = vpop.f32.mrb[0].mxu0
  %v4319 = vadd.f32 %v167, %v4318
  %v4320 = vpop.f32.mrb[0].mxu0
  %4321 = vmatprep.mubr.f32.mxu0 0.0
  %4322 = vmatmul.mubr.f32.gmra.mrb[0].mxu0 %v3628
  %v4323 = vpop.f32.mrb[0].mxu0
  %v4324 = vadd.f32 %v167, %v4323
  %v4325 = vpop.f32.mrb[0].mxu0
  %4326 = vmatprep.mubr.f32.mxu0 0.0
  %4327 = vmatmul.mubr.f32.gmra.mrb[0].mxu0 %v3631
  %v4328 = vpop.f32.mrb[0].mxu0
  %v4329 = vadd.f32 %v167, %v4328
  %v4330 = vpop.f32.mrb[0].mxu0
  %4331 = vmatprep.mubr.f32.mxu0 0.0
  %4332 = vmatmul.mubr.f32.gmra.mrb[0].mxu0 %v3634
  %v4333 = vpop.f32.mrb[0].mxu0
  %v4334 = vadd.f32 %v167, %v4333
  %v4335 = vpop.f32.mrb[0].mxu0
  %4336 = vmatprep.mubr.f32.mxu0 0.0
  %4337 = vmatmul.mubr.f32.gmra.mrb[0].mxu0 %v3637
  %v4338 = vpop.f32.mrb[0].mxu0
  %v4339 = vadd.f32 %v167, %v4338
  %v4340 = vpop.f32.mrb[0].mxu0
  %4341 = vmatprep.mubr.f32.mxu0 0.0
  %4342 = vmatmul.mubr.f32.gmra.mrb[0].mxu0 %v3640
  %v4343 = vpop.f32.mrb[0].mxu0
  %v4344 = vadd.f32 %v167, %v4343
  %v4345 = vpop.f32.mrb[0].mxu0
  %4346 = vmatprep.mubr.f32.mxu0 0.0
  %4347 = vmatmul.mubr.f32.gmra.mrb[0].mxu0 %v3643
  %v4348 = vpop.f32.mrb[0].mxu0
  %v4349 = vadd.f32 %v167, %v4348
  %v4350 = vpop.f32.mrb[0].mxu0
  %4351 = vmatprep.mubr.f32.mxu0 0.0
  %4352 = vmatmul.mubr.f32.gmra.mrb[0].mxu0 %v3646
  %v4353 = vpop.f32.mrb[0].mxu0
  %v4354 = vadd.f32 %v167, %v4353
  %v4355 = vpop.f32.mrb[0].mxu0
  %4356 = vmatprep.mubr.f32.mxu0 0.0
  %4357 = vmatmul.mubr.f32.gmra.mrb[0].mxu0 %v3649
  %v4358 = vpop.f32.mrb[0].mxu0
  %v4359 = vadd.f32 %v167, %v4358
  %v4360 = vpop.f32.mrb[0].mxu0
  %4361 = vmatprep.mubr.f32.mxu0 0.0
  %4362 = vmatmul.mubr.f32.gmra.mrb[0].mxu0 %v3652
  %v4363 = vpop.f32.mrb[0].mxu0
  %v4364 = vadd.f32 %v167, %v4363
  %v4365 = vpop.f32.mrb[0].mxu0
  %4366 = vmatprep.mubr.f32.mxu0 0.0
  %4367 = vmatmul.mubr.f32.gmra.mrb[0].mxu0 %v3655
  %v4368 = vpop.f32.mrb[0].mxu0
  %v4369 = vadd.f32 %v167, %v4368
  %v4370 = vpop.f32.mrb[0].mxu0
  %4371 = vmatprep.mubr.f32.mxu0 0.0
  %4372 = vmatmul.mubr.f32.gmra.mrb[0].mxu0 %v3658
  %v4373 = vpop.f32.mrb[0].mxu0
  %v4374 = vadd.f32 %v167, %v4373
  %v4375 = vpop.f32.mrb[0].mxu0
  %4376 = vmatprep.mubr.f32.mxu0 0.0
  %4377 = vmatmul.mubr.f32.gmra.mrb[0].mxu0 %v3661
  %v4378 = vpop.f32.mrb[0].mxu0
  %v4379 = vadd.f32 %v167, %v4378
  %v4380 = vpop.f32.mrb[0].mxu0
  %4381 = vmatprep.mubr.f32.mxu0 0.0
  %4382 = vmatmul.mubr.f32.gmra.mrb[0].mxu0 %v3664
  %v4383 = vpop.f32.mrb[0].mxu0
  %v4384 = vadd.f32 %v167, %v4383
  %v4385 = vpop.f32.mrb[0].mxu0
  %4386 = vmatprep.mubr.f32.mxu0 0.0
  %4387 = vmatmul.mubr.f32.gmra.mrb[0].mxu0 %v3667
  %v4388 = vpop.f32.mrb[0].mxu0
  %v4389 = vadd.f32 %v167, %v4388
  %v4390 = vpop.f32.mrb[0].mxu0
  %4391 = vmatprep.mubr.f32.mxu0 0.0
  %4392 = vmatmul.mubr.f32.gmra.mrb[0].mxu0 %v3670
  %v4393 = vpop.f32.mrb[0].mxu0
  %v4394 = vadd.f32 %v167, %v4393
  %v4395 = vpop.f32.mrb[0].mxu0
  %4396 = vmatprep.mubr.f32.mxu0 0.0
  %4397 = vmatmul.mubr.f32.gmra.mrb[0].mxu0 %v3673
  %v4398 = vpop.f32.mrb[0].mxu0
  %v4399 = vadd.f32 %v167, %v4398
  %v4400 = vpop.f32.mrb[0].mxu0
  %4401 = vmatprep.mubr.f32.mxu0 0.0
  %4402 = vmatmul.mubr.f32.gmra.mrb[0].mxu0 %v3676
  %v4403 = vpop.f32.mrb[0].mxu0
  %v4404 = vadd.f32 %v167, %v4403
  %v4405 = vpop.f32.mrb[0].mxu0
  %4406 = vmatprep.mubr.f32.mxu0 0.0
  %4407 = vmatmul.mubr.f32.gmra.mrb[0].mxu0 %v3679
  %v4408 = vpop.f32.mrb[0].mxu0
  %v4409 = vadd.f32 %v167, %v4408
  %v4410 = vpop.f32.mrb[0].mxu0
  %4411 = vmatprep.mubr.f32.mxu0 0.0
  %4412 = vmatmul.mubr.f32.gmra.mrb[0].mxu0 %v3682
  %v4413 = vpop.f32.mrb[0].mxu0
  %v4414 = vadd.f32 %v167, %v4413
  %v4415 = vpop.f32.mrb[0].mxu0
  %4416 = vmatprep.mubr.f32.mxu0 0.0
  %4417 = vmatmul.mubr.f32.gmra.mrb[0].mxu0 %v3685
  %v4418 = vpop.f32.mrb[0].mxu0
  %v4419 = vadd.f32 %v167, %v4418
  %v4420 = vpop.f32.mrb[0].mxu0
  %4421 = vmatprep.mubr.f32.mxu0 0.0
  %4422 = vmatmul.mubr.f32.gmra.mrb[0].mxu0 %v3688
  %v4423 = vpop.f32.mrb[0].mxu0
  %v4424 = vadd.f32 %v167, %v4423
  %v4425 = vpop.f32.mrb[0].mxu0
  %4426 = vmatprep.mubr.f32.mxu0 0.0
  %4427 = vmatmul.mubr.f32.gmra.mrb[0].mxu0 %v3691
  %v4428 = vpop.f32.mrb[0].mxu0
  %v4429 = vadd.f32 %v167, %v4428
  %v4430 = vpop.f32.mrb[0].mxu0
  %4431 = vmatprep.mubr.f32.mxu0 0.0
  %4432 = vmatmul.mubr.f32.gmra.mrb[0].mxu0 %v3694
  %v4433 = vpop.f32.mrb[0].mxu0
  %v4434 = vadd.f32 %v167, %v4433
  %v4435 = vpop.f32.mrb[0].mxu0
  %4436 = vmatprep.mubr.f32.mxu0 0.0
  %4437 = vmatmul.mubr.f32.gmra.mrb[0].mxu0 %v3697
  %v4438 = vpop.f32.mrb[0].mxu0
  %v4439 = vadd.f32 %v167, %v4438
  %v4440 = vpop.f32.mrb[0].mxu0
  %4441 = vmatprep.mubr.f32.mxu0 0.0
  %4442 = vmatmul.mubr.f32.gmra.mrb[0].mxu0 %v3700
  %v4443 = vpop.f32.mrb[0].mxu0
  %v4444 = vadd.f32 %v167, %v4443
  %v4445 = vpop.f32.mrb[0].mxu0
  %4446 = vmatprep.mubr.f32.mxu0 0.0
  %4447 = vmatmul.mubr.f32.gmra.mrb[0].mxu0 %v3703
  %v4448 = vpop.f32.mrb[0].mxu0
  %v4449 = vadd.f32 %v167, %v4448
  %v4450 = vpop.f32.mrb[0].mxu0
  %4451 = vmatprep.mubr.f32.mxu0 0.0
  %4452 = vmatmul.mubr.f32.gmra.mrb[0].mxu0 %v3706
  %v4453 = vpop.f32.mrb[0].mxu0
  %v4454 = vadd.f32 %v167, %v4453
  %v4455 = vpop.f32.mrb[0].mxu0
  %4456 = vmatprep.mubr.f32.mxu0 0.0
  %4457 = vmatmul.mubr.f32.gmra.mrb[0].mxu0 %v3709
  %v4458 = vpop.f32.mrb[0].mxu0
  %v4459 = vadd.f32 %v167, %v4458
  %v4460 = vpop.f32.mrb[0].mxu0
  %4461 = vmatprep.mubr.f32.mxu0 0.0
  %4462 = vmatmul.mubr.f32.gmra.mrb[0].mxu0 %v3712
  %v4463 = vpop.f32.mrb[0].mxu0
  %v4464 = vadd.f32 %v167, %v4463
  %v4465 = vpop.f32.mrb[0].mxu0
  %4466 = vmatprep.mubr.f32.mxu0 0.0
  %4467 = vmatmul.mubr.f32.gmra.mrb[0].mxu0 %v3715
  %v4468 = vpop.f32.mrb[0].mxu0
  %v4469 = vadd.f32 %v167, %v4468
  %v4470 = vpop.f32.mrb[0].mxu0
  %4471 = vmatprep.mubr.f32.mxu0 0.0
  %4472 = vmatmul.mubr.f32.gmra.mrb[0].mxu0 %v3718
  %v4473 = vpop.f32.mrb[0].mxu0
  %v4474 = vadd.f32 %v167, %v4473
  %v4475 = vpop.f32.mrb[0].mxu0
  %4476 = vmatprep.mubr.f32.mxu0 0.0
  %4477 = vmatmul.mubr.f32.gmra.mrb[0].mxu0 %v3721
  %v4478 = vpop.f32.mrb[0].mxu0
  %v4479 = vadd.f32 %v167, %v4478
  %v4480 = vpop.f32.mrb[0].mxu0
  %4481 = vmatprep.mubr.f32.mxu0 0.0
  %4482 = vmatmul.mubr.f32.gmra.mrb[0].mxu0 %v3724
  %v4483 = vpop.f32.mrb[0].mxu0
  %v4484 = vadd.f32 %v167, %v4483
  %v4485 = vpop.f32.mrb[0].mxu0
  %4486 = vmatprep.mubr.f32.mxu0 0.0
  %4487 = vmatmul.mubr.f32.gmra.mrb[0].mxu0 %v3727
  %v4488 = vpop.f32.mrb[0].mxu0
  %v4489 = vadd.f32 %v167, %v4488
  %v4490 = vpop.f32.mrb[0].mxu0
  %4491 = vmatprep.mubr.f32.mxu0 0.0
  %4492 = vmatmul.mubr.f32.gmra.mrb[0].mxu0 %v3730
  %v4493 = vpop.f32.mrb[0].mxu0
  %v4494 = vadd.f32 %v167, %v4493
  %v4495 = vpop.f32.mrb[0].mxu0
  %4496 = vmatprep.mubr.f32.mxu0 0.0
  %4497 = vmatmul.mubr.f32.gmra.mrb[0].mxu0 %v3733
  %v4498 = vpop.f32.mrb[0].mxu0
  %v4499 = vadd.f32 %v167, %v4498
  %v4500 = vpop.f32.mrb[0].mxu0
  %4501 = vmatprep.mubr.f32.mxu0 0.0
  %4502 = vmatmul.mubr.f32.gmra.mrb[0].mxu0 %v3736
  %v4503 = vpop.f32.mrb[0].mxu0
  %v4504 = vadd.f32 %v167, %v4503
  %v4505 = vpop.f32.mrb[0].mxu0
  %4506 = vmatprep.mubr.f32.mxu0 0.0
  %4507 = vmatmul.mubr.f32.gmra.mrb[0].mxu0 %v3739
  %v4508 = vpop.f32.mrb[0].mxu0
  %v4509 = vadd.f32 %v167, %v4508
  %v4510 = vpop.f32.mrb[0].mxu0
  %4511 = vmatprep.mubr.f32.mxu0 0.0
  %4512 = vmatmul.mubr.f32.gmra.mrb[0].mxu0 %v3742
  %v4513 = vpop.f32.mrb[0].mxu0
  %v4514 = vadd.f32 %v167, %v4513
  %v4515 = vpop.f32.mrb[0].mxu0
  %4516 = vmatprep.mubr.f32.mxu0 0.0
  %4517 = vmatmul.mubr.f32.gmra.mrb[0].mxu0 %v3745
  %v4518 = vpop.f32.mrb[0].mxu0
  %v4519 = vadd.f32 %v167, %v4518
  %v4520 = vpop.f32.mrb[0].mxu0
  %4521 = vmatprep.mubr.f32.mxu0 0.0
  %4522 = vmatmul.mubr.f32.gmra.mrb[0].mxu0 %v3748
  %v4523 = vpop.f32.mrb[0].mxu0
  %v4524 = vadd.f32 %v167, %v4523
  %v4525 = vpop.f32.mrb[0].mxu0
  %4526 = vmatprep.mubr.f32.mxu0 0.0
  %4527 = vmatmul.mubr.f32.gmra.mrb[0].mxu0 %v3751
  %v4528 = vpop.f32.mrb[0].mxu0
  %v4529 = vadd.f32 %v167, %v4528
  %v4530 = vpop.f32.mrb[0].mxu0
  %4531 = vmatprep.mubr.f32.mxu0 0.0
  %4532 = vmatmul.mubr.f32.gmra.mrb[0].mxu0 %v3754
  %v4533 = vpop.f32.mrb[0].mxu0
  %v4534 = vadd.f32 %v167, %v4533
  %v4535 = vpop.f32.mrb[0].mxu0
  %4536 = vmatprep.mubr.f32.mxu0 0.0
  %4537 = vmatmul.mubr.f32.gmra.mrb[0].mxu0 %v3757
  %v4538 = vpop.f32.mrb[0].mxu0
  %v4539 = vadd.f32 %v167, %v4538
  %v4540 = vpop.f32.mrb[0].mxu0
  %4541 = vmatprep.mubr.f32.mxu0 0.0
  %4542 = vmatmul.mubr.f32.gmra.mrb[0].mxu0 %v3760
  %v4543 = vpop.f32.mrb[0].mxu0
  %v4544 = vadd.f32 %v167, %v4543
  %v4545 = vpop.f32.mrb[0].mxu0
  %4546 = vdwg.mxu0
  %v4547 = vmax.f32 %v3829, 0.0
  %v4548 = vmax.f32 %v3834, 0.0
  %v4549 = vmax.f32 %v3839, 0.0
  %v4550 = vmax.f32 %v3844, 0.0
  %v4551 = vmax.f32 %v3849, 0.0
  %v4552 = vmax.f32 %v3854, 0.0
  %v4553 = vmax.f32 %v3859, 0.0
  %v4554 = vmax.f32 %v3864, 0.0
  %v4555 = vmax.f32 %v3869, 0.0
  %v4556 = vmax.f32 %v3874, 0.0
  %v4557 = vmax.f32 %v3879, 0.0
  %v4558 = vmax.f32 %v3884, 0.0
  %v4559 = vmax.f32 %v3889, 0.0
  %v4560 = vmax.f32 %v3894, 0.0
  %v4561 = vmax.f32 %v3899, 0.0
  %v4562 = vmax.f32 %v3904, 0.0
  %v4563 = vmax.f32 %v3909, 0.0
  %v4564 = vmax.f32 %v3914, 0.0
  %v4565 = vmax.f32 %v3919, 0.0
  %v4566 = vmax.f32 %v3924, 0.0
  %v4567 = vmax.f32 %v3929, 0.0
  %v4568 = vmax.f32 %v3934, 0.0
  %v4569 = vmax.f32 %v3939, 0.0
  %v4570 = vmax.f32 %v3944, 0.0
  %v4571 = vmax.f32 %v3949, 0.0
  %v4572 = vmax.f32 %v3954, 0.0
  %v4573 = vmax.f32 %v3959, 0.0
  %v4574 = vmax.f32 %v3964, 0.0
  %v4575 = vmax.f32 %v3969, 0.0
  %v4576 = vmax.f32 %v3974, 0.0
  %v4577 = vmax.f32 %v3979, 0.0
  %v4578 = vmax.f32 %v3984, 0.0
  %v4579 = vmax.f32 %v3989, 0.0
  %v4580 = vmax.f32 %v3994, 0.0
  %v4581 = vmax.f32 %v3999, 0.0
  %v4582 = vmax.f32 %v4004, 0.0
  %v4583 = vmax.f32 %v4009, 0.0
  %v4584 = vmax.f32 %v4014, 0.0
  %v4585 = vmax.f32 %v4019, 0.0
  %v4586 = vmax.f32 %v4024, 0.0
  %v4587 = vmax.f32 %v4029, 0.0
  %v4588 = vmax.f32 %v4034, 0.0
  %v4589 = vmax.f32 %v4039, 0.0
  %v4590 = vmax.f32 %v4044, 0.0
  %v4591 = vmax.f32 %v4049, 0.0
  %v4592 = vmax.f32 %v4054, 0.0
  %v4593 = vmax.f32 %v4059, 0.0
  %v4594 = vmax.f32 %v4064, 0.0
  %v4595 = vmax.f32 %v4069, 0.0
  %v4596 = vmax.f32 %v4074, 0.0
  %v4597 = vmax.f32 %v4079, 0.0
  %v4598 = vmax.f32 %v4084, 0.0
  %v4599 = vmax.f32 %v4089, 0.0
  %v4600 = vmax.f32 %v4094, 0.0
  %v4601 = vmax.f32 %v4099, 0.0
  %v4602 = vmax.f32 %v4104, 0.0
  %v4603 = vmax.f32 %v4109, 0.0
  %v4604 = vmax.f32 %v4114, 0.0
  %v4605 = vmax.f32 %v4119, 0.0
  %v4606 = vmax.f32 %v4124, 0.0
  %v4607 = vmax.f32 %v4129, 0.0
  %v4608 = vmax.f32 %v4134, 0.0
  %v4609 = vmax.f32 %v4139, 0.0
  %v4610 = vmax.f32 %v4144, 0.0
  %v4611 = vmax.f32 %v4149, 0.0
  %v4612 = vmax.f32 %v4154, 0.0
  %v4613 = vmax.f32 %v4159, 0.0
  %v4614 = vmax.f32 %v4164, 0.0
  %v4615 = vmax.f32 %v4169, 0.0
  %v4616 = vmax.f32 %v4174, 0.0
  %v4617 = vmax.f32 %v4179, 0.0
  %v4618 = vmax.f32 %v4184, 0.0
  %v4619 = vmax.f32 %v4189, 0.0
  %v4620 = vmax.f32 %v4194, 0.0
  %v4621 = vmax.f32 %v4199, 0.0
  %v4622 = vmax.f32 %v4204, 0.0
  %v4623 = vmax.f32 %v4209, 0.0
  %v4624 = vmax.f32 %v4214, 0.0
  %v4625 = vmax.f32 %v4219, 0.0
  %v4626 = vmax.f32 %v4224, 0.0
  %v4627 = vmax.f32 %v4229, 0.0
  %v4628 = vmax.f32 %v4234, 0.0
  %v4629 = vmax.f32 %v4239, 0.0
  %v4630 = vmax.f32 %v4244, 0.0
  %v4631 = vmax.f32 %v4249, 0.0
  %v4632 = vmax.f32 %v4254, 0.0
  %v4633 = vmax.f32 %v4259, 0.0
  %v4634 = vmax.f32 %v4264, 0.0
  %v4635 = vmax.f32 %v4269, 0.0
  %v4636 = vmax.f32 %v4274, 0.0
  %v4637 = vmax.f32 %v4279, 0.0
  %v4638 = vmax.f32 %v4284, 0.0
  %v4639 = vmax.f32 %v4289, 0.0
  %v4640 = vmax.f32 %v4294, 0.0
  %v4641 = vmax.f32 %v4299, 0.0
  %v4642 = vmax.f32 %v4304, 0.0
  %v4643 = vmax.f32 %v4309, 0.0
  %v4644 = vmax.f32 %v4314, 0.0
  %v4645 = vmax.f32 %v4319, 0.0
  %v4646 = vmax.f32 %v4324, 0.0
  %v4647 = vmax.f32 %v4329, 0.0
  %v4648 = vmax.f32 %v4334, 0.0
  %v4649 = vmax.f32 %v4339, 0.0
  %v4650 = vmax.f32 %v4344, 0.0
  %v4651 = vmax.f32 %v4349, 0.0
  %v4652 = vmax.f32 %v4354, 0.0
  %v4653 = vmax.f32 %v4359, 0.0
  %v4654 = vmax.f32 %v4364, 0.0
  %v4655 = vmax.f32 %v4369, 0.0
  %v4656 = vmax.f32 %v4374, 0.0
  %v4657 = vmax.f32 %v4379, 0.0
  %v4658 = vmax.f32 %v4384, 0.0
  %v4659 = vmax.f32 %v4389, 0.0
  %v4660 = vmax.f32 %v4394, 0.0
  %v4661 = vmax.f32 %v4399, 0.0
  %v4662 = vmax.f32 %v4404, 0.0
  %v4663 = vmax.f32 %v4409, 0.0
  %v4664 = vmax.f32 %v4414, 0.0
  %v4665 = vmax.f32 %v4419, 0.0
  %v4666 = vmax.f32 %v4424, 0.0
  %v4667 = vmax.f32 %v4429, 0.0
  %v4668 = vmax.f32 %v4434, 0.0
  %v4669 = vmax.f32 %v4439, 0.0
  %v4670 = vmax.f32 %v4444, 0.0
  %v4671 = vmax.f32 %v4449, 0.0
  %v4672 = vmax.f32 %v4454, 0.0
  %v4673 = vmax.f32 %v4459, 0.0
  %v4674 = vmax.f32 %v4464, 0.0
  %v4675 = vmax.f32 %v4469, 0.0
  %v4676 = vmax.f32 %v4474, 0.0
  %v4677 = vmax.f32 %v4479, 0.0
  %v4678 = vmax.f32 %v4484, 0.0
  %v4679 = vmax.f32 %v4489, 0.0
  %v4680 = vmax.f32 %v4494, 0.0
  %v4681 = vmax.f32 %v4499, 0.0
  %v4682 = vmax.f32 %v4504, 0.0
  %v4683 = vmax.f32 %v4509, 0.0
  %v4684 = vmax.f32 %v4514, 0.0
  %v4685 = vmax.f32 %v4519, 0.0
  %v4686 = vmax.f32 %v4524, 0.0
  %v4687 = vmax.f32 %v4529, 0.0
  %v4688 = vmax.f32 %v4534, 0.0
  %v4689 = vmax.f32 %v4539, 0.0
  %v4690 = vmax.f32 %v4544, 0.0
  %v4691 = vmax.f32 %v3041, %v4547
  %v4692 = vmax.f32 %v3042, %v4548
  %v4693 = vmax.f32 %v3043, %v4549
  %v4694 = vmax.f32 %v3044, %v4550
  %v4695 = vmax.f32 %v3045, %v4551
  %v4696 = vmax.f32 %v3046, %v4552
  %v4697 = vmax.f32 %v3047, %v4553
  %v4698 = vmax.f32 %v3048, %v4554
  %v4699 = vmax.f32 %v3049, %v4555
  %v4700 = vmax.f32 %v3050, %v4556
  %v4701 = vmax.f32 %v3051, %v4557
  %v4702 = vmax.f32 %v3052, %v4558
  %v4703 = vmax.f32 %v3053, %v4559
  %v4704 = vmax.f32 %v3054, %v4560
  %v4705 = vmax.f32 %v3055, %v4561
  %v4706 = vmax.f32 %v3056, %v4562
  %v4707 = vmax.f32 %v3057, %v4563
  %v4708 = vmax.f32 %v3058, %v4564
  %v4709 = vmax.f32 %v3059, %v4565
  %v4710 = vmax.f32 %v3060, %v4566
  %v4711 = vmax.f32 %v3061, %v4567
  %v4712 = vmax.f32 %v3062, %v4568
  %v4713 = vmax.f32 %v3063, %v4569
  %v4714 = vmax.f32 %v3064, %v4570
  %v4715 = vmax.f32 %v3065, %v4571
  %v4716 = vmax.f32 %v3066, %v4572
  %v4717 = vmax.f32 %v3067, %v4573
  %v4718 = vmax.f32 %v3068, %v4574
  %v4719 = vmax.f32 %v3069, %v4575
  %v4720 = vmax.f32 %v3070, %v4576
  %v4721 = vmax.f32 %v3071, %v4577
  %v4722 = vmax.f32 %v3072, %v4578
  %v4723 = vmax.f32 %v3073, %v4579
  %v4724 = vmax.f32 %v3074, %v4580
  %v4725 = vmax.f32 %v3075, %v4581
  %v4726 = vmax.f32 %v3076, %v4582
  %v4727 = vmax.f32 %v3077, %v4583
  %v4728 = vmax.f32 %v3078, %v4584
  %v4729 = vmax.f32 %v3079, %v4585
  %v4730 = vmax.f32 %v3080, %v4586
  %v4731 = vmax.f32 %v3081, %v4587
  %v4732 = vmax.f32 %v3082, %v4588
  %v4733 = vmax.f32 %v3083, %v4589
  %v4734 = vmax.f32 %v3084, %v4590
  %v4735 = vmax.f32 %v3085, %v4591
  %v4736 = vmax.f32 %v3086, %v4592
  %v4737 = vmax.f32 %v3087, %v4593
  %v4738 = vmax.f32 %v3088, %v4594
  %v4739 = vmax.f32 %v3089, %v4595
  %v4740 = vmax.f32 %v3090, %v4596
  %v4741 = vmax.f32 %v3091, %v4597
  %v4742 = vmax.f32 %v3092, %v4598
  %v4743 = vmax.f32 %v3093, %v4599
  %v4744 = vmax.f32 %v3094, %v4600
  %v4745 = vmax.f32 %v3095, %v4601
  %v4746 = vmax.f32 %v3096, %v4602
  %v4747 = vmax.f32 %v3097, %v4603
  %v4748 = vmax.f32 %v3098, %v4604
  %v4749 = vmax.f32 %v3099, %v4605
  %v4750 = vmax.f32 %v3100, %v4606
  %v4751 = vmax.f32 %v3101, %v4607
  %v4752 = vmax.f32 %v3102, %v4608
  %v4753 = vmax.f32 %v3103, %v4609
  %v4754 = vmax.f32 %v3104, %v4610
  %v4755 = vmax.f32 %v3105, %v4611
  %v4756 = vmax.f32 %v3106, %v4612
  %v4757 = vmax.f32 %v3107, %v4613
  %v4758 = vmax.f32 %v3108, %v4614
  %v4759 = vmax.f32 %v3109, %v4615
  %v4760 = vmax.f32 %v3110, %v4616
  %v4761 = vmax.f32 %v3111, %v4617
  %v4762 = vmax.f32 %v3112, %v4618
  %v4763 = vmax.f32 %v3113, %v4619
  %v4764 = vmax.f32 %v3114, %v4620
  %v4765 = vmax.f32 %v3115, %v4621
  %v4766 = vmax.f32 %v3116, %v4622
  %v4767 = vmax.f32 %v3117, %v4623
  %v4768 = vmax.f32 %v3118, %v4624
  %v4769 = vmax.f32 %v3119, %v4625
  %v4770 = vmax.f32 %v3120, %v4626
  %v4771 = vmax.f32 %v3121, %v4627
  %v4772 = vmax.f32 %v3122, %v4628
  %v4773 = vmax.f32 %v3123, %v4629
  %v4774 = vmax.f32 %v3124, %v4630
  %v4775 = vmax.f32 %v3125, %v4631
  %v4776 = vmax.f32 %v3126, %v4632
  %v4777 = vmax.f32 %v3127, %v4633
  %v4778 = vmax.f32 %v3128, %v4634
  %v4779 = vmax.f32 %v3129, %v4635
  %v4780 = vmax.f32 %v3130, %v4636
  %v4781 = vmax.f32 %v3131, %v4637
  %v4782 = vmax.f32 %v3132, %v4638
  %v4783 = vmax.f32 %v3133, %v4639
  %v4784 = vmax.f32 %v3134, %v4640
  %v4785 = vmax.f32 %v3135, %v4641
  %v4786 = vmax.f32 %v3136, %v4642
  %v4787 = vmax.f32 %v3137, %v4643
  %v4788 = vmax.f32 %v3138, %v4644
  %v4789 = vmax.f32 %v3139, %v4645
  %v4790 = vmax.f32 %v3140, %v4646
  %v4791 = vmax.f32 %v3141, %v4647
  %v4792 = vmax.f32 %v3142, %v4648
  %v4793 = vmax.f32 %v3143, %v4649
  %v4794 = vmax.f32 %v3144, %v4650
  %v4795 = vmax.f32 %v3145, %v4651
  %v4796 = vmax.f32 %v3146, %v4652
  %v4797 = vmax.f32 %v3147, %v4653
  %v4798 = vmax.f32 %v3148, %v4654
  %v4799 = vmax.f32 %v3149, %v4655
  %v4800 = vmax.f32 %v3150, %v4656
  %v4801 = vmax.f32 %v3151, %v4657
  %v4802 = vmax.f32 %v3152, %v4658
  %v4803 = vmax.f32 %v3153, %v4659
  %v4804 = vmax.f32 %v3154, %v4660
  %v4805 = vmax.f32 %v3155, %v4661
  %v4806 = vmax.f32 %v3156, %v4662
  %v4807 = vmax.f32 %v3157, %v4663
  %v4808 = vmax.f32 %v3158, %v4664
  %v4809 = vmax.f32 %v3159, %v4665
  %v4810 = vmax.f32 %v3160, %v4666
  %v4811 = vmax.f32 %v3161, %v4667
  %v4812 = vmax.f32 %v3162, %v4668
  %v4813 = vmax.f32 %v3163, %v4669
  %v4814 = vmax.f32 %v3164, %v4670
  %v4815 = vmax.f32 %v3165, %v4671
  %v4816 = vmax.f32 %v3166, %v4672
  %v4817 = vmax.f32 %v3167, %v4673
  %v4818 = vmax.f32 %v3168, %v4674
  %v4819 = vmax.f32 %v3169, %v4675
  %v4820 = vmax.f32 %v3170, %v4676
  %v4821 = vmax.f32 %v3171, %v4677
  %v4822 = vmax.f32 %v3172, %v4678
  %v4823 = vmax.f32 %v3173, %v4679
  %v4824 = vmax.f32 %v3174, %v4680
  %v4825 = vmax.f32 %v3175, %v4681
  %v4826 = vmax.f32 %v3176, %v4682
  %v4827 = vmax.f32 %v3177, %v4683
  %v4828 = vmax.f32 %v3178, %v4684
  %v4829 = vmax.f32 %v3179, %v4685
  %v4830 = vmax.f32 %v3180, %v4686
  %v4831 = vmax.f32 %v3181, %v4687
  %v4832 = vmax.f32 %v3182, %v4688
  %v4833 = vmax.f32 %v3183, %v4689
  %v4834 = vmax.f32 %v3184, %v4690
  %s4835 = scalar_lea.vmem %s0, 3456
  %v4836 = vld [vmem:[%s4835] sm:$0xff]
  %v4837 = vld [vmem:[%s4835 + $0x8] sm:$0xff]
  %v4838 = vld [vmem:[%s4835 + $0x10] sm:$0xff]
  %v4839 = vld [vmem:[%s4835 + $0x18] sm:$0xff]
  %v4840 = vld [vmem:[%s4835 + $0x20] sm:$0xff]
  %v4841 = vld [vmem:[%s4835 + $0x28] sm:$0xff]
  %v4842 = vld [vmem:[%s4835 + $0x30] sm:$0xff]
  %v4843 = vld [vmem:[%s4835 + $0x38] sm:$0xff]
  %v4844 = vld [vmem:[%s4835 + $0x40] sm:$0xff]
  %v4845 = vld [vmem:[%s4835 + $0x48] sm:$0xff]
  %v4846 = vld [vmem:[%s4835 + $0x50] sm:$0xff]
  %v4847 = vld [vmem:[%s4835 + $0x58] sm:$0xff]
  %v4848 = vld [vmem:[%s4835 + $0x60] sm:$0xff]
  %v4849 = vld [vmem:[%s4835 + $0x68] sm:$0xff]
  %v4850 = vld [vmem:[%s4835 + $0x70] sm:$0xff]
  %v4851 = vld [vmem:[%s4835 + $0x78] sm:$0xff]
  %v4852 = vld [vmem:[%s4835 + $0x80] sm:$0xff]
  %v4853 = vld [vmem:[%s4835 + $0x88] sm:$0xff]
  %v4854 = vld [vmem:[%s4835 + $0x90] sm:$0xff]
  %v4855 = vld [vmem:[%s4835 + $0x98] sm:$0xff]
  %v4856 = vld [vmem:[%s4835 + $0xa0] sm:$0xff]
  %v4857 = vld [vmem:[%s4835 + $0xa8] sm:$0xff]
  %v4858 = vld [vmem:[%s4835 + $0xb0] sm:$0xff]
  %v4859 = vld [vmem:[%s4835 + $0xb8] sm:$0xff]
  %v4860 = vld [vmem:[%s4835 + $0xc0] sm:$0xff]
  %v4861 = vld [vmem:[%s4835 + $0xc8] sm:$0xff]
  %v4862 = vld [vmem:[%s4835 + $0xd0] sm:$0xff]
  %v4863 = vld [vmem:[%s4835 + $0xd8] sm:$0xff]
  %v4864 = vld [vmem:[%s4835 + $0xe0] sm:$0xff]
  %v4865 = vld [vmem:[%s4835 + $0xe8] sm:$0xff]
  %v4866 = vld [vmem:[%s4835 + $0xf0] sm:$0xff]
  %v4867 = vld [vmem:[%s4835 + $0xf8] sm:$0xff]
  %v4868 = vld [vmem:[%s4835 + $0x100] sm:$0xff]
  %v4869 = vld [vmem:[%s4835 + $0x108] sm:$0xff]
  %v4870 = vld [vmem:[%s4835 + $0x110] sm:$0xff]
  %v4871 = vld [vmem:[%s4835 + $0x118] sm:$0xff]
  %v4872 = vld [vmem:[%s4835 + $0x120] sm:$0xff]
  %v4873 = vld [vmem:[%s4835 + $0x128] sm:$0xff]
  %v4874 = vld [vmem:[%s4835 + $0x130] sm:$0xff]
  %v4875 = vld [vmem:[%s4835 + $0x138] sm:$0xff]
  %v4876 = vld [vmem:[%s4835 + $0x140] sm:$0xff]
  %v4877 = vld [vmem:[%s4835 + $0x148] sm:$0xff]
  %v4878 = vld [vmem:[%s4835 + $0x150] sm:$0xff]
  %v4879 = vld [vmem:[%s4835 + $0x158] sm:$0xff]
  %v4880 = vld [vmem:[%s4835 + $0x160] sm:$0xff]
  %v4881 = vld [vmem:[%s4835 + $0x168] sm:$0xff]
  %v4882 = vld [vmem:[%s4835 + $0x170] sm:$0xff]
  %v4883 = vld [vmem:[%s4835 + $0x178] sm:$0xff]
  %v4884 = vld [vmem:[%s4835 + $0x180] sm:$0xff]
  %v4885 = vld [vmem:[%s4835 + $0x188] sm:$0xff]
  %v4886 = vld [vmem:[%s4835 + $0x190] sm:$0xff]
  %v4887 = vld [vmem:[%s4835 + $0x198] sm:$0xff]
  %v4888 = vld [vmem:[%s4835 + $0x1a0] sm:$0xff]
  %v4889 = vld [vmem:[%s4835 + $0x1a8] sm:$0xff]
  %v4890 = vld [vmem:[%s4835 + $0x1b0] sm:$0xff]
  %v4891 = vld [vmem:[%s4835 + $0x1b8] sm:$0xff]
  %v4892 = vld [vmem:[%s4835 + $0x1c0] sm:$0xff]
  %v4893 = vld [vmem:[%s4835 + $0x1c8] sm:$0xff]
  %v4894 = vld [vmem:[%s4835 + $0x1d0] sm:$0xff]
  %v4895 = vld [vmem:[%s4835 + $0x1d8] sm:$0xff]
  %v4896 = vld [vmem:[%s4835 + $0x1e0] sm:$0xff]
  %v4897 = vld [vmem:[%s4835 + $0x1e8] sm:$0xff]
  %v4898 = vld [vmem:[%s4835 + $0x1f0] sm:$0xff]
  %v4899 = vld [vmem:[%s4835 + $0x1f8] sm:$0xff]
  %v4900 = vld [vmem:[%s4835 + $0x200] sm:$0xff]
  %v4901 = vld [vmem:[%s4835 + $0x208] sm:$0xff]
  %v4902 = vld [vmem:[%s4835 + $0x210] sm:$0xff]
  %v4903 = vld [vmem:[%s4835 + $0x218] sm:$0xff]
  %v4904 = vld [vmem:[%s4835 + $0x220] sm:$0xff]
  %v4905 = vld [vmem:[%s4835 + $0x228] sm:$0xff]
  %v4906 = vld [vmem:[%s4835 + $0x230] sm:$0xff]
  %v4907 = vld [vmem:[%s4835 + $0x238] sm:$0xff]
  %v4908 = vld [vmem:[%s4835 + $0x240] sm:$0xff]
  %v4909 = vld [vmem:[%s4835 + $0x248] sm:$0xff]
  %v4910 = vld [vmem:[%s4835 + $0x250] sm:$0xff]
  %v4911 = vld [vmem:[%s4835 + $0x258] sm:$0xff]
  %v4912 = vld [vmem:[%s4835 + $0x260] sm:$0xff]
  %v4913 = vld [vmem:[%s4835 + $0x268] sm:$0xff]
  %v4914 = vld [vmem:[%s4835 + $0x270] sm:$0xff]
  %v4915 = vld [vmem:[%s4835 + $0x278] sm:$0xff]
  %v4916 = vld [vmem:[%s4835 + $0x280] sm:$0xff]
  %v4917 = vld [vmem:[%s4835 + $0x288] sm:$0xff]
  %v4918 = vld [vmem:[%s4835 + $0x290] sm:$0xff]
  %v4919 = vld [vmem:[%s4835 + $0x298] sm:$0xff]
  %v4920 = vld [vmem:[%s4835 + $0x2a0] sm:$0xff]
  %v4921 = vld [vmem:[%s4835 + $0x2a8] sm:$0xff]
  %v4922 = vld [vmem:[%s4835 + $0x2b0] sm:$0xff]
  %v4923 = vld [vmem:[%s4835 + $0x2b8] sm:$0xff]
  %v4924 = vld [vmem:[%s4835 + $0x2c0] sm:$0xff]
  %v4925 = vld [vmem:[%s4835 + $0x2c8] sm:$0xff]
  %v4926 = vld [vmem:[%s4835 + $0x2d0] sm:$0xff]
  %v4927 = vld [vmem:[%s4835 + $0x2d8] sm:$0xff]
  %v4928 = vld [vmem:[%s4835 + $0x2e0] sm:$0xff]
  %v4929 = vld [vmem:[%s4835 + $0x2e8] sm:$0xff]
  %v4930 = vld [vmem:[%s4835 + $0x2f0] sm:$0xff]
  %v4931 = vld [vmem:[%s4835 + $0x2f8] sm:$0xff]
  %v4932 = vld [vmem:[%s4835 + $0x300] sm:$0xff]
  %v4933 = vld [vmem:[%s4835 + $0x308] sm:$0xff]
  %v4934 = vld [vmem:[%s4835 + $0x310] sm:$0xff]
  %v4935 = vld [vmem:[%s4835 + $0x318] sm:$0xff]
  %v4936 = vld [vmem:[%s4835 + $0x320] sm:$0xff]
  %v4937 = vld [vmem:[%s4835 + $0x328] sm:$0xff]
  %v4938 = vld [vmem:[%s4835 + $0x330] sm:$0xff]
  %v4939 = vld [vmem:[%s4835 + $0x338] sm:$0xff]
  %v4940 = vld [vmem:[%s4835 + $0x340] sm:$0xff]
  %v4941 = vld [vmem:[%s4835 + $0x348] sm:$0xff]
  %v4942 = vld [vmem:[%s4835 + $0x350] sm:$0xff]
  %v4943 = vld [vmem:[%s4835 + $0x358] sm:$0xff]
  %v4944 = vld [vmem:[%s4835 + $0x360] sm:$0xff]
  %v4945 = vld [vmem:[%s4835 + $0x368] sm:$0xff]
  %v4946 = vld [vmem:[%s4835 + $0x370] sm:$0xff]
  %v4947 = vld [vmem:[%s4835 + $0x378] sm:$0xff]
  %v4948 = vld [vmem:[%s4835 + $0x380] sm:$0xff]
  %v4949 = vld [vmem:[%s4835 + $0x388] sm:$0xff]
  %v4950 = vld [vmem:[%s4835 + $0x390] sm:$0xff]
  %v4951 = vld [vmem:[%s4835 + $0x398] sm:$0xff]
  %v4952 = vld [vmem:[%s4835 + $0x3a0] sm:$0xff]
  %v4953 = vld [vmem:[%s4835 + $0x3a8] sm:$0xff]
  %v4954 = vld [vmem:[%s4835 + $0x3b0] sm:$0xff]
  %v4955 = vld [vmem:[%s4835 + $0x3b8] sm:$0xff]
  %v4956 = vld [vmem:[%s4835 + $0x3c0] sm:$0xff]
  %v4957 = vld [vmem:[%s4835 + $0x3c8] sm:$0xff]
  %v4958 = vld [vmem:[%s4835 + $0x3d0] sm:$0xff]
  %v4959 = vld [vmem:[%s4835 + $0x3d8] sm:$0xff]
  %v4960 = vld [vmem:[%s4835 + $0x3e0] sm:$0xff]
  %v4961 = vld [vmem:[%s4835 + $0x3e8] sm:$0xff]
  %v4962 = vld [vmem:[%s4835 + $0x3f0] sm:$0xff]
  %v4963 = vld [vmem:[%s4835 + $0x3f8] sm:$0xff]
  %v4964 = vld [vmem:[%s4835 + $0x400] sm:$0xff]
  %v4965 = vld [vmem:[%s4835 + $0x408] sm:$0xff]
  %v4966 = vld [vmem:[%s4835 + $0x410] sm:$0xff]
  %v4967 = vld [vmem:[%s4835 + $0x418] sm:$0xff]
  %v4968 = vld [vmem:[%s4835 + $0x420] sm:$0xff]
  %v4969 = vld [vmem:[%s4835 + $0x428] sm:$0xff]
  %v4970 = vld [vmem:[%s4835 + $0x430] sm:$0xff]
  %v4971 = vld [vmem:[%s4835 + $0x438] sm:$0xff]
  %v4972 = vld [vmem:[%s4835 + $0x440] sm:$0xff]
  %v4973 = vld [vmem:[%s4835 + $0x448] sm:$0xff]
  %v4974 = vld [vmem:[%s4835 + $0x450] sm:$0xff]
  %v4975 = vld [vmem:[%s4835 + $0x458] sm:$0xff]
  %v4976 = vld [vmem:[%s4835 + $0x460] sm:$0xff]
  %v4977 = vld [vmem:[%s4835 + $0x468] sm:$0xff]
  %v4978 = vld [vmem:[%s4835 + $0x470] sm:$0xff]
  %v4979 = vld [vmem:[%s4835 + $0x478] sm:$0xff]
  %v4981 = vsel %vm169, %v4836, 0
  %v4984 = vsel %vm169, %v4837, 0
  %v4987 = vsel %vm169, %v4838, 0
  %v4990 = vsel %vm169, %v4839, 0
  %v4993 = vsel %vm169, %v4840, 0
  %v4996 = vsel %vm169, %v4841, 0
  %v4999 = vsel %vm169, %v4842, 0
  %v5002 = vsel %vm169, %v4843, 0
  %v5005 = vsel %vm169, %v4844, 0
  %v5008 = vsel %vm169, %v4845, 0
  %v5011 = vsel %vm169, %v4846, 0
  %v5014 = vsel %vm169, %v4847, 0
  %v5017 = vsel %vm169, %v4848, 0
  %v5020 = vsel %vm169, %v4849, 0
  %v5023 = vsel %vm169, %v4850, 0
  %v5026 = vsel %vm169, %v4851, 0
  %v5029 = vsel %vm169, %v4852, 0
  %v5032 = vsel %vm169, %v4853, 0
  %v5035 = vsel %vm169, %v4854, 0
  %v5038 = vsel %vm169, %v4855, 0
  %v5041 = vsel %vm169, %v4856, 0
  %v5044 = vsel %vm169, %v4857, 0
  %v5047 = vsel %vm169, %v4858, 0
  %v5050 = vsel %vm169, %v4859, 0
  %v5053 = vsel %vm169, %v4860, 0
  %v5056 = vsel %vm169, %v4861, 0
  %v5059 = vsel %vm169, %v4862, 0
  %v5062 = vsel %vm169, %v4863, 0
  %v5065 = vsel %vm169, %v4864, 0
  %v5068 = vsel %vm169, %v4865, 0
  %v5071 = vsel %vm169, %v4866, 0
  %v5074 = vsel %vm169, %v4867, 0
  %v5077 = vsel %vm169, %v4868, 0
  %v5080 = vsel %vm169, %v4869, 0
  %v5083 = vsel %vm169, %v4870, 0
  %v5086 = vsel %vm169, %v4871, 0
  %v5089 = vsel %vm169, %v4872, 0
  %v5092 = vsel %vm169, %v4873, 0
  %v5095 = vsel %vm169, %v4874, 0
  %v5098 = vsel %vm169, %v4875, 0
  %v5101 = vsel %vm169, %v4876, 0
  %v5104 = vsel %vm169, %v4877, 0
  %v5107 = vsel %vm169, %v4878, 0
  %v5110 = vsel %vm169, %v4879, 0
  %v5113 = vsel %vm169, %v4880, 0
  %v5116 = vsel %vm169, %v4881, 0
  %v5119 = vsel %vm169, %v4882, 0
  %v5122 = vsel %vm169, %v4883, 0
  %v5125 = vsel %vm169, %v4884, 0
  %v5128 = vsel %vm169, %v4885, 0
  %v5131 = vsel %vm169, %v4886, 0
  %v5134 = vsel %vm169, %v4887, 0
  %v5137 = vsel %vm169, %v4888, 0
  %v5140 = vsel %vm169, %v4889, 0
  %v5143 = vsel %vm169, %v4890, 0
  %v5146 = vsel %vm169, %v4891, 0
  %v5149 = vsel %vm169, %v4892, 0
  %v5152 = vsel %vm169, %v4893, 0
  %v5155 = vsel %vm169, %v4894, 0
  %v5158 = vsel %vm169, %v4895, 0
  %v5161 = vsel %vm169, %v4896, 0
  %v5164 = vsel %vm169, %v4897, 0
  %v5167 = vsel %vm169, %v4898, 0
  %v5170 = vsel %vm169, %v4899, 0
  %v5173 = vsel %vm169, %v4900, 0
  %v5176 = vsel %vm169, %v4901, 0
  %v5179 = vsel %vm169, %v4902, 0
  %v5182 = vsel %vm169, %v4903, 0
  %v5185 = vsel %vm169, %v4904, 0
  %v5188 = vsel %vm169, %v4905, 0
  %v5191 = vsel %vm169, %v4906, 0
  %v5194 = vsel %vm169, %v4907, 0
  %v5197 = vsel %vm169, %v4908, 0
  %v5200 = vsel %vm169, %v4909, 0
  %v5203 = vsel %vm169, %v4910, 0
  %v5206 = vsel %vm169, %v4911, 0
  %v5209 = vsel %vm169, %v4912, 0
  %v5212 = vsel %vm169, %v4913, 0
  %v5215 = vsel %vm169, %v4914, 0
  %v5218 = vsel %vm169, %v4915, 0
  %v5221 = vsel %vm169, %v4916, 0
  %v5224 = vsel %vm169, %v4917, 0
  %v5227 = vsel %vm169, %v4918, 0
  %v5230 = vsel %vm169, %v4919, 0
  %v5233 = vsel %vm169, %v4920, 0
  %v5236 = vsel %vm169, %v4921, 0
  %v5239 = vsel %vm169, %v4922, 0
  %v5242 = vsel %vm169, %v4923, 0
  %v5245 = vsel %vm169, %v4924, 0
  %v5248 = vsel %vm169, %v4925, 0
  %v5251 = vsel %vm169, %v4926, 0
  %v5254 = vsel %vm169, %v4927, 0
  %v5257 = vsel %vm169, %v4928, 0
  %v5260 = vsel %vm169, %v4929, 0
  %v5263 = vsel %vm169, %v4930, 0
  %v5266 = vsel %vm169, %v4931, 0
  %v5269 = vsel %vm169, %v4932, 0
  %v5272 = vsel %vm169, %v4933, 0
  %v5275 = vsel %vm169, %v4934, 0
  %v5278 = vsel %vm169, %v4935, 0
  %v5281 = vsel %vm169, %v4936, 0
  %v5284 = vsel %vm169, %v4937, 0
  %v5287 = vsel %vm169, %v4938, 0
  %v5290 = vsel %vm169, %v4939, 0
  %v5293 = vsel %vm169, %v4940, 0
  %v5296 = vsel %vm169, %v4941, 0
  %v5299 = vsel %vm169, %v4942, 0
  %v5302 = vsel %vm169, %v4943, 0
  %v5305 = vsel %vm169, %v4944, 0
  %v5308 = vsel %vm169, %v4945, 0
  %v5311 = vsel %vm169, %v4946, 0
  %v5314 = vsel %vm169, %v4947, 0
  %v5317 = vsel %vm169, %v4948, 0
  %v5320 = vsel %vm169, %v4949, 0
  %v5323 = vsel %vm169, %v4950, 0
  %v5326 = vsel %vm169, %v4951, 0
  %v5329 = vsel %vm169, %v4952, 0
  %v5332 = vsel %vm169, %v4953, 0
  %v5335 = vsel %vm169, %v4954, 0
  %v5338 = vsel %vm169, %v4955, 0
  %v5341 = vsel %vm169, %v4956, 0
  %v5344 = vsel %vm169, %v4957, 0
  %v5347 = vsel %vm169, %v4958, 0
  %v5350 = vsel %vm169, %v4959, 0
  %v5353 = vsel %vm169, %v4960, 0
  %v5356 = vsel %vm169, %v4961, 0
  %v5359 = vsel %vm169, %v4962, 0
  %v5362 = vsel %vm169, %v4963, 0
  %v5365 = vsel %vm169, %v4964, 0
  %v5368 = vsel %vm169, %v4965, 0
  %v5371 = vsel %vm169, %v4966, 0
  %v5374 = vsel %vm169, %v4967, 0
  %v5377 = vsel %vm169, %v4968, 0
  %v5380 = vsel %vm169, %v4969, 0
  %v5383 = vsel %vm169, %v4970, 0
  %v5386 = vsel %vm169, %v4971, 0
  %v5389 = vsel %vm169, %v4972, 0
  %v5392 = vsel %vm169, %v4973, 0
  %v5395 = vsel %vm169, %v4974, 0
  %v5398 = vsel %vm169, %v4975, 0
  %v5401 = vsel %vm169, %v4976, 0
  %v5404 = vsel %vm169, %v4977, 0
  %v5407 = vsel %vm169, %v4978, 0
  %v5410 = vsel %vm169, %v4979, 0
  %5412 = vmatprep.subr.mxu0 0.0
  %5413 = vmatpush1.msra.mxu0 %v158
  %5414 = vmatprep.subr.mxu0 0.0
  %5415 = vmatpush1.msra.mxu0 %v159
  %5416 = vmatprep.subr.mxu0 0.0
  %5417 = vmatpush1.msra.mxu0 %v160
  %5418 = vmatprep.subr.mxu0 0.0
  %5419 = vmatpush1.msra.mxu0 %v604
  %5420 = vmatprep.subr.mxu0 0.0
  %5421 = vmatpush1.msra.mxu0 0.0
  %5422 = vmatprep.subr.mxu0 0.0
  %5423 = vmatpush1.msra.mxu0 0.0
  %5424 = vmatprep.subr.mxu0 0.0
  %5425 = vmatpush1.msra.mxu0 0.0
  %5426 = vmatprep.subr.mxu0 0.0
  %5427 = vmatpush1.msra.mxu0 0.0
  %5428 = vmatprep.subr.mxu0 0.0
  %5429 = vmatpush1.msra.mxu0 0.0
  %5430 = vmatprep.subr.mxu0 0.0
  %5431 = vmatpush1.msra.mxu0 0.0
  %5432 = vmatprep.subr.mxu0 0.0
  %5433 = vmatpush1.msra.mxu0 0.0
  %5434 = vmatprep.subr.mxu0 0.0
  %5435 = vmatpush1.msra.mxu0 0.0
  %5436 = vmatprep.subr.mxu0 0.0
  %5437 = vmatpush1.msra.mxu0 0.0
  %5438 = vmatprep.subr.mxu0 0.0
  %5439 = vmatpush1.msra.mxu0 0.0
  %5440 = vmatprep.subr.mxu0 0.0
  %5441 = vmatpush1.msra.mxu0 0.0
  %5442 = vmatprep.subr.mxu0 0.0
  %5443 = vmatpush1.msra.mxu0 0.0
  %5444 = vmatprep.subr.mxu0 0.0
  %5445 = vmatpush1.msra.mxu0 0.0
  %5446 = vmatprep.subr.mxu0 0.0
  %5447 = vmatpush1.msra.mxu0 0.0
  %5448 = vmatprep.subr.mxu0 0.0
  %5449 = vmatpush1.msra.mxu0 0.0
  %5450 = vmatprep.subr.mxu0 0.0
  %5451 = vmatpush1.msra.mxu0 0.0
  %5452 = vmatprep.subr.mxu0 0.0
  %5453 = vmatpush1.msra.mxu0 0.0
  %5454 = vmatprep.subr.mxu0 0.0
  %5455 = vmatpush1.msra.mxu0 0.0
  %5456 = vmatprep.subr.mxu0 0.0
  %5457 = vmatpush1.msra.mxu0 0.0
  %5458 = vmatprep.subr.mxu0 0.0
  %5459 = vmatpush1.msra.mxu0 0.0
  %5460 = vmatprep.subr.mxu0 0.0
  %5461 = vmatpush1.msra.mxu0 0.0
  %5462 = vmatprep.subr.mxu0 0.0
  %5463 = vmatpush1.msra.mxu0 0.0
  %5464 = vmatprep.subr.mxu0 0.0
  %5465 = vmatpush1.msra.mxu0 0.0
  %5466 = vmatprep.subr.mxu0 0.0
  %5467 = vmatpush1.msra.mxu0 0.0
  %5468 = vmatprep.subr.mxu0 0.0
  %5469 = vmatpush1.msra.mxu0 0.0
  %5470 = vmatprep.subr.mxu0 0.0
  %5471 = vmatpush1.msra.mxu0 0.0
  %5472 = vmatprep.subr.mxu0 0.0
  %5473 = vmatpush1.msra.mxu0 0.0
  %5474 = vmatprep.subr.mxu0 0.0
  %5475 = vmatpush1.msra.mxu0 0.0
  %5476 = vmatprep.mubr.f32.mxu0 0.0
  %5477 = vmatmul.mubr.f32.gmra.mrb[0].mxu0 %v4981
  %v5478 = vpop.f32.mrb[0].mxu0
  %v5479 = vadd.f32 %v167, %v5478
  %v5480 = vpop.f32.mrb[0].mxu0
  %5481 = vmatprep.mubr.f32.mxu0 0.0
  %5482 = vmatmul.mubr.f32.gmra.mrb[0].mxu0 %v4984
  %v5483 = vpop.f32.mrb[0].mxu0
  %v5484 = vadd.f32 %v167, %v5483
  %v5485 = vpop.f32.mrb[0].mxu0
  %5486 = vmatprep.mubr.f32.mxu0 0.0
  %5487 = vmatmul.mubr.f32.gmra.mrb[0].mxu0 %v4987
  %v5488 = vpop.f32.mrb[0].mxu0
  %v5489 = vadd.f32 %v167, %v5488
  %v5490 = vpop.f32.mrb[0].mxu0
  %5491 = vmatprep.mubr.f32.mxu0 0.0
  %5492 = vmatmul.mubr.f32.gmra.mrb[0].mxu0 %v4990
  %v5493 = vpop.f32.mrb[0].mxu0
  %v5494 = vadd.f32 %v167, %v5493
  %v5495 = vpop.f32.mrb[0].mxu0
  %5496 = vmatprep.mubr.f32.mxu0 0.0
  %5497 = vmatmul.mubr.f32.gmra.mrb[0].mxu0 %v4993
  %v5498 = vpop.f32.mrb[0].mxu0
  %v5499 = vadd.f32 %v167, %v5498
  %v5500 = vpop.f32.mrb[0].mxu0
  %5501 = vmatprep.mubr.f32.mxu0 0.0
  %5502 = vmatmul.mubr.f32.gmra.mrb[0].mxu0 %v4996
  %v5503 = vpop.f32.mrb[0].mxu0
  %v5504 = vadd.f32 %v167, %v5503
  %v5505 = vpop.f32.mrb[0].mxu0
  %5506 = vmatprep.mubr.f32.mxu0 0.0
  %5507 = vmatmul.mubr.f32.gmra.mrb[0].mxu0 %v4999
  %v5508 = vpop.f32.mrb[0].mxu0
  %v5509 = vadd.f32 %v167, %v5508
  %v5510 = vpop.f32.mrb[0].mxu0
  %5511 = vmatprep.mubr.f32.mxu0 0.0
  %5512 = vmatmul.mubr.f32.gmra.mrb[0].mxu0 %v5002
  %v5513 = vpop.f32.mrb[0].mxu0
  %v5514 = vadd.f32 %v167, %v5513
  %v5515 = vpop.f32.mrb[0].mxu0
  %5516 = vmatprep.mubr.f32.mxu0 0.0
  %5517 = vmatmul.mubr.f32.gmra.mrb[0].mxu0 %v5005
  %v5518 = vpop.f32.mrb[0].mxu0
  %v5519 = vadd.f32 %v167, %v5518
  %v5520 = vpop.f32.mrb[0].mxu0
  %5521 = vmatprep.mubr.f32.mxu0 0.0
  %5522 = vmatmul.mubr.f32.gmra.mrb[0].mxu0 %v5008
  %v5523 = vpop.f32.mrb[0].mxu0
  %v5524 = vadd.f32 %v167, %v5523
  %v5525 = vpop.f32.mrb[0].mxu0
  %5526 = vmatprep.mubr.f32.mxu0 0.0
  %5527 = vmatmul.mubr.f32.gmra.mrb[0].mxu0 %v5011
  %v5528 = vpop.f32.mrb[0].mxu0
  %v5529 = vadd.f32 %v167, %v5528
  %v5530 = vpop.f32.mrb[0].mxu0
  %5531 = vmatprep.mubr.f32.mxu0 0.0
  %5532 = vmatmul.mubr.f32.gmra.mrb[0].mxu0 %v5014
  %v5533 = vpop.f32.mrb[0].mxu0
  %v5534 = vadd.f32 %v167, %v5533
  %v5535 = vpop.f32.mrb[0].mxu0
  %5536 = vmatprep.mubr.f32.mxu0 0.0
  %5537 = vmatmul.mubr.f32.gmra.mrb[0].mxu0 %v5017
  %v5538 = vpop.f32.mrb[0].mxu0
  %v5539 = vadd.f32 %v167, %v5538
  %v5540 = vpop.f32.mrb[0].mxu0
  %5541 = vmatprep.mubr.f32.mxu0 0.0
  %5542 = vmatmul.mubr.f32.gmra.mrb[0].mxu0 %v5020
  %v5543 = vpop.f32.mrb[0].mxu0
  %v5544 = vadd.f32 %v167, %v5543
  %v5545 = vpop.f32.mrb[0].mxu0
  %5546 = vmatprep.mubr.f32.mxu0 0.0
  %5547 = vmatmul.mubr.f32.gmra.mrb[0].mxu0 %v5023
  %v5548 = vpop.f32.mrb[0].mxu0
  %v5549 = vadd.f32 %v167, %v5548
  %v5550 = vpop.f32.mrb[0].mxu0
  %5551 = vmatprep.mubr.f32.mxu0 0.0
  %5552 = vmatmul.mubr.f32.gmra.mrb[0].mxu0 %v5026
  %v5553 = vpop.f32.mrb[0].mxu0
  %v5554 = vadd.f32 %v167, %v5553
  %v5555 = vpop.f32.mrb[0].mxu0
  %5556 = vmatprep.mubr.f32.mxu0 0.0
  %5557 = vmatmul.mubr.f32.gmra.mrb[0].mxu0 %v5029
  %v5558 = vpop.f32.mrb[0].mxu0
  %v5559 = vadd.f32 %v167, %v5558
  %v5560 = vpop.f32.mrb[0].mxu0
  %5561 = vmatprep.mubr.f32.mxu0 0.0
  %5562 = vmatmul.mubr.f32.gmra.mrb[0].mxu0 %v5032
  %v5563 = vpop.f32.mrb[0].mxu0
  %v5564 = vadd.f32 %v167, %v5563
  %v5565 = vpop.f32.mrb[0].mxu0
  %5566 = vmatprep.mubr.f32.mxu0 0.0
  %5567 = vmatmul.mubr.f32.gmra.mrb[0].mxu0 %v5035
  %v5568 = vpop.f32.mrb[0].mxu0
  %v5569 = vadd.f32 %v167, %v5568
  %v5570 = vpop.f32.mrb[0].mxu0
  %5571 = vmatprep.mubr.f32.mxu0 0.0
  %5572 = vmatmul.mubr.f32.gmra.mrb[0].mxu0 %v5038
  %v5573 = vpop.f32.mrb[0].mxu0
  %v5574 = vadd.f32 %v167, %v5573
  %v5575 = vpop.f32.mrb[0].mxu0
  %5576 = vmatprep.mubr.f32.mxu0 0.0
  %5577 = vmatmul.mubr.f32.gmra.mrb[0].mxu0 %v5041
  %v5578 = vpop.f32.mrb[0].mxu0
  %v5579 = vadd.f32 %v167, %v5578
  %v5580 = vpop.f32.mrb[0].mxu0
  %5581 = vmatprep.mubr.f32.mxu0 0.0
  %5582 = vmatmul.mubr.f32.gmra.mrb[0].mxu0 %v5044
  %v5583 = vpop.f32.mrb[0].mxu0
  %v5584 = vadd.f32 %v167, %v5583
  %v5585 = vpop.f32.mrb[0].mxu0
  %5586 = vmatprep.mubr.f32.mxu0 0.0
  %5587 = vmatmul.mubr.f32.gmra.mrb[0].mxu0 %v5047
  %v5588 = vpop.f32.mrb[0].mxu0
  %v5589 = vadd.f32 %v167, %v5588
  %v5590 = vpop.f32.mrb[0].mxu0
  %5591 = vmatprep.mubr.f32.mxu0 0.0
  %5592 = vmatmul.mubr.f32.gmra.mrb[0].mxu0 %v5050
  %v5593 = vpop.f32.mrb[0].mxu0
  %v5594 = vadd.f32 %v167, %v5593
  %v5595 = vpop.f32.mrb[0].mxu0
  %5596 = vmatprep.mubr.f32.mxu0 0.0
  %5597 = vmatmul.mubr.f32.gmra.mrb[0].mxu0 %v5053
  %v5598 = vpop.f32.mrb[0].mxu0
  %v5599 = vadd.f32 %v167, %v5598
  %v5600 = vpop.f32.mrb[0].mxu0
  %5601 = vmatprep.mubr.f32.mxu0 0.0
  %5602 = vmatmul.mubr.f32.gmra.mrb[0].mxu0 %v5056
  %v5603 = vpop.f32.mrb[0].mxu0
  %v5604 = vadd.f32 %v167, %v5603
  %v5605 = vpop.f32.mrb[0].mxu0
  %5606 = vmatprep.mubr.f32.mxu0 0.0
  %5607 = vmatmul.mubr.f32.gmra.mrb[0].mxu0 %v5059
  %v5608 = vpop.f32.mrb[0].mxu0
  %v5609 = vadd.f32 %v167, %v5608
  %v5610 = vpop.f32.mrb[0].mxu0
  %5611 = vmatprep.mubr.f32.mxu0 0.0
  %5612 = vmatmul.mubr.f32.gmra.mrb[0].mxu0 %v5062
  %v5613 = vpop.f32.mrb[0].mxu0
  %v5614 = vadd.f32 %v167, %v5613
  %v5615 = vpop.f32.mrb[0].mxu0
  %5616 = vmatprep.mubr.f32.mxu0 0.0
  %5617 = vmatmul.mubr.f32.gmra.mrb[0].mxu0 %v5065
  %v5618 = vpop.f32.mrb[0].mxu0
  %v5619 = vadd.f32 %v167, %v5618
  %v5620 = vpop.f32.mrb[0].mxu0
  %5621 = vmatprep.mubr.f32.mxu0 0.0
  %5622 = vmatmul.mubr.f32.gmra.mrb[0].mxu0 %v5068
  %v5623 = vpop.f32.mrb[0].mxu0
  %v5624 = vadd.f32 %v167, %v5623
  %v5625 = vpop.f32.mrb[0].mxu0
  %5626 = vmatprep.mubr.f32.mxu0 0.0
  %5627 = vmatmul.mubr.f32.gmra.mrb[0].mxu0 %v5071
  %v5628 = vpop.f32.mrb[0].mxu0
  %v5629 = vadd.f32 %v167, %v5628
  %v5630 = vpop.f32.mrb[0].mxu0
  %5631 = vmatprep.mubr.f32.mxu0 0.0
  %5632 = vmatmul.mubr.f32.gmra.mrb[0].mxu0 %v5074
  %v5633 = vpop.f32.mrb[0].mxu0
  %v5634 = vadd.f32 %v167, %v5633
  %v5635 = vpop.f32.mrb[0].mxu0
  %5636 = vmatprep.mubr.f32.mxu0 0.0
  %5637 = vmatmul.mubr.f32.gmra.mrb[0].mxu0 %v5077
  %v5638 = vpop.f32.mrb[0].mxu0
  %v5639 = vadd.f32 %v167, %v5638
  %v5640 = vpop.f32.mrb[0].mxu0
  %5641 = vmatprep.mubr.f32.mxu0 0.0
  %5642 = vmatmul.mubr.f32.gmra.mrb[0].mxu0 %v5080
  %v5643 = vpop.f32.mrb[0].mxu0
  %v5644 = vadd.f32 %v167, %v5643
  %v5645 = vpop.f32.mrb[0].mxu0
  %5646 = vmatprep.mubr.f32.mxu0 0.0
  %5647 = vmatmul.mubr.f32.gmra.mrb[0].mxu0 %v5083
  %v5648 = vpop.f32.mrb[0].mxu0
  %v5649 = vadd.f32 %v167, %v5648
  %v5650 = vpop.f32.mrb[0].mxu0
  %5651 = vmatprep.mubr.f32.mxu0 0.0
  %5652 = vmatmul.mubr.f32.gmra.mrb[0].mxu0 %v5086
  %v5653 = vpop.f32.mrb[0].mxu0
  %v5654 = vadd.f32 %v167, %v5653
  %v5655 = vpop.f32.mrb[0].mxu0
  %5656 = vmatprep.mubr.f32.mxu0 0.0
  %5657 = vmatmul.mubr.f32.gmra.mrb[0].mxu0 %v5089
  %v5658 = vpop.f32.mrb[0].mxu0
  %v5659 = vadd.f32 %v167, %v5658
  %v5660 = vpop.f32.mrb[0].mxu0
  %5661 = vmatprep.mubr.f32.mxu0 0.0
  %5662 = vmatmul.mubr.f32.gmra.mrb[0].mxu0 %v5092
  %v5663 = vpop.f32.mrb[0].mxu0
  %v5664 = vadd.f32 %v167, %v5663
  %v5665 = vpop.f32.mrb[0].mxu0
  %5666 = vmatprep.mubr.f32.mxu0 0.0
  %5667 = vmatmul.mubr.f32.gmra.mrb[0].mxu0 %v5095
  %v5668 = vpop.f32.mrb[0].mxu0
  %v5669 = vadd.f32 %v167, %v5668
  %v5670 = vpop.f32.mrb[0].mxu0
  %5671 = vmatprep.mubr.f32.mxu0 0.0
  %5672 = vmatmul.mubr.f32.gmra.mrb[0].mxu0 %v5098
  %v5673 = vpop.f32.mrb[0].mxu0
  %v5674 = vadd.f32 %v167, %v5673
  %v5675 = vpop.f32.mrb[0].mxu0
  %5676 = vmatprep.mubr.f32.mxu0 0.0
  %5677 = vmatmul.mubr.f32.gmra.mrb[0].mxu0 %v5101
  %v5678 = vpop.f32.mrb[0].mxu0
  %v5679 = vadd.f32 %v167, %v5678
  %v5680 = vpop.f32.mrb[0].mxu0
  %5681 = vmatprep.mubr.f32.mxu0 0.0
  %5682 = vmatmul.mubr.f32.gmra.mrb[0].mxu0 %v5104
  %v5683 = vpop.f32.mrb[0].mxu0
  %v5684 = vadd.f32 %v167, %v5683
  %v5685 = vpop.f32.mrb[0].mxu0
  %5686 = vmatprep.mubr.f32.mxu0 0.0
  %5687 = vmatmul.mubr.f32.gmra.mrb[0].mxu0 %v5107
  %v5688 = vpop.f32.mrb[0].mxu0
  %v5689 = vadd.f32 %v167, %v5688
  %v5690 = vpop.f32.mrb[0].mxu0
  %5691 = vmatprep.mubr.f32.mxu0 0.0
  %5692 = vmatmul.mubr.f32.gmra.mrb[0].mxu0 %v5110
  %v5693 = vpop.f32.mrb[0].mxu0
  %v5694 = vadd.f32 %v167, %v5693
  %v5695 = vpop.f32.mrb[0].mxu0
  %5696 = vmatprep.mubr.f32.mxu0 0.0
  %5697 = vmatmul.mubr.f32.gmra.mrb[0].mxu0 %v5113
  %v5698 = vpop.f32.mrb[0].mxu0
  %v5699 = vadd.f32 %v167, %v5698
  %v5700 = vpop.f32.mrb[0].mxu0
  %5701 = vmatprep.mubr.f32.mxu0 0.0
  %5702 = vmatmul.mubr.f32.gmra.mrb[0].mxu0 %v5116
  %v5703 = vpop.f32.mrb[0].mxu0
  %v5704 = vadd.f32 %v167, %v5703
  %v5705 = vpop.f32.mrb[0].mxu0
  %5706 = vmatprep.mubr.f32.mxu0 0.0
  %5707 = vmatmul.mubr.f32.gmra.mrb[0].mxu0 %v5119
  %v5708 = vpop.f32.mrb[0].mxu0
  %v5709 = vadd.f32 %v167, %v5708
  %v5710 = vpop.f32.mrb[0].mxu0
  %5711 = vmatprep.mubr.f32.mxu0 0.0
  %5712 = vmatmul.mubr.f32.gmra.mrb[0].mxu0 %v5122
  %v5713 = vpop.f32.mrb[0].mxu0
  %v5714 = vadd.f32 %v167, %v5713
  %v5715 = vpop.f32.mrb[0].mxu0
  %5716 = vmatprep.mubr.f32.mxu0 0.0
  %5717 = vmatmul.mubr.f32.gmra.mrb[0].mxu0 %v5125
  %v5718 = vpop.f32.mrb[0].mxu0
  %v5719 = vadd.f32 %v167, %v5718
  %v5720 = vpop.f32.mrb[0].mxu0
  %5721 = vmatprep.mubr.f32.mxu0 0.0
  %5722 = vmatmul.mubr.f32.gmra.mrb[0].mxu0 %v5128
  %v5723 = vpop.f32.mrb[0].mxu0
  %v5724 = vadd.f32 %v167, %v5723
  %v5725 = vpop.f32.mrb[0].mxu0
  %5726 = vmatprep.mubr.f32.mxu0 0.0
  %5727 = vmatmul.mubr.f32.gmra.mrb[0].mxu0 %v5131
  %v5728 = vpop.f32.mrb[0].mxu0
  %v5729 = vadd.f32 %v167, %v5728
  %v5730 = vpop.f32.mrb[0].mxu0
  %5731 = vmatprep.mubr.f32.mxu0 0.0
  %5732 = vmatmul.mubr.f32.gmra.mrb[0].mxu0 %v5134
  %v5733 = vpop.f32.mrb[0].mxu0
  %v5734 = vadd.f32 %v167, %v5733
  %v5735 = vpop.f32.mrb[0].mxu0
  %5736 = vmatprep.mubr.f32.mxu0 0.0
  %5737 = vmatmul.mubr.f32.gmra.mrb[0].mxu0 %v5137
  %v5738 = vpop.f32.mrb[0].mxu0
  %v5739 = vadd.f32 %v167, %v5738
  %v5740 = vpop.f32.mrb[0].mxu0
  %5741 = vmatprep.mubr.f32.mxu0 0.0
  %5742 = vmatmul.mubr.f32.gmra.mrb[0].mxu0 %v5140
  %v5743 = vpop.f32.mrb[0].mxu0
  %v5744 = vadd.f32 %v167, %v5743
  %v5745 = vpop.f32.mrb[0].mxu0
  %5746 = vmatprep.mubr.f32.mxu0 0.0
  %5747 = vmatmul.mubr.f32.gmra.mrb[0].mxu0 %v5143
  %v5748 = vpop.f32.mrb[0].mxu0
  %v5749 = vadd.f32 %v167, %v5748
  %v5750 = vpop.f32.mrb[0].mxu0
  %5751 = vmatprep.mubr.f32.mxu0 0.0
  %5752 = vmatmul.mubr.f32.gmra.mrb[0].mxu0 %v5146
  %v5753 = vpop.f32.mrb[0].mxu0
  %v5754 = vadd.f32 %v167, %v5753
  %v5755 = vpop.f32.mrb[0].mxu0
  %5756 = vmatprep.mubr.f32.mxu0 0.0
  %5757 = vmatmul.mubr.f32.gmra.mrb[0].mxu0 %v5149
  %v5758 = vpop.f32.mrb[0].mxu0
  %v5759 = vadd.f32 %v167, %v5758
  %v5760 = vpop.f32.mrb[0].mxu0
  %5761 = vmatprep.mubr.f32.mxu0 0.0
  %5762 = vmatmul.mubr.f32.gmra.mrb[0].mxu0 %v5152
  %v5763 = vpop.f32.mrb[0].mxu0
  %v5764 = vadd.f32 %v167, %v5763
  %v5765 = vpop.f32.mrb[0].mxu0
  %5766 = vmatprep.mubr.f32.mxu0 0.0
  %5767 = vmatmul.mubr.f32.gmra.mrb[0].mxu0 %v5155
  %v5768 = vpop.f32.mrb[0].mxu0
  %v5769 = vadd.f32 %v167, %v5768
  %v5770 = vpop.f32.mrb[0].mxu0
  %5771 = vmatprep.mubr.f32.mxu0 0.0
  %5772 = vmatmul.mubr.f32.gmra.mrb[0].mxu0 %v5158
  %v5773 = vpop.f32.mrb[0].mxu0
  %v5774 = vadd.f32 %v167, %v5773
  %v5775 = vpop.f32.mrb[0].mxu0
  %5776 = vmatprep.mubr.f32.mxu0 0.0
  %5777 = vmatmul.mubr.f32.gmra.mrb[0].mxu0 %v5161
  %v5778 = vpop.f32.mrb[0].mxu0
  %v5779 = vadd.f32 %v167, %v5778
  %v5780 = vpop.f32.mrb[0].mxu0
  %5781 = vmatprep.mubr.f32.mxu0 0.0
  %5782 = vmatmul.mubr.f32.gmra.mrb[0].mxu0 %v5164
  %v5783 = vpop.f32.mrb[0].mxu0
  %v5784 = vadd.f32 %v167, %v5783
  %v5785 = vpop.f32.mrb[0].mxu0
  %5786 = vmatprep.mubr.f32.mxu0 0.0
  %5787 = vmatmul.mubr.f32.gmra.mrb[0].mxu0 %v5167
  %v5788 = vpop.f32.mrb[0].mxu0
  %v5789 = vadd.f32 %v167, %v5788
  %v5790 = vpop.f32.mrb[0].mxu0
  %5791 = vmatprep.mubr.f32.mxu0 0.0
  %5792 = vmatmul.mubr.f32.gmra.mrb[0].mxu0 %v5170
  %v5793 = vpop.f32.mrb[0].mxu0
  %v5794 = vadd.f32 %v167, %v5793
  %v5795 = vpop.f32.mrb[0].mxu0
  %5796 = vmatprep.mubr.f32.mxu0 0.0
  %5797 = vmatmul.mubr.f32.gmra.mrb[0].mxu0 %v5173
  %v5798 = vpop.f32.mrb[0].mxu0
  %v5799 = vadd.f32 %v167, %v5798
  %v5800 = vpop.f32.mrb[0].mxu0
  %5801 = vmatprep.mubr.f32.mxu0 0.0
  %5802 = vmatmul.mubr.f32.gmra.mrb[0].mxu0 %v5176
  %v5803 = vpop.f32.mrb[0].mxu0
  %v5804 = vadd.f32 %v167, %v5803
  %v5805 = vpop.f32.mrb[0].mxu0
  %5806 = vmatprep.mubr.f32.mxu0 0.0
  %5807 = vmatmul.mubr.f32.gmra.mrb[0].mxu0 %v5179
  %v5808 = vpop.f32.mrb[0].mxu0
  %v5809 = vadd.f32 %v167, %v5808
  %v5810 = vpop.f32.mrb[0].mxu0
  %5811 = vmatprep.mubr.f32.mxu0 0.0
  %5812 = vmatmul.mubr.f32.gmra.mrb[0].mxu0 %v5182
  %v5813 = vpop.f32.mrb[0].mxu0
  %v5814 = vadd.f32 %v167, %v5813
  %v5815 = vpop.f32.mrb[0].mxu0
  %5816 = vmatprep.mubr.f32.mxu0 0.0
  %5817 = vmatmul.mubr.f32.gmra.mrb[0].mxu0 %v5185
  %v5818 = vpop.f32.mrb[0].mxu0
  %v5819 = vadd.f32 %v167, %v5818
  %v5820 = vpop.f32.mrb[0].mxu0
  %5821 = vmatprep.mubr.f32.mxu0 0.0
  %5822 = vmatmul.mubr.f32.gmra.mrb[0].mxu0 %v5188
  %v5823 = vpop.f32.mrb[0].mxu0
  %v5824 = vadd.f32 %v167, %v5823
  %v5825 = vpop.f32.mrb[0].mxu0
  %5826 = vmatprep.mubr.f32.mxu0 0.0
  %5827 = vmatmul.mubr.f32.gmra.mrb[0].mxu0 %v5191
  %v5828 = vpop.f32.mrb[0].mxu0
  %v5829 = vadd.f32 %v167, %v5828
  %v5830 = vpop.f32.mrb[0].mxu0
  %5831 = vmatprep.mubr.f32.mxu0 0.0
  %5832 = vmatmul.mubr.f32.gmra.mrb[0].mxu0 %v5194
  %v5833 = vpop.f32.mrb[0].mxu0
  %v5834 = vadd.f32 %v167, %v5833
  %v5835 = vpop.f32.mrb[0].mxu0
  %5836 = vmatprep.mubr.f32.mxu0 0.0
  %5837 = vmatmul.mubr.f32.gmra.mrb[0].mxu0 %v5197
  %v5838 = vpop.f32.mrb[0].mxu0
  %v5839 = vadd.f32 %v167, %v5838
  %v5840 = vpop.f32.mrb[0].mxu0
  %5841 = vmatprep.mubr.f32.mxu0 0.0
  %5842 = vmatmul.mubr.f32.gmra.mrb[0].mxu0 %v5200
  %v5843 = vpop.f32.mrb[0].mxu0
  %v5844 = vadd.f32 %v167, %v5843
  %v5845 = vpop.f32.mrb[0].mxu0
  %5846 = vmatprep.mubr.f32.mxu0 0.0
  %5847 = vmatmul.mubr.f32.gmra.mrb[0].mxu0 %v5203
  %v5848 = vpop.f32.mrb[0].mxu0
  %v5849 = vadd.f32 %v167, %v5848
  %v5850 = vpop.f32.mrb[0].mxu0
  %5851 = vmatprep.mubr.f32.mxu0 0.0
  %5852 = vmatmul.mubr.f32.gmra.mrb[0].mxu0 %v5206
  %v5853 = vpop.f32.mrb[0].mxu0
  %v5854 = vadd.f32 %v167, %v5853
  %v5855 = vpop.f32.mrb[0].mxu0
  %5856 = vmatprep.mubr.f32.mxu0 0.0
  %5857 = vmatmul.mubr.f32.gmra.mrb[0].mxu0 %v5209
  %v5858 = vpop.f32.mrb[0].mxu0
  %v5859 = vadd.f32 %v167, %v5858
  %v5860 = vpop.f32.mrb[0].mxu0
  %5861 = vmatprep.mubr.f32.mxu0 0.0
  %5862 = vmatmul.mubr.f32.gmra.mrb[0].mxu0 %v5212
  %v5863 = vpop.f32.mrb[0].mxu0
  %v5864 = vadd.f32 %v167, %v5863
  %v5865 = vpop.f32.mrb[0].mxu0
  %5866 = vmatprep.mubr.f32.mxu0 0.0
  %5867 = vmatmul.mubr.f32.gmra.mrb[0].mxu0 %v5215
  %v5868 = vpop.f32.mrb[0].mxu0
  %v5869 = vadd.f32 %v167, %v5868
  %v5870 = vpop.f32.mrb[0].mxu0
  %5871 = vmatprep.mubr.f32.mxu0 0.0
  %5872 = vmatmul.mubr.f32.gmra.mrb[0].mxu0 %v5218
  %v5873 = vpop.f32.mrb[0].mxu0
  %v5874 = vadd.f32 %v167, %v5873
  %v5875 = vpop.f32.mrb[0].mxu0
  %5876 = vmatprep.mubr.f32.mxu0 0.0
  %5877 = vmatmul.mubr.f32.gmra.mrb[0].mxu0 %v5221
  %v5878 = vpop.f32.mrb[0].mxu0
  %v5879 = vadd.f32 %v167, %v5878
  %v5880 = vpop.f32.mrb[0].mxu0
  %5881 = vmatprep.mubr.f32.mxu0 0.0
  %5882 = vmatmul.mubr.f32.gmra.mrb[0].mxu0 %v5224
  %v5883 = vpop.f32.mrb[0].mxu0
  %v5884 = vadd.f32 %v167, %v5883
  %v5885 = vpop.f32.mrb[0].mxu0
  %5886 = vmatprep.mubr.f32.mxu0 0.0
  %5887 = vmatmul.mubr.f32.gmra.mrb[0].mxu0 %v5227
  %v5888 = vpop.f32.mrb[0].mxu0
  %v5889 = vadd.f32 %v167, %v5888
  %v5890 = vpop.f32.mrb[0].mxu0
  %5891 = vmatprep.mubr.f32.mxu0 0.0
  %5892 = vmatmul.mubr.f32.gmra.mrb[0].mxu0 %v5230
  %v5893 = vpop.f32.mrb[0].mxu0
  %v5894 = vadd.f32 %v167, %v5893
  %v5895 = vpop.f32.mrb[0].mxu0
  %5896 = vmatprep.mubr.f32.mxu0 0.0
  %5897 = vmatmul.mubr.f32.gmra.mrb[0].mxu0 %v5233
  %v5898 = vpop.f32.mrb[0].mxu0
  %v5899 = vadd.f32 %v167, %v5898
  %v5900 = vpop.f32.mrb[0].mxu0
  %5901 = vmatprep.mubr.f32.mxu0 0.0
  %5902 = vmatmul.mubr.f32.gmra.mrb[0].mxu0 %v5236
  %v5903 = vpop.f32.mrb[0].mxu0
  %v5904 = vadd.f32 %v167, %v5903
  %v5905 = vpop.f32.mrb[0].mxu0
  %5906 = vmatprep.mubr.f32.mxu0 0.0
  %5907 = vmatmul.mubr.f32.gmra.mrb[0].mxu0 %v5239
  %v5908 = vpop.f32.mrb[0].mxu0
  %v5909 = vadd.f32 %v167, %v5908
  %v5910 = vpop.f32.mrb[0].mxu0
  %5911 = vmatprep.mubr.f32.mxu0 0.0
  %5912 = vmatmul.mubr.f32.gmra.mrb[0].mxu0 %v5242
  %v5913 = vpop.f32.mrb[0].mxu0
  %v5914 = vadd.f32 %v167, %v5913
  %v5915 = vpop.f32.mrb[0].mxu0
  %5916 = vmatprep.mubr.f32.mxu0 0.0
  %5917 = vmatmul.mubr.f32.gmra.mrb[0].mxu0 %v5245
  %v5918 = vpop.f32.mrb[0].mxu0
  %v5919 = vadd.f32 %v167, %v5918
  %v5920 = vpop.f32.mrb[0].mxu0
  %5921 = vmatprep.mubr.f32.mxu0 0.0
  %5922 = vmatmul.mubr.f32.gmra.mrb[0].mxu0 %v5248
  %v5923 = vpop.f32.mrb[0].mxu0
  %v5924 = vadd.f32 %v167, %v5923
  %v5925 = vpop.f32.mrb[0].mxu0
  %5926 = vmatprep.mubr.f32.mxu0 0.0
  %5927 = vmatmul.mubr.f32.gmra.mrb[0].mxu0 %v5251
  %v5928 = vpop.f32.mrb[0].mxu0
  %v5929 = vadd.f32 %v167, %v5928
  %v5930 = vpop.f32.mrb[0].mxu0
  %5931 = vmatprep.mubr.f32.mxu0 0.0
  %5932 = vmatmul.mubr.f32.gmra.mrb[0].mxu0 %v5254
  %v5933 = vpop.f32.mrb[0].mxu0
  %v5934 = vadd.f32 %v167, %v5933
  %v5935 = vpop.f32.mrb[0].mxu0
  %5936 = vmatprep.mubr.f32.mxu0 0.0
  %5937 = vmatmul.mubr.f32.gmra.mrb[0].mxu0 %v5257
  %v5938 = vpop.f32.mrb[0].mxu0
  %v5939 = vadd.f32 %v167, %v5938
  %v5940 = vpop.f32.mrb[0].mxu0
  %5941 = vmatprep.mubr.f32.mxu0 0.0
  %5942 = vmatmul.mubr.f32.gmra.mrb[0].mxu0 %v5260
  %v5943 = vpop.f32.mrb[0].mxu0
  %v5944 = vadd.f32 %v167, %v5943
  %v5945 = vpop.f32.mrb[0].mxu0
  %5946 = vmatprep.mubr.f32.mxu0 0.0
  %5947 = vmatmul.mubr.f32.gmra.mrb[0].mxu0 %v5263
  %v5948 = vpop.f32.mrb[0].mxu0
  %v5949 = vadd.f32 %v167, %v5948
  %v5950 = vpop.f32.mrb[0].mxu0
  %5951 = vmatprep.mubr.f32.mxu0 0.0
  %5952 = vmatmul.mubr.f32.gmra.mrb[0].mxu0 %v5266
  %v5953 = vpop.f32.mrb[0].mxu0
  %v5954 = vadd.f32 %v167, %v5953
  %v5955 = vpop.f32.mrb[0].mxu0
  %5956 = vmatprep.mubr.f32.mxu0 0.0
  %5957 = vmatmul.mubr.f32.gmra.mrb[0].mxu0 %v5269
  %v5958 = vpop.f32.mrb[0].mxu0
  %v5959 = vadd.f32 %v167, %v5958
  %v5960 = vpop.f32.mrb[0].mxu0
  %5961 = vmatprep.mubr.f32.mxu0 0.0
  %5962 = vmatmul.mubr.f32.gmra.mrb[0].mxu0 %v5272
  %v5963 = vpop.f32.mrb[0].mxu0
  %v5964 = vadd.f32 %v167, %v5963
  %v5965 = vpop.f32.mrb[0].mxu0
  %5966 = vmatprep.mubr.f32.mxu0 0.0
  %5967 = vmatmul.mubr.f32.gmra.mrb[0].mxu0 %v5275
  %v5968 = vpop.f32.mrb[0].mxu0
  %v5969 = vadd.f32 %v167, %v5968
  %v5970 = vpop.f32.mrb[0].mxu0
  %5971 = vmatprep.mubr.f32.mxu0 0.0
  %5972 = vmatmul.mubr.f32.gmra.mrb[0].mxu0 %v5278
  %v5973 = vpop.f32.mrb[0].mxu0
  %v5974 = vadd.f32 %v167, %v5973
  %v5975 = vpop.f32.mrb[0].mxu0
  %5976 = vmatprep.mubr.f32.mxu0 0.0
  %5977 = vmatmul.mubr.f32.gmra.mrb[0].mxu0 %v5281
  %v5978 = vpop.f32.mrb[0].mxu0
  %v5979 = vadd.f32 %v167, %v5978
  %v5980 = vpop.f32.mrb[0].mxu0
  %5981 = vmatprep.mubr.f32.mxu0 0.0
  %5982 = vmatmul.mubr.f32.gmra.mrb[0].mxu0 %v5284
  %v5983 = vpop.f32.mrb[0].mxu0
  %v5984 = vadd.f32 %v167, %v5983
  %v5985 = vpop.f32.mrb[0].mxu0
  %5986 = vmatprep.mubr.f32.mxu0 0.0
  %5987 = vmatmul.mubr.f32.gmra.mrb[0].mxu0 %v5287
  %v5988 = vpop.f32.mrb[0].mxu0
  %v5989 = vadd.f32 %v167, %v5988
  %v5990 = vpop.f32.mrb[0].mxu0
  %5991 = vmatprep.mubr.f32.mxu0 0.0
  %5992 = vmatmul.mubr.f32.gmra.mrb[0].mxu0 %v5290
  %v5993 = vpop.f32.mrb[0].mxu0
  %v5994 = vadd.f32 %v167, %v5993
  %v5995 = vpop.f32.mrb[0].mxu0
  %5996 = vmatprep.mubr.f32.mxu0 0.0
  %5997 = vmatmul.mubr.f32.gmra.mrb[0].mxu0 %v5293
  %v5998 = vpop.f32.mrb[0].mxu0
  %v5999 = vadd.f32 %v167, %v5998
  %v6000 = vpop.f32.mrb[0].mxu0
  %6001 = vmatprep.mubr.f32.mxu0 0.0
  %6002 = vmatmul.mubr.f32.gmra.mrb[0].mxu0 %v5296
  %v6003 = vpop.f32.mrb[0].mxu0
  %v6004 = vadd.f32 %v167, %v6003
  %v6005 = vpop.f32.mrb[0].mxu0
  %6006 = vmatprep.mubr.f32.mxu0 0.0
  %6007 = vmatmul.mubr.f32.gmra.mrb[0].mxu0 %v5299
  %v6008 = vpop.f32.mrb[0].mxu0
  %v6009 = vadd.f32 %v167, %v6008
  %v6010 = vpop.f32.mrb[0].mxu0
  %6011 = vmatprep.mubr.f32.mxu0 0.0
  %6012 = vmatmul.mubr.f32.gmra.mrb[0].mxu0 %v5302
  %v6013 = vpop.f32.mrb[0].mxu0
  %v6014 = vadd.f32 %v167, %v6013
  %v6015 = vpop.f32.mrb[0].mxu0
  %6016 = vmatprep.mubr.f32.mxu0 0.0
  %6017 = vmatmul.mubr.f32.gmra.mrb[0].mxu0 %v5305
  %v6018 = vpop.f32.mrb[0].mxu0
  %v6019 = vadd.f32 %v167, %v6018
  %v6020 = vpop.f32.mrb[0].mxu0
  %6021 = vmatprep.mubr.f32.mxu0 0.0
  %6022 = vmatmul.mubr.f32.gmra.mrb[0].mxu0 %v5308
  %v6023 = vpop.f32.mrb[0].mxu0
  %v6024 = vadd.f32 %v167, %v6023
  %v6025 = vpop.f32.mrb[0].mxu0
  %6026 = vmatprep.mubr.f32.mxu0 0.0
  %6027 = vmatmul.mubr.f32.gmra.mrb[0].mxu0 %v5311
  %v6028 = vpop.f32.mrb[0].mxu0
  %v6029 = vadd.f32 %v167, %v6028
  %v6030 = vpop.f32.mrb[0].mxu0
  %6031 = vmatprep.mubr.f32.mxu0 0.0
  %6032 = vmatmul.mubr.f32.gmra.mrb[0].mxu0 %v5314
  %v6033 = vpop.f32.mrb[0].mxu0
  %v6034 = vadd.f32 %v167, %v6033
  %v6035 = vpop.f32.mrb[0].mxu0
  %6036 = vmatprep.mubr.f32.mxu0 0.0
  %6037 = vmatmul.mubr.f32.gmra.mrb[0].mxu0 %v5317
  %v6038 = vpop.f32.mrb[0].mxu0
  %v6039 = vadd.f32 %v167, %v6038
  %v6040 = vpop.f32.mrb[0].mxu0
  %6041 = vmatprep.mubr.f32.mxu0 0.0
  %6042 = vmatmul.mubr.f32.gmra.mrb[0].mxu0 %v5320
  %v6043 = vpop.f32.mrb[0].mxu0
  %v6044 = vadd.f32 %v167, %v6043
  %v6045 = vpop.f32.mrb[0].mxu0
  %6046 = vmatprep.mubr.f32.mxu0 0.0
  %6047 = vmatmul.mubr.f32.gmra.mrb[0].mxu0 %v5323
  %v6048 = vpop.f32.mrb[0].mxu0
  %v6049 = vadd.f32 %v167, %v6048
  %v6050 = vpop.f32.mrb[0].mxu0
  %6051 = vmatprep.mubr.f32.mxu0 0.0
  %6052 = vmatmul.mubr.f32.gmra.mrb[0].mxu0 %v5326
  %v6053 = vpop.f32.mrb[0].mxu0
  %v6054 = vadd.f32 %v167, %v6053
  %v6055 = vpop.f32.mrb[0].mxu0
  %6056 = vmatprep.mubr.f32.mxu0 0.0
  %6057 = vmatmul.mubr.f32.gmra.mrb[0].mxu0 %v5329
  %v6058 = vpop.f32.mrb[0].mxu0
  %v6059 = vadd.f32 %v167, %v6058
  %v6060 = vpop.f32.mrb[0].mxu0
  %6061 = vmatprep.mubr.f32.mxu0 0.0
  %6062 = vmatmul.mubr.f32.gmra.mrb[0].mxu0 %v5332
  %v6063 = vpop.f32.mrb[0].mxu0
  %v6064 = vadd.f32 %v167, %v6063
  %v6065 = vpop.f32.mrb[0].mxu0
  %6066 = vmatprep.mubr.f32.mxu0 0.0
  %6067 = vmatmul.mubr.f32.gmra.mrb[0].mxu0 %v5335
  %v6068 = vpop.f32.mrb[0].mxu0
  %v6069 = vadd.f32 %v167, %v6068
  %v6070 = vpop.f32.mrb[0].mxu0
  %6071 = vmatprep.mubr.f32.mxu0 0.0
  %6072 = vmatmul.mubr.f32.gmra.mrb[0].mxu0 %v5338
  %v6073 = vpop.f32.mrb[0].mxu0
  %v6074 = vadd.f32 %v167, %v6073
  %v6075 = vpop.f32.mrb[0].mxu0
  %6076 = vmatprep.mubr.f32.mxu0 0.0
  %6077 = vmatmul.mubr.f32.gmra.mrb[0].mxu0 %v5341
  %v6078 = vpop.f32.mrb[0].mxu0
  %v6079 = vadd.f32 %v167, %v6078
  %v6080 = vpop.f32.mrb[0].mxu0
  %6081 = vmatprep.mubr.f32.mxu0 0.0
  %6082 = vmatmul.mubr.f32.gmra.mrb[0].mxu0 %v5344
  %v6083 = vpop.f32.mrb[0].mxu0
  %v6084 = vadd.f32 %v167, %v6083
  %v6085 = vpop.f32.mrb[0].mxu0
  %6086 = vmatprep.mubr.f32.mxu0 0.0
  %6087 = vmatmul.mubr.f32.gmra.mrb[0].mxu0 %v5347
  %v6088 = vpop.f32.mrb[0].mxu0
  %v6089 = vadd.f32 %v167, %v6088
  %v6090 = vpop.f32.mrb[0].mxu0
  %6091 = vmatprep.mubr.f32.mxu0 0.0
  %6092 = vmatmul.mubr.f32.gmra.mrb[0].mxu0 %v5350
  %v6093 = vpop.f32.mrb[0].mxu0
  %v6094 = vadd.f32 %v167, %v6093
  %v6095 = vpop.f32.mrb[0].mxu0
  %6096 = vmatprep.mubr.f32.mxu0 0.0
  %6097 = vmatmul.mubr.f32.gmra.mrb[0].mxu0 %v5353
  %v6098 = vpop.f32.mrb[0].mxu0
  %v6099 = vadd.f32 %v167, %v6098
  %v6100 = vpop.f32.mrb[0].mxu0
  %6101 = vmatprep.mubr.f32.mxu0 0.0
  %6102 = vmatmul.mubr.f32.gmra.mrb[0].mxu0 %v5356
  %v6103 = vpop.f32.mrb[0].mxu0
  %v6104 = vadd.f32 %v167, %v6103
  %v6105 = vpop.f32.mrb[0].mxu0
  %6106 = vmatprep.mubr.f32.mxu0 0.0
  %6107 = vmatmul.mubr.f32.gmra.mrb[0].mxu0 %v5359
  %v6108 = vpop.f32.mrb[0].mxu0
  %v6109 = vadd.f32 %v167, %v6108
  %v6110 = vpop.f32.mrb[0].mxu0
  %6111 = vmatprep.mubr.f32.mxu0 0.0
  %6112 = vmatmul.mubr.f32.gmra.mrb[0].mxu0 %v5362
  %v6113 = vpop.f32.mrb[0].mxu0
  %v6114 = vadd.f32 %v167, %v6113
  %v6115 = vpop.f32.mrb[0].mxu0
  %6116 = vmatprep.mubr.f32.mxu0 0.0
  %6117 = vmatmul.mubr.f32.gmra.mrb[0].mxu0 %v5365
  %v6118 = vpop.f32.mrb[0].mxu0
  %v6119 = vadd.f32 %v167, %v6118
  %v6120 = vpop.f32.mrb[0].mxu0
  %6121 = vmatprep.mubr.f32.mxu0 0.0
  %6122 = vmatmul.mubr.f32.gmra.mrb[0].mxu0 %v5368
  %v6123 = vpop.f32.mrb[0].mxu0
  %v6124 = vadd.f32 %v167, %v6123
  %v6125 = vpop.f32.mrb[0].mxu0
  %6126 = vmatprep.mubr.f32.mxu0 0.0
  %6127 = vmatmul.mubr.f32.gmra.mrb[0].mxu0 %v5371
  %v6128 = vpop.f32.mrb[0].mxu0
  %v6129 = vadd.f32 %v167, %v6128
  %v6130 = vpop.f32.mrb[0].mxu0
  %6131 = vmatprep.mubr.f32.mxu0 0.0
  %6132 = vmatmul.mubr.f32.gmra.mrb[0].mxu0 %v5374
  %v6133 = vpop.f32.mrb[0].mxu0
  %v6134 = vadd.f32 %v167, %v6133
  %v6135 = vpop.f32.mrb[0].mxu0
  %6136 = vmatprep.mubr.f32.mxu0 0.0
  %6137 = vmatmul.mubr.f32.gmra.mrb[0].mxu0 %v5377
  %v6138 = vpop.f32.mrb[0].mxu0
  %v6139 = vadd.f32 %v167, %v6138
  %v6140 = vpop.f32.mrb[0].mxu0
  %6141 = vmatprep.mubr.f32.mxu0 0.0
  %6142 = vmatmul.mubr.f32.gmra.mrb[0].mxu0 %v5380
  %v6143 = vpop.f32.mrb[0].mxu0
  %v6144 = vadd.f32 %v167, %v6143
  %v6145 = vpop.f32.mrb[0].mxu0
  %6146 = vmatprep.mubr.f32.mxu0 0.0
  %6147 = vmatmul.mubr.f32.gmra.mrb[0].mxu0 %v5383
  %v6148 = vpop.f32.mrb[0].mxu0
  %v6149 = vadd.f32 %v167, %v6148
  %v6150 = vpop.f32.mrb[0].mxu0
  %6151 = vmatprep.mubr.f32.mxu0 0.0
  %6152 = vmatmul.mubr.f32.gmra.mrb[0].mxu0 %v5386
  %v6153 = vpop.f32.mrb[0].mxu0
  %v6154 = vadd.f32 %v167, %v6153
  %v6155 = vpop.f32.mrb[0].mxu0
  %6156 = vmatprep.mubr.f32.mxu0 0.0
  %6157 = vmatmul.mubr.f32.gmra.mrb[0].mxu0 %v5389
  %v6158 = vpop.f32.mrb[0].mxu0
  %v6159 = vadd.f32 %v167, %v6158
  %v6160 = vpop.f32.mrb[0].mxu0
  %6161 = vmatprep.mubr.f32.mxu0 0.0
  %6162 = vmatmul.mubr.f32.gmra.mrb[0].mxu0 %v5392
  %v6163 = vpop.f32.mrb[0].mxu0
  %v6164 = vadd.f32 %v167, %v6163
  %v6165 = vpop.f32.mrb[0].mxu0
  %6166 = vmatprep.mubr.f32.mxu0 0.0
  %6167 = vmatmul.mubr.f32.gmra.mrb[0].mxu0 %v5395
  %v6168 = vpop.f32.mrb[0].mxu0
  %v6169 = vadd.f32 %v167, %v6168
  %v6170 = vpop.f32.mrb[0].mxu0
  %6171 = vmatprep.mubr.f32.mxu0 0.0
  %6172 = vmatmul.mubr.f32.gmra.mrb[0].mxu0 %v5398
  %v6173 = vpop.f32.mrb[0].mxu0
  %v6174 = vadd.f32 %v167, %v6173
  %v6175 = vpop.f32.mrb[0].mxu0
  %6176 = vmatprep.mubr.f32.mxu0 0.0
  %6177 = vmatmul.mubr.f32.gmra.mrb[0].mxu0 %v5401
  %v6178 = vpop.f32.mrb[0].mxu0
  %v6179 = vadd.f32 %v167, %v6178
  %v6180 = vpop.f32.mrb[0].mxu0
  %6181 = vmatprep.mubr.f32.mxu0 0.0
  %6182 = vmatmul.mubr.f32.gmra.mrb[0].mxu0 %v5404
  %v6183 = vpop.f32.mrb[0].mxu0
  %v6184 = vadd.f32 %v167, %v6183
  %v6185 = vpop.f32.mrb[0].mxu0
  %6186 = vmatprep.mubr.f32.mxu0 0.0
  %6187 = vmatmul.mubr.f32.gmra.mrb[0].mxu0 %v5407
  %v6188 = vpop.f32.mrb[0].mxu0
  %v6189 = vadd.f32 %v167, %v6188
  %v6190 = vpop.f32.mrb[0].mxu0
  %6191 = vmatprep.mubr.f32.mxu0 0.0
  %6192 = vmatmul.mubr.f32.gmra.mrb[0].mxu0 %v5410
  %v6193 = vpop.f32.mrb[0].mxu0
  %v6194 = vadd.f32 %v167, %v6193
  %v6195 = vpop.f32.mrb[0].mxu0
  %6196 = vdwg.mxu0
  %v6197 = vmax.f32 %v5479, 0.0
  %v6198 = vmax.f32 %v5484, 0.0
  %v6199 = vmax.f32 %v5489, 0.0
  %v6200 = vmax.f32 %v5494, 0.0
  %v6201 = vmax.f32 %v5499, 0.0
  %v6202 = vmax.f32 %v5504, 0.0
  %v6203 = vmax.f32 %v5509, 0.0
  %v6204 = vmax.f32 %v5514, 0.0
  %v6205 = vmax.f32 %v5519, 0.0
  %v6206 = vmax.f32 %v5524, 0.0
  %v6207 = vmax.f32 %v5529, 0.0
  %v6208 = vmax.f32 %v5534, 0.0
  %v6209 = vmax.f32 %v5539, 0.0
  %v6210 = vmax.f32 %v5544, 0.0
  %v6211 = vmax.f32 %v5549, 0.0
  %v6212 = vmax.f32 %v5554, 0.0
  %v6213 = vmax.f32 %v5559, 0.0
  %v6214 = vmax.f32 %v5564, 0.0
  %v6215 = vmax.f32 %v5569, 0.0
  %v6216 = vmax.f32 %v5574, 0.0
  %v6217 = vmax.f32 %v5579, 0.0
  %v6218 = vmax.f32 %v5584, 0.0
  %v6219 = vmax.f32 %v5589, 0.0
  %v6220 = vmax.f32 %v5594, 0.0
  %v6221 = vmax.f32 %v5599, 0.0
  %v6222 = vmax.f32 %v5604, 0.0
  %v6223 = vmax.f32 %v5609, 0.0
  %v6224 = vmax.f32 %v5614, 0.0
  %v6225 = vmax.f32 %v5619, 0.0
  %v6226 = vmax.f32 %v5624, 0.0
  %v6227 = vmax.f32 %v5629, 0.0
  %v6228 = vmax.f32 %v5634, 0.0
  %v6229 = vmax.f32 %v5639, 0.0
  %v6230 = vmax.f32 %v5644, 0.0
  %v6231 = vmax.f32 %v5649, 0.0
  %v6232 = vmax.f32 %v5654, 0.0
  %v6233 = vmax.f32 %v5659, 0.0
  %v6234 = vmax.f32 %v5664, 0.0
  %v6235 = vmax.f32 %v5669, 0.0
  %v6236 = vmax.f32 %v5674, 0.0
  %v6237 = vmax.f32 %v5679, 0.0
  %v6238 = vmax.f32 %v5684, 0.0
  %v6239 = vmax.f32 %v5689, 0.0
  %v6240 = vmax.f32 %v5694, 0.0
  %v6241 = vmax.f32 %v5699, 0.0
  %v6242 = vmax.f32 %v5704, 0.0
  %v6243 = vmax.f32 %v5709, 0.0
  %v6244 = vmax.f32 %v5714, 0.0
  %v6245 = vmax.f32 %v5719, 0.0
  %v6246 = vmax.f32 %v5724, 0.0
  %v6247 = vmax.f32 %v5729, 0.0
  %v6248 = vmax.f32 %v5734, 0.0
  %v6249 = vmax.f32 %v5739, 0.0
  %v6250 = vmax.f32 %v5744, 0.0
  %v6251 = vmax.f32 %v5749, 0.0
  %v6252 = vmax.f32 %v5754, 0.0
  %v6253 = vmax.f32 %v5759, 0.0
  %v6254 = vmax.f32 %v5764, 0.0
  %v6255 = vmax.f32 %v5769, 0.0
  %v6256 = vmax.f32 %v5774, 0.0
  %v6257 = vmax.f32 %v5779, 0.0
  %v6258 = vmax.f32 %v5784, 0.0
  %v6259 = vmax.f32 %v5789, 0.0
  %v6260 = vmax.f32 %v5794, 0.0
  %v6261 = vmax.f32 %v5799, 0.0
  %v6262 = vmax.f32 %v5804, 0.0
  %v6263 = vmax.f32 %v5809, 0.0
  %v6264 = vmax.f32 %v5814, 0.0
  %v6265 = vmax.f32 %v5819, 0.0
  %v6266 = vmax.f32 %v5824, 0.0
  %v6267 = vmax.f32 %v5829, 0.0
  %v6268 = vmax.f32 %v5834, 0.0
  %v6269 = vmax.f32 %v5839, 0.0
  %v6270 = vmax.f32 %v5844, 0.0
  %v6271 = vmax.f32 %v5849, 0.0
  %v6272 = vmax.f32 %v5854, 0.0
  %v6273 = vmax.f32 %v5859, 0.0
  %v6274 = vmax.f32 %v5864, 0.0
  %v6275 = vmax.f32 %v5869, 0.0
  %v6276 = vmax.f32 %v5874, 0.0
  %v6277 = vmax.f32 %v5879, 0.0
  %v6278 = vmax.f32 %v5884, 0.0
  %v6279 = vmax.f32 %v5889, 0.0
  %v6280 = vmax.f32 %v5894, 0.0
  %v6281 = vmax.f32 %v5899, 0.0
  %v6282 = vmax.f32 %v5904, 0.0
  %v6283 = vmax.f32 %v5909, 0.0
  %v6284 = vmax.f32 %v5914, 0.0
  %v6285 = vmax.f32 %v5919, 0.0
  %v6286 = vmax.f32 %v5924, 0.0
  %v6287 = vmax.f32 %v5929, 0.0
  %v6288 = vmax.f32 %v5934, 0.0
  %v6289 = vmax.f32 %v5939, 0.0
  %v6290 = vmax.f32 %v5944, 0.0
  %v6291 = vmax.f32 %v5949, 0.0
  %v6292 = vmax.f32 %v5954, 0.0
  %v6293 = vmax.f32 %v5959, 0.0
  %v6294 = vmax.f32 %v5964, 0.0
  %v6295 = vmax.f32 %v5969, 0.0
  %v6296 = vmax.f32 %v5974, 0.0
  %v6297 = vmax.f32 %v5979, 0.0
  %v6298 = vmax.f32 %v5984, 0.0
  %v6299 = vmax.f32 %v5989, 0.0
  %v6300 = vmax.f32 %v5994, 0.0
  %v6301 = vmax.f32 %v5999, 0.0
  %v6302 = vmax.f32 %v6004, 0.0
  %v6303 = vmax.f32 %v6009, 0.0
  %v6304 = vmax.f32 %v6014, 0.0
  %v6305 = vmax.f32 %v6019, 0.0
  %v6306 = vmax.f32 %v6024, 0.0
  %v6307 = vmax.f32 %v6029, 0.0
  %v6308 = vmax.f32 %v6034, 0.0
  %v6309 = vmax.f32 %v6039, 0.0
  %v6310 = vmax.f32 %v6044, 0.0
  %v6311 = vmax.f32 %v6049, 0.0
  %v6312 = vmax.f32 %v6054, 0.0
  %v6313 = vmax.f32 %v6059, 0.0
  %v6314 = vmax.f32 %v6064, 0.0
  %v6315 = vmax.f32 %v6069, 0.0
  %v6316 = vmax.f32 %v6074, 0.0
  %v6317 = vmax.f32 %v6079, 0.0
  %v6318 = vmax.f32 %v6084, 0.0
  %v6319 = vmax.f32 %v6089, 0.0
  %v6320 = vmax.f32 %v6094, 0.0
  %v6321 = vmax.f32 %v6099, 0.0
  %v6322 = vmax.f32 %v6104, 0.0
  %v6323 = vmax.f32 %v6109, 0.0
  %v6324 = vmax.f32 %v6114, 0.0
  %v6325 = vmax.f32 %v6119, 0.0
  %v6326 = vmax.f32 %v6124, 0.0
  %v6327 = vmax.f32 %v6129, 0.0
  %v6328 = vmax.f32 %v6134, 0.0
  %v6329 = vmax.f32 %v6139, 0.0
  %v6330 = vmax.f32 %v6144, 0.0
  %v6331 = vmax.f32 %v6149, 0.0
  %v6332 = vmax.f32 %v6154, 0.0
  %v6333 = vmax.f32 %v6159, 0.0
  %v6334 = vmax.f32 %v6164, 0.0
  %v6335 = vmax.f32 %v6169, 0.0
  %v6336 = vmax.f32 %v6174, 0.0
  %v6337 = vmax.f32 %v6179, 0.0
  %v6338 = vmax.f32 %v6184, 0.0
  %v6339 = vmax.f32 %v6189, 0.0
  %v6340 = vmax.f32 %v6194, 0.0
  %v6341 = vmax.f32 %v4691, %v6197
  %v6342 = vmax.f32 %v4692, %v6198
  %v6343 = vmax.f32 %v4693, %v6199
  %v6344 = vmax.f32 %v4694, %v6200
  %v6345 = vmax.f32 %v4695, %v6201
  %v6346 = vmax.f32 %v4696, %v6202
  %v6347 = vmax.f32 %v4697, %v6203
  %v6348 = vmax.f32 %v4698, %v6204
  %v6349 = vmax.f32 %v4699, %v6205
  %v6350 = vmax.f32 %v4700, %v6206
  %v6351 = vmax.f32 %v4701, %v6207
  %v6352 = vmax.f32 %v4702, %v6208
  %v6353 = vmax.f32 %v4703, %v6209
  %v6354 = vmax.f32 %v4704, %v6210
  %v6355 = vmax.f32 %v4705, %v6211
  %v6356 = vmax.f32 %v4706, %v6212
  %v6357 = vmax.f32 %v4707, %v6213
  %v6358 = vmax.f32 %v4708, %v6214
  %v6359 = vmax.f32 %v4709, %v6215
  %v6360 = vmax.f32 %v4710, %v6216
  %v6361 = vmax.f32 %v4711, %v6217
  %v6362 = vmax.f32 %v4712, %v6218
  %v6363 = vmax.f32 %v4713, %v6219
  %v6364 = vmax.f32 %v4714, %v6220
  %v6365 = vmax.f32 %v4715, %v6221
  %v6366 = vmax.f32 %v4716, %v6222
  %v6367 = vmax.f32 %v4717, %v6223
  %v6368 = vmax.f32 %v4718, %v6224
  %v6369 = vmax.f32 %v4719, %v6225
  %v6370 = vmax.f32 %v4720, %v6226
  %v6371 = vmax.f32 %v4721, %v6227
  %v6372 = vmax.f32 %v4722, %v6228
  %v6373 = vmax.f32 %v4723, %v6229
  %v6374 = vmax.f32 %v4724, %v6230
  %v6375 = vmax.f32 %v4725, %v6231
  %v6376 = vmax.f32 %v4726, %v6232
  %v6377 = vmax.f32 %v4727, %v6233
  %v6378 = vmax.f32 %v4728, %v6234
  %v6379 = vmax.f32 %v4729, %v6235
  %v6380 = vmax.f32 %v4730, %v6236
  %v6381 = vmax.f32 %v4731, %v6237
  %v6382 = vmax.f32 %v4732, %v6238
  %v6383 = vmax.f32 %v4733, %v6239
  %v6384 = vmax.f32 %v4734, %v6240
  %v6385 = vmax.f32 %v4735, %v6241
  %v6386 = vmax.f32 %v4736, %v6242
  %v6387 = vmax.f32 %v4737, %v6243
  %v6388 = vmax.f32 %v4738, %v6244
  %v6389 = vmax.f32 %v4739, %v6245
  %v6390 = vmax.f32 %v4740, %v6246
  %v6391 = vmax.f32 %v4741, %v6247
  %v6392 = vmax.f32 %v4742, %v6248
  %v6393 = vmax.f32 %v4743, %v6249
  %v6394 = vmax.f32 %v4744, %v6250
  %v6395 = vmax.f32 %v4745, %v6251
  %v6396 = vmax.f32 %v4746, %v6252
  %v6397 = vmax.f32 %v4747, %v6253
  %v6398 = vmax.f32 %v4748, %v6254
  %v6399 = vmax.f32 %v4749, %v6255
  %v6400 = vmax.f32 %v4750, %v6256
  %v6401 = vmax.f32 %v4751, %v6257
  %v6402 = vmax.f32 %v4752, %v6258
  %v6403 = vmax.f32 %v4753, %v6259
  %v6404 = vmax.f32 %v4754, %v6260
  %v6405 = vmax.f32 %v4755, %v6261
  %v6406 = vmax.f32 %v4756, %v6262
  %v6407 = vmax.f32 %v4757, %v6263
  %v6408 = vmax.f32 %v4758, %v6264
  %v6409 = vmax.f32 %v4759, %v6265
  %v6410 = vmax.f32 %v4760, %v6266
  %v6411 = vmax.f32 %v4761, %v6267
  %v6412 = vmax.f32 %v4762, %v6268
  %v6413 = vmax.f32 %v4763, %v6269
  %v6414 = vmax.f32 %v4764, %v6270
  %v6415 = vmax.f32 %v4765, %v6271
  %v6416 = vmax.f32 %v4766, %v6272
  %v6417 = vmax.f32 %v4767, %v6273
  %v6418 = vmax.f32 %v4768, %v6274
  %v6419 = vmax.f32 %v4769, %v6275
  %v6420 = vmax.f32 %v4770, %v6276
  %v6421 = vmax.f32 %v4771, %v6277
  %v6422 = vmax.f32 %v4772, %v6278
  %v6423 = vmax.f32 %v4773, %v6279
  %v6424 = vmax.f32 %v4774, %v6280
  %v6425 = vmax.f32 %v4775, %v6281
  %v6426 = vmax.f32 %v4776, %v6282
  %v6427 = vmax.f32 %v4777, %v6283
  %v6428 = vmax.f32 %v4778, %v6284
  %v6429 = vmax.f32 %v4779, %v6285
  %v6430 = vmax.f32 %v4780, %v6286
  %v6431 = vmax.f32 %v4781, %v6287
  %v6432 = vmax.f32 %v4782, %v6288
  %v6433 = vmax.f32 %v4783, %v6289
  %v6434 = vmax.f32 %v4784, %v6290
  %v6435 = vmax.f32 %v4785, %v6291
  %v6436 = vmax.f32 %v4786, %v6292
  %v6437 = vmax.f32 %v4787, %v6293
  %v6438 = vmax.f32 %v4788, %v6294
  %v6439 = vmax.f32 %v4789, %v6295
  %v6440 = vmax.f32 %v4790, %v6296
  %v6441 = vmax.f32 %v4791, %v6297
  %v6442 = vmax.f32 %v4792, %v6298
  %v6443 = vmax.f32 %v4793, %v6299
  %v6444 = vmax.f32 %v4794, %v6300
  %v6445 = vmax.f32 %v4795, %v6301
  %v6446 = vmax.f32 %v4796, %v6302
  %v6447 = vmax.f32 %v4797, %v6303
  %v6448 = vmax.f32 %v4798, %v6304
  %v6449 = vmax.f32 %v4799, %v6305
  %v6450 = vmax.f32 %v4800, %v6306
  %v6451 = vmax.f32 %v4801, %v6307
  %v6452 = vmax.f32 %v4802, %v6308
  %v6453 = vmax.f32 %v4803, %v6309
  %v6454 = vmax.f32 %v4804, %v6310
  %v6455 = vmax.f32 %v4805, %v6311
  %v6456 = vmax.f32 %v4806, %v6312
  %v6457 = vmax.f32 %v4807, %v6313
  %v6458 = vmax.f32 %v4808, %v6314
  %v6459 = vmax.f32 %v4809, %v6315
  %v6460 = vmax.f32 %v4810, %v6316
  %v6461 = vmax.f32 %v4811, %v6317
  %v6462 = vmax.f32 %v4812, %v6318
  %v6463 = vmax.f32 %v4813, %v6319
  %v6464 = vmax.f32 %v4814, %v6320
  %v6465 = vmax.f32 %v4815, %v6321
  %v6466 = vmax.f32 %v4816, %v6322
  %v6467 = vmax.f32 %v4817, %v6323
  %v6468 = vmax.f32 %v4818, %v6324
  %v6469 = vmax.f32 %v4819, %v6325
  %v6470 = vmax.f32 %v4820, %v6326
  %v6471 = vmax.f32 %v4821, %v6327
  %v6472 = vmax.f32 %v4822, %v6328
  %v6473 = vmax.f32 %v4823, %v6329
  %v6474 = vmax.f32 %v4824, %v6330
  %v6475 = vmax.f32 %v4825, %v6331
  %v6476 = vmax.f32 %v4826, %v6332
  %v6477 = vmax.f32 %v4827, %v6333
  %v6478 = vmax.f32 %v4828, %v6334
  %v6479 = vmax.f32 %v4829, %v6335
  %v6480 = vmax.f32 %v4830, %v6336
  %v6481 = vmax.f32 %v4831, %v6337
  %v6482 = vmax.f32 %v4832, %v6338
  %v6483 = vmax.f32 %v4833, %v6339
  %v6484 = vmax.f32 %v4834, %v6340
  %vm6485 = vcmask 162816
  %6486 = vst.msk [vmem:[%s3] sm:$0xff] %vm6485, %v6341
  %6487 = vst.msk [vmem:[%s3 + $0x8] sm:$0xff] %vm6485, %v6342
  %6488 = vst.msk [vmem:[%s3 + $0x10] sm:$0xff] %vm6485, %v6343
  %6489 = vst.msk [vmem:[%s3 + $0x18] sm:$0xff] %vm6485, %v6344
  %6490 = vst.msk [vmem:[%s3 + $0x20] sm:$0xff] %vm6485, %v6345
  %6491 = vst.msk [vmem:[%s3 + $0x28] sm:$0xff] %vm6485, %v6346
  %6492 = vst.msk [vmem:[%s3 + $0x30] sm:$0xff] %vm6485, %v6347
  %6493 = vst.msk [vmem:[%s3 + $0x38] sm:$0xff] %vm6485, %v6348
  %6494 = vst.msk [vmem:[%s3 + $0x40] sm:$0xff] %vm6485, %v6349
  %6495 = vst.msk [vmem:[%s3 + $0x48] sm:$0xff] %vm6485, %v6350
  %6496 = vst.msk [vmem:[%s3 + $0x50] sm:$0xff] %vm6485, %v6351
  %6497 = vst.msk [vmem:[%s3 + $0x58] sm:$0xff] %vm6485, %v6352
  %6498 = vst.msk [vmem:[%s3 + $0x60] sm:$0xff] %vm6485, %v6353
  %6499 = vst.msk [vmem:[%s3 + $0x68] sm:$0xff] %vm6485, %v6354
  %6500 = vst.msk [vmem:[%s3 + $0x70] sm:$0xff] %vm6485, %v6355
  %6501 = vst.msk [vmem:[%s3 + $0x78] sm:$0xff] %vm6485, %v6356
  %6502 = vst.msk [vmem:[%s3 + $0x80] sm:$0xff] %vm6485, %v6357
  %6503 = vst.msk [vmem:[%s3 + $0x88] sm:$0xff] %vm6485, %v6358
  %6504 = vst.msk [vmem:[%s3 + $0x90] sm:$0xff] %vm6485, %v6359
  %6505 = vst.msk [vmem:[%s3 + $0x98] sm:$0xff] %vm6485, %v6360
  %6506 = vst.msk [vmem:[%s3 + $0xa0] sm:$0xff] %vm6485, %v6361
  %6507 = vst.msk [vmem:[%s3 + $0xa8] sm:$0xff] %vm6485, %v6362
  %6508 = vst.msk [vmem:[%s3 + $0xb0] sm:$0xff] %vm6485, %v6363
  %6509 = vst.msk [vmem:[%s3 + $0xb8] sm:$0xff] %vm6485, %v6364
  %6510 = vst.msk [vmem:[%s3 + $0xc0] sm:$0xff] %vm6485, %v6365
  %6511 = vst.msk [vmem:[%s3 + $0xc8] sm:$0xff] %vm6485, %v6366
  %6512 = vst.msk [vmem:[%s3 + $0xd0] sm:$0xff] %vm6485, %v6367
  %6513 = vst.msk [vmem:[%s3 + $0xd8] sm:$0xff] %vm6485, %v6368
  %6514 = vst.msk [vmem:[%s3 + $0xe0] sm:$0xff] %vm6485, %v6369
  %6515 = vst.msk [vmem:[%s3 + $0xe8] sm:$0xff] %vm6485, %v6370
  %6516 = vst.msk [vmem:[%s3 + $0xf0] sm:$0xff] %vm6485, %v6371
  %6517 = vst.msk [vmem:[%s3 + $0xf8] sm:$0xff] %vm6485, %v6372
  %6518 = vst.msk [vmem:[%s3 + $0x100] sm:$0xff] %vm6485, %v6373
  %6519 = vst.msk [vmem:[%s3 + $0x108] sm:$0xff] %vm6485, %v6374
  %6520 = vst.msk [vmem:[%s3 + $0x110] sm:$0xff] %vm6485, %v6375
  %6521 = vst.msk [vmem:[%s3 + $0x118] sm:$0xff] %vm6485, %v6376
  %6522 = vst.msk [vmem:[%s3 + $0x120] sm:$0xff] %vm6485, %v6377
  %6523 = vst.msk [vmem:[%s3 + $0x128] sm:$0xff] %vm6485, %v6378
  %6524 = vst.msk [vmem:[%s3 + $0x130] sm:$0xff] %vm6485, %v6379
  %6525 = vst.msk [vmem:[%s3 + $0x138] sm:$0xff] %vm6485, %v6380
  %6526 = vst.msk [vmem:[%s3 + $0x140] sm:$0xff] %vm6485, %v6381
  %6527 = vst.msk [vmem:[%s3 + $0x148] sm:$0xff] %vm6485, %v6382
  %6528 = vst.msk [vmem:[%s3 + $0x150] sm:$0xff] %vm6485, %v6383
  %6529 = vst.msk [vmem:[%s3 + $0x158] sm:$0xff] %vm6485, %v6384
  %6530 = vst.msk [vmem:[%s3 + $0x160] sm:$0xff] %vm6485, %v6385
  %6531 = vst.msk [vmem:[%s3 + $0x168] sm:$0xff] %vm6485, %v6386
  %6532 = vst.msk [vmem:[%s3 + $0x170] sm:$0xff] %vm6485, %v6387
  %6533 = vst.msk [vmem:[%s3 + $0x178] sm:$0xff] %vm6485, %v6388
  %6534 = vst.msk [vmem:[%s3 + $0x180] sm:$0xff] %vm6485, %v6389
  %6535 = vst.msk [vmem:[%s3 + $0x188] sm:$0xff] %vm6485, %v6390
  %6536 = vst.msk [vmem:[%s3 + $0x190] sm:$0xff] %vm6485, %v6391
  %6537 = vst.msk [vmem:[%s3 + $0x198] sm:$0xff] %vm6485, %v6392
  %6538 = vst.msk [vmem:[%s3 + $0x1a0] sm:$0xff] %vm6485, %v6393
  %6539 = vst.msk [vmem:[%s3 + $0x1a8] sm:$0xff] %vm6485, %v6394
  %6540 = vst.msk [vmem:[%s3 + $0x1b0] sm:$0xff] %vm6485, %v6395
  %6541 = vst.msk [vmem:[%s3 + $0x1b8] sm:$0xff] %vm6485, %v6396
  %6542 = vst.msk [vmem:[%s3 + $0x1c0] sm:$0xff] %vm6485, %v6397
  %6543 = vst.msk [vmem:[%s3 + $0x1c8] sm:$0xff] %vm6485, %v6398
  %6544 = vst.msk [vmem:[%s3 + $0x1d0] sm:$0xff] %vm6485, %v6399
  %6545 = vst.msk [vmem:[%s3 + $0x1d8] sm:$0xff] %vm6485, %v6400
  %6546 = vst.msk [vmem:[%s3 + $0x1e0] sm:$0xff] %vm6485, %v6401
  %6547 = vst.msk [vmem:[%s3 + $0x1e8] sm:$0xff] %vm6485, %v6402
  %6548 = vst.msk [vmem:[%s3 + $0x1f0] sm:$0xff] %vm6485, %v6403
  %6549 = vst.msk [vmem:[%s3 + $0x1f8] sm:$0xff] %vm6485, %v6404
  %6550 = vst.msk [vmem:[%s3 + $0x200] sm:$0xff] %vm6485, %v6405
  %6551 = vst.msk [vmem:[%s3 + $0x208] sm:$0xff] %vm6485, %v6406
  %6552 = vst.msk [vmem:[%s3 + $0x210] sm:$0xff] %vm6485, %v6407
  %6553 = vst.msk [vmem:[%s3 + $0x218] sm:$0xff] %vm6485, %v6408
  %6554 = vst.msk [vmem:[%s3 + $0x220] sm:$0xff] %vm6485, %v6409
  %6555 = vst.msk [vmem:[%s3 + $0x228] sm:$0xff] %vm6485, %v6410
  %6556 = vst.msk [vmem:[%s3 + $0x230] sm:$0xff] %vm6485, %v6411
  %6557 = vst.msk [vmem:[%s3 + $0x238] sm:$0xff] %vm6485, %v6412
  %6558 = vst.msk [vmem:[%s3 + $0x240] sm:$0xff] %vm6485, %v6413
  %6559 = vst.msk [vmem:[%s3 + $0x248] sm:$0xff] %vm6485, %v6414
  %6560 = vst.msk [vmem:[%s3 + $0x250] sm:$0xff] %vm6485, %v6415
  %6561 = vst.msk [vmem:[%s3 + $0x258] sm:$0xff] %vm6485, %v6416
  %6562 = vst.msk [vmem:[%s3 + $0x260] sm:$0xff] %vm6485, %v6417
  %6563 = vst.msk [vmem:[%s3 + $0x268] sm:$0xff] %vm6485, %v6418
  %6564 = vst.msk [vmem:[%s3 + $0x270] sm:$0xff] %vm6485, %v6419
  %6565 = vst.msk [vmem:[%s3 + $0x278] sm:$0xff] %vm6485, %v6420
  %6566 = vst.msk [vmem:[%s3 + $0x280] sm:$0xff] %vm6485, %v6421
  %6567 = vst.msk [vmem:[%s3 + $0x288] sm:$0xff] %vm6485, %v6422
  %6568 = vst.msk [vmem:[%s3 + $0x290] sm:$0xff] %vm6485, %v6423
  %6569 = vst.msk [vmem:[%s3 + $0x298] sm:$0xff] %vm6485, %v6424
  %6570 = vst.msk [vmem:[%s3 + $0x2a0] sm:$0xff] %vm6485, %v6425
  %6571 = vst.msk [vmem:[%s3 + $0x2a8] sm:$0xff] %vm6485, %v6426
  %6572 = vst.msk [vmem:[%s3 + $0x2b0] sm:$0xff] %vm6485, %v6427
  %6573 = vst.msk [vmem:[%s3 + $0x2b8] sm:$0xff] %vm6485, %v6428
  %6574 = vst.msk [vmem:[%s3 + $0x2c0] sm:$0xff] %vm6485, %v6429
  %6575 = vst.msk [vmem:[%s3 + $0x2c8] sm:$0xff] %vm6485, %v6430
  %6576 = vst.msk [vmem:[%s3 + $0x2d0] sm:$0xff] %vm6485, %v6431
  %6577 = vst.msk [vmem:[%s3 + $0x2d8] sm:$0xff] %vm6485, %v6432
  %6578 = vst.msk [vmem:[%s3 + $0x2e0] sm:$0xff] %vm6485, %v6433
  %6579 = vst.msk [vmem:[%s3 + $0x2e8] sm:$0xff] %vm6485, %v6434
  %6580 = vst.msk [vmem:[%s3 + $0x2f0] sm:$0xff] %vm6485, %v6435
  %6581 = vst.msk [vmem:[%s3 + $0x2f8] sm:$0xff] %vm6485, %v6436
  %6582 = vst.msk [vmem:[%s3 + $0x300] sm:$0xff] %vm6485, %v6437
  %6583 = vst.msk [vmem:[%s3 + $0x308] sm:$0xff] %vm6485, %v6438
  %6584 = vst.msk [vmem:[%s3 + $0x310] sm:$0xff] %vm6485, %v6439
  %6585 = vst.msk [vmem:[%s3 + $0x318] sm:$0xff] %vm6485, %v6440
  %6586 = vst.msk [vmem:[%s3 + $0x320] sm:$0xff] %vm6485, %v6441
  %6587 = vst.msk [vmem:[%s3 + $0x328] sm:$0xff] %vm6485, %v6442
  %6588 = vst.msk [vmem:[%s3 + $0x330] sm:$0xff] %vm6485, %v6443
  %6589 = vst.msk [vmem:[%s3 + $0x338] sm:$0xff] %vm6485, %v6444
  %6590 = vst.msk [vmem:[%s3 + $0x340] sm:$0xff] %vm6485, %v6445
  %6591 = vst.msk [vmem:[%s3 + $0x348] sm:$0xff] %vm6485, %v6446
  %6592 = vst.msk [vmem:[%s3 + $0x350] sm:$0xff] %vm6485, %v6447
  %6593 = vst.msk [vmem:[%s3 + $0x358] sm:$0xff] %vm6485, %v6448
  %6594 = vst.msk [vmem:[%s3 + $0x360] sm:$0xff] %vm6485, %v6449
  %6595 = vst.msk [vmem:[%s3 + $0x368] sm:$0xff] %vm6485, %v6450
  %6596 = vst.msk [vmem:[%s3 + $0x370] sm:$0xff] %vm6485, %v6451
  %6597 = vst.msk [vmem:[%s3 + $0x378] sm:$0xff] %vm6485, %v6452
  %6598 = vst.msk [vmem:[%s3 + $0x380] sm:$0xff] %vm6485, %v6453
  %6599 = vst.msk [vmem:[%s3 + $0x388] sm:$0xff] %vm6485, %v6454
  %6600 = vst.msk [vmem:[%s3 + $0x390] sm:$0xff] %vm6485, %v6455
  %6601 = vst.msk [vmem:[%s3 + $0x398] sm:$0xff] %vm6485, %v6456
  %6602 = vst.msk [vmem:[%s3 + $0x3a0] sm:$0xff] %vm6485, %v6457
  %6603 = vst.msk [vmem:[%s3 + $0x3a8] sm:$0xff] %vm6485, %v6458
  %6604 = vst.msk [vmem:[%s3 + $0x3b0] sm:$0xff] %vm6485, %v6459
  %6605 = vst.msk [vmem:[%s3 + $0x3b8] sm:$0xff] %vm6485, %v6460
  %6606 = vst.msk [vmem:[%s3 + $0x3c0] sm:$0xff] %vm6485, %v6461
  %6607 = vst.msk [vmem:[%s3 + $0x3c8] sm:$0xff] %vm6485, %v6462
  %6608 = vst.msk [vmem:[%s3 + $0x3d0] sm:$0xff] %vm6485, %v6463
  %6609 = vst.msk [vmem:[%s3 + $0x3d8] sm:$0xff] %vm6485, %v6464
  %6610 = vst.msk [vmem:[%s3 + $0x3e0] sm:$0xff] %vm6485, %v6465
  %6611 = vst.msk [vmem:[%s3 + $0x3e8] sm:$0xff] %vm6485, %v6466
  %6612 = vst.msk [vmem:[%s3 + $0x3f0] sm:$0xff] %vm6485, %v6467
  %6613 = vst.msk [vmem:[%s3 + $0x3f8] sm:$0xff] %vm6485, %v6468
  %6614 = vst.msk [vmem:[%s3 + $0x400] sm:$0xff] %vm6485, %v6469
  %6615 = vst.msk [vmem:[%s3 + $0x408] sm:$0xff] %vm6485, %v6470
  %6616 = vst.msk [vmem:[%s3 + $0x410] sm:$0xff] %vm6485, %v6471
  %6617 = vst.msk [vmem:[%s3 + $0x418] sm:$0xff] %vm6485, %v6472
  %6618 = vst.msk [vmem:[%s3 + $0x420] sm:$0xff] %vm6485, %v6473
  %6619 = vst.msk [vmem:[%s3 + $0x428] sm:$0xff] %vm6485, %v6474
  %6620 = vst.msk [vmem:[%s3 + $0x430] sm:$0xff] %vm6485, %v6475
  %6621 = vst.msk [vmem:[%s3 + $0x438] sm:$0xff] %vm6485, %v6476
  %6622 = vst.msk [vmem:[%s3 + $0x440] sm:$0xff] %vm6485, %v6477
  %6623 = vst.msk [vmem:[%s3 + $0x448] sm:$0xff] %vm6485, %v6478
  %6624 = vst.msk [vmem:[%s3 + $0x450] sm:$0xff] %vm6485, %v6479
  %6625 = vst.msk [vmem:[%s3 + $0x458] sm:$0xff] %vm6485, %v6480
  %6626 = vst.msk [vmem:[%s3 + $0x460] sm:$0xff] %vm6485, %v6481
  %6627 = vst.msk [vmem:[%s3 + $0x468] sm:$0xff] %vm6485, %v6482
  %6628 = vst.msk [vmem:[%s3 + $0x470] sm:$0xff] %vm6485, %v6483
  %6629 = vst.msk [vmem:[%s3 + $0x478] sm:$0xff] %vm6485, %v6484
  // Predicated region
  $region14: #{attention_mil_forward.2} parent=0 // pred_check
    _
  $region15: #{attention_mil_forward.2} parent=0 // pred_check_branch
    %6631 = sbr.rel (0) target = $region17
  $region16: #{attention_mil_forward.2} parent=0 // pred_region
    _
  $region17: #{attention_mil_forward.2} parent=0 // pred_fallthru
    _
  // Predicated region
  $region18: #{attention_mil_forward.2} parent=0 // pred_check
    _
  $region19: #{attention_mil_forward.2} parent=0 // pred_check_branch
    %6633 = sbr.rel (0) target = $region21
  $region20: #{attention_mil_forward.2} parent=0 // pred_region
    _
  $region21: #{attention_mil_forward.2} parent=0 // pred_fallthru
    _

// kernel: attention_mil_forward.3
$region0: #{attention_mil_forward.3}
  #allocation0 [shape = 'u32[]', space=smem, size = 0x4, offset = 0x4, fixed_abs, tag = 'smem constant byte address 0x4 - core index']
  #allocation1 [shape = 'u32[144,128]{1,0:T(1,128)}', space=vmem, size = 0x12000, scoped, tag = 'internal scratch']
  #allocation2 [shape = 'f32[1,1]{1,0:T(1,128)S(1)}', space=vmem, size = 0x200, scoped, tag = 'scoped memory for attention_mil_forward.3']
  #allocation3 [shape = 'f32[1,1]{1,0:T(1,128)S(1)}', space=vmem, size = 0x200, scoped, tag = 'scoped memory for attention_mil_forward.3']
  %s0 = inlined_call_operand.vmem [shape: f32[4,128,500], index: 0, kind: input, shape index: {}]
  %s1 = inlined_call_operand.vmem [shape: f32[500,50], index: 1, kind: input, shape index: {}]
  %s2 = inlined_call_operand.vmem [shape: f32[1,50], index: 2, kind: input, shape index: {}]
  %s3 = inlined_call_operand.vmem [shape: f32[16,50,500], index: 3, kind: input, shape index: {}]
  %s4 = inlined_call_operand.vmem [shape: f32[1,500], index: 4, kind: input, shape index: {}]
  %s5 = inlined_call_operand.vmem [shape: f32[500,128], index: 5, kind: input, shape index: {}]
  %s6 = inlined_call_operand.vmem [shape: f32[1,128], index: 6, kind: input, shape index: {}]
  %s7 = inlined_call_operand.vmem [shape: f32[128,1], index: 7, kind: input, shape index: {}]
  %s8 = inlined_call_operand.<no memory space> [shape: f32[1,1], index: 8, kind: input, shape index: {}]
  %s9 = inlined_call_operand.vmem [shape: f32[500,1], index: 9, kind: input, shape index: {}]
  %s10 = inlined_call_operand.<no memory space> [shape: f32[1,1], index: 10, kind: input, shape index: {}]
  %s11 = inlined_call_operand.hbm [shape: f32[1,1], index: 11, kind: output, shape index: {0}]
  %s12 = inlined_call_operand.vmem [shape: f32[8,1], index: 12, kind: output, shape index: {1}]
  %13 = xla_tuple %s11, %s12
  %s14 = sld [smem:[#allocation0]]
  $region62: #{attention_mil_forward.3} parent=0
    _
  %s16 = ssub.s32 1, %s14
  %s17 = scalar_select 0, %s16, %s14
  %v18 = vstv %s8
  %19 = vst [vmem:[#allocation2] sm:$0x1] %v18
  %v20 = vstv %s10
  %21 = vst [vmem:[#allocation3] sm:$0x1] %v20
  $region1: #{attention_mil_forward.3} parent=0
    #allocation4 [shape = 'u8[512]{0}', space=vmem, size = 0x400, scoped, tag = 'output window, operand 0, single buffered']
    #allocation5 [shape = 's32[1]{0}', space=sflag, size = 0x4, scoped, tag = 'scoped memory for attention_mil_forward.3']
    %22 = vsyncpa [#allocation5], 0
    // Predicated region
    $region2: #{attention_mil_forward.3} parent=1 // pred_check
      _
    $region3: #{attention_mil_forward.3} parent=1 // pred_check_branch
      %24 = sbr.rel (0) target = $region5
    $region4: #{attention_mil_forward.3} parent=1 // pred_region
      _
    $region5: #{attention_mil_forward.3} parent=1 // pred_fallthru
      _
    // Predicated region
    $region6: #{attention_mil_forward.3} parent=1 // pred_check
      _
    $region7: #{attention_mil_forward.3} parent=1 // pred_check_branch
      %26 = sbr.rel (0) target = $region9
    $region8: #{attention_mil_forward.3} parent=1 // pred_region
      _
    $region9: #{attention_mil_forward.3} parent=1 // pred_fallthru
      _
    // Predicated region
    $region10: #{attention_mil_forward.3} parent=1 // pred_check
      _
    $region11: #{attention_mil_forward.3} parent=1 // pred_check_branch
      %28 = sbr.rel (0) target = $region13
    $region12: #{attention_mil_forward.3} parent=1 // pred_region
      _
    $region13: #{attention_mil_forward.3} parent=1 // pred_fallthru
      _
    // Predicated region
    $region14: #{attention_mil_forward.3} parent=1 // pred_check
      _
    $region15: #{attention_mil_forward.3} parent=1 // pred_check_branch
      %30 = sbr.rel (0) target = $region17
    $region16: #{attention_mil_forward.3} parent=1 // pred_region
      _
    $region17: #{attention_mil_forward.3} parent=1 // pred_fallthru
      _
    // Predicated region
    $region18: #{attention_mil_forward.3} parent=1 // pred_check
      _
    $region19: #{attention_mil_forward.3} parent=1 // pred_check_branch
      %32 = sbr.rel (0) target = $region21
    $region20: #{attention_mil_forward.3} parent=1 // pred_region
      _
    $region21: #{attention_mil_forward.3} parent=1 // pred_fallthru
      _
    // Predicated region
    $region22: #{attention_mil_forward.3} parent=1 // pred_check
      _
    $region23: #{attention_mil_forward.3} parent=1 // pred_check_branch
      %34 = sbr.rel (0) target = $region25
    $region24: #{attention_mil_forward.3} parent=1 // pred_region
      _
    $region25: #{attention_mil_forward.3} parent=1 // pred_fallthru
      _
    // Predicated region
    $region26: #{attention_mil_forward.3} parent=1 // pred_check
      _
    $region27: #{attention_mil_forward.3} parent=1 // pred_check_branch
      %36 = sbr.rel (0) target = $region29
    $region28: #{attention_mil_forward.3} parent=1 // pred_region
      _
    $region29: #{attention_mil_forward.3} parent=1 // pred_fallthru
      _
    // Predicated region
    $region30: #{attention_mil_forward.3} parent=1 // pred_check
      _
    $region31: #{attention_mil_forward.3} parent=1 // pred_check_branch
      %38 = sbr.rel (0) target = $region33
    $region32: #{attention_mil_forward.3} parent=1 // pred_region
      _
    $region33: #{attention_mil_forward.3} parent=1 // pred_fallthru
      _
    // Predicated region
    $region34: #{attention_mil_forward.3} parent=1 // pred_check
      _
    $region35: #{attention_mil_forward.3} parent=1 // pred_check_branch
      %40 = sbr.rel (0) target = $region37
    $region36: #{attention_mil_forward.3} parent=1 // pred_region
      _
    $region37: #{attention_mil_forward.3} parent=1 // pred_fallthru
      _
    // Predicated region
    $region38: #{attention_mil_forward.3} parent=1 // pred_check
      _
    $region39: #{attention_mil_forward.3} parent=1 // pred_check_branch
      %42 = sbr.rel (0) target = $region41
    $region40: #{attention_mil_forward.3} parent=1 // pred_region
      _
    $region41: #{attention_mil_forward.3} parent=1 // pred_fallthru
      _
    // Predicated region
    $region42: #{attention_mil_forward.3} parent=1 // pred_check
      _
    $region43: #{attention_mil_forward.3} parent=1 // pred_check_branch
      %44 = sbr.rel (0) target = $region45
    $region44: #{attention_mil_forward.3} parent=1 // pred_region
      _
    $region45: #{attention_mil_forward.3} parent=1 // pred_fallthru
      _
    %v45 = vld [vmem:[%s0] sm:$0xff]
    %v46 = vld [vmem:[%s0 + $0x8] sm:$0xff]
    %v47 = vld [vmem:[%s0 + $0x10] sm:$0xff]
    %v48 = vld [vmem:[%s0 + $0x18] sm:$0xff]
    %v49 = vld [vmem:[%s0 + $0x20] sm:$0xff]
    %v50 = vld [vmem:[%s0 + $0x28] sm:$0xff]
    %v51 = vld [vmem:[%s0 + $0x30] sm:$0xff]
    %v52 = vld [vmem:[%s0 + $0x38] sm:$0xff]
    %v53 = vld [vmem:[%s0 + $0x40] sm:$0xff]
    %v54 = vld [vmem:[%s0 + $0x48] sm:$0xff]
    %v55 = vld [vmem:[%s0 + $0x50] sm:$0xff]
    %v56 = vld [vmem:[%s0 + $0x58] sm:$0xff]
    %v57 = vld [vmem:[%s0 + $0x60] sm:$0xff]
    %v58 = vld [vmem:[%s0 + $0x68] sm:$0xff]
    %v59 = vld [vmem:[%s0 + $0x70] sm:$0xff]
    %v60 = vld [vmem:[%s0 + $0x78] sm:$0xff]
    %v61 = vld [vmem:[%s0 + $0x80] sm:$0xff]
    %v62 = vld [vmem:[%s0 + $0x88] sm:$0xff]
    %v63 = vld [vmem:[%s0 + $0x90] sm:$0xff]
    %v64 = vld [vmem:[%s0 + $0x98] sm:$0xff]
    %v65 = vld [vmem:[%s0 + $0xa0] sm:$0xff]
    %v66 = vld [vmem:[%s0 + $0xa8] sm:$0xff]
    %v67 = vld [vmem:[%s0 + $0xb0] sm:$0xff]
    %v68 = vld [vmem:[%s0 + $0xb8] sm:$0xff]
    %v69 = vld [vmem:[%s0 + $0xc0] sm:$0xff]
    %v70 = vld [vmem:[%s0 + $0xc8] sm:$0xff]
    %v71 = vld [vmem:[%s0 + $0xd0] sm:$0xff]
    %v72 = vld [vmem:[%s0 + $0xd8] sm:$0xff]
    %v73 = vld [vmem:[%s0 + $0xe0] sm:$0xff]
    %v74 = vld [vmem:[%s0 + $0xe8] sm:$0xff]
    %v75 = vld [vmem:[%s0 + $0xf0] sm:$0xff]
    %v76 = vld [vmem:[%s0 + $0xf8] sm:$0xff]
    %v77 = vld [vmem:[%s0 + $0x100] sm:$0xff]
    %v78 = vld [vmem:[%s0 + $0x108] sm:$0xff]
    %v79 = vld [vmem:[%s0 + $0x110] sm:$0xff]
    %v80 = vld [vmem:[%s0 + $0x118] sm:$0xff]
    %v81 = vld [vmem:[%s0 + $0x120] sm:$0xff]
    %v82 = vld [vmem:[%s0 + $0x128] sm:$0xff]
    %v83 = vld [vmem:[%s0 + $0x130] sm:$0xff]
    %v84 = vld [vmem:[%s0 + $0x138] sm:$0xff]
    %v85 = vld [vmem:[%s0 + $0x140] sm:$0xff]
    %v86 = vld [vmem:[%s0 + $0x148] sm:$0xff]
    %v87 = vld [vmem:[%s0 + $0x150] sm:$0xff]
    %v88 = vld [vmem:[%s0 + $0x158] sm:$0xff]
    %v89 = vld [vmem:[%s0 + $0x160] sm:$0xff]
    %v90 = vld [vmem:[%s0 + $0x168] sm:$0xff]
    %v91 = vld [vmem:[%s0 + $0x170] sm:$0xff]
    %v92 = vld [vmem:[%s0 + $0x178] sm:$0xff]
    %v93 = vld [vmem:[%s0 + $0x180] sm:$0xff]
    %v94 = vld [vmem:[%s0 + $0x188] sm:$0xff]
    %v95 = vld [vmem:[%s0 + $0x190] sm:$0xff]
    %v96 = vld [vmem:[%s0 + $0x198] sm:$0xff]
    %v97 = vld [vmem:[%s0 + $0x1a0] sm:$0xff]
    %v98 = vld [vmem:[%s0 + $0x1a8] sm:$0xff]
    %v99 = vld [vmem:[%s0 + $0x1b0] sm:$0xff]
    %v100 = vld [vmem:[%s0 + $0x1b8] sm:$0xff]
    %v101 = vld [vmem:[%s0 + $0x1c0] sm:$0xff]
    %v102 = vld [vmem:[%s0 + $0x1c8] sm:$0xff]
    %v103 = vld [vmem:[%s0 + $0x1d0] sm:$0xff]
    %v104 = vld [vmem:[%s0 + $0x1d8] sm:$0xff]
    %v105 = vld [vmem:[%s0 + $0x1e0] sm:$0xff]
    %v106 = vld [vmem:[%s0 + $0x1e8] sm:$0xff]
    %v107 = vld [vmem:[%s0 + $0x1f0] sm:$0xff]
    %v108 = vld [vmem:[%s0 + $0x1f8] sm:$0xff]
    %v109 = vld [vmem:[%s1] sm:$0xff]
    %v110 = vld [vmem:[%s1 + $0x8] sm:$0xff]
    %v111 = vld [vmem:[%s1 + $0x10] sm:$0xff]
    %v112 = vld [vmem:[%s1 + $0x18] sm:$0xff]
    %v113 = vld [vmem:[%s1 + $0x20] sm:$0xff]
    %v114 = vld [vmem:[%s1 + $0x28] sm:$0xff]
    %v115 = vld [vmem:[%s1 + $0x30] sm:$0xff]
    %v116 = vld [vmem:[%s1 + $0x38] sm:$0xff]
    %v117 = vld [vmem:[%s1 + $0x40] sm:$0xff]
    %v118 = vld [vmem:[%s1 + $0x48] sm:$0xff]
    %v119 = vld [vmem:[%s1 + $0x50] sm:$0xff]
    %v120 = vld [vmem:[%s1 + $0x58] sm:$0xff]
    %v121 = vld [vmem:[%s1 + $0x60] sm:$0xff]
    %v122 = vld [vmem:[%s1 + $0x68] sm:$0xff]
    %v123 = vld [vmem:[%s1 + $0x70] sm:$0xff]
    %v124 = vld [vmem:[%s1 + $0x78] sm:$0xff]
    %v125 = vld [vmem:[%s1 + $0x80] sm:$0xff]
    %v126 = vld [vmem:[%s1 + $0x88] sm:$0xff]
    %v127 = vld [vmem:[%s1 + $0x90] sm:$0xff]
    %v128 = vld [vmem:[%s1 + $0x98] sm:$0xff]
    %v129 = vld [vmem:[%s1 + $0xa0] sm:$0xff]
    %v130 = vld [vmem:[%s1 + $0xa8] sm:$0xff]
    %v131 = vld [vmem:[%s1 + $0xb0] sm:$0xff]
    %v132 = vld [vmem:[%s1 + $0xb8] sm:$0xff]
    %v133 = vld [vmem:[%s1 + $0xc0] sm:$0xff]
    %v134 = vld [vmem:[%s1 + $0xc8] sm:$0xff]
    %v135 = vld [vmem:[%s1 + $0xd0] sm:$0xff]
    %v136 = vld [vmem:[%s1 + $0xd8] sm:$0xff]
    %v137 = vld [vmem:[%s1 + $0xe0] sm:$0xff]
    %v138 = vld [vmem:[%s1 + $0xe8] sm:$0xff]
    %v139 = vld [vmem:[%s1 + $0xf0] sm:$0xff]
    %v140 = vld [vmem:[%s1 + $0xf8] sm:$0xff]
    %v141 = vld [vmem:[%s1 + $0x100] sm:$0xff]
    %v142 = vld [vmem:[%s1 + $0x108] sm:$0xff]
    %v143 = vld [vmem:[%s1 + $0x110] sm:$0xff]
    %v144 = vld [vmem:[%s1 + $0x118] sm:$0xff]
    %v145 = vld [vmem:[%s1 + $0x120] sm:$0xff]
    %v146 = vld [vmem:[%s1 + $0x128] sm:$0xff]
    %v147 = vld [vmem:[%s1 + $0x130] sm:$0xff]
    %v148 = vld [vmem:[%s1 + $0x138] sm:$0xff]
    %v149 = vld [vmem:[%s1 + $0x140] sm:$0xff]
    %v150 = vld [vmem:[%s1 + $0x148] sm:$0xff]
    %v151 = vld [vmem:[%s1 + $0x150] sm:$0xff]
    %v152 = vld [vmem:[%s1 + $0x158] sm:$0xff]
    %v153 = vld [vmem:[%s1 + $0x160] sm:$0xff]
    %v154 = vld [vmem:[%s1 + $0x168] sm:$0xff]
    %v155 = vld [vmem:[%s1 + $0x170] sm:$0xff]
    %v156 = vld [vmem:[%s1 + $0x178] sm:$0xff]
    %v157 = vld [vmem:[%s1 + $0x180] sm:$0xff]
    %v158 = vld [vmem:[%s1 + $0x188] sm:$0xff]
    %v159 = vld [vmem:[%s1 + $0x190] sm:$0xff]
    %v160 = vld [vmem:[%s1 + $0x198] sm:$0xff]
    %v161 = vld [vmem:[%s1 + $0x1a0] sm:$0xff]
    %v162 = vld [vmem:[%s1 + $0x1a8] sm:$0xff]
    %v163 = vld [vmem:[%s1 + $0x1b0] sm:$0xff]
    %v164 = vld [vmem:[%s1 + $0x1b8] sm:$0xff]
    %v165 = vld [vmem:[%s1 + $0x1c0] sm:$0xff]
    %v166 = vld [vmem:[%s1 + $0x1c8] sm:$0xff]
    %v167 = vld [vmem:[%s1 + $0x1d0] sm:$0xff]
    %v168 = vld [vmem:[%s1 + $0x1d8] sm:$0xff]
    %v169 = vld [vmem:[%s1 + $0x1e0] sm:$0xff]
    %v170 = vld [vmem:[%s1 + $0x1e8] sm:$0xff]
    %v171 = vld [vmem:[%s1 + $0x1f0] sm:$0xf]
    %v172 = vld [vmem:[%s2] sm:$0x1]
    %v174 = vlaneseq
    %v175 = vshrl.u32 %v174, 7
    %v176 = vsub.s32 0, %v175
    %v177 = vrot.slane %v172, %v176
    %vm179 = vcmask 949248
    %v181 = vsel %vm179, %v48, 0
    %v184 = vsel %vm179, %v52, 0
    %v187 = vsel %vm179, %v56, 0
    %v190 = vsel %vm179, %v60, 0
    %v193 = vsel %vm179, %v64, 0
    %v196 = vsel %vm179, %v68, 0
    %v199 = vsel %vm179, %v72, 0
    %v202 = vsel %vm179, %v76, 0
    %v205 = vsel %vm179, %v80, 0
    %v208 = vsel %vm179, %v84, 0
    %v211 = vsel %vm179, %v88, 0
    %v214 = vsel %vm179, %v92, 0
    %v217 = vsel %vm179, %v96, 0
    %v220 = vsel %vm179, %v100, 0
    %v223 = vsel %vm179, %v104, 0
    %v226 = vsel %vm179, %v108, 0
    %vm228 = vcmask 1043456
    %v230 = vsel %vm228, %v171, 0
    %232 = vmatprep.subr.mxu0 0.0
    %233 = vmatpush1.msra.mxu0 %v109
    %234 = vmatprep.subr.mxu0 0.0
    %235 = vmatpush1.msra.mxu0 %v110
    %236 = vmatprep.subr.mxu0 0.0
    %237 = vmatpush1.msra.mxu0 %v111
    %238 = vmatprep.subr.mxu0 0.0
    %239 = vmatpush1.msra.mxu0 %v112
    %240 = vmatprep.subr.mxu0 0.0
    %241 = vmatpush1.msra.mxu0 %v113
    %242 = vmatprep.subr.mxu0 0.0
    %243 = vmatpush1.msra.mxu0 %v114
    %244 = vmatprep.subr.mxu0 0.0
    %245 = vmatpush1.msra.mxu0 %v115
    %246 = vmatprep.subr.mxu0 0.0
    %247 = vmatpush1.msra.mxu0 %v116
    %248 = vmatprep.subr.mxu0 0.0
    %249 = vmatpush1.msra.mxu0 %v117
    %250 = vmatprep.subr.mxu0 0.0
    %251 = vmatpush1.msra.mxu0 %v118
    %252 = vmatprep.subr.mxu0 0.0
    %253 = vmatpush1.msra.mxu0 %v119
    %254 = vmatprep.subr.mxu0 0.0
    %255 = vmatpush1.msra.mxu0 %v120
    %256 = vmatprep.subr.mxu0 0.0
    %257 = vmatpush1.msra.mxu0 %v121
    %258 = vmatprep.subr.mxu0 0.0
    %259 = vmatpush1.msra.mxu0 %v122
    %260 = vmatprep.subr.mxu0 0.0
    %261 = vmatpush1.msra.mxu0 %v123
    %262 = vmatprep.subr.mxu0 0.0
    %263 = vmatpush1.msra.mxu0 %v124
    %264 = vmatprep.subr.mxu0 0.0
    %265 = vmatpush1.msra.mxu0 %v125
    %266 = vmatprep.subr.mxu0 0.0
    %267 = vmatpush1.msra.mxu0 %v126
    %268 = vmatprep.subr.mxu0 0.0
    %269 = vmatpush1.msra.mxu0 %v127
    %270 = vmatprep.subr.mxu0 0.0
    %271 = vmatpush1.msra.mxu0 %v128
    %272 = vmatprep.subr.mxu0 0.0
    %273 = vmatpush1.msra.mxu0 %v129
    %274 = vmatprep.subr.mxu0 0.0
    %275 = vmatpush1.msra.mxu0 %v130
    %276 = vmatprep.subr.mxu0 0.0
    %277 = vmatpush1.msra.mxu0 %v131
    %278 = vmatprep.subr.mxu0 0.0
    %279 = vmatpush1.msra.mxu0 %v132
    %280 = vmatprep.subr.mxu0 0.0
    %281 = vmatpush1.msra.mxu0 %v133
    %282 = vmatprep.subr.mxu0 0.0
    %283 = vmatpush1.msra.mxu0 %v134
    %284 = vmatprep.subr.mxu0 0.0
    %285 = vmatpush1.msra.mxu0 %v135
    %286 = vmatprep.subr.mxu0 0.0
    %287 = vmatpush1.msra.mxu0 %v136
    %288 = vmatprep.subr.mxu0 0.0
    %289 = vmatpush1.msra.mxu0 %v137
    %290 = vmatprep.subr.mxu0 0.0
    %291 = vmatpush1.msra.mxu0 %v138
    %292 = vmatprep.subr.mxu0 0.0
    %293 = vmatpush1.msra.mxu0 %v139
    %294 = vmatprep.subr.mxu0 0.0
    %295 = vmatpush1.msra.mxu0 %v140
    %296 = vmatprep.mubr.f32.mxu0 %v46
    %297 = vmatmul.mubr.f32.gmra.mrb[0].mxu0 %v45
    %v298 = vpop.f32.mrb[0].mxu0
    %v299 = vadd.f32 %v177, %v298
    %v300 = vpop.f32.mrb[0].mxu0
    %301 = vmatprep.mubr.f32.mxu0 %v50
    %302 = vmatmul.mubr.f32.gmra.mrb[0].mxu0 %v49
    %v303 = vpop.f32.mrb[0].mxu0
    %v304 = vadd.f32 %v177, %v303
    %v305 = vpop.f32.mrb[0].mxu0
    %306 = vmatprep.mubr.f32.mxu0 %v54
    %307 = vmatmul.mubr.f32.gmra.mrb[0].mxu0 %v53
    %v308 = vpop.f32.mrb[0].mxu0
    %v309 = vadd.f32 %v177, %v308
    %v310 = vpop.f32.mrb[0].mxu0
    %311 = vmatprep.mubr.f32.mxu0 %v58
    %312 = vmatmul.mubr.f32.gmra.mrb[0].mxu0 %v57
    %v313 = vpop.f32.mrb[0].mxu0
    %v314 = vadd.f32 %v177, %v313
    %v315 = vpop.f32.mrb[0].mxu0
    %316 = vmatprep.mubr.f32.mxu0 %v62
    %317 = vmatmul.mubr.f32.gmra.mrb[0].mxu0 %v61
    %v318 = vpop.f32.mrb[0].mxu0
    %v319 = vadd.f32 %v177, %v318
    %v320 = vpop.f32.mrb[0].mxu0
    %321 = vmatprep.mubr.f32.mxu0 %v66
    %322 = vmatmul.mubr.f32.gmra.mrb[0].mxu0 %v65
    %v323 = vpop.f32.mrb[0].mxu0
    %v324 = vadd.f32 %v177, %v323
    %v325 = vpop.f32.mrb[0].mxu0
    %326 = vmatprep.mubr.f32.mxu0 %v70
    %327 = vmatmul.mubr.f32.gmra.mrb[0].mxu0 %v69
    %v328 = vpop.f32.mrb[0].mxu0
    %v329 = vadd.f32 %v177, %v328
    %v330 = vpop.f32.mrb[0].mxu0
    %331 = vmatprep.mubr.f32.mxu0 %v74
    %332 = vmatmul.mubr.f32.gmra.mrb[0].mxu0 %v73
    %v333 = vpop.f32.mrb[0].mxu0
    %v334 = vadd.f32 %v177, %v333
    %v335 = vpop.f32.mrb[0].mxu0
    %336 = vmatprep.mubr.f32.mxu0 %v78
    %337 = vmatmul.mubr.f32.gmra.mrb[0].mxu0 %v77
    %v338 = vpop.f32.mrb[0].mxu0
    %v339 = vadd.f32 %v177, %v338
    %v340 = vpop.f32.mrb[0].mxu0
    %341 = vmatprep.mubr.f32.mxu0 %v82
    %342 = vmatmul.mubr.f32.gmra.mrb[0].mxu0 %v81
    %v343 = vpop.f32.mrb[0].mxu0
    %v344 = vadd.f32 %v177, %v343
    %v345 = vpop.f32.mrb[0].mxu0
    %346 = vmatprep.mubr.f32.mxu0 %v86
    %347 = vmatmul.mubr.f32.gmra.mrb[0].mxu0 %v85
    %v348 = vpop.f32.mrb[0].mxu0
    %v349 = vadd.f32 %v177, %v348
    %v350 = vpop.f32.mrb[0].mxu0
    %351 = vmatprep.mubr.f32.mxu0 %v90
    %352 = vmatmul.mubr.f32.gmra.mrb[0].mxu0 %v89
    %v353 = vpop.f32.mrb[0].mxu0
    %v354 = vadd.f32 %v177, %v353
    %v355 = vpop.f32.mrb[0].mxu0
    %356 = vmatprep.mubr.f32.mxu0 %v94
    %357 = vmatmul.mubr.f32.gmra.mrb[0].mxu0 %v93
    %v358 = vpop.f32.mrb[0].mxu0
    %v359 = vadd.f32 %v177, %v358
    %v360 = vpop.f32.mrb[0].mxu0
    %361 = vmatprep.mubr.f32.mxu0 %v98
    %362 = vmatmul.mubr.f32.gmra.mrb[0].mxu0 %v97
    %v363 = vpop.f32.mrb[0].mxu0
    %v364 = vadd.f32 %v177, %v363
    %v365 = vpop.f32.mrb[0].mxu0
    %366 = vmatprep.mubr.f32.mxu0 %v102
    %367 = vmatmul.mubr.f32.gmra.mrb[0].mxu0 %v101
    %v368 = vpop.f32.mrb[0].mxu0
    %v369 = vadd.f32 %v177, %v368
    %v370 = vpop.f32.mrb[0].mxu0
    %371 = vmatprep.mubr.f32.mxu0 %v106
    %372 = vmatmul.mubr.f32.gmra.mrb[0].mxu0 %v105
    %v373 = vpop.f32.mrb[0].mxu0
    %v374 = vadd.f32 %v177, %v373
    %v375 = vpop.f32.mrb[0].mxu0
    %376 = vdwg.mxu0
    %377 = vmatprep.subr.mxu0 0.0
    %378 = vmatpush1.msra.mxu0 %v141
    %379 = vmatprep.subr.mxu0 0.0
    %380 = vmatpush1.msra.mxu0 %v142
    %381 = vmatprep.subr.mxu0 0.0
    %382 = vmatpush1.msra.mxu0 %v143
    %383 = vmatprep.subr.mxu0 0.0
    %384 = vmatpush1.msra.mxu0 %v144
    %385 = vmatprep.subr.mxu0 0.0
    %386 = vmatpush1.msra.mxu0 %v145
    %387 = vmatprep.subr.mxu0 0.0
    %388 = vmatpush1.msra.mxu0 %v146
    %389 = vmatprep.subr.mxu0 0.0
    %390 = vmatpush1.msra.mxu0 %v147
    %391 = vmatprep.subr.mxu0 0.0
    %392 = vmatpush1.msra.mxu0 %v148
    %393 = vmatprep.subr.mxu0 0.0
    %394 = vmatpush1.msra.mxu0 %v149
    %395 = vmatprep.subr.mxu0 0.0
    %396 = vmatpush1.msra.mxu0 %v150
    %397 = vmatprep.subr.mxu0 0.0
    %398 = vmatpush1.msra.mxu0 %v151
    %399 = vmatprep.subr.mxu0 0.0
    %400 = vmatpush1.msra.mxu0 %v152
    %401 = vmatprep.subr.mxu0 0.0
    %402 = vmatpush1.msra.mxu0 %v153
    %403 = vmatprep.subr.mxu0 0.0
    %404 = vmatpush1.msra.mxu0 %v154
    %405 = vmatprep.subr.mxu0 0.0
    %406 = vmatpush1.msra.mxu0 %v155
    %407 = vmatprep.subr.mxu0 0.0
    %408 = vmatpush1.msra.mxu0 %v156
    %409 = vmatprep.subr.mxu0 0.0
    %410 = vmatpush1.msra.mxu0 %v157
    %411 = vmatprep.subr.mxu0 0.0
    %412 = vmatpush1.msra.mxu0 %v158
    %413 = vmatprep.subr.mxu0 0.0
    %414 = vmatpush1.msra.mxu0 %v159
    %415 = vmatprep.subr.mxu0 0.0
    %416 = vmatpush1.msra.mxu0 %v160
    %417 = vmatprep.subr.mxu0 0.0
    %418 = vmatpush1.msra.mxu0 %v161
    %419 = vmatprep.subr.mxu0 0.0
    %420 = vmatpush1.msra.mxu0 %v162
    %421 = vmatprep.subr.mxu0 0.0
    %422 = vmatpush1.msra.mxu0 %v163
    %423 = vmatprep.subr.mxu0 0.0
    %424 = vmatpush1.msra.mxu0 %v164
    %425 = vmatprep.subr.mxu0 0.0
    %426 = vmatpush1.msra.mxu0 %v165
    %427 = vmatprep.subr.mxu0 0.0
    %428 = vmatpush1.msra.mxu0 %v166
    %429 = vmatprep.subr.mxu0 0.0
    %430 = vmatpush1.msra.mxu0 %v167
    %431 = vmatprep.subr.mxu0 0.0
    %432 = vmatpush1.msra.mxu0 %v168
    %433 = vmatprep.subr.mxu0 0.0
    %434 = vmatpush1.msra.mxu0 %v169
    %435 = vmatprep.subr.mxu0 0.0
    %436 = vmatpush1.msra.mxu0 %v170
    %437 = vmatprep.subr.mxu0 0.0
    %438 = vmatpush1.msra.mxu0 %v230
    %439 = vmatprep.subr.mxu0 0.0
    %440 = vmatpush1.msra.mxu0 0.0
    %441 = vmatprep.mubr.f32.mxu0 %v181
    %442 = vmatmul.mubr.f32.gmra.mrb[0].mxu0 %v47
    %v443 = vpop.f32.mrb[0].mxu0
    %v444 = vadd.f32 %v299, %v443
    %v445 = vpop.f32.mrb[0].mxu0
    %446 = vmatprep.mubr.f32.mxu0 %v184
    %447 = vmatmul.mubr.f32.gmra.mrb[0].mxu0 %v51
    %v448 = vpop.f32.mrb[0].mxu0
    %v449 = vadd.f32 %v304, %v448
    %v450 = vpop.f32.mrb[0].mxu0
    %451 = vmatprep.mubr.f32.mxu0 %v187
    %452 = vmatmul.mubr.f32.gmra.mrb[0].mxu0 %v55
    %v453 = vpop.f32.mrb[0].mxu0
    %v454 = vadd.f32 %v309, %v453
    %v455 = vpop.f32.mrb[0].mxu0
    %456 = vmatprep.mubr.f32.mxu0 %v190
    %457 = vmatmul.mubr.f32.gmra.mrb[0].mxu0 %v59
    %v458 = vpop.f32.mrb[0].mxu0
    %v459 = vadd.f32 %v314, %v458
    %v460 = vpop.f32.mrb[0].mxu0
    %461 = vmatprep.mubr.f32.mxu0 %v193
    %462 = vmatmul.mubr.f32.gmra.mrb[0].mxu0 %v63
    %v463 = vpop.f32.mrb[0].mxu0
    %v464 = vadd.f32 %v319, %v463
    %v465 = vpop.f32.mrb[0].mxu0
    %466 = vmatprep.mubr.f32.mxu0 %v196
    %467 = vmatmul.mubr.f32.gmra.mrb[0].mxu0 %v67
    %v468 = vpop.f32.mrb[0].mxu0
    %v469 = vadd.f32 %v324, %v468
    %v470 = vpop.f32.mrb[0].mxu0
    %471 = vmatprep.mubr.f32.mxu0 %v199
    %472 = vmatmul.mubr.f32.gmra.mrb[0].mxu0 %v71
    %v473 = vpop.f32.mrb[0].mxu0
    %v474 = vadd.f32 %v329, %v473
    %v475 = vpop.f32.mrb[0].mxu0
    %476 = vmatprep.mubr.f32.mxu0 %v202
    %477 = vmatmul.mubr.f32.gmra.mrb[0].mxu0 %v75
    %v478 = vpop.f32.mrb[0].mxu0
    %v479 = vadd.f32 %v334, %v478
    %v480 = vpop.f32.mrb[0].mxu0
    %481 = vmatprep.mubr.f32.mxu0 %v205
    %482 = vmatmul.mubr.f32.gmra.mrb[0].mxu0 %v79
    %v483 = vpop.f32.mrb[0].mxu0
    %v484 = vadd.f32 %v339, %v483
    %v485 = vpop.f32.mrb[0].mxu0
    %486 = vmatprep.mubr.f32.mxu0 %v208
    %487 = vmatmul.mubr.f32.gmra.mrb[0].mxu0 %v83
    %v488 = vpop.f32.mrb[0].mxu0
    %v489 = vadd.f32 %v344, %v488
    %v490 = vpop.f32.mrb[0].mxu0
    %491 = vmatprep.mubr.f32.mxu0 %v211
    %492 = vmatmul.mubr.f32.gmra.mrb[0].mxu0 %v87
    %v493 = vpop.f32.mrb[0].mxu0
    %v494 = vadd.f32 %v349, %v493
    %v495 = vpop.f32.mrb[0].mxu0
    %496 = vmatprep.mubr.f32.mxu0 %v214
    %497 = vmatmul.mubr.f32.gmra.mrb[0].mxu0 %v91
    %v498 = vpop.f32.mrb[0].mxu0
    %v499 = vadd.f32 %v354, %v498
    %v500 = vpop.f32.mrb[0].mxu0
    %501 = vmatprep.mubr.f32.mxu0 %v217
    %502 = vmatmul.mubr.f32.gmra.mrb[0].mxu0 %v95
    %v503 = vpop.f32.mrb[0].mxu0
    %v504 = vadd.f32 %v359, %v503
    %v505 = vpop.f32.mrb[0].mxu0
    %506 = vmatprep.mubr.f32.mxu0 %v220
    %507 = vmatmul.mubr.f32.gmra.mrb[0].mxu0 %v99
    %v508 = vpop.f32.mrb[0].mxu0
    %v509 = vadd.f32 %v364, %v508
    %v510 = vpop.f32.mrb[0].mxu0
    %511 = vmatprep.mubr.f32.mxu0 %v223
    %512 = vmatmul.mubr.f32.gmra.mrb[0].mxu0 %v103
    %v513 = vpop.f32.mrb[0].mxu0
    %v514 = vadd.f32 %v369, %v513
    %v515 = vpop.f32.mrb[0].mxu0
    %516 = vmatprep.mubr.f32.mxu0 %v226
    %517 = vmatmul.mubr.f32.gmra.mrb[0].mxu0 %v107
    %v518 = vpop.f32.mrb[0].mxu0
    %v519 = vadd.f32 %v374, %v518
    %v520 = vpop.f32.mrb[0].mxu0
    %521 = vdwg.mxu0
    %v522 = vmax.f32 %v444, 0.0
    %v523 = vmax.f32 %v449, 0.0
    %v524 = vmax.f32 %v454, 0.0
    %v525 = vmax.f32 %v459, 0.0
    %v526 = vmax.f32 %v464, 0.0
    %v527 = vmax.f32 %v469, 0.0
    %v528 = vmax.f32 %v474, 0.0
    %v529 = vmax.f32 %v479, 0.0
    %v530 = vmax.f32 %v484, 0.0
    %v531 = vmax.f32 %v489, 0.0
    %v532 = vmax.f32 %v494, 0.0
    %v533 = vmax.f32 %v499, 0.0
    %v534 = vmax.f32 %v504, 0.0
    %v535 = vmax.f32 %v509, 0.0
    %v536 = vmax.f32 %v514, 0.0
    %v537 = vmax.f32 %v519, 0.0
    %s538 = scalar_lea.vmem %s0, 512
    %v539 = vld [vmem:[%s538] sm:$0xff]
    %v540 = vld [vmem:[%s538 + $0x8] sm:$0xff]
    %v541 = vld [vmem:[%s538 + $0x10] sm:$0xff]
    %v542 = vld [vmem:[%s538 + $0x18] sm:$0xff]
    %v543 = vld [vmem:[%s538 + $0x20] sm:$0xff]
    %v544 = vld [vmem:[%s538 + $0x28] sm:$0xff]
    %v545 = vld [vmem:[%s538 + $0x30] sm:$0xff]
    %v546 = vld [vmem:[%s538 + $0x38] sm:$0xff]
    %v547 = vld [vmem:[%s538 + $0x40] sm:$0xff]
    %v548 = vld [vmem:[%s538 + $0x48] sm:$0xff]
    %v549 = vld [vmem:[%s538 + $0x50] sm:$0xff]
    %v550 = vld [vmem:[%s538 + $0x58] sm:$0xff]
    %v551 = vld [vmem:[%s538 + $0x60] sm:$0xff]
    %v552 = vld [vmem:[%s538 + $0x68] sm:$0xff]
    %v553 = vld [vmem:[%s538 + $0x70] sm:$0xff]
    %v554 = vld [vmem:[%s538 + $0x78] sm:$0xff]
    %v555 = vld [vmem:[%s538 + $0x80] sm:$0xff]
    %v556 = vld [vmem:[%s538 + $0x88] sm:$0xff]
    %v557 = vld [vmem:[%s538 + $0x90] sm:$0xff]
    %v558 = vld [vmem:[%s538 + $0x98] sm:$0xff]
    %v559 = vld [vmem:[%s538 + $0xa0] sm:$0xff]
    %v560 = vld [vmem:[%s538 + $0xa8] sm:$0xff]
    %v561 = vld [vmem:[%s538 + $0xb0] sm:$0xff]
    %v562 = vld [vmem:[%s538 + $0xb8] sm:$0xff]
    %v563 = vld [vmem:[%s538 + $0xc0] sm:$0xff]
    %v564 = vld [vmem:[%s538 + $0xc8] sm:$0xff]
    %v565 = vld [vmem:[%s538 + $0xd0] sm:$0xff]
    %v566 = vld [vmem:[%s538 + $0xd8] sm:$0xff]
    %v567 = vld [vmem:[%s538 + $0xe0] sm:$0xff]
    %v568 = vld [vmem:[%s538 + $0xe8] sm:$0xff]
    %v569 = vld [vmem:[%s538 + $0xf0] sm:$0xff]
    %v570 = vld [vmem:[%s538 + $0xf8] sm:$0xff]
    %v571 = vld [vmem:[%s538 + $0x100] sm:$0xff]
    %v572 = vld [vmem:[%s538 + $0x108] sm:$0xff]
    %v573 = vld [vmem:[%s538 + $0x110] sm:$0xff]
    %v574 = vld [vmem:[%s538 + $0x118] sm:$0xff]
    %v575 = vld [vmem:[%s538 + $0x120] sm:$0xff]
    %v576 = vld [vmem:[%s538 + $0x128] sm:$0xff]
    %v577 = vld [vmem:[%s538 + $0x130] sm:$0xff]
    %v578 = vld [vmem:[%s538 + $0x138] sm:$0xff]
    %v579 = vld [vmem:[%s538 + $0x140] sm:$0xff]
    %v580 = vld [vmem:[%s538 + $0x148] sm:$0xff]
    %v581 = vld [vmem:[%s538 + $0x150] sm:$0xff]
    %v582 = vld [vmem:[%s538 + $0x158] sm:$0xff]
    %v583 = vld [vmem:[%s538 + $0x160] sm:$0xff]
    %v584 = vld [vmem:[%s538 + $0x168] sm:$0xff]
    %v585 = vld [vmem:[%s538 + $0x170] sm:$0xff]
    %v586 = vld [vmem:[%s538 + $0x178] sm:$0xff]
    %v587 = vld [vmem:[%s538 + $0x180] sm:$0xff]
    %v588 = vld [vmem:[%s538 + $0x188] sm:$0xff]
    %v589 = vld [vmem:[%s538 + $0x190] sm:$0xff]
    %v590 = vld [vmem:[%s538 + $0x198] sm:$0xff]
    %v591 = vld [vmem:[%s538 + $0x1a0] sm:$0xff]
    %v592 = vld [vmem:[%s538 + $0x1a8] sm:$0xff]
    %v593 = vld [vmem:[%s538 + $0x1b0] sm:$0xff]
    %v594 = vld [vmem:[%s538 + $0x1b8] sm:$0xff]
    %v595 = vld [vmem:[%s538 + $0x1c0] sm:$0xff]
    %v596 = vld [vmem:[%s538 + $0x1c8] sm:$0xff]
    %v597 = vld [vmem:[%s538 + $0x1d0] sm:$0xff]
    %v598 = vld [vmem:[%s538 + $0x1d8] sm:$0xff]
    %v599 = vld [vmem:[%s538 + $0x1e0] sm:$0xff]
    %v600 = vld [vmem:[%s538 + $0x1e8] sm:$0xff]
    %v601 = vld [vmem:[%s538 + $0x1f0] sm:$0xff]
    %v602 = vld [vmem:[%s538 + $0x1f8] sm:$0xff]
    %v604 = vsel %vm179, %v542, 0
    %v607 = vsel %vm179, %v546, 0
    %v610 = vsel %vm179, %v550, 0
    %v613 = vsel %vm179, %v554, 0
    %v616 = vsel %vm179, %v558, 0
    %v619 = vsel %vm179, %v562, 0
    %v622 = vsel %vm179, %v566, 0
    %v625 = vsel %vm179, %v570, 0
    %v628 = vsel %vm179, %v574, 0
    %v631 = vsel %vm179, %v578, 0
    %v634 = vsel %vm179, %v582, 0
    %v637 = vsel %vm179, %v586, 0
    %v640 = vsel %vm179, %v590, 0
    %v643 = vsel %vm179, %v594, 0
    %v646 = vsel %vm179, %v598, 0
    %v649 = vsel %vm179, %v602, 0
    %651 = vmatprep.subr.mxu0 0.0
    %652 = vmatpush1.msra.mxu0 %v109
    %653 = vmatprep.subr.mxu0 0.0
    %654 = vmatpush1.msra.mxu0 %v110
    %655 = vmatprep.subr.mxu0 0.0
    %656 = vmatpush1.msra.mxu0 %v111
    %657 = vmatprep.subr.mxu0 0.0
    %658 = vmatpush1.msra.mxu0 %v112
    %659 = vmatprep.subr.mxu0 0.0
    %660 = vmatpush1.msra.mxu0 %v113
    %661 = vmatprep.subr.mxu0 0.0
    %662 = vmatpush1.msra.mxu0 %v114
    %663 = vmatprep.subr.mxu0 0.0
    %664 = vmatpush1.msra.mxu0 %v115
    %665 = vmatprep.subr.mxu0 0.0
    %666 = vmatpush1.msra.mxu0 %v116
    %667 = vmatprep.subr.mxu0 0.0
    %668 = vmatpush1.msra.mxu0 %v117
    %669 = vmatprep.subr.mxu0 0.0
    %670 = vmatpush1.msra.mxu0 %v118
    %671 = vmatprep.subr.mxu0 0.0
    %672 = vmatpush1.msra.mxu0 %v119
    %673 = vmatprep.subr.mxu0 0.0
    %674 = vmatpush1.msra.mxu0 %v120
    %675 = vmatprep.subr.mxu0 0.0
    %676 = vmatpush1.msra.mxu0 %v121
    %677 = vmatprep.subr.mxu0 0.0
    %678 = vmatpush1.msra.mxu0 %v122
    %679 = vmatprep.subr.mxu0 0.0
    %680 = vmatpush1.msra.mxu0 %v123
    %681 = vmatprep.subr.mxu0 0.0
    %682 = vmatpush1.msra.mxu0 %v124
    %683 = vmatprep.subr.mxu0 0.0
    %684 = vmatpush1.msra.mxu0 %v125
    %685 = vmatprep.subr.mxu0 0.0
    %686 = vmatpush1.msra.mxu0 %v126
    %687 = vmatprep.subr.mxu0 0.0
    %688 = vmatpush1.msra.mxu0 %v127
    %689 = vmatprep.subr.mxu0 0.0
    %690 = vmatpush1.msra.mxu0 %v128
    %691 = vmatprep.subr.mxu0 0.0
    %692 = vmatpush1.msra.mxu0 %v129
    %693 = vmatprep.subr.mxu0 0.0
    %694 = vmatpush1.msra.mxu0 %v130
    %695 = vmatprep.subr.mxu0 0.0
    %696 = vmatpush1.msra.mxu0 %v131
    %697 = vmatprep.subr.mxu0 0.0
    %698 = vmatpush1.msra.mxu0 %v132
    %699 = vmatprep.subr.mxu0 0.0
    %700 = vmatpush1.msra.mxu0 %v133
    %701 = vmatprep.subr.mxu0 0.0
    %702 = vmatpush1.msra.mxu0 %v134
    %703 = vmatprep.subr.mxu0 0.0
    %704 = vmatpush1.msra.mxu0 %v135
    %705 = vmatprep.subr.mxu0 0.0
    %706 = vmatpush1.msra.mxu0 %v136
    %707 = vmatprep.subr.mxu0 0.0
    %708 = vmatpush1.msra.mxu0 %v137
    %709 = vmatprep.subr.mxu0 0.0
    %710 = vmatpush1.msra.mxu0 %v138
    %711 = vmatprep.subr.mxu0 0.0
    %712 = vmatpush1.msra.mxu0 %v139
    %713 = vmatprep.subr.mxu0 0.0
    %714 = vmatpush1.msra.mxu0 %v140
    %715 = vmatprep.mubr.f32.mxu0 %v540
    %716 = vmatmul.mubr.f32.gmra.mrb[0].mxu0 %v539
    %v717 = vpop.f32.mrb[0].mxu0
    %v718 = vadd.f32 %v177, %v717
    %v719 = vpop.f32.mrb[0].mxu0
    %720 = vmatprep.mubr.f32.mxu0 %v544
    %721 = vmatmul.mubr.f32.gmra.mrb[0].mxu0 %v543
    %v722 = vpop.f32.mrb[0].mxu0
    %v723 = vadd.f32 %v177, %v722
    %v724 = vpop.f32.mrb[0].mxu0
    %725 = vmatprep.mubr.f32.mxu0 %v548
    %726 = vmatmul.mubr.f32.gmra.mrb[0].mxu0 %v547
    %v727 = vpop.f32.mrb[0].mxu0
    %v728 = vadd.f32 %v177, %v727
    %v729 = vpop.f32.mrb[0].mxu0
    %730 = vmatprep.mubr.f32.mxu0 %v552
    %731 = vmatmul.mubr.f32.gmra.mrb[0].mxu0 %v551
    %v732 = vpop.f32.mrb[0].mxu0
    %v733 = vadd.f32 %v177, %v732
    %v734 = vpop.f32.mrb[0].mxu0
    %735 = vmatprep.mubr.f32.mxu0 %v556
    %736 = vmatmul.mubr.f32.gmra.mrb[0].mxu0 %v555
    %v737 = vpop.f32.mrb[0].mxu0
    %v738 = vadd.f32 %v177, %v737
    %v739 = vpop.f32.mrb[0].mxu0
    %740 = vmatprep.mubr.f32.mxu0 %v560
    %741 = vmatmul.mubr.f32.gmra.mrb[0].mxu0 %v559
    %v742 = vpop.f32.mrb[0].mxu0
    %v743 = vadd.f32 %v177, %v742
    %v744 = vpop.f32.mrb[0].mxu0
    %745 = vmatprep.mubr.f32.mxu0 %v564
    %746 = vmatmul.mubr.f32.gmra.mrb[0].mxu0 %v563
    %v747 = vpop.f32.mrb[0].mxu0
    %v748 = vadd.f32 %v177, %v747
    %v749 = vpop.f32.mrb[0].mxu0
    %750 = vmatprep.mubr.f32.mxu0 %v568
    %751 = vmatmul.mubr.f32.gmra.mrb[0].mxu0 %v567
    %v752 = vpop.f32.mrb[0].mxu0
    %v753 = vadd.f32 %v177, %v752
    %v754 = vpop.f32.mrb[0].mxu0
    %755 = vmatprep.mubr.f32.mxu0 %v572
    %756 = vmatmul.mubr.f32.gmra.mrb[0].mxu0 %v571
    %v757 = vpop.f32.mrb[0].mxu0
    %v758 = vadd.f32 %v177, %v757
    %v759 = vpop.f32.mrb[0].mxu0
    %760 = vmatprep.mubr.f32.mxu0 %v576
    %761 = vmatmul.mubr.f32.gmra.mrb[0].mxu0 %v575
    %v762 = vpop.f32.mrb[0].mxu0
    %v763 = vadd.f32 %v177, %v762
    %v764 = vpop.f32.mrb[0].mxu0
    %765 = vmatprep.mubr.f32.mxu0 %v580
    %766 = vmatmul.mubr.f32.gmra.mrb[0].mxu0 %v579
    %v767 = vpop.f32.mrb[0].mxu0
    %v768 = vadd.f32 %v177, %v767
    %v769 = vpop.f32.mrb[0].mxu0
    %770 = vmatprep.mubr.f32.mxu0 %v584
    %771 = vmatmul.mubr.f32.gmra.mrb[0].mxu0 %v583
    %v772 = vpop.f32.mrb[0].mxu0
    %v773 = vadd.f32 %v177, %v772
    %v774 = vpop.f32.mrb[0].mxu0
    %775 = vmatprep.mubr.f32.mxu0 %v588
    %776 = vmatmul.mubr.f32.gmra.mrb[0].mxu0 %v587
    %v777 = vpop.f32.mrb[0].mxu0
    %v778 = vadd.f32 %v177, %v777
    %v779 = vpop.f32.mrb[0].mxu0
    %780 = vmatprep.mubr.f32.mxu0 %v592
    %781 = vmatmul.mubr.f32.gmra.mrb[0].mxu0 %v591
    %v782 = vpop.f32.mrb[0].mxu0
    %v783 = vadd.f32 %v177, %v782
    %v784 = vpop.f32.mrb[0].mxu0
    %785 = vmatprep.mubr.f32.mxu0 %v596
    %786 = vmatmul.mubr.f32.gmra.mrb[0].mxu0 %v595
    %v787 = vpop.f32.mrb[0].mxu0
    %v788 = vadd.f32 %v177, %v787
    %v789 = vpop.f32.mrb[0].mxu0
    %790 = vmatprep.mubr.f32.mxu0 %v600
    %791 = vmatmul.mubr.f32.gmra.mrb[0].mxu0 %v599
    %v792 = vpop.f32.mrb[0].mxu0
    %v793 = vadd.f32 %v177, %v792
    %v794 = vpop.f32.mrb[0].mxu0
    %795 = vdwg.mxu0
    %796 = vmatprep.subr.mxu0 0.0
    %797 = vmatpush1.msra.mxu0 %v141
    %798 = vmatprep.subr.mxu0 0.0
    %799 = vmatpush1.msra.mxu0 %v142
    %800 = vmatprep.subr.mxu0 0.0
    %801 = vmatpush1.msra.mxu0 %v143
    %802 = vmatprep.subr.mxu0 0.0
    %803 = vmatpush1.msra.mxu0 %v144
    %804 = vmatprep.subr.mxu0 0.0
    %805 = vmatpush1.msra.mxu0 %v145
    %806 = vmatprep.subr.mxu0 0.0
    %807 = vmatpush1.msra.mxu0 %v146
    %808 = vmatprep.subr.mxu0 0.0
    %809 = vmatpush1.msra.mxu0 %v147
    %810 = vmatprep.subr.mxu0 0.0
    %811 = vmatpush1.msra.mxu0 %v148
    %812 = vmatprep.subr.mxu0 0.0
    %813 = vmatpush1.msra.mxu0 %v149
    %814 = vmatprep.subr.mxu0 0.0
    %815 = vmatpush1.msra.mxu0 %v150
    %816 = vmatprep.subr.mxu0 0.0
    %817 = vmatpush1.msra.mxu0 %v151
    %818 = vmatprep.subr.mxu0 0.0
    %819 = vmatpush1.msra.mxu0 %v152
    %820 = vmatprep.subr.mxu0 0.0
    %821 = vmatpush1.msra.mxu0 %v153
    %822 = vmatprep.subr.mxu0 0.0
    %823 = vmatpush1.msra.mxu0 %v154
    %824 = vmatprep.subr.mxu0 0.0
    %825 = vmatpush1.msra.mxu0 %v155
    %826 = vmatprep.subr.mxu0 0.0
    %827 = vmatpush1.msra.mxu0 %v156
    %828 = vmatprep.subr.mxu0 0.0
    %829 = vmatpush1.msra.mxu0 %v157
    %830 = vmatprep.subr.mxu0 0.0
    %831 = vmatpush1.msra.mxu0 %v158
    %832 = vmatprep.subr.mxu0 0.0
    %833 = vmatpush1.msra.mxu0 %v159
    %834 = vmatprep.subr.mxu0 0.0
    %835 = vmatpush1.msra.mxu0 %v160
    %836 = vmatprep.subr.mxu0 0.0
    %837 = vmatpush1.msra.mxu0 %v161
    %838 = vmatprep.subr.mxu0 0.0
    %839 = vmatpush1.msra.mxu0 %v162
    %840 = vmatprep.subr.mxu0 0.0
    %841 = vmatpush1.msra.mxu0 %v163
    %842 = vmatprep.subr.mxu0 0.0
    %843 = vmatpush1.msra.mxu0 %v164
    %844 = vmatprep.subr.mxu0 0.0
    %845 = vmatpush1.msra.mxu0 %v165
    %846 = vmatprep.subr.mxu0 0.0
    %847 = vmatpush1.msra.mxu0 %v166
    %848 = vmatprep.subr.mxu0 0.0
    %849 = vmatpush1.msra.mxu0 %v167
    %850 = vmatprep.subr.mxu0 0.0
    %851 = vmatpush1.msra.mxu0 %v168
    %852 = vmatprep.subr.mxu0 0.0
    %853 = vmatpush1.msra.mxu0 %v169
    %854 = vmatprep.subr.mxu0 0.0
    %855 = vmatpush1.msra.mxu0 %v170
    %856 = vmatprep.subr.mxu0 0.0
    %857 = vmatpush1.msra.mxu0 %v230
    %858 = vmatprep.subr.mxu0 0.0
    %859 = vmatpush1.msra.mxu0 0.0
    %860 = vmatprep.mubr.f32.mxu0 %v604
    %861 = vmatmul.mubr.f32.gmra.mrb[0].mxu0 %v541
    %v862 = vpop.f32.mrb[0].mxu0
    %v863 = vadd.f32 %v718, %v862
    %v864 = vpop.f32.mrb[0].mxu0
    %865 = vmatprep.mubr.f32.mxu0 %v607
    %866 = vmatmul.mubr.f32.gmra.mrb[0].mxu0 %v545
    %v867 = vpop.f32.mrb[0].mxu0
    %v868 = vadd.f32 %v723, %v867
    %v869 = vpop.f32.mrb[0].mxu0
    %870 = vmatprep.mubr.f32.mxu0 %v610
    %871 = vmatmul.mubr.f32.gmra.mrb[0].mxu0 %v549
    %v872 = vpop.f32.mrb[0].mxu0
    %v873 = vadd.f32 %v728, %v872
    %v874 = vpop.f32.mrb[0].mxu0
    %875 = vmatprep.mubr.f32.mxu0 %v613
    %876 = vmatmul.mubr.f32.gmra.mrb[0].mxu0 %v553
    %v877 = vpop.f32.mrb[0].mxu0
    %v878 = vadd.f32 %v733, %v877
    %v879 = vpop.f32.mrb[0].mxu0
    %880 = vmatprep.mubr.f32.mxu0 %v616
    %881 = vmatmul.mubr.f32.gmra.mrb[0].mxu0 %v557
    %v882 = vpop.f32.mrb[0].mxu0
    %v883 = vadd.f32 %v738, %v882
    %v884 = vpop.f32.mrb[0].mxu0
    %885 = vmatprep.mubr.f32.mxu0 %v619
    %886 = vmatmul.mubr.f32.gmra.mrb[0].mxu0 %v561
    %v887 = vpop.f32.mrb[0].mxu0
    %v888 = vadd.f32 %v743, %v887
    %v889 = vpop.f32.mrb[0].mxu0
    %890 = vmatprep.mubr.f32.mxu0 %v622
    %891 = vmatmul.mubr.f32.gmra.mrb[0].mxu0 %v565
    %v892 = vpop.f32.mrb[0].mxu0
    %v893 = vadd.f32 %v748, %v892
    %v894 = vpop.f32.mrb[0].mxu0
    %895 = vmatprep.mubr.f32.mxu0 %v625
    %896 = vmatmul.mubr.f32.gmra.mrb[0].mxu0 %v569
    %v897 = vpop.f32.mrb[0].mxu0
    %v898 = vadd.f32 %v753, %v897
    %v899 = vpop.f32.mrb[0].mxu0
    %900 = vmatprep.mubr.f32.mxu0 %v628
    %901 = vmatmul.mubr.f32.gmra.mrb[0].mxu0 %v573
    %v902 = vpop.f32.mrb[0].mxu0
    %v903 = vadd.f32 %v758, %v902
    %v904 = vpop.f32.mrb[0].mxu0
    %905 = vmatprep.mubr.f32.mxu0 %v631
    %906 = vmatmul.mubr.f32.gmra.mrb[0].mxu0 %v577
    %v907 = vpop.f32.mrb[0].mxu0
    %v908 = vadd.f32 %v763, %v907
    %v909 = vpop.f32.mrb[0].mxu0
    %910 = vmatprep.mubr.f32.mxu0 %v634
    %911 = vmatmul.mubr.f32.gmra.mrb[0].mxu0 %v581
    %v912 = vpop.f32.mrb[0].mxu0
    %v913 = vadd.f32 %v768, %v912
    %v914 = vpop.f32.mrb[0].mxu0
    %915 = vmatprep.mubr.f32.mxu0 %v637
    %916 = vmatmul.mubr.f32.gmra.mrb[0].mxu0 %v585
    %v917 = vpop.f32.mrb[0].mxu0
    %v918 = vadd.f32 %v773, %v917
    %v919 = vpop.f32.mrb[0].mxu0
    %920 = vmatprep.mubr.f32.mxu0 %v640
    %921 = vmatmul.mubr.f32.gmra.mrb[0].mxu0 %v589
    %v922 = vpop.f32.mrb[0].mxu0
    %v923 = vadd.f32 %v778, %v922
    %v924 = vpop.f32.mrb[0].mxu0
    %925 = vmatprep.mubr.f32.mxu0 %v643
    %926 = vmatmul.mubr.f32.gmra.mrb[0].mxu0 %v593
    %v927 = vpop.f32.mrb[0].mxu0
    %v928 = vadd.f32 %v783, %v927
    %v929 = vpop.f32.mrb[0].mxu0
    %930 = vmatprep.mubr.f32.mxu0 %v646
    %931 = vmatmul.mubr.f32.gmra.mrb[0].mxu0 %v597
    %v932 = vpop.f32.mrb[0].mxu0
    %v933 = vadd.f32 %v788, %v932
    %v934 = vpop.f32.mrb[0].mxu0
    %935 = vmatprep.mubr.f32.mxu0 %v649
    %936 = vmatmul.mubr.f32.gmra.mrb[0].mxu0 %v601
    %v937 = vpop.f32.mrb[0].mxu0
    %v938 = vadd.f32 %v793, %v937
    %v939 = vpop.f32.mrb[0].mxu0
    %940 = vdwg.mxu0
    %v941 = vmax.f32 %v863, 0.0
    %v942 = vmax.f32 %v868, 0.0
    %v943 = vmax.f32 %v873, 0.0
    %v944 = vmax.f32 %v878, 0.0
    %v945 = vmax.f32 %v883, 0.0
    %v946 = vmax.f32 %v888, 0.0
    %v947 = vmax.f32 %v893, 0.0
    %v948 = vmax.f32 %v898, 0.0
    %v949 = vmax.f32 %v903, 0.0
    %v950 = vmax.f32 %v908, 0.0
    %v951 = vmax.f32 %v913, 0.0
    %v952 = vmax.f32 %v918, 0.0
    %v953 = vmax.f32 %v923, 0.0
    %v954 = vmax.f32 %v928, 0.0
    %v955 = vmax.f32 %v933, 0.0
    %v956 = vmax.f32 %v938, 0.0
    %v957 = vmax.f32 %v522, %v941
    %v958 = vmax.f32 %v523, %v942
    %v959 = vmax.f32 %v524, %v943
    %v960 = vmax.f32 %v525, %v944
    %v961 = vmax.f32 %v526, %v945
    %v962 = vmax.f32 %v527, %v946
    %v963 = vmax.f32 %v528, %v947
    %v964 = vmax.f32 %v529, %v948
    %v965 = vmax.f32 %v530, %v949
    %v966 = vmax.f32 %v531, %v950
    %v967 = vmax.f32 %v532, %v951
    %v968 = vmax.f32 %v533, %v952
    %v969 = vmax.f32 %v534, %v953
    %v970 = vmax.f32 %v535, %v954
    %v971 = vmax.f32 %v536, %v955
    %v972 = vmax.f32 %v537, %v956
    %s973 = scalar_lea.vmem %s0, 1024
    %v974 = vld [vmem:[%s973] sm:$0xff]
    %v975 = vld [vmem:[%s973 + $0x8] sm:$0xff]
    %v976 = vld [vmem:[%s973 + $0x10] sm:$0xff]
    %v977 = vld [vmem:[%s973 + $0x18] sm:$0xff]
    %v978 = vld [vmem:[%s973 + $0x20] sm:$0xff]
    %v979 = vld [vmem:[%s973 + $0x28] sm:$0xff]
    %v980 = vld [vmem:[%s973 + $0x30] sm:$0xff]
    %v981 = vld [vmem:[%s973 + $0x38] sm:$0xff]
    %v982 = vld [vmem:[%s973 + $0x40] sm:$0xff]
    %v983 = vld [vmem:[%s973 + $0x48] sm:$0xff]
    %v984 = vld [vmem:[%s973 + $0x50] sm:$0xff]
    %v985 = vld [vmem:[%s973 + $0x58] sm:$0xff]
    %v986 = vld [vmem:[%s973 + $0x60] sm:$0xff]
    %v987 = vld [vmem:[%s973 + $0x68] sm:$0xff]
    %v988 = vld [vmem:[%s973 + $0x70] sm:$0xff]
    %v989 = vld [vmem:[%s973 + $0x78] sm:$0xff]
    %v990 = vld [vmem:[%s973 + $0x80] sm:$0xff]
    %v991 = vld [vmem:[%s973 + $0x88] sm:$0xff]
    %v992 = vld [vmem:[%s973 + $0x90] sm:$0xff]
    %v993 = vld [vmem:[%s973 + $0x98] sm:$0xff]
    %v994 = vld [vmem:[%s973 + $0xa0] sm:$0xff]
    %v995 = vld [vmem:[%s973 + $0xa8] sm:$0xff]
    %v996 = vld [vmem:[%s973 + $0xb0] sm:$0xff]
    %v997 = vld [vmem:[%s973 + $0xb8] sm:$0xff]
    %v998 = vld [vmem:[%s973 + $0xc0] sm:$0xff]
    %v999 = vld [vmem:[%s973 + $0xc8] sm:$0xff]
    %v1000 = vld [vmem:[%s973 + $0xd0] sm:$0xff]
    %v1001 = vld [vmem:[%s973 + $0xd8] sm:$0xff]
    %v1002 = vld [vmem:[%s973 + $0xe0] sm:$0xff]
    %v1003 = vld [vmem:[%s973 + $0xe8] sm:$0xff]
    %v1004 = vld [vmem:[%s973 + $0xf0] sm:$0xff]
    %v1005 = vld [vmem:[%s973 + $0xf8] sm:$0xff]
    %v1006 = vld [vmem:[%s973 + $0x100] sm:$0xff]
    %v1007 = vld [vmem:[%s973 + $0x108] sm:$0xff]
    %v1008 = vld [vmem:[%s973 + $0x110] sm:$0xff]
    %v1009 = vld [vmem:[%s973 + $0x118] sm:$0xff]
    %v1010 = vld [vmem:[%s973 + $0x120] sm:$0xff]
    %v1011 = vld [vmem:[%s973 + $0x128] sm:$0xff]
    %v1012 = vld [vmem:[%s973 + $0x130] sm:$0xff]
    %v1013 = vld [vmem:[%s973 + $0x138] sm:$0xff]
    %v1014 = vld [vmem:[%s973 + $0x140] sm:$0xff]
    %v1015 = vld [vmem:[%s973 + $0x148] sm:$0xff]
    %v1016 = vld [vmem:[%s973 + $0x150] sm:$0xff]
    %v1017 = vld [vmem:[%s973 + $0x158] sm:$0xff]
    %v1018 = vld [vmem:[%s973 + $0x160] sm:$0xff]
    %v1019 = vld [vmem:[%s973 + $0x168] sm:$0xff]
    %v1020 = vld [vmem:[%s973 + $0x170] sm:$0xff]
    %v1021 = vld [vmem:[%s973 + $0x178] sm:$0xff]
    %v1022 = vld [vmem:[%s973 + $0x180] sm:$0xff]
    %v1023 = vld [vmem:[%s973 + $0x188] sm:$0xff]
    %v1024 = vld [vmem:[%s973 + $0x190] sm:$0xff]
    %v1025 = vld [vmem:[%s973 + $0x198] sm:$0xff]
    %v1026 = vld [vmem:[%s973 + $0x1a0] sm:$0xff]
    %v1027 = vld [vmem:[%s973 + $0x1a8] sm:$0xff]
    %v1028 = vld [vmem:[%s973 + $0x1b0] sm:$0xff]
    %v1029 = vld [vmem:[%s973 + $0x1b8] sm:$0xff]
    %v1030 = vld [vmem:[%s973 + $0x1c0] sm:$0xff]
    %v1031 = vld [vmem:[%s973 + $0x1c8] sm:$0xff]
    %v1032 = vld [vmem:[%s973 + $0x1d0] sm:$0xff]
    %v1033 = vld [vmem:[%s973 + $0x1d8] sm:$0xff]
    %v1034 = vld [vmem:[%s973 + $0x1e0] sm:$0xff]
    %v1035 = vld [vmem:[%s973 + $0x1e8] sm:$0xff]
    %v1036 = vld [vmem:[%s973 + $0x1f0] sm:$0xff]
    %v1037 = vld [vmem:[%s973 + $0x1f8] sm:$0xff]
    %v1039 = vsel %vm179, %v977, 0
    %v1042 = vsel %vm179, %v981, 0
    %v1045 = vsel %vm179, %v985, 0
    %v1048 = vsel %vm179, %v989, 0
    %v1051 = vsel %vm179, %v993, 0
    %v1054 = vsel %vm179, %v997, 0
    %v1057 = vsel %vm179, %v1001, 0
    %v1060 = vsel %vm179, %v1005, 0
    %v1063 = vsel %vm179, %v1009, 0
    %v1066 = vsel %vm179, %v1013, 0
    %v1069 = vsel %vm179, %v1017, 0
    %v1072 = vsel %vm179, %v1021, 0
    %v1075 = vsel %vm179, %v1025, 0
    %v1078 = vsel %vm179, %v1029, 0
    %v1081 = vsel %vm179, %v1033, 0
    %v1084 = vsel %vm179, %v1037, 0
    %1086 = vmatprep.subr.mxu0 0.0
    %1087 = vmatpush1.msra.mxu0 %v109
    %1088 = vmatprep.subr.mxu0 0.0
    %1089 = vmatpush1.msra.mxu0 %v110
    %1090 = vmatprep.subr.mxu0 0.0
    %1091 = vmatpush1.msra.mxu0 %v111
    %1092 = vmatprep.subr.mxu0 0.0
    %1093 = vmatpush1.msra.mxu0 %v112
    %1094 = vmatprep.subr.mxu0 0.0
    %1095 = vmatpush1.msra.mxu0 %v113
    %1096 = vmatprep.subr.mxu0 0.0
    %1097 = vmatpush1.msra.mxu0 %v114
    %1098 = vmatprep.subr.mxu0 0.0
    %1099 = vmatpush1.msra.mxu0 %v115
    %1100 = vmatprep.subr.mxu0 0.0
    %1101 = vmatpush1.msra.mxu0 %v116
    %1102 = vmatprep.subr.mxu0 0.0
    %1103 = vmatpush1.msra.mxu0 %v117
    %1104 = vmatprep.subr.mxu0 0.0
    %1105 = vmatpush1.msra.mxu0 %v118
    %1106 = vmatprep.subr.mxu0 0.0
    %1107 = vmatpush1.msra.mxu0 %v119
    %1108 = vmatprep.subr.mxu0 0.0
    %1109 = vmatpush1.msra.mxu0 %v120
    %1110 = vmatprep.subr.mxu0 0.0
    %1111 = vmatpush1.msra.mxu0 %v121
    %1112 = vmatprep.subr.mxu0 0.0
    %1113 = vmatpush1.msra.mxu0 %v122
    %1114 = vmatprep.subr.mxu0 0.0
    %1115 = vmatpush1.msra.mxu0 %v123
    %1116 = vmatprep.subr.mxu0 0.0
    %1117 = vmatpush1.msra.mxu0 %v124
    %1118 = vmatprep.subr.mxu0 0.0
    %1119 = vmatpush1.msra.mxu0 %v125
    %1120 = vmatprep.subr.mxu0 0.0
    %1121 = vmatpush1.msra.mxu0 %v126
    %1122 = vmatprep.subr.mxu0 0.0
    %1123 = vmatpush1.msra.mxu0 %v127
    %1124 = vmatprep.subr.mxu0 0.0
    %1125 = vmatpush1.msra.mxu0 %v128
    %1126 = vmatprep.subr.mxu0 0.0
    %1127 = vmatpush1.msra.mxu0 %v129
    %1128 = vmatprep.subr.mxu0 0.0
    %1129 = vmatpush1.msra.mxu0 %v130
    %1130 = vmatprep.subr.mxu0 0.0
    %1131 = vmatpush1.msra.mxu0 %v131
    %1132 = vmatprep.subr.mxu0 0.0
    %1133 = vmatpush1.msra.mxu0 %v132
    %1134 = vmatprep.subr.mxu0 0.0
    %1135 = vmatpush1.msra.mxu0 %v133
    %1136 = vmatprep.subr.mxu0 0.0
    %1137 = vmatpush1.msra.mxu0 %v134
    %1138 = vmatprep.subr.mxu0 0.0
    %1139 = vmatpush1.msra.mxu0 %v135
    %1140 = vmatprep.subr.mxu0 0.0
    %1141 = vmatpush1.msra.mxu0 %v136
    %1142 = vmatprep.subr.mxu0 0.0
    %1143 = vmatpush1.msra.mxu0 %v137
    %1144 = vmatprep.subr.mxu0 0.0
    %1145 = vmatpush1.msra.mxu0 %v138
    %1146 = vmatprep.subr.mxu0 0.0
    %1147 = vmatpush1.msra.mxu0 %v139
    %1148 = vmatprep.subr.mxu0 0.0
    %1149 = vmatpush1.msra.mxu0 %v140
    %1150 = vmatprep.mubr.f32.mxu0 %v975
    %1151 = vmatmul.mubr.f32.gmra.mrb[0].mxu0 %v974
    %v1152 = vpop.f32.mrb[0].mxu0
    %v1153 = vadd.f32 %v177, %v1152
    %v1154 = vpop.f32.mrb[0].mxu0
    %1155 = vmatprep.mubr.f32.mxu0 %v979
    %1156 = vmatmul.mubr.f32.gmra.mrb[0].mxu0 %v978
    %v1157 = vpop.f32.mrb[0].mxu0
    %v1158 = vadd.f32 %v177, %v1157
    %v1159 = vpop.f32.mrb[0].mxu0
    %1160 = vmatprep.mubr.f32.mxu0 %v983
    %1161 = vmatmul.mubr.f32.gmra.mrb[0].mxu0 %v982
    %v1162 = vpop.f32.mrb[0].mxu0
    %v1163 = vadd.f32 %v177, %v1162
    %v1164 = vpop.f32.mrb[0].mxu0
    %1165 = vmatprep.mubr.f32.mxu0 %v987
    %1166 = vmatmul.mubr.f32.gmra.mrb[0].mxu0 %v986
    %v1167 = vpop.f32.mrb[0].mxu0
    %v1168 = vadd.f32 %v177, %v1167
    %v1169 = vpop.f32.mrb[0].mxu0
    %1170 = vmatprep.mubr.f32.mxu0 %v991
    %1171 = vmatmul.mubr.f32.gmra.mrb[0].mxu0 %v990
    %v1172 = vpop.f32.mrb[0].mxu0
    %v1173 = vadd.f32 %v177, %v1172
    %v1174 = vpop.f32.mrb[0].mxu0
    %1175 = vmatprep.mubr.f32.mxu0 %v995
    %1176 = vmatmul.mubr.f32.gmra.mrb[0].mxu0 %v994
    %v1177 = vpop.f32.mrb[0].mxu0
    %v1178 = vadd.f32 %v177, %v1177
    %v1179 = vpop.f32.mrb[0].mxu0
    %1180 = vmatprep.mubr.f32.mxu0 %v999
    %1181 = vmatmul.mubr.f32.gmra.mrb[0].mxu0 %v998
    %v1182 = vpop.f32.mrb[0].mxu0
    %v1183 = vadd.f32 %v177, %v1182
    %v1184 = vpop.f32.mrb[0].mxu0
    %1185 = vmatprep.mubr.f32.mxu0 %v1003
    %1186 = vmatmul.mubr.f32.gmra.mrb[0].mxu0 %v1002
    %v1187 = vpop.f32.mrb[0].mxu0
    %v1188 = vadd.f32 %v177, %v1187
    %v1189 = vpop.f32.mrb[0].mxu0
    %1190 = vmatprep.mubr.f32.mxu0 %v1007
    %1191 = vmatmul.mubr.f32.gmra.mrb[0].mxu0 %v1006
    %v1192 = vpop.f32.mrb[0].mxu0
    %v1193 = vadd.f32 %v177, %v1192
    %v1194 = vpop.f32.mrb[0].mxu0
    %1195 = vmatprep.mubr.f32.mxu0 %v1011
    %1196 = vmatmul.mubr.f32.gmra.mrb[0].mxu0 %v1010
    %v1197 = vpop.f32.mrb[0].mxu0
    %v1198 = vadd.f32 %v177, %v1197
    %v1199 = vpop.f32.mrb[0].mxu0
    %1200 = vmatprep.mubr.f32.mxu0 %v1015
    %1201 = vmatmul.mubr.f32.gmra.mrb[0].mxu0 %v1014
    %v1202 = vpop.f32.mrb[0].mxu0
    %v1203 = vadd.f32 %v177, %v1202
    %v1204 = vpop.f32.mrb[0].mxu0
    %1205 = vmatprep.mubr.f32.mxu0 %v1019
    %1206 = vmatmul.mubr.f32.gmra.mrb[0].mxu0 %v1018
    %v1207 = vpop.f32.mrb[0].mxu0
    %v1208 = vadd.f32 %v177, %v1207
    %v1209 = vpop.f32.mrb[0].mxu0
    %1210 = vmatprep.mubr.f32.mxu0 %v1023
    %1211 = vmatmul.mubr.f32.gmra.mrb[0].mxu0 %v1022
    %v1212 = vpop.f32.mrb[0].mxu0
    %v1213 = vadd.f32 %v177, %v1212
    %v1214 = vpop.f32.mrb[0].mxu0
    %1215 = vmatprep.mubr.f32.mxu0 %v1027
    %1216 = vmatmul.mubr.f32.gmra.mrb[0].mxu0 %v1026
    %v1217 = vpop.f32.mrb[0].mxu0
    %v1218 = vadd.f32 %v177, %v1217
    %v1219 = vpop.f32.mrb[0].mxu0
    %1220 = vmatprep.mubr.f32.mxu0 %v1031
    %1221 = vmatmul.mubr.f32.gmra.mrb[0].mxu0 %v1030
    %v1222 = vpop.f32.mrb[0].mxu0
    %v1223 = vadd.f32 %v177, %v1222
    %v1224 = vpop.f32.mrb[0].mxu0
    %1225 = vmatprep.mubr.f32.mxu0 %v1035
    %1226 = vmatmul.mubr.f32.gmra.mrb[0].mxu0 %v1034
    %v1227 = vpop.f32.mrb[0].mxu0
    %v1228 = vadd.f32 %v177, %v1227
    %v1229 = vpop.f32.mrb[0].mxu0
    %1230 = vdwg.mxu0
    %1231 = vmatprep.subr.mxu0 0.0
    %1232 = vmatpush1.msra.mxu0 %v141
    %1233 = vmatprep.subr.mxu0 0.0
    %1234 = vmatpush1.msra.mxu0 %v142
    %1235 = vmatprep.subr.mxu0 0.0
    %1236 = vmatpush1.msra.mxu0 %v143
    %1237 = vmatprep.subr.mxu0 0.0
    %1238 = vmatpush1.msra.mxu0 %v144
    %1239 = vmatprep.subr.mxu0 0.0
    %1240 = vmatpush1.msra.mxu0 %v145
    %1241 = vmatprep.subr.mxu0 0.0
    %1242 = vmatpush1.msra.mxu0 %v146
    %1243 = vmatprep.subr.mxu0 0.0
    %1244 = vmatpush1.msra.mxu0 %v147
    %1245 = vmatprep.subr.mxu0 0.0
    %1246 = vmatpush1.msra.mxu0 %v148
    %1247 = vmatprep.subr.mxu0 0.0
    %1248 = vmatpush1.msra.mxu0 %v149
    %1249 = vmatprep.subr.mxu0 0.0
    %1250 = vmatpush1.msra.mxu0 %v150
    %1251 = vmatprep.subr.mxu0 0.0
    %1252 = vmatpush1.msra.mxu0 %v151
    %1253 = vmatprep.subr.mxu0 0.0
    %1254 = vmatpush1.msra.mxu0 %v152
    %1255 = vmatprep.subr.mxu0 0.0
    %1256 = vmatpush1.msra.mxu0 %v153
    %1257 = vmatprep.subr.mxu0 0.0
    %1258 = vmatpush1.msra.mxu0 %v154
    %1259 = vmatprep.subr.mxu0 0.0
    %1260 = vmatpush1.msra.mxu0 %v155
    %1261 = vmatprep.subr.mxu0 0.0
    %1262 = vmatpush1.msra.mxu0 %v156
    %1263 = vmatprep.subr.mxu0 0.0
    %1264 = vmatpush1.msra.mxu0 %v157
    %1265 = vmatprep.subr.mxu0 0.0
    %1266 = vmatpush1.msra.mxu0 %v158
    %1267 = vmatprep.subr.mxu0 0.0
    %1268 = vmatpush1.msra.mxu0 %v159
    %1269 = vmatprep.subr.mxu0 0.0
    %1270 = vmatpush1.msra.mxu0 %v160
    %1271 = vmatprep.subr.mxu0 0.0
    %1272 = vmatpush1.msra.mxu0 %v161
    %1273 = vmatprep.subr.mxu0 0.0
    %1274 = vmatpush1.msra.mxu0 %v162
    %1275 = vmatprep.subr.mxu0 0.0
    %1276 = vmatpush1.msra.mxu0 %v163
    %1277 = vmatprep.subr.mxu0 0.0
    %1278 = vmatpush1.msra.mxu0 %v164
    %1279 = vmatprep.subr.mxu0 0.0
    %1280 = vmatpush1.msra.mxu0 %v165
    %1281 = vmatprep.subr.mxu0 0.0
    %1282 = vmatpush1.msra.mxu0 %v166
    %1283 = vmatprep.subr.mxu0 0.0
    %1284 = vmatpush1.msra.mxu0 %v167
    %1285 = vmatprep.subr.mxu0 0.0
    %1286 = vmatpush1.msra.mxu0 %v168
    %1287 = vmatprep.subr.mxu0 0.0
    %1288 = vmatpush1.msra.mxu0 %v169
    %1289 = vmatprep.subr.mxu0 0.0
    %1290 = vmatpush1.msra.mxu0 %v170
    %1291 = vmatprep.subr.mxu0 0.0
    %1292 = vmatpush1.msra.mxu0 %v230
    %1293 = vmatprep.subr.mxu0 0.0
    %1294 = vmatpush1.msra.mxu0 0.0
    %1295 = vmatprep.mubr.f32.mxu0 %v1039
    %1296 = vmatmul.mubr.f32.gmra.mrb[0].mxu0 %v976
    %v1297 = vpop.f32.mrb[0].mxu0
    %v1298 = vadd.f32 %v1153, %v1297
    %v1299 = vpop.f32.mrb[0].mxu0
    %1300 = vmatprep.mubr.f32.mxu0 %v1042
    %1301 = vmatmul.mubr.f32.gmra.mrb[0].mxu0 %v980
    %v1302 = vpop.f32.mrb[0].mxu0
    %v1303 = vadd.f32 %v1158, %v1302
    %v1304 = vpop.f32.mrb[0].mxu0
    %1305 = vmatprep.mubr.f32.mxu0 %v1045
    %1306 = vmatmul.mubr.f32.gmra.mrb[0].mxu0 %v984
    %v1307 = vpop.f32.mrb[0].mxu0
    %v1308 = vadd.f32 %v1163, %v1307
    %v1309 = vpop.f32.mrb[0].mxu0
    %1310 = vmatprep.mubr.f32.mxu0 %v1048
    %1311 = vmatmul.mubr.f32.gmra.mrb[0].mxu0 %v988
    %v1312 = vpop.f32.mrb[0].mxu0
    %v1313 = vadd.f32 %v1168, %v1312
    %v1314 = vpop.f32.mrb[0].mxu0
    %1315 = vmatprep.mubr.f32.mxu0 %v1051
    %1316 = vmatmul.mubr.f32.gmra.mrb[0].mxu0 %v992
    %v1317 = vpop.f32.mrb[0].mxu0
    %v1318 = vadd.f32 %v1173, %v1317
    %v1319 = vpop.f32.mrb[0].mxu0
    %1320 = vmatprep.mubr.f32.mxu0 %v1054
    %1321 = vmatmul.mubr.f32.gmra.mrb[0].mxu0 %v996
    %v1322 = vpop.f32.mrb[0].mxu0
    %v1323 = vadd.f32 %v1178, %v1322
    %v1324 = vpop.f32.mrb[0].mxu0
    %1325 = vmatprep.mubr.f32.mxu0 %v1057
    %1326 = vmatmul.mubr.f32.gmra.mrb[0].mxu0 %v1000
    %v1327 = vpop.f32.mrb[0].mxu0
    %v1328 = vadd.f32 %v1183, %v1327
    %v1329 = vpop.f32.mrb[0].mxu0
    %1330 = vmatprep.mubr.f32.mxu0 %v1060
    %1331 = vmatmul.mubr.f32.gmra.mrb[0].mxu0 %v1004
    %v1332 = vpop.f32.mrb[0].mxu0
    %v1333 = vadd.f32 %v1188, %v1332
    %v1334 = vpop.f32.mrb[0].mxu0
    %1335 = vmatprep.mubr.f32.mxu0 %v1063
    %1336 = vmatmul.mubr.f32.gmra.mrb[0].mxu0 %v1008
    %v1337 = vpop.f32.mrb[0].mxu0
    %v1338 = vadd.f32 %v1193, %v1337
    %v1339 = vpop.f32.mrb[0].mxu0
    %1340 = vmatprep.mubr.f32.mxu0 %v1066
    %1341 = vmatmul.mubr.f32.gmra.mrb[0].mxu0 %v1012
    %v1342 = vpop.f32.mrb[0].mxu0
    %v1343 = vadd.f32 %v1198, %v1342
    %v1344 = vpop.f32.mrb[0].mxu0
    %1345 = vmatprep.mubr.f32.mxu0 %v1069
    %1346 = vmatmul.mubr.f32.gmra.mrb[0].mxu0 %v1016
    %v1347 = vpop.f32.mrb[0].mxu0
    %v1348 = vadd.f32 %v1203, %v1347
    %v1349 = vpop.f32.mrb[0].mxu0
    %1350 = vmatprep.mubr.f32.mxu0 %v1072
    %1351 = vmatmul.mubr.f32.gmra.mrb[0].mxu0 %v1020
    %v1352 = vpop.f32.mrb[0].mxu0
    %v1353 = vadd.f32 %v1208, %v1352
    %v1354 = vpop.f32.mrb[0].mxu0
    %1355 = vmatprep.mubr.f32.mxu0 %v1075
    %1356 = vmatmul.mubr.f32.gmra.mrb[0].mxu0 %v1024
    %v1357 = vpop.f32.mrb[0].mxu0
    %v1358 = vadd.f32 %v1213, %v1357
    %v1359 = vpop.f32.mrb[0].mxu0
    %1360 = vmatprep.mubr.f32.mxu0 %v1078
    %1361 = vmatmul.mubr.f32.gmra.mrb[0].mxu0 %v1028
    %v1362 = vpop.f32.mrb[0].mxu0
    %v1363 = vadd.f32 %v1218, %v1362
    %v1364 = vpop.f32.mrb[0].mxu0
    %1365 = vmatprep.mubr.f32.mxu0 %v1081
    %1366 = vmatmul.mubr.f32.gmra.mrb[0].mxu0 %v1032
    %v1367 = vpop.f32.mrb[0].mxu0
    %v1368 = vadd.f32 %v1223, %v1367
    %v1369 = vpop.f32.mrb[0].mxu0
    %1370 = vmatprep.mubr.f32.mxu0 %v1084
    %1371 = vmatmul.mubr.f32.gmra.mrb[0].mxu0 %v1036
    %v1372 = vpop.f32.mrb[0].mxu0
    %v1373 = vadd.f32 %v1228, %v1372
    %v1374 = vpop.f32.mrb[0].mxu0
    %1375 = vdwg.mxu0
    %v1376 = vmax.f32 %v1298, 0.0
    %v1377 = vmax.f32 %v1303, 0.0
    %v1378 = vmax.f32 %v1308, 0.0
    %v1379 = vmax.f32 %v1313, 0.0
    %v1380 = vmax.f32 %v1318, 0.0
    %v1381 = vmax.f32 %v1323, 0.0
    %v1382 = vmax.f32 %v1328, 0.0
    %v1383 = vmax.f32 %v1333, 0.0
    %v1384 = vmax.f32 %v1338, 0.0
    %v1385 = vmax.f32 %v1343, 0.0
    %v1386 = vmax.f32 %v1348, 0.0
    %v1387 = vmax.f32 %v1353, 0.0
    %v1388 = vmax.f32 %v1358, 0.0
    %v1389 = vmax.f32 %v1363, 0.0
    %v1390 = vmax.f32 %v1368, 0.0
    %v1391 = vmax.f32 %v1373, 0.0
    %v1392 = vmax.f32 %v957, %v1376
    %v1393 = vmax.f32 %v958, %v1377
    %v1394 = vmax.f32 %v959, %v1378
    %v1395 = vmax.f32 %v960, %v1379
    %v1396 = vmax.f32 %v961, %v1380
    %v1397 = vmax.f32 %v962, %v1381
    %v1398 = vmax.f32 %v963, %v1382
    %v1399 = vmax.f32 %v964, %v1383
    %v1400 = vmax.f32 %v965, %v1384
    %v1401 = vmax.f32 %v966, %v1385
    %v1402 = vmax.f32 %v967, %v1386
    %v1403 = vmax.f32 %v968, %v1387
    %v1404 = vmax.f32 %v969, %v1388
    %v1405 = vmax.f32 %v970, %v1389
    %v1406 = vmax.f32 %v971, %v1390
    %v1407 = vmax.f32 %v972, %v1391
    %s1408 = scalar_lea.vmem %s0, 1536
    %v1409 = vld [vmem:[%s1408] sm:$0xff]
    %v1410 = vld [vmem:[%s1408 + $0x8] sm:$0xff]
    %v1411 = vld [vmem:[%s1408 + $0x10] sm:$0xff]
    %v1412 = vld [vmem:[%s1408 + $0x18] sm:$0xff]
    %v1413 = vld [vmem:[%s1408 + $0x20] sm:$0xff]
    %v1414 = vld [vmem:[%s1408 + $0x28] sm:$0xff]
    %v1415 = vld [vmem:[%s1408 + $0x30] sm:$0xff]
    %v1416 = vld [vmem:[%s1408 + $0x38] sm:$0xff]
    %v1417 = vld [vmem:[%s1408 + $0x40] sm:$0xff]
    %v1418 = vld [vmem:[%s1408 + $0x48] sm:$0xff]
    %v1419 = vld [vmem:[%s1408 + $0x50] sm:$0xff]
    %v1420 = vld [vmem:[%s1408 + $0x58] sm:$0xff]
    %v1421 = vld [vmem:[%s1408 + $0x60] sm:$0xff]
    %v1422 = vld [vmem:[%s1408 + $0x68] sm:$0xff]
    %v1423 = vld [vmem:[%s1408 + $0x70] sm:$0xff]
    %v1424 = vld [vmem:[%s1408 + $0x78] sm:$0xff]
    %v1425 = vld [vmem:[%s1408 + $0x80] sm:$0xff]
    %v1426 = vld [vmem:[%s1408 + $0x88] sm:$0xff]
    %v1427 = vld [vmem:[%s1408 + $0x90] sm:$0xff]
    %v1428 = vld [vmem:[%s1408 + $0x98] sm:$0xff]
    %v1429 = vld [vmem:[%s1408 + $0xa0] sm:$0xff]
    %v1430 = vld [vmem:[%s1408 + $0xa8] sm:$0xff]
    %v1431 = vld [vmem:[%s1408 + $0xb0] sm:$0xff]
    %v1432 = vld [vmem:[%s1408 + $0xb8] sm:$0xff]
    %v1433 = vld [vmem:[%s1408 + $0xc0] sm:$0xff]
    %v1434 = vld [vmem:[%s1408 + $0xc8] sm:$0xff]
    %v1435 = vld [vmem:[%s1408 + $0xd0] sm:$0xff]
    %v1436 = vld [vmem:[%s1408 + $0xd8] sm:$0xff]
    %v1437 = vld [vmem:[%s1408 + $0xe0] sm:$0xff]
    %v1438 = vld [vmem:[%s1408 + $0xe8] sm:$0xff]
    %v1439 = vld [vmem:[%s1408 + $0xf0] sm:$0xff]
    %v1440 = vld [vmem:[%s1408 + $0xf8] sm:$0xff]
    %v1441 = vld [vmem:[%s1408 + $0x100] sm:$0xff]
    %v1442 = vld [vmem:[%s1408 + $0x108] sm:$0xff]
    %v1443 = vld [vmem:[%s1408 + $0x110] sm:$0xff]
    %v1444 = vld [vmem:[%s1408 + $0x118] sm:$0xff]
    %v1445 = vld [vmem:[%s1408 + $0x120] sm:$0xff]
    %v1446 = vld [vmem:[%s1408 + $0x128] sm:$0xff]
    %v1447 = vld [vmem:[%s1408 + $0x130] sm:$0xff]
    %v1448 = vld [vmem:[%s1408 + $0x138] sm:$0xff]
    %v1449 = vld [vmem:[%s1408 + $0x140] sm:$0xff]
    %v1450 = vld [vmem:[%s1408 + $0x148] sm:$0xff]
    %v1451 = vld [vmem:[%s1408 + $0x150] sm:$0xff]
    %v1452 = vld [vmem:[%s1408 + $0x158] sm:$0xff]
    %v1453 = vld [vmem:[%s1408 + $0x160] sm:$0xff]
    %v1454 = vld [vmem:[%s1408 + $0x168] sm:$0xff]
    %v1455 = vld [vmem:[%s1408 + $0x170] sm:$0xff]
    %v1456 = vld [vmem:[%s1408 + $0x178] sm:$0xff]
    %v1457 = vld [vmem:[%s1408 + $0x180] sm:$0xff]
    %v1458 = vld [vmem:[%s1408 + $0x188] sm:$0xff]
    %v1459 = vld [vmem:[%s1408 + $0x190] sm:$0xff]
    %v1460 = vld [vmem:[%s1408 + $0x198] sm:$0xff]
    %v1461 = vld [vmem:[%s1408 + $0x1a0] sm:$0xff]
    %v1462 = vld [vmem:[%s1408 + $0x1a8] sm:$0xff]
    %v1463 = vld [vmem:[%s1408 + $0x1b0] sm:$0xff]
    %v1464 = vld [vmem:[%s1408 + $0x1b8] sm:$0xff]
    %v1465 = vld [vmem:[%s1408 + $0x1c0] sm:$0xff]
    %v1466 = vld [vmem:[%s1408 + $0x1c8] sm:$0xff]
    %v1467 = vld [vmem:[%s1408 + $0x1d0] sm:$0xff]
    %v1468 = vld [vmem:[%s1408 + $0x1d8] sm:$0xff]
    %v1469 = vld [vmem:[%s1408 + $0x1e0] sm:$0xff]
    %v1470 = vld [vmem:[%s1408 + $0x1e8] sm:$0xff]
    %v1471 = vld [vmem:[%s1408 + $0x1f0] sm:$0xff]
    %v1472 = vld [vmem:[%s1408 + $0x1f8] sm:$0xff]
    %v1474 = vsel %vm179, %v1412, 0
    %v1477 = vsel %vm179, %v1416, 0
    %v1480 = vsel %vm179, %v1420, 0
    %v1483 = vsel %vm179, %v1424, 0
    %v1486 = vsel %vm179, %v1428, 0
    %v1489 = vsel %vm179, %v1432, 0
    %v1492 = vsel %vm179, %v1436, 0
    %v1495 = vsel %vm179, %v1440, 0
    %v1498 = vsel %vm179, %v1444, 0
    %v1501 = vsel %vm179, %v1448, 0
    %v1504 = vsel %vm179, %v1452, 0
    %v1507 = vsel %vm179, %v1456, 0
    %v1510 = vsel %vm179, %v1460, 0
    %v1513 = vsel %vm179, %v1464, 0
    %v1516 = vsel %vm179, %v1468, 0
    %v1519 = vsel %vm179, %v1472, 0
    %1521 = vmatprep.subr.mxu0 0.0
    %1522 = vmatpush1.msra.mxu0 %v109
    %1523 = vmatprep.subr.mxu0 0.0
    %1524 = vmatpush1.msra.mxu0 %v110
    %1525 = vmatprep.subr.mxu0 0.0
    %1526 = vmatpush1.msra.mxu0 %v111
    %1527 = vmatprep.subr.mxu0 0.0
    %1528 = vmatpush1.msra.mxu0 %v112
    %1529 = vmatprep.subr.mxu0 0.0
    %1530 = vmatpush1.msra.mxu0 %v113
    %1531 = vmatprep.subr.mxu0 0.0
    %1532 = vmatpush1.msra.mxu0 %v114
    %1533 = vmatprep.subr.mxu0 0.0
    %1534 = vmatpush1.msra.mxu0 %v115
    %1535 = vmatprep.subr.mxu0 0.0
    %1536 = vmatpush1.msra.mxu0 %v116
    %1537 = vmatprep.subr.mxu0 0.0
    %1538 = vmatpush1.msra.mxu0 %v117
    %1539 = vmatprep.subr.mxu0 0.0
    %1540 = vmatpush1.msra.mxu0 %v118
    %1541 = vmatprep.subr.mxu0 0.0
    %1542 = vmatpush1.msra.mxu0 %v119
    %1543 = vmatprep.subr.mxu0 0.0
    %1544 = vmatpush1.msra.mxu0 %v120
    %1545 = vmatprep.subr.mxu0 0.0
    %1546 = vmatpush1.msra.mxu0 %v121
    %1547 = vmatprep.subr.mxu0 0.0
    %1548 = vmatpush1.msra.mxu0 %v122
    %1549 = vmatprep.subr.mxu0 0.0
    %1550 = vmatpush1.msra.mxu0 %v123
    %1551 = vmatprep.subr.mxu0 0.0
    %1552 = vmatpush1.msra.mxu0 %v124
    %1553 = vmatprep.subr.mxu0 0.0
    %1554 = vmatpush1.msra.mxu0 %v125
    %1555 = vmatprep.subr.mxu0 0.0
    %1556 = vmatpush1.msra.mxu0 %v126
    %1557 = vmatprep.subr.mxu0 0.0
    %1558 = vmatpush1.msra.mxu0 %v127
    %1559 = vmatprep.subr.mxu0 0.0
    %1560 = vmatpush1.msra.mxu0 %v128
    %1561 = vmatprep.subr.mxu0 0.0
    %1562 = vmatpush1.msra.mxu0 %v129
    %1563 = vmatprep.subr.mxu0 0.0
    %1564 = vmatpush1.msra.mxu0 %v130
    %1565 = vmatprep.subr.mxu0 0.0
    %1566 = vmatpush1.msra.mxu0 %v131
    %1567 = vmatprep.subr.mxu0 0.0
    %1568 = vmatpush1.msra.mxu0 %v132
    %1569 = vmatprep.subr.mxu0 0.0
    %1570 = vmatpush1.msra.mxu0 %v133
    %1571 = vmatprep.subr.mxu0 0.0
    %1572 = vmatpush1.msra.mxu0 %v134
    %1573 = vmatprep.subr.mxu0 0.0
    %1574 = vmatpush1.msra.mxu0 %v135
    %1575 = vmatprep.subr.mxu0 0.0
    %1576 = vmatpush1.msra.mxu0 %v136
    %1577 = vmatprep.subr.mxu0 0.0
    %1578 = vmatpush1.msra.mxu0 %v137
    %1579 = vmatprep.subr.mxu0 0.0
    %1580 = vmatpush1.msra.mxu0 %v138
    %1581 = vmatprep.subr.mxu0 0.0
    %1582 = vmatpush1.msra.mxu0 %v139
    %1583 = vmatprep.subr.mxu0 0.0
    %1584 = vmatpush1.msra.mxu0 %v140
    %1585 = vmatprep.mubr.f32.mxu0 %v1410
    %1586 = vmatmul.mubr.f32.gmra.mrb[0].mxu0 %v1409
    %v1587 = vpop.f32.mrb[0].mxu0
    %v1588 = vadd.f32 %v177, %v1587
    %v1589 = vpop.f32.mrb[0].mxu0
    %1590 = vmatprep.mubr.f32.mxu0 %v1414
    %1591 = vmatmul.mubr.f32.gmra.mrb[0].mxu0 %v1413
    %v1592 = vpop.f32.mrb[0].mxu0
    %v1593 = vadd.f32 %v177, %v1592
    %v1594 = vpop.f32.mrb[0].mxu0
    %1595 = vmatprep.mubr.f32.mxu0 %v1418
    %1596 = vmatmul.mubr.f32.gmra.mrb[0].mxu0 %v1417
    %v1597 = vpop.f32.mrb[0].mxu0
    %v1598 = vadd.f32 %v177, %v1597
    %v1599 = vpop.f32.mrb[0].mxu0
    %1600 = vmatprep.mubr.f32.mxu0 %v1422
    %1601 = vmatmul.mubr.f32.gmra.mrb[0].mxu0 %v1421
    %v1602 = vpop.f32.mrb[0].mxu0
    %v1603 = vadd.f32 %v177, %v1602
    %v1604 = vpop.f32.mrb[0].mxu0
    %1605 = vmatprep.mubr.f32.mxu0 %v1426
    %1606 = vmatmul.mubr.f32.gmra.mrb[0].mxu0 %v1425
    %v1607 = vpop.f32.mrb[0].mxu0
    %v1608 = vadd.f32 %v177, %v1607
    %v1609 = vpop.f32.mrb[0].mxu0
    %1610 = vmatprep.mubr.f32.mxu0 %v1430
    %1611 = vmatmul.mubr.f32.gmra.mrb[0].mxu0 %v1429
    %v1612 = vpop.f32.mrb[0].mxu0
    %v1613 = vadd.f32 %v177, %v1612
    %v1614 = vpop.f32.mrb[0].mxu0
    %1615 = vmatprep.mubr.f32.mxu0 %v1434
    %1616 = vmatmul.mubr.f32.gmra.mrb[0].mxu0 %v1433
    %v1617 = vpop.f32.mrb[0].mxu0
    %v1618 = vadd.f32 %v177, %v1617
    %v1619 = vpop.f32.mrb[0].mxu0
    %1620 = vmatprep.mubr.f32.mxu0 %v1438
    %1621 = vmatmul.mubr.f32.gmra.mrb[0].mxu0 %v1437
    %v1622 = vpop.f32.mrb[0].mxu0
    %v1623 = vadd.f32 %v177, %v1622
    %v1624 = vpop.f32.mrb[0].mxu0
    %1625 = vmatprep.mubr.f32.mxu0 %v1442
    %1626 = vmatmul.mubr.f32.gmra.mrb[0].mxu0 %v1441
    %v1627 = vpop.f32.mrb[0].mxu0
    %v1628 = vadd.f32 %v177, %v1627
    %v1629 = vpop.f32.mrb[0].mxu0
    %1630 = vmatprep.mubr.f32.mxu0 %v1446
    %1631 = vmatmul.mubr.f32.gmra.mrb[0].mxu0 %v1445
    %v1632 = vpop.f32.mrb[0].mxu0
    %v1633 = vadd.f32 %v177, %v1632
    %v1634 = vpop.f32.mrb[0].mxu0
    %1635 = vmatprep.mubr.f32.mxu0 %v1450
    %1636 = vmatmul.mubr.f32.gmra.mrb[0].mxu0 %v1449
    %v1637 = vpop.f32.mrb[0].mxu0
    %v1638 = vadd.f32 %v177, %v1637
    %v1639 = vpop.f32.mrb[0].mxu0
    %1640 = vmatprep.mubr.f32.mxu0 %v1454
    %1641 = vmatmul.mubr.f32.gmra.mrb[0].mxu0 %v1453
    %v1642 = vpop.f32.mrb[0].mxu0
    %v1643 = vadd.f32 %v177, %v1642
    %v1644 = vpop.f32.mrb[0].mxu0
    %1645 = vmatprep.mubr.f32.mxu0 %v1458
    %1646 = vmatmul.mubr.f32.gmra.mrb[0].mxu0 %v1457
    %v1647 = vpop.f32.mrb[0].mxu0
    %v1648 = vadd.f32 %v177, %v1647
    %v1649 = vpop.f32.mrb[0].mxu0
    %1650 = vmatprep.mubr.f32.mxu0 %v1462
    %1651 = vmatmul.mubr.f32.gmra.mrb[0].mxu0 %v1461
    %v1652 = vpop.f32.mrb[0].mxu0
    %v1653 = vadd.f32 %v177, %v1652
    %v1654 = vpop.f32.mrb[0].mxu0
    %1655 = vmatprep.mubr.f32.mxu0 %v1466
    %1656 = vmatmul.mubr.f32.gmra.mrb[0].mxu0 %v1465
    %v1657 = vpop.f32.mrb[0].mxu0
    %v1658 = vadd.f32 %v177, %v1657
    %v1659 = vpop.f32.mrb[0].mxu0
    %1660 = vmatprep.mubr.f32.mxu0 %v1470
    %1661 = vmatmul.mubr.f32.gmra.mrb[0].mxu0 %v1469
    %v1662 = vpop.f32.mrb[0].mxu0
    %v1663 = vadd.f32 %v177, %v1662
    %v1664 = vpop.f32.mrb[0].mxu0
    %1665 = vdwg.mxu0
    %1666 = vmatprep.subr.mxu0 0.0
    %1667 = vmatpush1.msra.mxu0 %v141
    %1668 = vmatprep.subr.mxu0 0.0
    %1669 = vmatpush1.msra.mxu0 %v142
    %1670 = vmatprep.subr.mxu0 0.0
    %1671 = vmatpush1.msra.mxu0 %v143
    %1672 = vmatprep.subr.mxu0 0.0
    %1673 = vmatpush1.msra.mxu0 %v144
    %1674 = vmatprep.subr.mxu0 0.0
    %1675 = vmatpush1.msra.mxu0 %v145
    %1676 = vmatprep.subr.mxu0 0.0
    %1677 = vmatpush1.msra.mxu0 %v146
    %1678 = vmatprep.subr.mxu0 0.0
    %1679 = vmatpush1.msra.mxu0 %v147
    %1680 = vmatprep.subr.mxu0 0.0
    %1681 = vmatpush1.msra.mxu0 %v148
    %1682 = vmatprep.subr.mxu0 0.0
    %1683 = vmatpush1.msra.mxu0 %v149
    %1684 = vmatprep.subr.mxu0 0.0
    %1685 = vmatpush1.msra.mxu0 %v150
    %1686 = vmatprep.subr.mxu0 0.0
    %1687 = vmatpush1.msra.mxu0 %v151
    %1688 = vmatprep.subr.mxu0 0.0
    %1689 = vmatpush1.msra.mxu0 %v152
    %1690 = vmatprep.subr.mxu0 0.0
    %1691 = vmatpush1.msra.mxu0 %v153
    %1692 = vmatprep.subr.mxu0 0.0
    %1693 = vmatpush1.msra.mxu0 %v154
    %1694 = vmatprep.subr.mxu0 0.0
    %1695 = vmatpush1.msra.mxu0 %v155
    %1696 = vmatprep.subr.mxu0 0.0
    %1697 = vmatpush1.msra.mxu0 %v156
    %1698 = vmatprep.subr.mxu0 0.0
    %1699 = vmatpush1.msra.mxu0 %v157
    %1700 = vmatprep.subr.mxu0 0.0
    %1701 = vmatpush1.msra.mxu0 %v158
    %1702 = vmatprep.subr.mxu0 0.0
    %1703 = vmatpush1.msra.mxu0 %v159
    %1704 = vmatprep.subr.mxu0 0.0
    %1705 = vmatpush1.msra.mxu0 %v160
    %1706 = vmatprep.subr.mxu0 0.0
    %1707 = vmatpush1.msra.mxu0 %v161
    %1708 = vmatprep.subr.mxu0 0.0
    %1709 = vmatpush1.msra.mxu0 %v162
    %1710 = vmatprep.subr.mxu0 0.0
    %1711 = vmatpush1.msra.mxu0 %v163
    %1712 = vmatprep.subr.mxu0 0.0
    %1713 = vmatpush1.msra.mxu0 %v164
    %1714 = vmatprep.subr.mxu0 0.0
    %1715 = vmatpush1.msra.mxu0 %v165
    %1716 = vmatprep.subr.mxu0 0.0
    %1717 = vmatpush1.msra.mxu0 %v166
    %1718 = vmatprep.subr.mxu0 0.0
    %1719 = vmatpush1.msra.mxu0 %v167
    %1720 = vmatprep.subr.mxu0 0.0
    %1721 = vmatpush1.msra.mxu0 %v168
    %1722 = vmatprep.subr.mxu0 0.0
    %1723 = vmatpush1.msra.mxu0 %v169
    %1724 = vmatprep.subr.mxu0 0.0
    %1725 = vmatpush1.msra.mxu0 %v170
    %1726 = vmatprep.subr.mxu0 0.0
    %1727 = vmatpush1.msra.mxu0 %v230
    %1728 = vmatprep.subr.mxu0 0.0
    %1729 = vmatpush1.msra.mxu0 0.0
    %1730 = vmatprep.mubr.f32.mxu0 %v1474
    %1731 = vmatmul.mubr.f32.gmra.mrb[0].mxu0 %v1411
    %v1732 = vpop.f32.mrb[0].mxu0
    %v1733 = vadd.f32 %v1588, %v1732
    %v1734 = vpop.f32.mrb[0].mxu0
    %1735 = vmatprep.mubr.f32.mxu0 %v1477
    %1736 = vmatmul.mubr.f32.gmra.mrb[0].mxu0 %v1415
    %v1737 = vpop.f32.mrb[0].mxu0
    %v1738 = vadd.f32 %v1593, %v1737
    %v1739 = vpop.f32.mrb[0].mxu0
    %1740 = vmatprep.mubr.f32.mxu0 %v1480
    %1741 = vmatmul.mubr.f32.gmra.mrb[0].mxu0 %v1419
    %v1742 = vpop.f32.mrb[0].mxu0
    %v1743 = vadd.f32 %v1598, %v1742
    %v1744 = vpop.f32.mrb[0].mxu0
    %1745 = vmatprep.mubr.f32.mxu0 %v1483
    %1746 = vmatmul.mubr.f32.gmra.mrb[0].mxu0 %v1423
    %v1747 = vpop.f32.mrb[0].mxu0
    %v1748 = vadd.f32 %v1603, %v1747
    %v1749 = vpop.f32.mrb[0].mxu0
    %1750 = vmatprep.mubr.f32.mxu0 %v1486
    %1751 = vmatmul.mubr.f32.gmra.mrb[0].mxu0 %v1427
    %v1752 = vpop.f32.mrb[0].mxu0
    %v1753 = vadd.f32 %v1608, %v1752
    %v1754 = vpop.f32.mrb[0].mxu0
    %1755 = vmatprep.mubr.f32.mxu0 %v1489
    %1756 = vmatmul.mubr.f32.gmra.mrb[0].mxu0 %v1431
    %v1757 = vpop.f32.mrb[0].mxu0
    %v1758 = vadd.f32 %v1613, %v1757
    %v1759 = vpop.f32.mrb[0].mxu0
    %1760 = vmatprep.mubr.f32.mxu0 %v1492
    %1761 = vmatmul.mubr.f32.gmra.mrb[0].mxu0 %v1435
    %v1762 = vpop.f32.mrb[0].mxu0
    %v1763 = vadd.f32 %v1618, %v1762
    %v1764 = vpop.f32.mrb[0].mxu0
    %1765 = vmatprep.mubr.f32.mxu0 %v1495
    %1766 = vmatmul.mubr.f32.gmra.mrb[0].mxu0 %v1439
    %v1767 = vpop.f32.mrb[0].mxu0
    %v1768 = vadd.f32 %v1623, %v1767
    %v1769 = vpop.f32.mrb[0].mxu0
    %1770 = vmatprep.mubr.f32.mxu0 %v1498
    %1771 = vmatmul.mubr.f32.gmra.mrb[0].mxu0 %v1443
    %v1772 = vpop.f32.mrb[0].mxu0
    %v1773 = vadd.f32 %v1628, %v1772
    %v1774 = vpop.f32.mrb[0].mxu0
    %1775 = vmatprep.mubr.f32.mxu0 %v1501
    %1776 = vmatmul.mubr.f32.gmra.mrb[0].mxu0 %v1447
    %v1777 = vpop.f32.mrb[0].mxu0
    %v1778 = vadd.f32 %v1633, %v1777
    %v1779 = vpop.f32.mrb[0].mxu0
    %1780 = vmatprep.mubr.f32.mxu0 %v1504
    %1781 = vmatmul.mubr.f32.gmra.mrb[0].mxu0 %v1451
    %v1782 = vpop.f32.mrb[0].mxu0
    %v1783 = vadd.f32 %v1638, %v1782
    %v1784 = vpop.f32.mrb[0].mxu0
    %1785 = vmatprep.mubr.f32.mxu0 %v1507
    %1786 = vmatmul.mubr.f32.gmra.mrb[0].mxu0 %v1455
    %v1787 = vpop.f32.mrb[0].mxu0
    %v1788 = vadd.f32 %v1643, %v1787
    %v1789 = vpop.f32.mrb[0].mxu0
    %1790 = vmatprep.mubr.f32.mxu0 %v1510
    %1791 = vmatmul.mubr.f32.gmra.mrb[0].mxu0 %v1459
    %v1792 = vpop.f32.mrb[0].mxu0
    %v1793 = vadd.f32 %v1648, %v1792
    %v1794 = vpop.f32.mrb[0].mxu0
    %1795 = vmatprep.mubr.f32.mxu0 %v1513
    %1796 = vmatmul.mubr.f32.gmra.mrb[0].mxu0 %v1463
    %v1797 = vpop.f32.mrb[0].mxu0
    %v1798 = vadd.f32 %v1653, %v1797
    %v1799 = vpop.f32.mrb[0].mxu0
    %1800 = vmatprep.mubr.f32.mxu0 %v1516
    %1801 = vmatmul.mubr.f32.gmra.mrb[0].mxu0 %v1467
    %v1802 = vpop.f32.mrb[0].mxu0
    %v1803 = vadd.f32 %v1658, %v1802
    %v1804 = vpop.f32.mrb[0].mxu0
    %1805 = vmatprep.mubr.f32.mxu0 %v1519
    %1806 = vmatmul.mubr.f32.gmra.mrb[0].mxu0 %v1471
    %v1807 = vpop.f32.mrb[0].mxu0
    %v1808 = vadd.f32 %v1663, %v1807
    %v1809 = vpop.f32.mrb[0].mxu0
    %1810 = vdwg.mxu0
    %v1811 = vmax.f32 %v1733, 0.0
    %v1812 = vmax.f32 %v1738, 0.0
    %v1813 = vmax.f32 %v1743, 0.0
    %v1814 = vmax.f32 %v1748, 0.0
    %v1815 = vmax.f32 %v1753, 0.0
    %v1816 = vmax.f32 %v1758, 0.0
    %v1817 = vmax.f32 %v1763, 0.0
    %v1818 = vmax.f32 %v1768, 0.0
    %v1819 = vmax.f32 %v1773, 0.0
    %v1820 = vmax.f32 %v1778, 0.0
    %v1821 = vmax.f32 %v1783, 0.0
    %v1822 = vmax.f32 %v1788, 0.0
    %v1823 = vmax.f32 %v1793, 0.0
    %v1824 = vmax.f32 %v1798, 0.0
    %v1825 = vmax.f32 %v1803, 0.0
    %v1826 = vmax.f32 %v1808, 0.0
    %v1827 = vmax.f32 %v1392, %v1811
    %v1828 = vmax.f32 %v1393, %v1812
    %v1829 = vmax.f32 %v1394, %v1813
    %v1830 = vmax.f32 %v1395, %v1814
    %v1831 = vmax.f32 %v1396, %v1815
    %v1832 = vmax.f32 %v1397, %v1816
    %v1833 = vmax.f32 %v1398, %v1817
    %v1834 = vmax.f32 %v1399, %v1818
    %v1835 = vmax.f32 %v1400, %v1819
    %v1836 = vmax.f32 %v1401, %v1820
    %v1837 = vmax.f32 %v1402, %v1821
    %v1838 = vmax.f32 %v1403, %v1822
    %v1839 = vmax.f32 %v1404, %v1823
    %v1840 = vmax.f32 %v1405, %v1824
    %v1841 = vmax.f32 %v1406, %v1825
    %v1842 = vmax.f32 %v1407, %v1826
    %v1843 = vld [vmem:[%s3] sm:$0xff]
    %v1844 = vld [vmem:[%s3 + $0x8] sm:$0xff]
    %v1845 = vld [vmem:[%s3 + $0x10] sm:$0xff]
    %v1846 = vld [vmem:[%s3 + $0x18] sm:$0xff]
    %v1847 = vld [vmem:[%s3 + $0x20] sm:$0xff]
    %v1848 = vld [vmem:[%s3 + $0x28] sm:$0xff]
    %v1849 = vld [vmem:[%s3 + $0x30] sm:$0xff]
    %v1850 = vld [vmem:[%s3 + $0x38] sm:$0xff]
    %v1851 = vld [vmem:[%s3 + $0x40] sm:$0xff]
    %v1852 = vld [vmem:[%s3 + $0x48] sm:$0xff]
    %v1853 = vld [vmem:[%s3 + $0x50] sm:$0xff]
    %v1854 = vld [vmem:[%s3 + $0x58] sm:$0xff]
    %v1855 = vld [vmem:[%s3 + $0x60] sm:$0xff]
    %v1856 = vld [vmem:[%s3 + $0x68] sm:$0xff]
    %v1857 = vld [vmem:[%s3 + $0x70] sm:$0xff]
    %v1858 = vld [vmem:[%s3 + $0x78] sm:$0xff]
    %v1859 = vld [vmem:[%s3 + $0x80] sm:$0xff]
    %v1860 = vld [vmem:[%s3 + $0x88] sm:$0xff]
    %v1861 = vld [vmem:[%s3 + $0x90] sm:$0xff]
    %v1862 = vld [vmem:[%s3 + $0x98] sm:$0xff]
    %v1863 = vld [vmem:[%s3 + $0xa0] sm:$0xff]
    %v1864 = vld [vmem:[%s3 + $0xa8] sm:$0xff]
    %v1865 = vld [vmem:[%s3 + $0xb0] sm:$0xff]
    %v1866 = vld [vmem:[%s3 + $0xb8] sm:$0xff]
    %v1867 = vld [vmem:[%s3 + $0xc0] sm:$0x3]
    %v1868 = vld [vmem:[%s3 + $0xc8] sm:$0x3]
    %v1869 = vld [vmem:[%s3 + $0xd0] sm:$0x3]
    %v1870 = vld [vmem:[%s3 + $0xd8] sm:$0x3]
    %s1871 = scalar_lea.vmem %s3, 224
    %v1872 = vld [vmem:[%s1871] sm:$0xff]
    %v1873 = vld [vmem:[%s1871 + $0x8] sm:$0xff]
    %v1874 = vld [vmem:[%s1871 + $0x10] sm:$0xff]
    %v1875 = vld [vmem:[%s1871 + $0x18] sm:$0xff]
    %v1876 = vld [vmem:[%s1871 + $0x20] sm:$0xff]
    %v1877 = vld [vmem:[%s1871 + $0x28] sm:$0xff]
    %v1878 = vld [vmem:[%s1871 + $0x30] sm:$0xff]
    %v1879 = vld [vmem:[%s1871 + $0x38] sm:$0xff]
    %v1880 = vld [vmem:[%s1871 + $0x40] sm:$0xff]
    %v1881 = vld [vmem:[%s1871 + $0x48] sm:$0xff]
    %v1882 = vld [vmem:[%s1871 + $0x50] sm:$0xff]
    %v1883 = vld [vmem:[%s1871 + $0x58] sm:$0xff]
    %v1884 = vld [vmem:[%s1871 + $0x60] sm:$0xff]
    %v1885 = vld [vmem:[%s1871 + $0x68] sm:$0xff]
    %v1886 = vld [vmem:[%s1871 + $0x70] sm:$0xff]
    %v1887 = vld [vmem:[%s1871 + $0x78] sm:$0xff]
    %v1888 = vld [vmem:[%s1871 + $0x80] sm:$0xff]
    %v1889 = vld [vmem:[%s1871 + $0x88] sm:$0xff]
    %v1890 = vld [vmem:[%s1871 + $0x90] sm:$0xff]
    %v1891 = vld [vmem:[%s1871 + $0x98] sm:$0xff]
    %v1892 = vld [vmem:[%s1871 + $0xa0] sm:$0xff]
    %v1893 = vld [vmem:[%s1871 + $0xa8] sm:$0xff]
    %v1894 = vld [vmem:[%s1871 + $0xb0] sm:$0xff]
    %v1895 = vld [vmem:[%s1871 + $0xb8] sm:$0xff]
    %v1896 = vld [vmem:[%s1871 + $0xc0] sm:$0x3]
    %v1897 = vld [vmem:[%s1871 + $0xc8] sm:$0x3]
    %v1898 = vld [vmem:[%s1871 + $0xd0] sm:$0x3]
    %v1899 = vld [vmem:[%s1871 + $0xd8] sm:$0x3]
    %vm1900 = vcmask 408576
    %v1902 = vsel %vm1900, %v1828, 0
    %vm1904 = vcmask 1041408
    %v1906 = vsel %vm1904, %v1896, 0
    %v1909 = vsel %vm1904, %v1897, 0
    %v1912 = vsel %vm1904, %v1898, 0
    %v1915 = vsel %vm1904, %v1899, 0
    %1917 = vmatprep.subr.mxu0 %v1873
    %1918 = vmatpush1.msra.mxu0 %v1872
    %1919 = vmatprep.subr.mxu0 %v1877
    %1920 = vmatpush1.msra.mxu0 %v1876
    %1921 = vmatprep.subr.mxu0 %v1881
    %1922 = vmatpush1.msra.mxu0 %v1880
    %1923 = vmatprep.subr.mxu0 %v1885
    %1924 = vmatpush1.msra.mxu0 %v1884
    %1925 = vmatprep.subr.mxu0 %v1889
    %1926 = vmatpush1.msra.mxu0 %v1888
    %1927 = vmatprep.subr.mxu0 %v1893
    %1928 = vmatpush1.msra.mxu0 %v1892
    %1929 = vmatprep.subr.mxu0 %v1909
    %1930 = vmatpush1.msra.mxu0 %v1906
    %1931 = vmatprep.subr.mxu0 0.0
    %1932 = vmatpush1.msra.mxu0 0.0
    %1933 = vmatprep.subr.mxu0 0.0
    %1934 = vmatpush1.msra.mxu0 0.0
    %1935 = vmatprep.subr.mxu0 0.0
    %1936 = vmatpush1.msra.mxu0 0.0
    %1937 = vmatprep.subr.mxu0 0.0
    %1938 = vmatpush1.msra.mxu0 0.0
    %1939 = vmatprep.subr.mxu0 0.0
    %1940 = vmatpush1.msra.mxu0 0.0
    %1941 = vmatprep.subr.mxu0 0.0
    %1942 = vmatpush1.msra.mxu0 0.0
    %1943 = vmatprep.subr.mxu0 0.0
    %1944 = vmatpush1.msra.mxu0 0.0
    %1945 = vmatprep.subr.mxu0 0.0
    %1946 = vmatpush1.msra.mxu0 0.0
    %1947 = vmatprep.subr.mxu0 0.0
    %1948 = vmatpush1.msra.mxu0 0.0
    %1949 = vmatprep.subr.mxu0 0.0
    %1950 = vmatpush1.msra.mxu0 0.0
    %1951 = vmatprep.subr.mxu0 0.0
    %1952 = vmatpush1.msra.mxu0 0.0
    %1953 = vmatprep.subr.mxu0 0.0
    %1954 = vmatpush1.msra.mxu0 0.0
    %1955 = vmatprep.subr.mxu0 0.0
    %1956 = vmatpush1.msra.mxu0 0.0
    %1957 = vmatprep.subr.mxu0 0.0
    %1958 = vmatpush1.msra.mxu0 0.0
    %1959 = vmatprep.subr.mxu0 0.0
    %1960 = vmatpush1.msra.mxu0 0.0
    %1961 = vmatprep.subr.mxu0 0.0
    %1962 = vmatpush1.msra.mxu0 0.0
    %1963 = vmatprep.subr.mxu0 0.0
    %1964 = vmatpush1.msra.mxu0 0.0
    %1965 = vmatprep.subr.mxu0 0.0
    %1966 = vmatpush1.msra.mxu0 0.0
    %1967 = vmatprep.subr.mxu0 0.0
    %1968 = vmatpush1.msra.mxu0 0.0
    %1969 = vmatprep.subr.mxu0 0.0
    %1970 = vmatpush1.msra.mxu0 0.0
    %1971 = vmatprep.subr.mxu0 0.0
    %1972 = vmatpush1.msra.mxu0 0.0
    %1973 = vmatprep.subr.mxu0 0.0
    %1974 = vmatpush1.msra.mxu0 0.0
    %1975 = vmatprep.subr.mxu0 0.0
    %1976 = vmatpush1.msra.mxu0 0.0
    %1977 = vmatprep.subr.mxu0 0.0
    %1978 = vmatpush1.msra.mxu0 0.0
    %1979 = vmatprep.subr.mxu0 0.0
    %1980 = vmatpush1.msra.mxu0 0.0
    %1981 = vmatprep.mubr.f32.mxu0 0.0
    %1982 = vmatmul.mubr.f32.gmra.mrb[0].mxu0 %v1902
    %v1983 = vpop.f32.mrb[0].mxu0
    %v1984 = vadd.f32 0.0, %v1983
    %v1985 = vpop.f32.mrb[0].mxu0
    %v1986 = vadd.f32 0.0, %v1985
    %1987 = vdwg.mxu0
    %1988 = vmatprep.subr.mxu0 %v1875
    %1989 = vmatpush1.msra.mxu0 %v1874
    %1990 = vmatprep.subr.mxu0 %v1879
    %1991 = vmatpush1.msra.mxu0 %v1878
    %1992 = vmatprep.subr.mxu0 %v1883
    %1993 = vmatpush1.msra.mxu0 %v1882
    %1994 = vmatprep.subr.mxu0 %v1887
    %1995 = vmatpush1.msra.mxu0 %v1886
    %1996 = vmatprep.subr.mxu0 %v1891
    %1997 = vmatpush1.msra.mxu0 %v1890
    %1998 = vmatprep.subr.mxu0 %v1895
    %1999 = vmatpush1.msra.mxu0 %v1894
    %2000 = vmatprep.subr.mxu0 %v1915
    %2001 = vmatpush1.msra.mxu0 %v1912
    %2002 = vmatprep.subr.mxu0 0.0
    %2003 = vmatpush1.msra.mxu0 0.0
    %2004 = vmatprep.subr.mxu0 0.0
    %2005 = vmatpush1.msra.mxu0 0.0
    %2006 = vmatprep.subr.mxu0 0.0
    %2007 = vmatpush1.msra.mxu0 0.0
    %2008 = vmatprep.subr.mxu0 0.0
    %2009 = vmatpush1.msra.mxu0 0.0
    %2010 = vmatprep.subr.mxu0 0.0
    %2011 = vmatpush1.msra.mxu0 0.0
    %2012 = vmatprep.subr.mxu0 0.0
    %2013 = vmatpush1.msra.mxu0 0.0
    %2014 = vmatprep.subr.mxu0 0.0
    %2015 = vmatpush1.msra.mxu0 0.0
    %2016 = vmatprep.subr.mxu0 0.0
    %2017 = vmatpush1.msra.mxu0 0.0
    %2018 = vmatprep.subr.mxu0 0.0
    %2019 = vmatpush1.msra.mxu0 0.0
    %2020 = vmatprep.subr.mxu0 0.0
    %2021 = vmatpush1.msra.mxu0 0.0
    %2022 = vmatprep.subr.mxu0 0.0
    %2023 = vmatpush1.msra.mxu0 0.0
    %2024 = vmatprep.subr.mxu0 0.0
    %2025 = vmatpush1.msra.mxu0 0.0
    %2026 = vmatprep.subr.mxu0 0.0
    %2027 = vmatpush1.msra.mxu0 0.0
    %2028 = vmatprep.subr.mxu0 0.0
    %2029 = vmatpush1.msra.mxu0 0.0
    %2030 = vmatprep.subr.mxu0 0.0
    %2031 = vmatpush1.msra.mxu0 0.0
    %2032 = vmatprep.subr.mxu0 0.0
    %2033 = vmatpush1.msra.mxu0 0.0
    %2034 = vmatprep.subr.mxu0 0.0
    %2035 = vmatpush1.msra.mxu0 0.0
    %2036 = vmatprep.subr.mxu0 0.0
    %2037 = vmatpush1.msra.mxu0 0.0
    %2038 = vmatprep.subr.mxu0 0.0
    %2039 = vmatpush1.msra.mxu0 0.0
    %2040 = vmatprep.subr.mxu0 0.0
    %2041 = vmatpush1.msra.mxu0 0.0
    %2042 = vmatprep.subr.mxu0 0.0
    %2043 = vmatpush1.msra.mxu0 0.0
    %2044 = vmatprep.subr.mxu0 0.0
    %2045 = vmatpush1.msra.mxu0 0.0
    %2046 = vmatprep.subr.mxu0 0.0
    %2047 = vmatpush1.msra.mxu0 0.0
    %2048 = vmatprep.subr.mxu0 0.0
    %2049 = vmatpush1.msra.mxu0 0.0
    %2050 = vmatprep.subr.mxu0 0.0
    %2051 = vmatpush1.msra.mxu0 0.0
    %2052 = vmatprep.mubr.f32.mxu0 0.0
    %2053 = vmatmul.mubr.f32.gmra.mrb[0].mxu0 %v1902
    %v2054 = vpop.f32.mrb[0].mxu0
    %v2055 = vadd.f32 0.0, %v2054
    %v2056 = vpop.f32.mrb[0].mxu0
    %v2057 = vadd.f32 0.0, %v2056
    %2058 = vdwg.mxu0
    %v2060 = vsel %vm1900, %v1827, 0
    %v2063 = vsel %vm1904, %v1867, 0
    %v2066 = vsel %vm1904, %v1868, 0
    %v2069 = vsel %vm1904, %v1869, 0
    %v2072 = vsel %vm1904, %v1870, 0
    %2074 = vmatprep.subr.mxu0 %v1844
    %2075 = vmatpush1.msra.mxu0 %v1843
    %2076 = vmatprep.subr.mxu0 %v1848
    %2077 = vmatpush1.msra.mxu0 %v1847
    %2078 = vmatprep.subr.mxu0 %v1852
    %2079 = vmatpush1.msra.mxu0 %v1851
    %2080 = vmatprep.subr.mxu0 %v1856
    %2081 = vmatpush1.msra.mxu0 %v1855
    %2082 = vmatprep.subr.mxu0 %v1860
    %2083 = vmatpush1.msra.mxu0 %v1859
    %2084 = vmatprep.subr.mxu0 %v1864
    %2085 = vmatpush1.msra.mxu0 %v1863
    %2086 = vmatprep.subr.mxu0 %v2066
    %2087 = vmatpush1.msra.mxu0 %v2063
    %2088 = vmatprep.subr.mxu0 0.0
    %2089 = vmatpush1.msra.mxu0 0.0
    %2090 = vmatprep.subr.mxu0 0.0
    %2091 = vmatpush1.msra.mxu0 0.0
    %2092 = vmatprep.subr.mxu0 0.0
    %2093 = vmatpush1.msra.mxu0 0.0
    %2094 = vmatprep.subr.mxu0 0.0
    %2095 = vmatpush1.msra.mxu0 0.0
    %2096 = vmatprep.subr.mxu0 0.0
    %2097 = vmatpush1.msra.mxu0 0.0
    %2098 = vmatprep.subr.mxu0 0.0
    %2099 = vmatpush1.msra.mxu0 0.0
    %2100 = vmatprep.subr.mxu0 0.0
    %2101 = vmatpush1.msra.mxu0 0.0
    %2102 = vmatprep.subr.mxu0 0.0
    %2103 = vmatpush1.msra.mxu0 0.0
    %2104 = vmatprep.subr.mxu0 0.0
    %2105 = vmatpush1.msra.mxu0 0.0
    %2106 = vmatprep.subr.mxu0 0.0
    %2107 = vmatpush1.msra.mxu0 0.0
    %2108 = vmatprep.subr.mxu0 0.0
    %2109 = vmatpush1.msra.mxu0 0.0
    %2110 = vmatprep.subr.mxu0 0.0
    %2111 = vmatpush1.msra.mxu0 0.0
    %2112 = vmatprep.subr.mxu0 0.0
    %2113 = vmatpush1.msra.mxu0 0.0
    %2114 = vmatprep.subr.mxu0 0.0
    %2115 = vmatpush1.msra.mxu0 0.0
    %2116 = vmatprep.subr.mxu0 0.0
    %2117 = vmatpush1.msra.mxu0 0.0
    %2118 = vmatprep.subr.mxu0 0.0
    %2119 = vmatpush1.msra.mxu0 0.0
    %2120 = vmatprep.subr.mxu0 0.0
    %2121 = vmatpush1.msra.mxu0 0.0
    %2122 = vmatprep.subr.mxu0 0.0
    %2123 = vmatpush1.msra.mxu0 0.0
    %2124 = vmatprep.subr.mxu0 0.0
    %2125 = vmatpush1.msra.mxu0 0.0
    %2126 = vmatprep.subr.mxu0 0.0
    %2127 = vmatpush1.msra.mxu0 0.0
    %2128 = vmatprep.subr.mxu0 0.0
    %2129 = vmatpush1.msra.mxu0 0.0
    %2130 = vmatprep.subr.mxu0 0.0
    %2131 = vmatpush1.msra.mxu0 0.0
    %2132 = vmatprep.subr.mxu0 0.0
    %2133 = vmatpush1.msra.mxu0 0.0
    %2134 = vmatprep.subr.mxu0 0.0
    %2135 = vmatpush1.msra.mxu0 0.0
    %2136 = vmatprep.subr.mxu0 0.0
    %2137 = vmatpush1.msra.mxu0 0.0
    %2138 = vmatprep.mubr.f32.mxu0 0.0
    %2139 = vmatmul.mubr.f32.gmra.mrb[0].mxu0 %v2060
    %v2140 = vpop.f32.mrb[0].mxu0
    %v2141 = vadd.f32 %v1984, %v2140
    %v2142 = vpop.f32.mrb[0].mxu0
    %v2143 = vadd.f32 %v1986, %v2142
    %2144 = vdwg.mxu0
    %2145 = vmatprep.subr.mxu0 %v1846
    %2146 = vmatpush1.msra.mxu0 %v1845
    %2147 = vmatprep.subr.mxu0 %v1850
    %2148 = vmatpush1.msra.mxu0 %v1849
    %2149 = vmatprep.subr.mxu0 %v1854
    %2150 = vmatpush1.msra.mxu0 %v1853
    %2151 = vmatprep.subr.mxu0 %v1858
    %2152 = vmatpush1.msra.mxu0 %v1857
    %2153 = vmatprep.subr.mxu0 %v1862
    %2154 = vmatpush1.msra.mxu0 %v1861
    %2155 = vmatprep.subr.mxu0 %v1866
    %2156 = vmatpush1.msra.mxu0 %v1865
    %2157 = vmatprep.subr.mxu0 %v2072
    %2158 = vmatpush1.msra.mxu0 %v2069
    %2159 = vmatprep.subr.mxu0 0.0
    %2160 = vmatpush1.msra.mxu0 0.0
    %2161 = vmatprep.subr.mxu0 0.0
    %2162 = vmatpush1.msra.mxu0 0.0
    %2163 = vmatprep.subr.mxu0 0.0
    %2164 = vmatpush1.msra.mxu0 0.0
    %2165 = vmatprep.subr.mxu0 0.0
    %2166 = vmatpush1.msra.mxu0 0.0
    %2167 = vmatprep.subr.mxu0 0.0
    %2168 = vmatpush1.msra.mxu0 0.0
    %2169 = vmatprep.subr.mxu0 0.0
    %2170 = vmatpush1.msra.mxu0 0.0
    %2171 = vmatprep.subr.mxu0 0.0
    %2172 = vmatpush1.msra.mxu0 0.0
    %2173 = vmatprep.subr.mxu0 0.0
    %2174 = vmatpush1.msra.mxu0 0.0
    %2175 = vmatprep.subr.mxu0 0.0
    %2176 = vmatpush1.msra.mxu0 0.0
    %2177 = vmatprep.subr.mxu0 0.0
    %2178 = vmatpush1.msra.mxu0 0.0
    %2179 = vmatprep.subr.mxu0 0.0
    %2180 = vmatpush1.msra.mxu0 0.0
    %2181 = vmatprep.subr.mxu0 0.0
    %2182 = vmatpush1.msra.mxu0 0.0
    %2183 = vmatprep.subr.mxu0 0.0
    %2184 = vmatpush1.msra.mxu0 0.0
    %2185 = vmatprep.subr.mxu0 0.0
    %2186 = vmatpush1.msra.mxu0 0.0
    %2187 = vmatprep.subr.mxu0 0.0
    %2188 = vmatpush1.msra.mxu0 0.0
    %2189 = vmatprep.subr.mxu0 0.0
    %2190 = vmatpush1.msra.mxu0 0.0
    %2191 = vmatprep.subr.mxu0 0.0
    %2192 = vmatpush1.msra.mxu0 0.0
    %2193 = vmatprep.subr.mxu0 0.0
    %2194 = vmatpush1.msra.mxu0 0.0
    %2195 = vmatprep.subr.mxu0 0.0
    %2196 = vmatpush1.msra.mxu0 0.0
    %2197 = vmatprep.subr.mxu0 0.0
    %2198 = vmatpush1.msra.mxu0 0.0
    %2199 = vmatprep.subr.mxu0 0.0
    %2200 = vmatpush1.msra.mxu0 0.0
    %2201 = vmatprep.subr.mxu0 0.0
    %2202 = vmatpush1.msra.mxu0 0.0
    %2203 = vmatprep.subr.mxu0 0.0
    %2204 = vmatpush1.msra.mxu0 0.0
    %2205 = vmatprep.subr.mxu0 0.0
    %2206 = vmatpush1.msra.mxu0 0.0
    %2207 = vmatprep.subr.mxu0 0.0
    %2208 = vmatpush1.msra.mxu0 0.0
    %2209 = vmatprep.mubr.f32.mxu0 0.0
    %2210 = vmatmul.mubr.f32.gmra.mrb[0].mxu0 %v2060
    %v2211 = vpop.f32.mrb[0].mxu0
    %v2212 = vadd.f32 %v2055, %v2211
    %v2213 = vpop.f32.mrb[0].mxu0
    %v2214 = vadd.f32 %v2057, %v2213
    %2215 = vdwg.mxu0
    %s2216 = scalar_lea.vmem %s3, 448
    %v2217 = vld [vmem:[%s2216] sm:$0xff]
    %v2218 = vld [vmem:[%s2216 + $0x8] sm:$0xff]
    %v2219 = vld [vmem:[%s2216 + $0x10] sm:$0xff]
    %v2220 = vld [vmem:[%s2216 + $0x18] sm:$0xff]
    %v2221 = vld [vmem:[%s2216 + $0x20] sm:$0xff]
    %v2222 = vld [vmem:[%s2216 + $0x28] sm:$0xff]
    %v2223 = vld [vmem:[%s2216 + $0x30] sm:$0xff]
    %v2224 = vld [vmem:[%s2216 + $0x38] sm:$0xff]
    %v2225 = vld [vmem:[%s2216 + $0x40] sm:$0xff]
    %v2226 = vld [vmem:[%s2216 + $0x48] sm:$0xff]
    %v2227 = vld [vmem:[%s2216 + $0x50] sm:$0xff]
    %v2228 = vld [vmem:[%s2216 + $0x58] sm:$0xff]
    %v2229 = vld [vmem:[%s2216 + $0x60] sm:$0xff]
    %v2230 = vld [vmem:[%s2216 + $0x68] sm:$0xff]
    %v2231 = vld [vmem:[%s2216 + $0x70] sm:$0xff]
    %v2232 = vld [vmem:[%s2216 + $0x78] sm:$0xff]
    %v2233 = vld [vmem:[%s2216 + $0x80] sm:$0xff]
    %v2234 = vld [vmem:[%s2216 + $0x88] sm:$0xff]
    %v2235 = vld [vmem:[%s2216 + $0x90] sm:$0xff]
    %v2236 = vld [vmem:[%s2216 + $0x98] sm:$0xff]
    %v2237 = vld [vmem:[%s2216 + $0xa0] sm:$0xff]
    %v2238 = vld [vmem:[%s2216 + $0xa8] sm:$0xff]
    %v2239 = vld [vmem:[%s2216 + $0xb0] sm:$0xff]
    %v2240 = vld [vmem:[%s2216 + $0xb8] sm:$0xff]
    %v2241 = vld [vmem:[%s2216 + $0xc0] sm:$0x3]
    %v2242 = vld [vmem:[%s2216 + $0xc8] sm:$0x3]
    %v2243 = vld [vmem:[%s2216 + $0xd0] sm:$0x3]
    %v2244 = vld [vmem:[%s2216 + $0xd8] sm:$0x3]
    %v2246 = vsel %vm1900, %v1829, 0
    %v2249 = vsel %vm1904, %v2241, 0
    %v2252 = vsel %vm1904, %v2242, 0
    %v2255 = vsel %vm1904, %v2243, 0
    %v2258 = vsel %vm1904, %v2244, 0
    %2260 = vmatprep.subr.mxu0 %v2218
    %2261 = vmatpush1.msra.mxu0 %v2217
    %2262 = vmatprep.subr.mxu0 %v2222
    %2263 = vmatpush1.msra.mxu0 %v2221
    %2264 = vmatprep.subr.mxu0 %v2226
    %2265 = vmatpush1.msra.mxu0 %v2225
    %2266 = vmatprep.subr.mxu0 %v2230
    %2267 = vmatpush1.msra.mxu0 %v2229
    %2268 = vmatprep.subr.mxu0 %v2234
    %2269 = vmatpush1.msra.mxu0 %v2233
    %2270 = vmatprep.subr.mxu0 %v2238
    %2271 = vmatpush1.msra.mxu0 %v2237
    %2272 = vmatprep.subr.mxu0 %v2252
    %2273 = vmatpush1.msra.mxu0 %v2249
    %2274 = vmatprep.subr.mxu0 0.0
    %2275 = vmatpush1.msra.mxu0 0.0
    %2276 = vmatprep.subr.mxu0 0.0
    %2277 = vmatpush1.msra.mxu0 0.0
    %2278 = vmatprep.subr.mxu0 0.0
    %2279 = vmatpush1.msra.mxu0 0.0
    %2280 = vmatprep.subr.mxu0 0.0
    %2281 = vmatpush1.msra.mxu0 0.0
    %2282 = vmatprep.subr.mxu0 0.0
    %2283 = vmatpush1.msra.mxu0 0.0
    %2284 = vmatprep.subr.mxu0 0.0
    %2285 = vmatpush1.msra.mxu0 0.0
    %2286 = vmatprep.subr.mxu0 0.0
    %2287 = vmatpush1.msra.mxu0 0.0
    %2288 = vmatprep.subr.mxu0 0.0
    %2289 = vmatpush1.msra.mxu0 0.0
    %2290 = vmatprep.subr.mxu0 0.0
    %2291 = vmatpush1.msra.mxu0 0.0
    %2292 = vmatprep.subr.mxu0 0.0
    %2293 = vmatpush1.msra.mxu0 0.0
    %2294 = vmatprep.subr.mxu0 0.0
    %2295 = vmatpush1.msra.mxu0 0.0
    %2296 = vmatprep.subr.mxu0 0.0
    %2297 = vmatpush1.msra.mxu0 0.0
    %2298 = vmatprep.subr.mxu0 0.0
    %2299 = vmatpush1.msra.mxu0 0.0
    %2300 = vmatprep.subr.mxu0 0.0
    %2301 = vmatpush1.msra.mxu0 0.0
    %2302 = vmatprep.subr.mxu0 0.0
    %2303 = vmatpush1.msra.mxu0 0.0
    %2304 = vmatprep.subr.mxu0 0.0
    %2305 = vmatpush1.msra.mxu0 0.0
    %2306 = vmatprep.subr.mxu0 0.0
    %2307 = vmatpush1.msra.mxu0 0.0
    %2308 = vmatprep.subr.mxu0 0.0
    %2309 = vmatpush1.msra.mxu0 0.0
    %2310 = vmatprep.subr.mxu0 0.0
    %2311 = vmatpush1.msra.mxu0 0.0
    %2312 = vmatprep.subr.mxu0 0.0
    %2313 = vmatpush1.msra.mxu0 0.0
    %2314 = vmatprep.subr.mxu0 0.0
    %2315 = vmatpush1.msra.mxu0 0.0
    %2316 = vmatprep.subr.mxu0 0.0
    %2317 = vmatpush1.msra.mxu0 0.0
    %2318 = vmatprep.subr.mxu0 0.0
    %2319 = vmatpush1.msra.mxu0 0.0
    %2320 = vmatprep.subr.mxu0 0.0
    %2321 = vmatpush1.msra.mxu0 0.0
    %2322 = vmatprep.subr.mxu0 0.0
    %2323 = vmatpush1.msra.mxu0 0.0
    %2324 = vmatprep.mubr.f32.mxu0 0.0
    %2325 = vmatmul.mubr.f32.gmra.mrb[0].mxu0 %v2246
    %v2326 = vpop.f32.mrb[0].mxu0
    %v2327 = vadd.f32 0.0, %v2326
    %v2328 = vpop.f32.mrb[0].mxu0
    %v2329 = vadd.f32 0.0, %v2328
    %2330 = vdwg.mxu0
    %2331 = vmatprep.subr.mxu0 %v2220
    %2332 = vmatpush1.msra.mxu0 %v2219
    %2333 = vmatprep.subr.mxu0 %v2224
    %2334 = vmatpush1.msra.mxu0 %v2223
    %2335 = vmatprep.subr.mxu0 %v2228
    %2336 = vmatpush1.msra.mxu0 %v2227
    %2337 = vmatprep.subr.mxu0 %v2232
    %2338 = vmatpush1.msra.mxu0 %v2231
    %2339 = vmatprep.subr.mxu0 %v2236
    %2340 = vmatpush1.msra.mxu0 %v2235
    %2341 = vmatprep.subr.mxu0 %v2240
    %2342 = vmatpush1.msra.mxu0 %v2239
    %2343 = vmatprep.subr.mxu0 %v2258
    %2344 = vmatpush1.msra.mxu0 %v2255
    %2345 = vmatprep.subr.mxu0 0.0
    %2346 = vmatpush1.msra.mxu0 0.0
    %2347 = vmatprep.subr.mxu0 0.0
    %2348 = vmatpush1.msra.mxu0 0.0
    %2349 = vmatprep.subr.mxu0 0.0
    %2350 = vmatpush1.msra.mxu0 0.0
    %2351 = vmatprep.subr.mxu0 0.0
    %2352 = vmatpush1.msra.mxu0 0.0
    %2353 = vmatprep.subr.mxu0 0.0
    %2354 = vmatpush1.msra.mxu0 0.0
    %2355 = vmatprep.subr.mxu0 0.0
    %2356 = vmatpush1.msra.mxu0 0.0
    %2357 = vmatprep.subr.mxu0 0.0
    %2358 = vmatpush1.msra.mxu0 0.0
    %2359 = vmatprep.subr.mxu0 0.0
    %2360 = vmatpush1.msra.mxu0 0.0
    %2361 = vmatprep.subr.mxu0 0.0
    %2362 = vmatpush1.msra.mxu0 0.0
    %2363 = vmatprep.subr.mxu0 0.0
    %2364 = vmatpush1.msra.mxu0 0.0
    %2365 = vmatprep.subr.mxu0 0.0
    %2366 = vmatpush1.msra.mxu0 0.0
    %2367 = vmatprep.subr.mxu0 0.0
    %2368 = vmatpush1.msra.mxu0 0.0
    %2369 = vmatprep.subr.mxu0 0.0
    %2370 = vmatpush1.msra.mxu0 0.0
    %2371 = vmatprep.subr.mxu0 0.0
    %2372 = vmatpush1.msra.mxu0 0.0
    %2373 = vmatprep.subr.mxu0 0.0
    %2374 = vmatpush1.msra.mxu0 0.0
    %2375 = vmatprep.subr.mxu0 0.0
    %2376 = vmatpush1.msra.mxu0 0.0
    %2377 = vmatprep.subr.mxu0 0.0
    %2378 = vmatpush1.msra.mxu0 0.0
    %2379 = vmatprep.subr.mxu0 0.0
    %2380 = vmatpush1.msra.mxu0 0.0
    %2381 = vmatprep.subr.mxu0 0.0
    %2382 = vmatpush1.msra.mxu0 0.0
    %2383 = vmatprep.subr.mxu0 0.0
    %2384 = vmatpush1.msra.mxu0 0.0
    %2385 = vmatprep.subr.mxu0 0.0
    %2386 = vmatpush1.msra.mxu0 0.0
    %2387 = vmatprep.subr.mxu0 0.0
    %2388 = vmatpush1.msra.mxu0 0.0
    %2389 = vmatprep.subr.mxu0 0.0
    %2390 = vmatpush1.msra.mxu0 0.0
    %2391 = vmatprep.subr.mxu0 0.0
    %2392 = vmatpush1.msra.mxu0 0.0
    %2393 = vmatprep.subr.mxu0 0.0
    %2394 = vmatpush1.msra.mxu0 0.0
    %2395 = vmatprep.mubr.f32.mxu0 0.0
    %2396 = vmatmul.mubr.f32.gmra.mrb[0].mxu0 %v2246
    %v2397 = vpop.f32.mrb[0].mxu0
    %v2398 = vadd.f32 0.0, %v2397
    %v2399 = vpop.f32.mrb[0].mxu0
    %v2400 = vadd.f32 0.0, %v2399
    %2401 = vdwg.mxu0
    %v2402 = vadd.f32 %v2141, %v2327
    %v2403 = vadd.f32 %v2143, %v2329
    %v2404 = vadd.f32 %v2212, %v2398
    %v2405 = vadd.f32 %v2214, %v2400
    %s2406 = scalar_lea.vmem %s3, 672
    %v2407 = vld [vmem:[%s2406] sm:$0xff]
    %v2408 = vld [vmem:[%s2406 + $0x8] sm:$0xff]
    %v2409 = vld [vmem:[%s2406 + $0x10] sm:$0xff]
    %v2410 = vld [vmem:[%s2406 + $0x18] sm:$0xff]
    %v2411 = vld [vmem:[%s2406 + $0x20] sm:$0xff]
    %v2412 = vld [vmem:[%s2406 + $0x28] sm:$0xff]
    %v2413 = vld [vmem:[%s2406 + $0x30] sm:$0xff]
    %v2414 = vld [vmem:[%s2406 + $0x38] sm:$0xff]
    %v2415 = vld [vmem:[%s2406 + $0x40] sm:$0xff]
    %v2416 = vld [vmem:[%s2406 + $0x48] sm:$0xff]
    %v2417 = vld [vmem:[%s2406 + $0x50] sm:$0xff]
    %v2418 = vld [vmem:[%s2406 + $0x58] sm:$0xff]
    %v2419 = vld [vmem:[%s2406 + $0x60] sm:$0xff]
    %v2420 = vld [vmem:[%s2406 + $0x68] sm:$0xff]
    %v2421 = vld [vmem:[%s2406 + $0x70] sm:$0xff]
    %v2422 = vld [vmem:[%s2406 + $0x78] sm:$0xff]
    %v2423 = vld [vmem:[%s2406 + $0x80] sm:$0xff]
    %v2424 = vld [vmem:[%s2406 + $0x88] sm:$0xff]
    %v2425 = vld [vmem:[%s2406 + $0x90] sm:$0xff]
    %v2426 = vld [vmem:[%s2406 + $0x98] sm:$0xff]
    %v2427 = vld [vmem:[%s2406 + $0xa0] sm:$0xff]
    %v2428 = vld [vmem:[%s2406 + $0xa8] sm:$0xff]
    %v2429 = vld [vmem:[%s2406 + $0xb0] sm:$0xff]
    %v2430 = vld [vmem:[%s2406 + $0xb8] sm:$0xff]
    %v2431 = vld [vmem:[%s2406 + $0xc0] sm:$0x3]
    %v2432 = vld [vmem:[%s2406 + $0xc8] sm:$0x3]
    %v2433 = vld [vmem:[%s2406 + $0xd0] sm:$0x3]
    %v2434 = vld [vmem:[%s2406 + $0xd8] sm:$0x3]
    %v2436 = vsel %vm1900, %v1830, 0
    %v2439 = vsel %vm1904, %v2431, 0
    %v2442 = vsel %vm1904, %v2432, 0
    %v2445 = vsel %vm1904, %v2433, 0
    %v2448 = vsel %vm1904, %v2434, 0
    %2450 = vmatprep.subr.mxu0 %v2408
    %2451 = vmatpush1.msra.mxu0 %v2407
    %2452 = vmatprep.subr.mxu0 %v2412
    %2453 = vmatpush1.msra.mxu0 %v2411
    %2454 = vmatprep.subr.mxu0 %v2416
    %2455 = vmatpush1.msra.mxu0 %v2415
    %2456 = vmatprep.subr.mxu0 %v2420
    %2457 = vmatpush1.msra.mxu0 %v2419
    %2458 = vmatprep.subr.mxu0 %v2424
    %2459 = vmatpush1.msra.mxu0 %v2423
    %2460 = vmatprep.subr.mxu0 %v2428
    %2461 = vmatpush1.msra.mxu0 %v2427
    %2462 = vmatprep.subr.mxu0 %v2442
    %2463 = vmatpush1.msra.mxu0 %v2439
    %2464 = vmatprep.subr.mxu0 0.0
    %2465 = vmatpush1.msra.mxu0 0.0
    %2466 = vmatprep.subr.mxu0 0.0
    %2467 = vmatpush1.msra.mxu0 0.0
    %2468 = vmatprep.subr.mxu0 0.0
    %2469 = vmatpush1.msra.mxu0 0.0
    %2470 = vmatprep.subr.mxu0 0.0
    %2471 = vmatpush1.msra.mxu0 0.0
    %2472 = vmatprep.subr.mxu0 0.0
    %2473 = vmatpush1.msra.mxu0 0.0
    %2474 = vmatprep.subr.mxu0 0.0
    %2475 = vmatpush1.msra.mxu0 0.0
    %2476 = vmatprep.subr.mxu0 0.0
    %2477 = vmatpush1.msra.mxu0 0.0
    %2478 = vmatprep.subr.mxu0 0.0
    %2479 = vmatpush1.msra.mxu0 0.0
    %2480 = vmatprep.subr.mxu0 0.0
    %2481 = vmatpush1.msra.mxu0 0.0
    %2482 = vmatprep.subr.mxu0 0.0
    %2483 = vmatpush1.msra.mxu0 0.0
    %2484 = vmatprep.subr.mxu0 0.0
    %2485 = vmatpush1.msra.mxu0 0.0
    %2486 = vmatprep.subr.mxu0 0.0
    %2487 = vmatpush1.msra.mxu0 0.0
    %2488 = vmatprep.subr.mxu0 0.0
    %2489 = vmatpush1.msra.mxu0 0.0
    %2490 = vmatprep.subr.mxu0 0.0
    %2491 = vmatpush1.msra.mxu0 0.0
    %2492 = vmatprep.subr.mxu0 0.0
    %2493 = vmatpush1.msra.mxu0 0.0
    %2494 = vmatprep.subr.mxu0 0.0
    %2495 = vmatpush1.msra.mxu0 0.0
    %2496 = vmatprep.subr.mxu0 0.0
    %2497 = vmatpush1.msra.mxu0 0.0
    %2498 = vmatprep.subr.mxu0 0.0
    %2499 = vmatpush1.msra.mxu0 0.0
    %2500 = vmatprep.subr.mxu0 0.0
    %2501 = vmatpush1.msra.mxu0 0.0
    %2502 = vmatprep.subr.mxu0 0.0
    %2503 = vmatpush1.msra.mxu0 0.0
    %2504 = vmatprep.subr.mxu0 0.0
    %2505 = vmatpush1.msra.mxu0 0.0
    %2506 = vmatprep.subr.mxu0 0.0
    %2507 = vmatpush1.msra.mxu0 0.0
    %2508 = vmatprep.subr.mxu0 0.0
    %2509 = vmatpush1.msra.mxu0 0.0
    %2510 = vmatprep.subr.mxu0 0.0
    %2511 = vmatpush1.msra.mxu0 0.0
    %2512 = vmatprep.subr.mxu0 0.0
    %2513 = vmatpush1.msra.mxu0 0.0
    %2514 = vmatprep.mubr.f32.mxu0 0.0
    %2515 = vmatmul.mubr.f32.gmra.mrb[0].mxu0 %v2436
    %v2516 = vpop.f32.mrb[0].mxu0
    %v2517 = vadd.f32 0.0, %v2516
    %v2518 = vpop.f32.mrb[0].mxu0
    %v2519 = vadd.f32 0.0, %v2518
    %2520 = vdwg.mxu0
    %2521 = vmatprep.subr.mxu0 %v2410
    %2522 = vmatpush1.msra.mxu0 %v2409
    %2523 = vmatprep.subr.mxu0 %v2414
    %2524 = vmatpush1.msra.mxu0 %v2413
    %2525 = vmatprep.subr.mxu0 %v2418
    %2526 = vmatpush1.msra.mxu0 %v2417
    %2527 = vmatprep.subr.mxu0 %v2422
    %2528 = vmatpush1.msra.mxu0 %v2421
    %2529 = vmatprep.subr.mxu0 %v2426
    %2530 = vmatpush1.msra.mxu0 %v2425
    %2531 = vmatprep.subr.mxu0 %v2430
    %2532 = vmatpush1.msra.mxu0 %v2429
    %2533 = vmatprep.subr.mxu0 %v2448
    %2534 = vmatpush1.msra.mxu0 %v2445
    %2535 = vmatprep.subr.mxu0 0.0
    %2536 = vmatpush1.msra.mxu0 0.0
    %2537 = vmatprep.subr.mxu0 0.0
    %2538 = vmatpush1.msra.mxu0 0.0
    %2539 = vmatprep.subr.mxu0 0.0
    %2540 = vmatpush1.msra.mxu0 0.0
    %2541 = vmatprep.subr.mxu0 0.0
    %2542 = vmatpush1.msra.mxu0 0.0
    %2543 = vmatprep.subr.mxu0 0.0
    %2544 = vmatpush1.msra.mxu0 0.0
    %2545 = vmatprep.subr.mxu0 0.0
    %2546 = vmatpush1.msra.mxu0 0.0
    %2547 = vmatprep.subr.mxu0 0.0
    %2548 = vmatpush1.msra.mxu0 0.0
    %2549 = vmatprep.subr.mxu0 0.0
    %2550 = vmatpush1.msra.mxu0 0.0
    %2551 = vmatprep.subr.mxu0 0.0
    %2552 = vmatpush1.msra.mxu0 0.0
    %2553 = vmatprep.subr.mxu0 0.0
    %2554 = vmatpush1.msra.mxu0 0.0
    %2555 = vmatprep.subr.mxu0 0.0
    %2556 = vmatpush1.msra.mxu0 0.0
    %2557 = vmatprep.subr.mxu0 0.0
    %2558 = vmatpush1.msra.mxu0 0.0
    %2559 = vmatprep.subr.mxu0 0.0
    %2560 = vmatpush1.msra.mxu0 0.0
    %2561 = vmatprep.subr.mxu0 0.0
    %2562 = vmatpush1.msra.mxu0 0.0
    %2563 = vmatprep.subr.mxu0 0.0
    %2564 = vmatpush1.msra.mxu0 0.0
    %2565 = vmatprep.subr.mxu0 0.0
    %2566 = vmatpush1.msra.mxu0 0.0
    %2567 = vmatprep.subr.mxu0 0.0
    %2568 = vmatpush1.msra.mxu0 0.0
    %2569 = vmatprep.subr.mxu0 0.0
    %2570 = vmatpush1.msra.mxu0 0.0
    %2571 = vmatprep.subr.mxu0 0.0
    %2572 = vmatpush1.msra.mxu0 0.0
    %2573 = vmatprep.subr.mxu0 0.0
    %2574 = vmatpush1.msra.mxu0 0.0
    %2575 = vmatprep.subr.mxu0 0.0
    %2576 = vmatpush1.msra.mxu0 0.0
    %2577 = vmatprep.subr.mxu0 0.0
    %2578 = vmatpush1.msra.mxu0 0.0
    %2579 = vmatprep.subr.mxu0 0.0
    %2580 = vmatpush1.msra.mxu0 0.0
    %2581 = vmatprep.subr.mxu0 0.0
    %2582 = vmatpush1.msra.mxu0 0.0
    %2583 = vmatprep.subr.mxu0 0.0
    %2584 = vmatpush1.msra.mxu0 0.0
    %2585 = vmatprep.mubr.f32.mxu0 0.0
    %2586 = vmatmul.mubr.f32.gmra.mrb[0].mxu0 %v2436
    %v2587 = vpop.f32.mrb[0].mxu0
    %v2588 = vadd.f32 0.0, %v2587
    %v2589 = vpop.f32.mrb[0].mxu0
    %v2590 = vadd.f32 0.0, %v2589
    %2591 = vdwg.mxu0
    %v2592 = vadd.f32 %v2402, %v2517
    %v2593 = vadd.f32 %v2403, %v2519
    %v2594 = vadd.f32 %v2404, %v2588
    %v2595 = vadd.f32 %v2405, %v2590
    %s2596 = scalar_lea.vmem %s3, 896
    %v2597 = vld [vmem:[%s2596] sm:$0xff]
    %v2598 = vld [vmem:[%s2596 + $0x8] sm:$0xff]
    %v2599 = vld [vmem:[%s2596 + $0x10] sm:$0xff]
    %v2600 = vld [vmem:[%s2596 + $0x18] sm:$0xff]
    %v2601 = vld [vmem:[%s2596 + $0x20] sm:$0xff]
    %v2602 = vld [vmem:[%s2596 + $0x28] sm:$0xff]
    %v2603 = vld [vmem:[%s2596 + $0x30] sm:$0xff]
    %v2604 = vld [vmem:[%s2596 + $0x38] sm:$0xff]
    %v2605 = vld [vmem:[%s2596 + $0x40] sm:$0xff]
    %v2606 = vld [vmem:[%s2596 + $0x48] sm:$0xff]
    %v2607 = vld [vmem:[%s2596 + $0x50] sm:$0xff]
    %v2608 = vld [vmem:[%s2596 + $0x58] sm:$0xff]
    %v2609 = vld [vmem:[%s2596 + $0x60] sm:$0xff]
    %v2610 = vld [vmem:[%s2596 + $0x68] sm:$0xff]
    %v2611 = vld [vmem:[%s2596 + $0x70] sm:$0xff]
    %v2612 = vld [vmem:[%s2596 + $0x78] sm:$0xff]
    %v2613 = vld [vmem:[%s2596 + $0x80] sm:$0xff]
    %v2614 = vld [vmem:[%s2596 + $0x88] sm:$0xff]
    %v2615 = vld [vmem:[%s2596 + $0x90] sm:$0xff]
    %v2616 = vld [vmem:[%s2596 + $0x98] sm:$0xff]
    %v2617 = vld [vmem:[%s2596 + $0xa0] sm:$0xff]
    %v2618 = vld [vmem:[%s2596 + $0xa8] sm:$0xff]
    %v2619 = vld [vmem:[%s2596 + $0xb0] sm:$0xff]
    %v2620 = vld [vmem:[%s2596 + $0xb8] sm:$0xff]
    %v2621 = vld [vmem:[%s2596 + $0xc0] sm:$0x3]
    %v2622 = vld [vmem:[%s2596 + $0xc8] sm:$0x3]
    %v2623 = vld [vmem:[%s2596 + $0xd0] sm:$0x3]
    %v2624 = vld [vmem:[%s2596 + $0xd8] sm:$0x3]
    %v2626 = vsel %vm1900, %v1831, 0
    %v2629 = vsel %vm1904, %v2621, 0
    %v2632 = vsel %vm1904, %v2622, 0
    %v2635 = vsel %vm1904, %v2623, 0
    %v2638 = vsel %vm1904, %v2624, 0
    %2640 = vmatprep.subr.mxu0 %v2598
    %2641 = vmatpush1.msra.mxu0 %v2597
    %2642 = vmatprep.subr.mxu0 %v2602
    %2643 = vmatpush1.msra.mxu0 %v2601
    %2644 = vmatprep.subr.mxu0 %v2606
    %2645 = vmatpush1.msra.mxu0 %v2605
    %2646 = vmatprep.subr.mxu0 %v2610
    %2647 = vmatpush1.msra.mxu0 %v2609
    %2648 = vmatprep.subr.mxu0 %v2614
    %2649 = vmatpush1.msra.mxu0 %v2613
    %2650 = vmatprep.subr.mxu0 %v2618
    %2651 = vmatpush1.msra.mxu0 %v2617
    %2652 = vmatprep.subr.mxu0 %v2632
    %2653 = vmatpush1.msra.mxu0 %v2629
    %2654 = vmatprep.subr.mxu0 0.0
    %2655 = vmatpush1.msra.mxu0 0.0
    %2656 = vmatprep.subr.mxu0 0.0
    %2657 = vmatpush1.msra.mxu0 0.0
    %2658 = vmatprep.subr.mxu0 0.0
    %2659 = vmatpush1.msra.mxu0 0.0
    %2660 = vmatprep.subr.mxu0 0.0
    %2661 = vmatpush1.msra.mxu0 0.0
    %2662 = vmatprep.subr.mxu0 0.0
    %2663 = vmatpush1.msra.mxu0 0.0
    %2664 = vmatprep.subr.mxu0 0.0
    %2665 = vmatpush1.msra.mxu0 0.0
    %2666 = vmatprep.subr.mxu0 0.0
    %2667 = vmatpush1.msra.mxu0 0.0
    %2668 = vmatprep.subr.mxu0 0.0
    %2669 = vmatpush1.msra.mxu0 0.0
    %2670 = vmatprep.subr.mxu0 0.0
    %2671 = vmatpush1.msra.mxu0 0.0
    %2672 = vmatprep.subr.mxu0 0.0
    %2673 = vmatpush1.msra.mxu0 0.0
    %2674 = vmatprep.subr.mxu0 0.0
    %2675 = vmatpush1.msra.mxu0 0.0
    %2676 = vmatprep.subr.mxu0 0.0
    %2677 = vmatpush1.msra.mxu0 0.0
    %2678 = vmatprep.subr.mxu0 0.0
    %2679 = vmatpush1.msra.mxu0 0.0
    %2680 = vmatprep.subr.mxu0 0.0
    %2681 = vmatpush1.msra.mxu0 0.0
    %2682 = vmatprep.subr.mxu0 0.0
    %2683 = vmatpush1.msra.mxu0 0.0
    %2684 = vmatprep.subr.mxu0 0.0
    %2685 = vmatpush1.msra.mxu0 0.0
    %2686 = vmatprep.subr.mxu0 0.0
    %2687 = vmatpush1.msra.mxu0 0.0
    %2688 = vmatprep.subr.mxu0 0.0
    %2689 = vmatpush1.msra.mxu0 0.0
    %2690 = vmatprep.subr.mxu0 0.0
    %2691 = vmatpush1.msra.mxu0 0.0
    %2692 = vmatprep.subr.mxu0 0.0
    %2693 = vmatpush1.msra.mxu0 0.0
    %2694 = vmatprep.subr.mxu0 0.0
    %2695 = vmatpush1.msra.mxu0 0.0
    %2696 = vmatprep.subr.mxu0 0.0
    %2697 = vmatpush1.msra.mxu0 0.0
    %2698 = vmatprep.subr.mxu0 0.0
    %2699 = vmatpush1.msra.mxu0 0.0
    %2700 = vmatprep.subr.mxu0 0.0
    %2701 = vmatpush1.msra.mxu0 0.0
    %2702 = vmatprep.subr.mxu0 0.0
    %2703 = vmatpush1.msra.mxu0 0.0
    %2704 = vmatprep.mubr.f32.mxu0 0.0
    %2705 = vmatmul.mubr.f32.gmra.mrb[0].mxu0 %v2626
    %v2706 = vpop.f32.mrb[0].mxu0
    %v2707 = vadd.f32 0.0, %v2706
    %v2708 = vpop.f32.mrb[0].mxu0
    %v2709 = vadd.f32 0.0, %v2708
    %2710 = vdwg.mxu0
    %2711 = vmatprep.subr.mxu0 %v2600
    %2712 = vmatpush1.msra.mxu0 %v2599
    %2713 = vmatprep.subr.mxu0 %v2604
    %2714 = vmatpush1.msra.mxu0 %v2603
    %2715 = vmatprep.subr.mxu0 %v2608
    %2716 = vmatpush1.msra.mxu0 %v2607
    %2717 = vmatprep.subr.mxu0 %v2612
    %2718 = vmatpush1.msra.mxu0 %v2611
    %2719 = vmatprep.subr.mxu0 %v2616
    %2720 = vmatpush1.msra.mxu0 %v2615
    %2721 = vmatprep.subr.mxu0 %v2620
    %2722 = vmatpush1.msra.mxu0 %v2619
    %2723 = vmatprep.subr.mxu0 %v2638
    %2724 = vmatpush1.msra.mxu0 %v2635
    %2725 = vmatprep.subr.mxu0 0.0
    %2726 = vmatpush1.msra.mxu0 0.0
    %2727 = vmatprep.subr.mxu0 0.0
    %2728 = vmatpush1.msra.mxu0 0.0
    %2729 = vmatprep.subr.mxu0 0.0
    %2730 = vmatpush1.msra.mxu0 0.0
    %2731 = vmatprep.subr.mxu0 0.0
    %2732 = vmatpush1.msra.mxu0 0.0
    %2733 = vmatprep.subr.mxu0 0.0
    %2734 = vmatpush1.msra.mxu0 0.0
    %2735 = vmatprep.subr.mxu0 0.0
    %2736 = vmatpush1.msra.mxu0 0.0
    %2737 = vmatprep.subr.mxu0 0.0
    %2738 = vmatpush1.msra.mxu0 0.0
    %2739 = vmatprep.subr.mxu0 0.0
    %2740 = vmatpush1.msra.mxu0 0.0
    %2741 = vmatprep.subr.mxu0 0.0
    %2742 = vmatpush1.msra.mxu0 0.0
    %2743 = vmatprep.subr.mxu0 0.0
    %2744 = vmatpush1.msra.mxu0 0.0
    %2745 = vmatprep.subr.mxu0 0.0
    %2746 = vmatpush1.msra.mxu0 0.0
    %2747 = vmatprep.subr.mxu0 0.0
    %2748 = vmatpush1.msra.mxu0 0.0
    %2749 = vmatprep.subr.mxu0 0.0
    %2750 = vmatpush1.msra.mxu0 0.0
    %2751 = vmatprep.subr.mxu0 0.0
    %2752 = vmatpush1.msra.mxu0 0.0
    %2753 = vmatprep.subr.mxu0 0.0
    %2754 = vmatpush1.msra.mxu0 0.0
    %2755 = vmatprep.subr.mxu0 0.0
    %2756 = vmatpush1.msra.mxu0 0.0
    %2757 = vmatprep.subr.mxu0 0.0
    %2758 = vmatpush1.msra.mxu0 0.0
    %2759 = vmatprep.subr.mxu0 0.0
    %2760 = vmatpush1.msra.mxu0 0.0
    %2761 = vmatprep.subr.mxu0 0.0
    %2762 = vmatpush1.msra.mxu0 0.0
    %2763 = vmatprep.subr.mxu0 0.0
    %2764 = vmatpush1.msra.mxu0 0.0
    %2765 = vmatprep.subr.mxu0 0.0
    %2766 = vmatpush1.msra.mxu0 0.0
    %2767 = vmatprep.subr.mxu0 0.0
    %2768 = vmatpush1.msra.mxu0 0.0
    %2769 = vmatprep.subr.mxu0 0.0
    %2770 = vmatpush1.msra.mxu0 0.0
    %2771 = vmatprep.subr.mxu0 0.0
    %2772 = vmatpush1.msra.mxu0 0.0
    %2773 = vmatprep.subr.mxu0 0.0
    %2774 = vmatpush1.msra.mxu0 0.0
    %2775 = vmatprep.mubr.f32.mxu0 0.0
    %2776 = vmatmul.mubr.f32.gmra.mrb[0].mxu0 %v2626
    %v2777 = vpop.f32.mrb[0].mxu0
    %v2778 = vadd.f32 0.0, %v2777
    %v2779 = vpop.f32.mrb[0].mxu0
    %v2780 = vadd.f32 0.0, %v2779
    %2781 = vdwg.mxu0
    %v2782 = vadd.f32 %v2592, %v2707
    %v2783 = vadd.f32 %v2593, %v2709
    %v2784 = vadd.f32 %v2594, %v2778
    %v2785 = vadd.f32 %v2595, %v2780
    %s2786 = scalar_lea.vmem %s3, 1120
    %v2787 = vld [vmem:[%s2786] sm:$0xff]
    %v2788 = vld [vmem:[%s2786 + $0x8] sm:$0xff]
    %v2789 = vld [vmem:[%s2786 + $0x10] sm:$0xff]
    %v2790 = vld [vmem:[%s2786 + $0x18] sm:$0xff]
    %v2791 = vld [vmem:[%s2786 + $0x20] sm:$0xff]
    %v2792 = vld [vmem:[%s2786 + $0x28] sm:$0xff]
    %v2793 = vld [vmem:[%s2786 + $0x30] sm:$0xff]
    %v2794 = vld [vmem:[%s2786 + $0x38] sm:$0xff]
    %v2795 = vld [vmem:[%s2786 + $0x40] sm:$0xff]
    %v2796 = vld [vmem:[%s2786 + $0x48] sm:$0xff]
    %v2797 = vld [vmem:[%s2786 + $0x50] sm:$0xff]
    %v2798 = vld [vmem:[%s2786 + $0x58] sm:$0xff]
    %v2799 = vld [vmem:[%s2786 + $0x60] sm:$0xff]
    %v2800 = vld [vmem:[%s2786 + $0x68] sm:$0xff]
    %v2801 = vld [vmem:[%s2786 + $0x70] sm:$0xff]
    %v2802 = vld [vmem:[%s2786 + $0x78] sm:$0xff]
    %v2803 = vld [vmem:[%s2786 + $0x80] sm:$0xff]
    %v2804 = vld [vmem:[%s2786 + $0x88] sm:$0xff]
    %v2805 = vld [vmem:[%s2786 + $0x90] sm:$0xff]
    %v2806 = vld [vmem:[%s2786 + $0x98] sm:$0xff]
    %v2807 = vld [vmem:[%s2786 + $0xa0] sm:$0xff]
    %v2808 = vld [vmem:[%s2786 + $0xa8] sm:$0xff]
    %v2809 = vld [vmem:[%s2786 + $0xb0] sm:$0xff]
    %v2810 = vld [vmem:[%s2786 + $0xb8] sm:$0xff]
    %v2811 = vld [vmem:[%s2786 + $0xc0] sm:$0x3]
    %v2812 = vld [vmem:[%s2786 + $0xc8] sm:$0x3]
    %v2813 = vld [vmem:[%s2786 + $0xd0] sm:$0x3]
    %v2814 = vld [vmem:[%s2786 + $0xd8] sm:$0x3]
    %v2816 = vsel %vm1900, %v1832, 0
    %v2819 = vsel %vm1904, %v2811, 0
    %v2822 = vsel %vm1904, %v2812, 0
    %v2825 = vsel %vm1904, %v2813, 0
    %v2828 = vsel %vm1904, %v2814, 0
    %2830 = vmatprep.subr.mxu0 %v2788
    %2831 = vmatpush1.msra.mxu0 %v2787
    %2832 = vmatprep.subr.mxu0 %v2792
    %2833 = vmatpush1.msra.mxu0 %v2791
    %2834 = vmatprep.subr.mxu0 %v2796
    %2835 = vmatpush1.msra.mxu0 %v2795
    %2836 = vmatprep.subr.mxu0 %v2800
    %2837 = vmatpush1.msra.mxu0 %v2799
    %2838 = vmatprep.subr.mxu0 %v2804
    %2839 = vmatpush1.msra.mxu0 %v2803
    %2840 = vmatprep.subr.mxu0 %v2808
    %2841 = vmatpush1.msra.mxu0 %v2807
    %2842 = vmatprep.subr.mxu0 %v2822
    %2843 = vmatpush1.msra.mxu0 %v2819
    %2844 = vmatprep.subr.mxu0 0.0
    %2845 = vmatpush1.msra.mxu0 0.0
    %2846 = vmatprep.subr.mxu0 0.0
    %2847 = vmatpush1.msra.mxu0 0.0
    %2848 = vmatprep.subr.mxu0 0.0
    %2849 = vmatpush1.msra.mxu0 0.0
    %2850 = vmatprep.subr.mxu0 0.0
    %2851 = vmatpush1.msra.mxu0 0.0
    %2852 = vmatprep.subr.mxu0 0.0
    %2853 = vmatpush1.msra.mxu0 0.0
    %2854 = vmatprep.subr.mxu0 0.0
    %2855 = vmatpush1.msra.mxu0 0.0
    %2856 = vmatprep.subr.mxu0 0.0
    %2857 = vmatpush1.msra.mxu0 0.0
    %2858 = vmatprep.subr.mxu0 0.0
    %2859 = vmatpush1.msra.mxu0 0.0
    %2860 = vmatprep.subr.mxu0 0.0
    %2861 = vmatpush1.msra.mxu0 0.0
    %2862 = vmatprep.subr.mxu0 0.0
    %2863 = vmatpush1.msra.mxu0 0.0
    %2864 = vmatprep.subr.mxu0 0.0
    %2865 = vmatpush1.msra.mxu0 0.0
    %2866 = vmatprep.subr.mxu0 0.0
    %2867 = vmatpush1.msra.mxu0 0.0
    %2868 = vmatprep.subr.mxu0 0.0
    %2869 = vmatpush1.msra.mxu0 0.0
    %2870 = vmatprep.subr.mxu0 0.0
    %2871 = vmatpush1.msra.mxu0 0.0
    %2872 = vmatprep.subr.mxu0 0.0
    %2873 = vmatpush1.msra.mxu0 0.0
    %2874 = vmatprep.subr.mxu0 0.0
    %2875 = vmatpush1.msra.mxu0 0.0
    %2876 = vmatprep.subr.mxu0 0.0
    %2877 = vmatpush1.msra.mxu0 0.0
    %2878 = vmatprep.subr.mxu0 0.0
    %2879 = vmatpush1.msra.mxu0 0.0
    %2880 = vmatprep.subr.mxu0 0.0
    %2881 = vmatpush1.msra.mxu0 0.0
    %2882 = vmatprep.subr.mxu0 0.0
    %2883 = vmatpush1.msra.mxu0 0.0
    %2884 = vmatprep.subr.mxu0 0.0
    %2885 = vmatpush1.msra.mxu0 0.0
    %2886 = vmatprep.subr.mxu0 0.0
    %2887 = vmatpush1.msra.mxu0 0.0
    %2888 = vmatprep.subr.mxu0 0.0
    %2889 = vmatpush1.msra.mxu0 0.0
    %2890 = vmatprep.subr.mxu0 0.0
    %2891 = vmatpush1.msra.mxu0 0.0
    %2892 = vmatprep.subr.mxu0 0.0
    %2893 = vmatpush1.msra.mxu0 0.0
    %2894 = vmatprep.mubr.f32.mxu0 0.0
    %2895 = vmatmul.mubr.f32.gmra.mrb[0].mxu0 %v2816
    %v2896 = vpop.f32.mrb[0].mxu0
    %v2897 = vadd.f32 0.0, %v2896
    %v2898 = vpop.f32.mrb[0].mxu0
    %v2899 = vadd.f32 0.0, %v2898
    %2900 = vdwg.mxu0
    %2901 = vmatprep.subr.mxu0 %v2790
    %2902 = vmatpush1.msra.mxu0 %v2789
    %2903 = vmatprep.subr.mxu0 %v2794
    %2904 = vmatpush1.msra.mxu0 %v2793
    %2905 = vmatprep.subr.mxu0 %v2798
    %2906 = vmatpush1.msra.mxu0 %v2797
    %2907 = vmatprep.subr.mxu0 %v2802
    %2908 = vmatpush1.msra.mxu0 %v2801
    %2909 = vmatprep.subr.mxu0 %v2806
    %2910 = vmatpush1.msra.mxu0 %v2805
    %2911 = vmatprep.subr.mxu0 %v2810
    %2912 = vmatpush1.msra.mxu0 %v2809
    %2913 = vmatprep.subr.mxu0 %v2828
    %2914 = vmatpush1.msra.mxu0 %v2825
    %2915 = vmatprep.subr.mxu0 0.0
    %2916 = vmatpush1.msra.mxu0 0.0
    %2917 = vmatprep.subr.mxu0 0.0
    %2918 = vmatpush1.msra.mxu0 0.0
    %2919 = vmatprep.subr.mxu0 0.0
    %2920 = vmatpush1.msra.mxu0 0.0
    %2921 = vmatprep.subr.mxu0 0.0
    %2922 = vmatpush1.msra.mxu0 0.0
    %2923 = vmatprep.subr.mxu0 0.0
    %2924 = vmatpush1.msra.mxu0 0.0
    %2925 = vmatprep.subr.mxu0 0.0
    %2926 = vmatpush1.msra.mxu0 0.0
    %2927 = vmatprep.subr.mxu0 0.0
    %2928 = vmatpush1.msra.mxu0 0.0
    %2929 = vmatprep.subr.mxu0 0.0
    %2930 = vmatpush1.msra.mxu0 0.0
    %2931 = vmatprep.subr.mxu0 0.0
    %2932 = vmatpush1.msra.mxu0 0.0
    %2933 = vmatprep.subr.mxu0 0.0
    %2934 = vmatpush1.msra.mxu0 0.0
    %2935 = vmatprep.subr.mxu0 0.0
    %2936 = vmatpush1.msra.mxu0 0.0
    %2937 = vmatprep.subr.mxu0 0.0
    %2938 = vmatpush1.msra.mxu0 0.0
    %2939 = vmatprep.subr.mxu0 0.0
    %2940 = vmatpush1.msra.mxu0 0.0
    %2941 = vmatprep.subr.mxu0 0.0
    %2942 = vmatpush1.msra.mxu0 0.0
    %2943 = vmatprep.subr.mxu0 0.0
    %2944 = vmatpush1.msra.mxu0 0.0
    %2945 = vmatprep.subr.mxu0 0.0
    %2946 = vmatpush1.msra.mxu0 0.0
    %2947 = vmatprep.subr.mxu0 0.0
    %2948 = vmatpush1.msra.mxu0 0.0
    %2949 = vmatprep.subr.mxu0 0.0
    %2950 = vmatpush1.msra.mxu0 0.0
    %2951 = vmatprep.subr.mxu0 0.0
    %2952 = vmatpush1.msra.mxu0 0.0
    %2953 = vmatprep.subr.mxu0 0.0
    %2954 = vmatpush1.msra.mxu0 0.0
    %2955 = vmatprep.subr.mxu0 0.0
    %2956 = vmatpush1.msra.mxu0 0.0
    %2957 = vmatprep.subr.mxu0 0.0
    %2958 = vmatpush1.msra.mxu0 0.0
    %2959 = vmatprep.subr.mxu0 0.0
    %2960 = vmatpush1.msra.mxu0 0.0
    %2961 = vmatprep.subr.mxu0 0.0
    %2962 = vmatpush1.msra.mxu0 0.0
    %2963 = vmatprep.subr.mxu0 0.0
    %2964 = vmatpush1.msra.mxu0 0.0
    %2965 = vmatprep.mubr.f32.mxu0 0.0
    %2966 = vmatmul.mubr.f32.gmra.mrb[0].mxu0 %v2816
    %v2967 = vpop.f32.mrb[0].mxu0
    %v2968 = vadd.f32 0.0, %v2967
    %v2969 = vpop.f32.mrb[0].mxu0
    %v2970 = vadd.f32 0.0, %v2969
    %2971 = vdwg.mxu0
    %v2972 = vadd.f32 %v2782, %v2897
    %v2973 = vadd.f32 %v2783, %v2899
    %v2974 = vadd.f32 %v2784, %v2968
    %v2975 = vadd.f32 %v2785, %v2970
    %s2976 = scalar_lea.vmem %s3, 1344
    %v2977 = vld [vmem:[%s2976] sm:$0xff]
    %v2978 = vld [vmem:[%s2976 + $0x8] sm:$0xff]
    %v2979 = vld [vmem:[%s2976 + $0x10] sm:$0xff]
    %v2980 = vld [vmem:[%s2976 + $0x18] sm:$0xff]
    %v2981 = vld [vmem:[%s2976 + $0x20] sm:$0xff]
    %v2982 = vld [vmem:[%s2976 + $0x28] sm:$0xff]
    %v2983 = vld [vmem:[%s2976 + $0x30] sm:$0xff]
    %v2984 = vld [vmem:[%s2976 + $0x38] sm:$0xff]
    %v2985 = vld [vmem:[%s2976 + $0x40] sm:$0xff]
    %v2986 = vld [vmem:[%s2976 + $0x48] sm:$0xff]
    %v2987 = vld [vmem:[%s2976 + $0x50] sm:$0xff]
    %v2988 = vld [vmem:[%s2976 + $0x58] sm:$0xff]
    %v2989 = vld [vmem:[%s2976 + $0x60] sm:$0xff]
    %v2990 = vld [vmem:[%s2976 + $0x68] sm:$0xff]
    %v2991 = vld [vmem:[%s2976 + $0x70] sm:$0xff]
    %v2992 = vld [vmem:[%s2976 + $0x78] sm:$0xff]
    %v2993 = vld [vmem:[%s2976 + $0x80] sm:$0xff]
    %v2994 = vld [vmem:[%s2976 + $0x88] sm:$0xff]
    %v2995 = vld [vmem:[%s2976 + $0x90] sm:$0xff]
    %v2996 = vld [vmem:[%s2976 + $0x98] sm:$0xff]
    %v2997 = vld [vmem:[%s2976 + $0xa0] sm:$0xff]
    %v2998 = vld [vmem:[%s2976 + $0xa8] sm:$0xff]
    %v2999 = vld [vmem:[%s2976 + $0xb0] sm:$0xff]
    %v3000 = vld [vmem:[%s2976 + $0xb8] sm:$0xff]
    %v3001 = vld [vmem:[%s2976 + $0xc0] sm:$0x3]
    %v3002 = vld [vmem:[%s2976 + $0xc8] sm:$0x3]
    %v3003 = vld [vmem:[%s2976 + $0xd0] sm:$0x3]
    %v3004 = vld [vmem:[%s2976 + $0xd8] sm:$0x3]
    %v3006 = vsel %vm1900, %v1833, 0
    %v3009 = vsel %vm1904, %v3001, 0
    %v3012 = vsel %vm1904, %v3002, 0
    %v3015 = vsel %vm1904, %v3003, 0
    %v3018 = vsel %vm1904, %v3004, 0
    %3020 = vmatprep.subr.mxu0 %v2978
    %3021 = vmatpush1.msra.mxu0 %v2977
    %3022 = vmatprep.subr.mxu0 %v2982
    %3023 = vmatpush1.msra.mxu0 %v2981
    %3024 = vmatprep.subr.mxu0 %v2986
    %3025 = vmatpush1.msra.mxu0 %v2985
    %3026 = vmatprep.subr.mxu0 %v2990
    %3027 = vmatpush1.msra.mxu0 %v2989
    %3028 = vmatprep.subr.mxu0 %v2994
    %3029 = vmatpush1.msra.mxu0 %v2993
    %3030 = vmatprep.subr.mxu0 %v2998
    %3031 = vmatpush1.msra.mxu0 %v2997
    %3032 = vmatprep.subr.mxu0 %v3012
    %3033 = vmatpush1.msra.mxu0 %v3009
    %3034 = vmatprep.subr.mxu0 0.0
    %3035 = vmatpush1.msra.mxu0 0.0
    %3036 = vmatprep.subr.mxu0 0.0
    %3037 = vmatpush1.msra.mxu0 0.0
    %3038 = vmatprep.subr.mxu0 0.0
    %3039 = vmatpush1.msra.mxu0 0.0
    %3040 = vmatprep.subr.mxu0 0.0
    %3041 = vmatpush1.msra.mxu0 0.0
    %3042 = vmatprep.subr.mxu0 0.0
    %3043 = vmatpush1.msra.mxu0 0.0
    %3044 = vmatprep.subr.mxu0 0.0
    %3045 = vmatpush1.msra.mxu0 0.0
    %3046 = vmatprep.subr.mxu0 0.0
    %3047 = vmatpush1.msra.mxu0 0.0
    %3048 = vmatprep.subr.mxu0 0.0
    %3049 = vmatpush1.msra.mxu0 0.0
    %3050 = vmatprep.subr.mxu0 0.0
    %3051 = vmatpush1.msra.mxu0 0.0
    %3052 = vmatprep.subr.mxu0 0.0
    %3053 = vmatpush1.msra.mxu0 0.0
    %3054 = vmatprep.subr.mxu0 0.0
    %3055 = vmatpush1.msra.mxu0 0.0
    %3056 = vmatprep.subr.mxu0 0.0
    %3057 = vmatpush1.msra.mxu0 0.0
    %3058 = vmatprep.subr.mxu0 0.0
    %3059 = vmatpush1.msra.mxu0 0.0
    %3060 = vmatprep.subr.mxu0 0.0
    %3061 = vmatpush1.msra.mxu0 0.0
    %3062 = vmatprep.subr.mxu0 0.0
    %3063 = vmatpush1.msra.mxu0 0.0
    %3064 = vmatprep.subr.mxu0 0.0
    %3065 = vmatpush1.msra.mxu0 0.0
    %3066 = vmatprep.subr.mxu0 0.0
    %3067 = vmatpush1.msra.mxu0 0.0
    %3068 = vmatprep.subr.mxu0 0.0
    %3069 = vmatpush1.msra.mxu0 0.0
    %3070 = vmatprep.subr.mxu0 0.0
    %3071 = vmatpush1.msra.mxu0 0.0
    %3072 = vmatprep.subr.mxu0 0.0
    %3073 = vmatpush1.msra.mxu0 0.0
    %3074 = vmatprep.subr.mxu0 0.0
    %3075 = vmatpush1.msra.mxu0 0.0
    %3076 = vmatprep.subr.mxu0 0.0
    %3077 = vmatpush1.msra.mxu0 0.0
    %3078 = vmatprep.subr.mxu0 0.0
    %3079 = vmatpush1.msra.mxu0 0.0
    %3080 = vmatprep.subr.mxu0 0.0
    %3081 = vmatpush1.msra.mxu0 0.0
    %3082 = vmatprep.subr.mxu0 0.0
    %3083 = vmatpush1.msra.mxu0 0.0
    %3084 = vmatprep.mubr.f32.mxu0 0.0
    %3085 = vmatmul.mubr.f32.gmra.mrb[0].mxu0 %v3006
    %v3086 = vpop.f32.mrb[0].mxu0
    %v3087 = vadd.f32 0.0, %v3086
    %v3088 = vpop.f32.mrb[0].mxu0
    %v3089 = vadd.f32 0.0, %v3088
    %3090 = vdwg.mxu0
    %3091 = vmatprep.subr.mxu0 %v2980
    %3092 = vmatpush1.msra.mxu0 %v2979
    %3093 = vmatprep.subr.mxu0 %v2984
    %3094 = vmatpush1.msra.mxu0 %v2983
    %3095 = vmatprep.subr.mxu0 %v2988
    %3096 = vmatpush1.msra.mxu0 %v2987
    %3097 = vmatprep.subr.mxu0 %v2992
    %3098 = vmatpush1.msra.mxu0 %v2991
    %3099 = vmatprep.subr.mxu0 %v2996
    %3100 = vmatpush1.msra.mxu0 %v2995
    %3101 = vmatprep.subr.mxu0 %v3000
    %3102 = vmatpush1.msra.mxu0 %v2999
    %3103 = vmatprep.subr.mxu0 %v3018
    %3104 = vmatpush1.msra.mxu0 %v3015
    %3105 = vmatprep.subr.mxu0 0.0
    %3106 = vmatpush1.msra.mxu0 0.0
    %3107 = vmatprep.subr.mxu0 0.0
    %3108 = vmatpush1.msra.mxu0 0.0
    %3109 = vmatprep.subr.mxu0 0.0
    %3110 = vmatpush1.msra.mxu0 0.0
    %3111 = vmatprep.subr.mxu0 0.0
    %3112 = vmatpush1.msra.mxu0 0.0
    %3113 = vmatprep.subr.mxu0 0.0
    %3114 = vmatpush1.msra.mxu0 0.0
    %3115 = vmatprep.subr.mxu0 0.0
    %3116 = vmatpush1.msra.mxu0 0.0
    %3117 = vmatprep.subr.mxu0 0.0
    %3118 = vmatpush1.msra.mxu0 0.0
    %3119 = vmatprep.subr.mxu0 0.0
    %3120 = vmatpush1.msra.mxu0 0.0
    %3121 = vmatprep.subr.mxu0 0.0
    %3122 = vmatpush1.msra.mxu0 0.0
    %3123 = vmatprep.subr.mxu0 0.0
    %3124 = vmatpush1.msra.mxu0 0.0
    %3125 = vmatprep.subr.mxu0 0.0
    %3126 = vmatpush1.msra.mxu0 0.0
    %3127 = vmatprep.subr.mxu0 0.0
    %3128 = vmatpush1.msra.mxu0 0.0
    %3129 = vmatprep.subr.mxu0 0.0
    %3130 = vmatpush1.msra.mxu0 0.0
    %3131 = vmatprep.subr.mxu0 0.0
    %3132 = vmatpush1.msra.mxu0 0.0
    %3133 = vmatprep.subr.mxu0 0.0
    %3134 = vmatpush1.msra.mxu0 0.0
    %3135 = vmatprep.subr.mxu0 0.0
    %3136 = vmatpush1.msra.mxu0 0.0
    %3137 = vmatprep.subr.mxu0 0.0
    %3138 = vmatpush1.msra.mxu0 0.0
    %3139 = vmatprep.subr.mxu0 0.0
    %3140 = vmatpush1.msra.mxu0 0.0
    %3141 = vmatprep.subr.mxu0 0.0
    %3142 = vmatpush1.msra.mxu0 0.0
    %3143 = vmatprep.subr.mxu0 0.0
    %3144 = vmatpush1.msra.mxu0 0.0
    %3145 = vmatprep.subr.mxu0 0.0
    %3146 = vmatpush1.msra.mxu0 0.0
    %3147 = vmatprep.subr.mxu0 0.0
    %3148 = vmatpush1.msra.mxu0 0.0
    %3149 = vmatprep.subr.mxu0 0.0
    %3150 = vmatpush1.msra.mxu0 0.0
    %3151 = vmatprep.subr.mxu0 0.0
    %3152 = vmatpush1.msra.mxu0 0.0
    %3153 = vmatprep.subr.mxu0 0.0
    %3154 = vmatpush1.msra.mxu0 0.0
    %3155 = vmatprep.mubr.f32.mxu0 0.0
    %3156 = vmatmul.mubr.f32.gmra.mrb[0].mxu0 %v3006
    %v3157 = vpop.f32.mrb[0].mxu0
    %v3158 = vadd.f32 0.0, %v3157
    %v3159 = vpop.f32.mrb[0].mxu0
    %v3160 = vadd.f32 0.0, %v3159
    %3161 = vdwg.mxu0
    %v3162 = vadd.f32 %v2972, %v3087
    %v3163 = vadd.f32 %v2973, %v3089
    %v3164 = vadd.f32 %v2974, %v3158
    %v3165 = vadd.f32 %v2975, %v3160
    %s3166 = scalar_lea.vmem %s3, 1568
    %v3167 = vld [vmem:[%s3166] sm:$0xff]
    %v3168 = vld [vmem:[%s3166 + $0x8] sm:$0xff]
    %v3169 = vld [vmem:[%s3166 + $0x10] sm:$0xff]
    %v3170 = vld [vmem:[%s3166 + $0x18] sm:$0xff]
    %v3171 = vld [vmem:[%s3166 + $0x20] sm:$0xff]
    %v3172 = vld [vmem:[%s3166 + $0x28] sm:$0xff]
    %v3173 = vld [vmem:[%s3166 + $0x30] sm:$0xff]
    %v3174 = vld [vmem:[%s3166 + $0x38] sm:$0xff]
    %v3175 = vld [vmem:[%s3166 + $0x40] sm:$0xff]
    %v3176 = vld [vmem:[%s3166 + $0x48] sm:$0xff]
    %v3177 = vld [vmem:[%s3166 + $0x50] sm:$0xff]
    %v3178 = vld [vmem:[%s3166 + $0x58] sm:$0xff]
    %v3179 = vld [vmem:[%s3166 + $0x60] sm:$0xff]
    %v3180 = vld [vmem:[%s3166 + $0x68] sm:$0xff]
    %v3181 = vld [vmem:[%s3166 + $0x70] sm:$0xff]
    %v3182 = vld [vmem:[%s3166 + $0x78] sm:$0xff]
    %v3183 = vld [vmem:[%s3166 + $0x80] sm:$0xff]
    %v3184 = vld [vmem:[%s3166 + $0x88] sm:$0xff]
    %v3185 = vld [vmem:[%s3166 + $0x90] sm:$0xff]
    %v3186 = vld [vmem:[%s3166 + $0x98] sm:$0xff]
    %v3187 = vld [vmem:[%s3166 + $0xa0] sm:$0xff]
    %v3188 = vld [vmem:[%s3166 + $0xa8] sm:$0xff]
    %v3189 = vld [vmem:[%s3166 + $0xb0] sm:$0xff]
    %v3190 = vld [vmem:[%s3166 + $0xb8] sm:$0xff]
    %v3191 = vld [vmem:[%s3166 + $0xc0] sm:$0x3]
    %v3192 = vld [vmem:[%s3166 + $0xc8] sm:$0x3]
    %v3193 = vld [vmem:[%s3166 + $0xd0] sm:$0x3]
    %v3194 = vld [vmem:[%s3166 + $0xd8] sm:$0x3]
    %v3196 = vsel %vm1900, %v1834, 0
    %v3199 = vsel %vm1904, %v3191, 0
    %v3202 = vsel %vm1904, %v3192, 0
    %v3205 = vsel %vm1904, %v3193, 0
    %v3208 = vsel %vm1904, %v3194, 0
    %3210 = vmatprep.subr.mxu0 %v3168
    %3211 = vmatpush1.msra.mxu0 %v3167
    %3212 = vmatprep.subr.mxu0 %v3172
    %3213 = vmatpush1.msra.mxu0 %v3171
    %3214 = vmatprep.subr.mxu0 %v3176
    %3215 = vmatpush1.msra.mxu0 %v3175
    %3216 = vmatprep.subr.mxu0 %v3180
    %3217 = vmatpush1.msra.mxu0 %v3179
    %3218 = vmatprep.subr.mxu0 %v3184
    %3219 = vmatpush1.msra.mxu0 %v3183
    %3220 = vmatprep.subr.mxu0 %v3188
    %3221 = vmatpush1.msra.mxu0 %v3187
    %3222 = vmatprep.subr.mxu0 %v3202
    %3223 = vmatpush1.msra.mxu0 %v3199
    %3224 = vmatprep.subr.mxu0 0.0
    %3225 = vmatpush1.msra.mxu0 0.0
    %3226 = vmatprep.subr.mxu0 0.0
    %3227 = vmatpush1.msra.mxu0 0.0
    %3228 = vmatprep.subr.mxu0 0.0
    %3229 = vmatpush1.msra.mxu0 0.0
    %3230 = vmatprep.subr.mxu0 0.0
    %3231 = vmatpush1.msra.mxu0 0.0
    %3232 = vmatprep.subr.mxu0 0.0
    %3233 = vmatpush1.msra.mxu0 0.0
    %3234 = vmatprep.subr.mxu0 0.0
    %3235 = vmatpush1.msra.mxu0 0.0
    %3236 = vmatprep.subr.mxu0 0.0
    %3237 = vmatpush1.msra.mxu0 0.0
    %3238 = vmatprep.subr.mxu0 0.0
    %3239 = vmatpush1.msra.mxu0 0.0
    %3240 = vmatprep.subr.mxu0 0.0
    %3241 = vmatpush1.msra.mxu0 0.0
    %3242 = vmatprep.subr.mxu0 0.0
    %3243 = vmatpush1.msra.mxu0 0.0
    %3244 = vmatprep.subr.mxu0 0.0
    %3245 = vmatpush1.msra.mxu0 0.0
    %3246 = vmatprep.subr.mxu0 0.0
    %3247 = vmatpush1.msra.mxu0 0.0
    %3248 = vmatprep.subr.mxu0 0.0
    %3249 = vmatpush1.msra.mxu0 0.0
    %3250 = vmatprep.subr.mxu0 0.0
    %3251 = vmatpush1.msra.mxu0 0.0
    %3252 = vmatprep.subr.mxu0 0.0
    %3253 = vmatpush1.msra.mxu0 0.0
    %3254 = vmatprep.subr.mxu0 0.0
    %3255 = vmatpush1.msra.mxu0 0.0
    %3256 = vmatprep.subr.mxu0 0.0
    %3257 = vmatpush1.msra.mxu0 0.0
    %3258 = vmatprep.subr.mxu0 0.0
    %3259 = vmatpush1.msra.mxu0 0.0
    %3260 = vmatprep.subr.mxu0 0.0
    %3261 = vmatpush1.msra.mxu0 0.0
    %3262 = vmatprep.subr.mxu0 0.0
    %3263 = vmatpush1.msra.mxu0 0.0
    %3264 = vmatprep.subr.mxu0 0.0
    %3265 = vmatpush1.msra.mxu0 0.0
    %3266 = vmatprep.subr.mxu0 0.0
    %3267 = vmatpush1.msra.mxu0 0.0
    %3268 = vmatprep.subr.mxu0 0.0
    %3269 = vmatpush1.msra.mxu0 0.0
    %3270 = vmatprep.subr.mxu0 0.0
    %3271 = vmatpush1.msra.mxu0 0.0
    %3272 = vmatprep.subr.mxu0 0.0
    %3273 = vmatpush1.msra.mxu0 0.0
    %3274 = vmatprep.mubr.f32.mxu0 0.0
    %3275 = vmatmul.mubr.f32.gmra.mrb[0].mxu0 %v3196
    %v3276 = vpop.f32.mrb[0].mxu0
    %v3277 = vadd.f32 0.0, %v3276
    %v3278 = vpop.f32.mrb[0].mxu0
    %v3279 = vadd.f32 0.0, %v3278
    %3280 = vdwg.mxu0
    %3281 = vmatprep.subr.mxu0 %v3170
    %3282 = vmatpush1.msra.mxu0 %v3169
    %3283 = vmatprep.subr.mxu0 %v3174
    %3284 = vmatpush1.msra.mxu0 %v3173
    %3285 = vmatprep.subr.mxu0 %v3178
    %3286 = vmatpush1.msra.mxu0 %v3177
    %3287 = vmatprep.subr.mxu0 %v3182
    %3288 = vmatpush1.msra.mxu0 %v3181
    %3289 = vmatprep.subr.mxu0 %v3186
    %3290 = vmatpush1.msra.mxu0 %v3185
    %3291 = vmatprep.subr.mxu0 %v3190
    %3292 = vmatpush1.msra.mxu0 %v3189
    %3293 = vmatprep.subr.mxu0 %v3208
    %3294 = vmatpush1.msra.mxu0 %v3205
    %3295 = vmatprep.subr.mxu0 0.0
    %3296 = vmatpush1.msra.mxu0 0.0
    %3297 = vmatprep.subr.mxu0 0.0
    %3298 = vmatpush1.msra.mxu0 0.0
    %3299 = vmatprep.subr.mxu0 0.0
    %3300 = vmatpush1.msra.mxu0 0.0
    %3301 = vmatprep.subr.mxu0 0.0
    %3302 = vmatpush1.msra.mxu0 0.0
    %3303 = vmatprep.subr.mxu0 0.0
    %3304 = vmatpush1.msra.mxu0 0.0
    %3305 = vmatprep.subr.mxu0 0.0
    %3306 = vmatpush1.msra.mxu0 0.0
    %3307 = vmatprep.subr.mxu0 0.0
    %3308 = vmatpush1.msra.mxu0 0.0
    %3309 = vmatprep.subr.mxu0 0.0
    %3310 = vmatpush1.msra.mxu0 0.0
    %3311 = vmatprep.subr.mxu0 0.0
    %3312 = vmatpush1.msra.mxu0 0.0
    %3313 = vmatprep.subr.mxu0 0.0
    %3314 = vmatpush1.msra.mxu0 0.0
    %3315 = vmatprep.subr.mxu0 0.0
    %3316 = vmatpush1.msra.mxu0 0.0
    %3317 = vmatprep.subr.mxu0 0.0
    %3318 = vmatpush1.msra.mxu0 0.0
    %3319 = vmatprep.subr.mxu0 0.0
    %3320 = vmatpush1.msra.mxu0 0.0
    %3321 = vmatprep.subr.mxu0 0.0
    %3322 = vmatpush1.msra.mxu0 0.0
    %3323 = vmatprep.subr.mxu0 0.0
    %3324 = vmatpush1.msra.mxu0 0.0
    %3325 = vmatprep.subr.mxu0 0.0
    %3326 = vmatpush1.msra.mxu0 0.0
    %3327 = vmatprep.subr.mxu0 0.0
    %3328 = vmatpush1.msra.mxu0 0.0
    %3329 = vmatprep.subr.mxu0 0.0
    %3330 = vmatpush1.msra.mxu0 0.0
    %3331 = vmatprep.subr.mxu0 0.0
    %3332 = vmatpush1.msra.mxu0 0.0
    %3333 = vmatprep.subr.mxu0 0.0
    %3334 = vmatpush1.msra.mxu0 0.0
    %3335 = vmatprep.subr.mxu0 0.0
    %3336 = vmatpush1.msra.mxu0 0.0
    %3337 = vmatprep.subr.mxu0 0.0
    %3338 = vmatpush1.msra.mxu0 0.0
    %3339 = vmatprep.subr.mxu0 0.0
    %3340 = vmatpush1.msra.mxu0 0.0
    %3341 = vmatprep.subr.mxu0 0.0
    %3342 = vmatpush1.msra.mxu0 0.0
    %3343 = vmatprep.subr.mxu0 0.0
    %3344 = vmatpush1.msra.mxu0 0.0
    %3345 = vmatprep.mubr.f32.mxu0 0.0
    %3346 = vmatmul.mubr.f32.gmra.mrb[0].mxu0 %v3196
    %v3347 = vpop.f32.mrb[0].mxu0
    %v3348 = vadd.f32 0.0, %v3347
    %v3349 = vpop.f32.mrb[0].mxu0
    %v3350 = vadd.f32 0.0, %v3349
    %3351 = vdwg.mxu0
    %v3352 = vadd.f32 %v3162, %v3277
    %v3353 = vadd.f32 %v3163, %v3279
    %v3354 = vadd.f32 %v3164, %v3348
    %v3355 = vadd.f32 %v3165, %v3350
    %s3356 = scalar_lea.vmem %s3, 1792
    %v3357 = vld [vmem:[%s3356] sm:$0xff]
    %v3358 = vld [vmem:[%s3356 + $0x8] sm:$0xff]
    %v3359 = vld [vmem:[%s3356 + $0x10] sm:$0xff]
    %v3360 = vld [vmem:[%s3356 + $0x18] sm:$0xff]
    %v3361 = vld [vmem:[%s3356 + $0x20] sm:$0xff]
    %v3362 = vld [vmem:[%s3356 + $0x28] sm:$0xff]
    %v3363 = vld [vmem:[%s3356 + $0x30] sm:$0xff]
    %v3364 = vld [vmem:[%s3356 + $0x38] sm:$0xff]
    %v3365 = vld [vmem:[%s3356 + $0x40] sm:$0xff]
    %v3366 = vld [vmem:[%s3356 + $0x48] sm:$0xff]
    %v3367 = vld [vmem:[%s3356 + $0x50] sm:$0xff]
    %v3368 = vld [vmem:[%s3356 + $0x58] sm:$0xff]
    %v3369 = vld [vmem:[%s3356 + $0x60] sm:$0xff]
    %v3370 = vld [vmem:[%s3356 + $0x68] sm:$0xff]
    %v3371 = vld [vmem:[%s3356 + $0x70] sm:$0xff]
    %v3372 = vld [vmem:[%s3356 + $0x78] sm:$0xff]
    %v3373 = vld [vmem:[%s3356 + $0x80] sm:$0xff]
    %v3374 = vld [vmem:[%s3356 + $0x88] sm:$0xff]
    %v3375 = vld [vmem:[%s3356 + $0x90] sm:$0xff]
    %v3376 = vld [vmem:[%s3356 + $0x98] sm:$0xff]
    %v3377 = vld [vmem:[%s3356 + $0xa0] sm:$0xff]
    %v3378 = vld [vmem:[%s3356 + $0xa8] sm:$0xff]
    %v3379 = vld [vmem:[%s3356 + $0xb0] sm:$0xff]
    %v3380 = vld [vmem:[%s3356 + $0xb8] sm:$0xff]
    %v3381 = vld [vmem:[%s3356 + $0xc0] sm:$0x3]
    %v3382 = vld [vmem:[%s3356 + $0xc8] sm:$0x3]
    %v3383 = vld [vmem:[%s3356 + $0xd0] sm:$0x3]
    %v3384 = vld [vmem:[%s3356 + $0xd8] sm:$0x3]
    %v3386 = vsel %vm1900, %v1835, 0
    %v3389 = vsel %vm1904, %v3381, 0
    %v3392 = vsel %vm1904, %v3382, 0
    %v3395 = vsel %vm1904, %v3383, 0
    %v3398 = vsel %vm1904, %v3384, 0
    %3400 = vmatprep.subr.mxu0 %v3358
    %3401 = vmatpush1.msra.mxu0 %v3357
    %3402 = vmatprep.subr.mxu0 %v3362
    %3403 = vmatpush1.msra.mxu0 %v3361
    %3404 = vmatprep.subr.mxu0 %v3366
    %3405 = vmatpush1.msra.mxu0 %v3365
    %3406 = vmatprep.subr.mxu0 %v3370
    %3407 = vmatpush1.msra.mxu0 %v3369
    %3408 = vmatprep.subr.mxu0 %v3374
    %3409 = vmatpush1.msra.mxu0 %v3373
    %3410 = vmatprep.subr.mxu0 %v3378
    %3411 = vmatpush1.msra.mxu0 %v3377
    %3412 = vmatprep.subr.mxu0 %v3392
    %3413 = vmatpush1.msra.mxu0 %v3389
    %3414 = vmatprep.subr.mxu0 0.0
    %3415 = vmatpush1.msra.mxu0 0.0
    %3416 = vmatprep.subr.mxu0 0.0
    %3417 = vmatpush1.msra.mxu0 0.0
    %3418 = vmatprep.subr.mxu0 0.0
    %3419 = vmatpush1.msra.mxu0 0.0
    %3420 = vmatprep.subr.mxu0 0.0
    %3421 = vmatpush1.msra.mxu0 0.0
    %3422 = vmatprep.subr.mxu0 0.0
    %3423 = vmatpush1.msra.mxu0 0.0
    %3424 = vmatprep.subr.mxu0 0.0
    %3425 = vmatpush1.msra.mxu0 0.0
    %3426 = vmatprep.subr.mxu0 0.0
    %3427 = vmatpush1.msra.mxu0 0.0
    %3428 = vmatprep.subr.mxu0 0.0
    %3429 = vmatpush1.msra.mxu0 0.0
    %3430 = vmatprep.subr.mxu0 0.0
    %3431 = vmatpush1.msra.mxu0 0.0
    %3432 = vmatprep.subr.mxu0 0.0
    %3433 = vmatpush1.msra.mxu0 0.0
    %3434 = vmatprep.subr.mxu0 0.0
    %3435 = vmatpush1.msra.mxu0 0.0
    %3436 = vmatprep.subr.mxu0 0.0
    %3437 = vmatpush1.msra.mxu0 0.0
    %3438 = vmatprep.subr.mxu0 0.0
    %3439 = vmatpush1.msra.mxu0 0.0
    %3440 = vmatprep.subr.mxu0 0.0
    %3441 = vmatpush1.msra.mxu0 0.0
    %3442 = vmatprep.subr.mxu0 0.0
    %3443 = vmatpush1.msra.mxu0 0.0
    %3444 = vmatprep.subr.mxu0 0.0
    %3445 = vmatpush1.msra.mxu0 0.0
    %3446 = vmatprep.subr.mxu0 0.0
    %3447 = vmatpush1.msra.mxu0 0.0
    %3448 = vmatprep.subr.mxu0 0.0
    %3449 = vmatpush1.msra.mxu0 0.0
    %3450 = vmatprep.subr.mxu0 0.0
    %3451 = vmatpush1.msra.mxu0 0.0
    %3452 = vmatprep.subr.mxu0 0.0
    %3453 = vmatpush1.msra.mxu0 0.0
    %3454 = vmatprep.subr.mxu0 0.0
    %3455 = vmatpush1.msra.mxu0 0.0
    %3456 = vmatprep.subr.mxu0 0.0
    %3457 = vmatpush1.msra.mxu0 0.0
    %3458 = vmatprep.subr.mxu0 0.0
    %3459 = vmatpush1.msra.mxu0 0.0
    %3460 = vmatprep.subr.mxu0 0.0
    %3461 = vmatpush1.msra.mxu0 0.0
    %3462 = vmatprep.subr.mxu0 0.0
    %3463 = vmatpush1.msra.mxu0 0.0
    %3464 = vmatprep.mubr.f32.mxu0 0.0
    %3465 = vmatmul.mubr.f32.gmra.mrb[0].mxu0 %v3386
    %v3466 = vpop.f32.mrb[0].mxu0
    %v3467 = vadd.f32 0.0, %v3466
    %v3468 = vpop.f32.mrb[0].mxu0
    %v3469 = vadd.f32 0.0, %v3468
    %3470 = vdwg.mxu0
    %3471 = vmatprep.subr.mxu0 %v3360
    %3472 = vmatpush1.msra.mxu0 %v3359
    %3473 = vmatprep.subr.mxu0 %v3364
    %3474 = vmatpush1.msra.mxu0 %v3363
    %3475 = vmatprep.subr.mxu0 %v3368
    %3476 = vmatpush1.msra.mxu0 %v3367
    %3477 = vmatprep.subr.mxu0 %v3372
    %3478 = vmatpush1.msra.mxu0 %v3371
    %3479 = vmatprep.subr.mxu0 %v3376
    %3480 = vmatpush1.msra.mxu0 %v3375
    %3481 = vmatprep.subr.mxu0 %v3380
    %3482 = vmatpush1.msra.mxu0 %v3379
    %3483 = vmatprep.subr.mxu0 %v3398
    %3484 = vmatpush1.msra.mxu0 %v3395
    %3485 = vmatprep.subr.mxu0 0.0
    %3486 = vmatpush1.msra.mxu0 0.0
    %3487 = vmatprep.subr.mxu0 0.0
    %3488 = vmatpush1.msra.mxu0 0.0
    %3489 = vmatprep.subr.mxu0 0.0
    %3490 = vmatpush1.msra.mxu0 0.0
    %3491 = vmatprep.subr.mxu0 0.0
    %3492 = vmatpush1.msra.mxu0 0.0
    %3493 = vmatprep.subr.mxu0 0.0
    %3494 = vmatpush1.msra.mxu0 0.0
    %3495 = vmatprep.subr.mxu0 0.0
    %3496 = vmatpush1.msra.mxu0 0.0
    %3497 = vmatprep.subr.mxu0 0.0
    %3498 = vmatpush1.msra.mxu0 0.0
    %3499 = vmatprep.subr.mxu0 0.0
    %3500 = vmatpush1.msra.mxu0 0.0
    %3501 = vmatprep.subr.mxu0 0.0
    %3502 = vmatpush1.msra.mxu0 0.0
    %3503 = vmatprep.subr.mxu0 0.0
    %3504 = vmatpush1.msra.mxu0 0.0
    %3505 = vmatprep.subr.mxu0 0.0
    %3506 = vmatpush1.msra.mxu0 0.0
    %3507 = vmatprep.subr.mxu0 0.0
    %3508 = vmatpush1.msra.mxu0 0.0
    %3509 = vmatprep.subr.mxu0 0.0
    %3510 = vmatpush1.msra.mxu0 0.0
    %3511 = vmatprep.subr.mxu0 0.0
    %3512 = vmatpush1.msra.mxu0 0.0
    %3513 = vmatprep.subr.mxu0 0.0
    %3514 = vmatpush1.msra.mxu0 0.0
    %3515 = vmatprep.subr.mxu0 0.0
    %3516 = vmatpush1.msra.mxu0 0.0
    %3517 = vmatprep.subr.mxu0 0.0
    %3518 = vmatpush1.msra.mxu0 0.0
    %3519 = vmatprep.subr.mxu0 0.0
    %3520 = vmatpush1.msra.mxu0 0.0
    %3521 = vmatprep.subr.mxu0 0.0
    %3522 = vmatpush1.msra.mxu0 0.0
    %3523 = vmatprep.subr.mxu0 0.0
    %3524 = vmatpush1.msra.mxu0 0.0
    %3525 = vmatprep.subr.mxu0 0.0
    %3526 = vmatpush1.msra.mxu0 0.0
    %3527 = vmatprep.subr.mxu0 0.0
    %3528 = vmatpush1.msra.mxu0 0.0
    %3529 = vmatprep.subr.mxu0 0.0
    %3530 = vmatpush1.msra.mxu0 0.0
    %3531 = vmatprep.subr.mxu0 0.0
    %3532 = vmatpush1.msra.mxu0 0.0
    %3533 = vmatprep.subr.mxu0 0.0
    %3534 = vmatpush1.msra.mxu0 0.0
    %3535 = vmatprep.mubr.f32.mxu0 0.0
    %3536 = vmatmul.mubr.f32.gmra.mrb[0].mxu0 %v3386
    %v3537 = vpop.f32.mrb[0].mxu0
    %v3538 = vadd.f32 0.0, %v3537
    %v3539 = vpop.f32.mrb[0].mxu0
    %v3540 = vadd.f32 0.0, %v3539
    %3541 = vdwg.mxu0
    %v3542 = vadd.f32 %v3352, %v3467
    %v3543 = vadd.f32 %v3353, %v3469
    %v3544 = vadd.f32 %v3354, %v3538
    %v3545 = vadd.f32 %v3355, %v3540
    %s3546 = scalar_lea.vmem %s3, 2016
    %v3547 = vld [vmem:[%s3546] sm:$0xff]
    %v3548 = vld [vmem:[%s3546 + $0x8] sm:$0xff]
    %v3549 = vld [vmem:[%s3546 + $0x10] sm:$0xff]
    %v3550 = vld [vmem:[%s3546 + $0x18] sm:$0xff]
    %v3551 = vld [vmem:[%s3546 + $0x20] sm:$0xff]
    %v3552 = vld [vmem:[%s3546 + $0x28] sm:$0xff]
    %v3553 = vld [vmem:[%s3546 + $0x30] sm:$0xff]
    %v3554 = vld [vmem:[%s3546 + $0x38] sm:$0xff]
    %v3555 = vld [vmem:[%s3546 + $0x40] sm:$0xff]
    %v3556 = vld [vmem:[%s3546 + $0x48] sm:$0xff]
    %v3557 = vld [vmem:[%s3546 + $0x50] sm:$0xff]
    %v3558 = vld [vmem:[%s3546 + $0x58] sm:$0xff]
    %v3559 = vld [vmem:[%s3546 + $0x60] sm:$0xff]
    %v3560 = vld [vmem:[%s3546 + $0x68] sm:$0xff]
    %v3561 = vld [vmem:[%s3546 + $0x70] sm:$0xff]
    %v3562 = vld [vmem:[%s3546 + $0x78] sm:$0xff]
    %v3563 = vld [vmem:[%s3546 + $0x80] sm:$0xff]
    %v3564 = vld [vmem:[%s3546 + $0x88] sm:$0xff]
    %v3565 = vld [vmem:[%s3546 + $0x90] sm:$0xff]
    %v3566 = vld [vmem:[%s3546 + $0x98] sm:$0xff]
    %v3567 = vld [vmem:[%s3546 + $0xa0] sm:$0xff]
    %v3568 = vld [vmem:[%s3546 + $0xa8] sm:$0xff]
    %v3569 = vld [vmem:[%s3546 + $0xb0] sm:$0xff]
    %v3570 = vld [vmem:[%s3546 + $0xb8] sm:$0xff]
    %v3571 = vld [vmem:[%s3546 + $0xc0] sm:$0x3]
    %v3572 = vld [vmem:[%s3546 + $0xc8] sm:$0x3]
    %v3573 = vld [vmem:[%s3546 + $0xd0] sm:$0x3]
    %v3574 = vld [vmem:[%s3546 + $0xd8] sm:$0x3]
    %v3576 = vsel %vm1900, %v1836, 0
    %v3579 = vsel %vm1904, %v3571, 0
    %v3582 = vsel %vm1904, %v3572, 0
    %v3585 = vsel %vm1904, %v3573, 0
    %v3588 = vsel %vm1904, %v3574, 0
    %3590 = vmatprep.subr.mxu0 %v3548
    %3591 = vmatpush1.msra.mxu0 %v3547
    %3592 = vmatprep.subr.mxu0 %v3552
    %3593 = vmatpush1.msra.mxu0 %v3551
    %3594 = vmatprep.subr.mxu0 %v3556
    %3595 = vmatpush1.msra.mxu0 %v3555
    %3596 = vmatprep.subr.mxu0 %v3560
    %3597 = vmatpush1.msra.mxu0 %v3559
    %3598 = vmatprep.subr.mxu0 %v3564
    %3599 = vmatpush1.msra.mxu0 %v3563
    %3600 = vmatprep.subr.mxu0 %v3568
    %3601 = vmatpush1.msra.mxu0 %v3567
    %3602 = vmatprep.subr.mxu0 %v3582
    %3603 = vmatpush1.msra.mxu0 %v3579
    %3604 = vmatprep.subr.mxu0 0.0
    %3605 = vmatpush1.msra.mxu0 0.0
    %3606 = vmatprep.subr.mxu0 0.0
    %3607 = vmatpush1.msra.mxu0 0.0
    %3608 = vmatprep.subr.mxu0 0.0
    %3609 = vmatpush1.msra.mxu0 0.0
    %3610 = vmatprep.subr.mxu0 0.0
    %3611 = vmatpush1.msra.mxu0 0.0
    %3612 = vmatprep.subr.mxu0 0.0
    %3613 = vmatpush1.msra.mxu0 0.0
    %3614 = vmatprep.subr.mxu0 0.0
    %3615 = vmatpush1.msra.mxu0 0.0
    %3616 = vmatprep.subr.mxu0 0.0
    %3617 = vmatpush1.msra.mxu0 0.0
    %3618 = vmatprep.subr.mxu0 0.0
    %3619 = vmatpush1.msra.mxu0 0.0
    %3620 = vmatprep.subr.mxu0 0.0
    %3621 = vmatpush1.msra.mxu0 0.0
    %3622 = vmatprep.subr.mxu0 0.0
    %3623 = vmatpush1.msra.mxu0 0.0
    %3624 = vmatprep.subr.mxu0 0.0
    %3625 = vmatpush1.msra.mxu0 0.0
    %3626 = vmatprep.subr.mxu0 0.0
    %3627 = vmatpush1.msra.mxu0 0.0
    %3628 = vmatprep.subr.mxu0 0.0
    %3629 = vmatpush1.msra.mxu0 0.0
    %3630 = vmatprep.subr.mxu0 0.0
    %3631 = vmatpush1.msra.mxu0 0.0
    %3632 = vmatprep.subr.mxu0 0.0
    %3633 = vmatpush1.msra.mxu0 0.0
    %3634 = vmatprep.subr.mxu0 0.0
    %3635 = vmatpush1.msra.mxu0 0.0
    %3636 = vmatprep.subr.mxu0 0.0
    %3637 = vmatpush1.msra.mxu0 0.0
    %3638 = vmatprep.subr.mxu0 0.0
    %3639 = vmatpush1.msra.mxu0 0.0
    %3640 = vmatprep.subr.mxu0 0.0
    %3641 = vmatpush1.msra.mxu0 0.0
    %3642 = vmatprep.subr.mxu0 0.0
    %3643 = vmatpush1.msra.mxu0 0.0
    %3644 = vmatprep.subr.mxu0 0.0
    %3645 = vmatpush1.msra.mxu0 0.0
    %3646 = vmatprep.subr.mxu0 0.0
    %3647 = vmatpush1.msra.mxu0 0.0
    %3648 = vmatprep.subr.mxu0 0.0
    %3649 = vmatpush1.msra.mxu0 0.0
    %3650 = vmatprep.subr.mxu0 0.0
    %3651 = vmatpush1.msra.mxu0 0.0
    %3652 = vmatprep.subr.mxu0 0.0
    %3653 = vmatpush1.msra.mxu0 0.0
    %3654 = vmatprep.mubr.f32.mxu0 0.0
    %3655 = vmatmul.mubr.f32.gmra.mrb[0].mxu0 %v3576
    %v3656 = vpop.f32.mrb[0].mxu0
    %v3657 = vadd.f32 0.0, %v3656
    %v3658 = vpop.f32.mrb[0].mxu0
    %v3659 = vadd.f32 0.0, %v3658
    %3660 = vdwg.mxu0
    %3661 = vmatprep.subr.mxu0 %v3550
    %3662 = vmatpush1.msra.mxu0 %v3549
    %3663 = vmatprep.subr.mxu0 %v3554
    %3664 = vmatpush1.msra.mxu0 %v3553
    %3665 = vmatprep.subr.mxu0 %v3558
    %3666 = vmatpush1.msra.mxu0 %v3557
    %3667 = vmatprep.subr.mxu0 %v3562
    %3668 = vmatpush1.msra.mxu0 %v3561
    %3669 = vmatprep.subr.mxu0 %v3566
    %3670 = vmatpush1.msra.mxu0 %v3565
    %3671 = vmatprep.subr.mxu0 %v3570
    %3672 = vmatpush1.msra.mxu0 %v3569
    %3673 = vmatprep.subr.mxu0 %v3588
    %3674 = vmatpush1.msra.mxu0 %v3585
    %3675 = vmatprep.subr.mxu0 0.0
    %3676 = vmatpush1.msra.mxu0 0.0
    %3677 = vmatprep.subr.mxu0 0.0
    %3678 = vmatpush1.msra.mxu0 0.0
    %3679 = vmatprep.subr.mxu0 0.0
    %3680 = vmatpush1.msra.mxu0 0.0
    %3681 = vmatprep.subr.mxu0 0.0
    %3682 = vmatpush1.msra.mxu0 0.0
    %3683 = vmatprep.subr.mxu0 0.0
    %3684 = vmatpush1.msra.mxu0 0.0
    %3685 = vmatprep.subr.mxu0 0.0
    %3686 = vmatpush1.msra.mxu0 0.0
    %3687 = vmatprep.subr.mxu0 0.0
    %3688 = vmatpush1.msra.mxu0 0.0
    %3689 = vmatprep.subr.mxu0 0.0
    %3690 = vmatpush1.msra.mxu0 0.0
    %3691 = vmatprep.subr.mxu0 0.0
    %3692 = vmatpush1.msra.mxu0 0.0
    %3693 = vmatprep.subr.mxu0 0.0
    %3694 = vmatpush1.msra.mxu0 0.0
    %3695 = vmatprep.subr.mxu0 0.0
    %3696 = vmatpush1.msra.mxu0 0.0
    %3697 = vmatprep.subr.mxu0 0.0
    %3698 = vmatpush1.msra.mxu0 0.0
    %3699 = vmatprep.subr.mxu0 0.0
    %3700 = vmatpush1.msra.mxu0 0.0
    %3701 = vmatprep.subr.mxu0 0.0
    %3702 = vmatpush1.msra.mxu0 0.0
    %3703 = vmatprep.subr.mxu0 0.0
    %3704 = vmatpush1.msra.mxu0 0.0
    %3705 = vmatprep.subr.mxu0 0.0
    %3706 = vmatpush1.msra.mxu0 0.0
    %3707 = vmatprep.subr.mxu0 0.0
    %3708 = vmatpush1.msra.mxu0 0.0
    %3709 = vmatprep.subr.mxu0 0.0
    %3710 = vmatpush1.msra.mxu0 0.0
    %3711 = vmatprep.subr.mxu0 0.0
    %3712 = vmatpush1.msra.mxu0 0.0
    %3713 = vmatprep.subr.mxu0 0.0
    %3714 = vmatpush1.msra.mxu0 0.0
    %3715 = vmatprep.subr.mxu0 0.0
    %3716 = vmatpush1.msra.mxu0 0.0
    %3717 = vmatprep.subr.mxu0 0.0
    %3718 = vmatpush1.msra.mxu0 0.0
    %3719 = vmatprep.subr.mxu0 0.0
    %3720 = vmatpush1.msra.mxu0 0.0
    %3721 = vmatprep.subr.mxu0 0.0
    %3722 = vmatpush1.msra.mxu0 0.0
    %3723 = vmatprep.subr.mxu0 0.0
    %3724 = vmatpush1.msra.mxu0 0.0
    %3725 = vmatprep.mubr.f32.mxu0 0.0
    %3726 = vmatmul.mubr.f32.gmra.mrb[0].mxu0 %v3576
    %v3727 = vpop.f32.mrb[0].mxu0
    %v3728 = vadd.f32 0.0, %v3727
    %v3729 = vpop.f32.mrb[0].mxu0
    %v3730 = vadd.f32 0.0, %v3729
    %3731 = vdwg.mxu0
    %v3732 = vadd.f32 %v3542, %v3657
    %v3733 = vadd.f32 %v3543, %v3659
    %v3734 = vadd.f32 %v3544, %v3728
    %v3735 = vadd.f32 %v3545, %v3730
    %s3736 = scalar_lea.vmem %s3, 2240
    %v3737 = vld [vmem:[%s3736] sm:$0xff]
    %v3738 = vld [vmem:[%s3736 + $0x8] sm:$0xff]
    %v3739 = vld [vmem:[%s3736 + $0x10] sm:$0xff]
    %v3740 = vld [vmem:[%s3736 + $0x18] sm:$0xff]
    %v3741 = vld [vmem:[%s3736 + $0x20] sm:$0xff]
    %v3742 = vld [vmem:[%s3736 + $0x28] sm:$0xff]
    %v3743 = vld [vmem:[%s3736 + $0x30] sm:$0xff]
    %v3744 = vld [vmem:[%s3736 + $0x38] sm:$0xff]
    %v3745 = vld [vmem:[%s3736 + $0x40] sm:$0xff]
    %v3746 = vld [vmem:[%s3736 + $0x48] sm:$0xff]
    %v3747 = vld [vmem:[%s3736 + $0x50] sm:$0xff]
    %v3748 = vld [vmem:[%s3736 + $0x58] sm:$0xff]
    %v3749 = vld [vmem:[%s3736 + $0x60] sm:$0xff]
    %v3750 = vld [vmem:[%s3736 + $0x68] sm:$0xff]
    %v3751 = vld [vmem:[%s3736 + $0x70] sm:$0xff]
    %v3752 = vld [vmem:[%s3736 + $0x78] sm:$0xff]
    %v3753 = vld [vmem:[%s3736 + $0x80] sm:$0xff]
    %v3754 = vld [vmem:[%s3736 + $0x88] sm:$0xff]
    %v3755 = vld [vmem:[%s3736 + $0x90] sm:$0xff]
    %v3756 = vld [vmem:[%s3736 + $0x98] sm:$0xff]
    %v3757 = vld [vmem:[%s3736 + $0xa0] sm:$0xff]
    %v3758 = vld [vmem:[%s3736 + $0xa8] sm:$0xff]
    %v3759 = vld [vmem:[%s3736 + $0xb0] sm:$0xff]
    %v3760 = vld [vmem:[%s3736 + $0xb8] sm:$0xff]
    %v3761 = vld [vmem:[%s3736 + $0xc0] sm:$0x3]
    %v3762 = vld [vmem:[%s3736 + $0xc8] sm:$0x3]
    %v3763 = vld [vmem:[%s3736 + $0xd0] sm:$0x3]
    %v3764 = vld [vmem:[%s3736 + $0xd8] sm:$0x3]
    %v3766 = vsel %vm1900, %v1837, 0
    %v3769 = vsel %vm1904, %v3761, 0
    %v3772 = vsel %vm1904, %v3762, 0
    %v3775 = vsel %vm1904, %v3763, 0
    %v3778 = vsel %vm1904, %v3764, 0
    %3780 = vmatprep.subr.mxu0 %v3738
    %3781 = vmatpush1.msra.mxu0 %v3737
    %3782 = vmatprep.subr.mxu0 %v3742
    %3783 = vmatpush1.msra.mxu0 %v3741
    %3784 = vmatprep.subr.mxu0 %v3746
    %3785 = vmatpush1.msra.mxu0 %v3745
    %3786 = vmatprep.subr.mxu0 %v3750
    %3787 = vmatpush1.msra.mxu0 %v3749
    %3788 = vmatprep.subr.mxu0 %v3754
    %3789 = vmatpush1.msra.mxu0 %v3753
    %3790 = vmatprep.subr.mxu0 %v3758
    %3791 = vmatpush1.msra.mxu0 %v3757
    %3792 = vmatprep.subr.mxu0 %v3772
    %3793 = vmatpush1.msra.mxu0 %v3769
    %3794 = vmatprep.subr.mxu0 0.0
    %3795 = vmatpush1.msra.mxu0 0.0
    %3796 = vmatprep.subr.mxu0 0.0
    %3797 = vmatpush1.msra.mxu0 0.0
    %3798 = vmatprep.subr.mxu0 0.0
    %3799 = vmatpush1.msra.mxu0 0.0
    %3800 = vmatprep.subr.mxu0 0.0
    %3801 = vmatpush1.msra.mxu0 0.0
    %3802 = vmatprep.subr.mxu0 0.0
    %3803 = vmatpush1.msra.mxu0 0.0
    %3804 = vmatprep.subr.mxu0 0.0
    %3805 = vmatpush1.msra.mxu0 0.0
    %3806 = vmatprep.subr.mxu0 0.0
    %3807 = vmatpush1.msra.mxu0 0.0
    %3808 = vmatprep.subr.mxu0 0.0
    %3809 = vmatpush1.msra.mxu0 0.0
    %3810 = vmatprep.subr.mxu0 0.0
    %3811 = vmatpush1.msra.mxu0 0.0
    %3812 = vmatprep.subr.mxu0 0.0
    %3813 = vmatpush1.msra.mxu0 0.0
    %3814 = vmatprep.subr.mxu0 0.0
    %3815 = vmatpush1.msra.mxu0 0.0
    %3816 = vmatprep.subr.mxu0 0.0
    %3817 = vmatpush1.msra.mxu0 0.0
    %3818 = vmatprep.subr.mxu0 0.0
    %3819 = vmatpush1.msra.mxu0 0.0
    %3820 = vmatprep.subr.mxu0 0.0
    %3821 = vmatpush1.msra.mxu0 0.0
    %3822 = vmatprep.subr.mxu0 0.0
    %3823 = vmatpush1.msra.mxu0 0.0
    %3824 = vmatprep.subr.mxu0 0.0
    %3825 = vmatpush1.msra.mxu0 0.0
    %3826 = vmatprep.subr.mxu0 0.0
    %3827 = vmatpush1.msra.mxu0 0.0
    %3828 = vmatprep.subr.mxu0 0.0
    %3829 = vmatpush1.msra.mxu0 0.0
    %3830 = vmatprep.subr.mxu0 0.0
    %3831 = vmatpush1.msra.mxu0 0.0
    %3832 = vmatprep.subr.mxu0 0.0
    %3833 = vmatpush1.msra.mxu0 0.0
    %3834 = vmatprep.subr.mxu0 0.0
    %3835 = vmatpush1.msra.mxu0 0.0
    %3836 = vmatprep.subr.mxu0 0.0
    %3837 = vmatpush1.msra.mxu0 0.0
    %3838 = vmatprep.subr.mxu0 0.0
    %3839 = vmatpush1.msra.mxu0 0.0
    %3840 = vmatprep.subr.mxu0 0.0
    %3841 = vmatpush1.msra.mxu0 0.0
    %3842 = vmatprep.subr.mxu0 0.0
    %3843 = vmatpush1.msra.mxu0 0.0
    %3844 = vmatprep.mubr.f32.mxu0 0.0
    %3845 = vmatmul.mubr.f32.gmra.mrb[0].mxu0 %v3766
    %v3846 = vpop.f32.mrb[0].mxu0
    %v3847 = vadd.f32 0.0, %v3846
    %v3848 = vpop.f32.mrb[0].mxu0
    %v3849 = vadd.f32 0.0, %v3848
    %3850 = vdwg.mxu0
    %3851 = vmatprep.subr.mxu0 %v3740
    %3852 = vmatpush1.msra.mxu0 %v3739
    %3853 = vmatprep.subr.mxu0 %v3744
    %3854 = vmatpush1.msra.mxu0 %v3743
    %3855 = vmatprep.subr.mxu0 %v3748
    %3856 = vmatpush1.msra.mxu0 %v3747
    %3857 = vmatprep.subr.mxu0 %v3752
    %3858 = vmatpush1.msra.mxu0 %v3751
    %3859 = vmatprep.subr.mxu0 %v3756
    %3860 = vmatpush1.msra.mxu0 %v3755
    %3861 = vmatprep.subr.mxu0 %v3760
    %3862 = vmatpush1.msra.mxu0 %v3759
    %3863 = vmatprep.subr.mxu0 %v3778
    %3864 = vmatpush1.msra.mxu0 %v3775
    %3865 = vmatprep.subr.mxu0 0.0
    %3866 = vmatpush1.msra.mxu0 0.0
    %3867 = vmatprep.subr.mxu0 0.0
    %3868 = vmatpush1.msra.mxu0 0.0
    %3869 = vmatprep.subr.mxu0 0.0
    %3870 = vmatpush1.msra.mxu0 0.0
    %3871 = vmatprep.subr.mxu0 0.0
    %3872 = vmatpush1.msra.mxu0 0.0
    %3873 = vmatprep.subr.mxu0 0.0
    %3874 = vmatpush1.msra.mxu0 0.0
    %3875 = vmatprep.subr.mxu0 0.0
    %3876 = vmatpush1.msra.mxu0 0.0
    %3877 = vmatprep.subr.mxu0 0.0
    %3878 = vmatpush1.msra.mxu0 0.0
    %3879 = vmatprep.subr.mxu0 0.0
    %3880 = vmatpush1.msra.mxu0 0.0
    %3881 = vmatprep.subr.mxu0 0.0
    %3882 = vmatpush1.msra.mxu0 0.0
    %3883 = vmatprep.subr.mxu0 0.0
    %3884 = vmatpush1.msra.mxu0 0.0
    %3885 = vmatprep.subr.mxu0 0.0
    %3886 = vmatpush1.msra.mxu0 0.0
    %3887 = vmatprep.subr.mxu0 0.0
    %3888 = vmatpush1.msra.mxu0 0.0
    %3889 = vmatprep.subr.mxu0 0.0
    %3890 = vmatpush1.msra.mxu0 0.0
    %3891 = vmatprep.subr.mxu0 0.0
    %3892 = vmatpush1.msra.mxu0 0.0
    %3893 = vmatprep.subr.mxu0 0.0
    %3894 = vmatpush1.msra.mxu0 0.0
    %3895 = vmatprep.subr.mxu0 0.0
    %3896 = vmatpush1.msra.mxu0 0.0
    %3897 = vmatprep.subr.mxu0 0.0
    %3898 = vmatpush1.msra.mxu0 0.0
    %3899 = vmatprep.subr.mxu0 0.0
    %3900 = vmatpush1.msra.mxu0 0.0
    %3901 = vmatprep.subr.mxu0 0.0
    %3902 = vmatpush1.msra.mxu0 0.0
    %3903 = vmatprep.subr.mxu0 0.0
    %3904 = vmatpush1.msra.mxu0 0.0
    %3905 = vmatprep.subr.mxu0 0.0
    %3906 = vmatpush1.msra.mxu0 0.0
    %3907 = vmatprep.subr.mxu0 0.0
    %3908 = vmatpush1.msra.mxu0 0.0
    %3909 = vmatprep.subr.mxu0 0.0
    %3910 = vmatpush1.msra.mxu0 0.0
    %3911 = vmatprep.subr.mxu0 0.0
    %3912 = vmatpush1.msra.mxu0 0.0
    %3913 = vmatprep.subr.mxu0 0.0
    %3914 = vmatpush1.msra.mxu0 0.0
    %3915 = vmatprep.mubr.f32.mxu0 0.0
    %3916 = vmatmul.mubr.f32.gmra.mrb[0].mxu0 %v3766
    %v3917 = vpop.f32.mrb[0].mxu0
    %v3918 = vadd.f32 0.0, %v3917
    %v3919 = vpop.f32.mrb[0].mxu0
    %v3920 = vadd.f32 0.0, %v3919
    %3921 = vdwg.mxu0
    %v3922 = vadd.f32 %v3732, %v3847
    %v3923 = vadd.f32 %v3733, %v3849
    %v3924 = vadd.f32 %v3734, %v3918
    %v3925 = vadd.f32 %v3735, %v3920
    %s3926 = scalar_lea.vmem %s3, 2464
    %v3927 = vld [vmem:[%s3926] sm:$0xff]
    %v3928 = vld [vmem:[%s3926 + $0x8] sm:$0xff]
    %v3929 = vld [vmem:[%s3926 + $0x10] sm:$0xff]
    %v3930 = vld [vmem:[%s3926 + $0x18] sm:$0xff]
    %v3931 = vld [vmem:[%s3926 + $0x20] sm:$0xff]
    %v3932 = vld [vmem:[%s3926 + $0x28] sm:$0xff]
    %v3933 = vld [vmem:[%s3926 + $0x30] sm:$0xff]
    %v3934 = vld [vmem:[%s3926 + $0x38] sm:$0xff]
    %v3935 = vld [vmem:[%s3926 + $0x40] sm:$0xff]
    %v3936 = vld [vmem:[%s3926 + $0x48] sm:$0xff]
    %v3937 = vld [vmem:[%s3926 + $0x50] sm:$0xff]
    %v3938 = vld [vmem:[%s3926 + $0x58] sm:$0xff]
    %v3939 = vld [vmem:[%s3926 + $0x60] sm:$0xff]
    %v3940 = vld [vmem:[%s3926 + $0x68] sm:$0xff]
    %v3941 = vld [vmem:[%s3926 + $0x70] sm:$0xff]
    %v3942 = vld [vmem:[%s3926 + $0x78] sm:$0xff]
    %v3943 = vld [vmem:[%s3926 + $0x80] sm:$0xff]
    %v3944 = vld [vmem:[%s3926 + $0x88] sm:$0xff]
    %v3945 = vld [vmem:[%s3926 + $0x90] sm:$0xff]
    %v3946 = vld [vmem:[%s3926 + $0x98] sm:$0xff]
    %v3947 = vld [vmem:[%s3926 + $0xa0] sm:$0xff]
    %v3948 = vld [vmem:[%s3926 + $0xa8] sm:$0xff]
    %v3949 = vld [vmem:[%s3926 + $0xb0] sm:$0xff]
    %v3950 = vld [vmem:[%s3926 + $0xb8] sm:$0xff]
    %v3951 = vld [vmem:[%s3926 + $0xc0] sm:$0x3]
    %v3952 = vld [vmem:[%s3926 + $0xc8] sm:$0x3]
    %v3953 = vld [vmem:[%s3926 + $0xd0] sm:$0x3]
    %v3954 = vld [vmem:[%s3926 + $0xd8] sm:$0x3]
    %v3956 = vsel %vm1900, %v1838, 0
    %v3959 = vsel %vm1904, %v3951, 0
    %v3962 = vsel %vm1904, %v3952, 0
    %v3965 = vsel %vm1904, %v3953, 0
    %v3968 = vsel %vm1904, %v3954, 0
    %3970 = vmatprep.subr.mxu0 %v3928
    %3971 = vmatpush1.msra.mxu0 %v3927
    %3972 = vmatprep.subr.mxu0 %v3932
    %3973 = vmatpush1.msra.mxu0 %v3931
    %3974 = vmatprep.subr.mxu0 %v3936
    %3975 = vmatpush1.msra.mxu0 %v3935
    %3976 = vmatprep.subr.mxu0 %v3940
    %3977 = vmatpush1.msra.mxu0 %v3939
    %3978 = vmatprep.subr.mxu0 %v3944
    %3979 = vmatpush1.msra.mxu0 %v3943
    %3980 = vmatprep.subr.mxu0 %v3948
    %3981 = vmatpush1.msra.mxu0 %v3947
    %3982 = vmatprep.subr.mxu0 %v3962
    %3983 = vmatpush1.msra.mxu0 %v3959
    %3984 = vmatprep.subr.mxu0 0.0
    %3985 = vmatpush1.msra.mxu0 0.0
    %3986 = vmatprep.subr.mxu0 0.0
    %3987 = vmatpush1.msra.mxu0 0.0
    %3988 = vmatprep.subr.mxu0 0.0
    %3989 = vmatpush1.msra.mxu0 0.0
    %3990 = vmatprep.subr.mxu0 0.0
    %3991 = vmatpush1.msra.mxu0 0.0
    %3992 = vmatprep.subr.mxu0 0.0
    %3993 = vmatpush1.msra.mxu0 0.0
    %3994 = vmatprep.subr.mxu0 0.0
    %3995 = vmatpush1.msra.mxu0 0.0
    %3996 = vmatprep.subr.mxu0 0.0
    %3997 = vmatpush1.msra.mxu0 0.0
    %3998 = vmatprep.subr.mxu0 0.0
    %3999 = vmatpush1.msra.mxu0 0.0
    %4000 = vmatprep.subr.mxu0 0.0
    %4001 = vmatpush1.msra.mxu0 0.0
    %4002 = vmatprep.subr.mxu0 0.0
    %4003 = vmatpush1.msra.mxu0 0.0
    %4004 = vmatprep.subr.mxu0 0.0
    %4005 = vmatpush1.msra.mxu0 0.0
    %4006 = vmatprep.subr.mxu0 0.0
    %4007 = vmatpush1.msra.mxu0 0.0
    %4008 = vmatprep.subr.mxu0 0.0
    %4009 = vmatpush1.msra.mxu0 0.0
    %4010 = vmatprep.subr.mxu0 0.0
    %4011 = vmatpush1.msra.mxu0 0.0
    %4012 = vmatprep.subr.mxu0 0.0
    %4013 = vmatpush1.msra.mxu0 0.0
    %4014 = vmatprep.subr.mxu0 0.0
    %4015 = vmatpush1.msra.mxu0 0.0
    %4016 = vmatprep.subr.mxu0 0.0
    %4017 = vmatpush1.msra.mxu0 0.0
    %4018 = vmatprep.subr.mxu0 0.0
    %4019 = vmatpush1.msra.mxu0 0.0
    %4020 = vmatprep.subr.mxu0 0.0
    %4021 = vmatpush1.msra.mxu0 0.0
    %4022 = vmatprep.subr.mxu0 0.0
    %4023 = vmatpush1.msra.mxu0 0.0
    %4024 = vmatprep.subr.mxu0 0.0
    %4025 = vmatpush1.msra.mxu0 0.0
    %4026 = vmatprep.subr.mxu0 0.0
    %4027 = vmatpush1.msra.mxu0 0.0
    %4028 = vmatprep.subr.mxu0 0.0
    %4029 = vmatpush1.msra.mxu0 0.0
    %4030 = vmatprep.subr.mxu0 0.0
    %4031 = vmatpush1.msra.mxu0 0.0
    %4032 = vmatprep.subr.mxu0 0.0
    %4033 = vmatpush1.msra.mxu0 0.0
    %4034 = vmatprep.mubr.f32.mxu0 0.0
    %4035 = vmatmul.mubr.f32.gmra.mrb[0].mxu0 %v3956
    %v4036 = vpop.f32.mrb[0].mxu0
    %v4037 = vadd.f32 0.0, %v4036
    %v4038 = vpop.f32.mrb[0].mxu0
    %v4039 = vadd.f32 0.0, %v4038
    %4040 = vdwg.mxu0
    %4041 = vmatprep.subr.mxu0 %v3930
    %4042 = vmatpush1.msra.mxu0 %v3929
    %4043 = vmatprep.subr.mxu0 %v3934
    %4044 = vmatpush1.msra.mxu0 %v3933
    %4045 = vmatprep.subr.mxu0 %v3938
    %4046 = vmatpush1.msra.mxu0 %v3937
    %4047 = vmatprep.subr.mxu0 %v3942
    %4048 = vmatpush1.msra.mxu0 %v3941
    %4049 = vmatprep.subr.mxu0 %v3946
    %4050 = vmatpush1.msra.mxu0 %v3945
    %4051 = vmatprep.subr.mxu0 %v3950
    %4052 = vmatpush1.msra.mxu0 %v3949
    %4053 = vmatprep.subr.mxu0 %v3968
    %4054 = vmatpush1.msra.mxu0 %v3965
    %4055 = vmatprep.subr.mxu0 0.0
    %4056 = vmatpush1.msra.mxu0 0.0
    %4057 = vmatprep.subr.mxu0 0.0
    %4058 = vmatpush1.msra.mxu0 0.0
    %4059 = vmatprep.subr.mxu0 0.0
    %4060 = vmatpush1.msra.mxu0 0.0
    %4061 = vmatprep.subr.mxu0 0.0
    %4062 = vmatpush1.msra.mxu0 0.0
    %4063 = vmatprep.subr.mxu0 0.0
    %4064 = vmatpush1.msra.mxu0 0.0
    %4065 = vmatprep.subr.mxu0 0.0
    %4066 = vmatpush1.msra.mxu0 0.0
    %4067 = vmatprep.subr.mxu0 0.0
    %4068 = vmatpush1.msra.mxu0 0.0
    %4069 = vmatprep.subr.mxu0 0.0
    %4070 = vmatpush1.msra.mxu0 0.0
    %4071 = vmatprep.subr.mxu0 0.0
    %4072 = vmatpush1.msra.mxu0 0.0
    %4073 = vmatprep.subr.mxu0 0.0
    %4074 = vmatpush1.msra.mxu0 0.0
    %4075 = vmatprep.subr.mxu0 0.0
    %4076 = vmatpush1.msra.mxu0 0.0
    %4077 = vmatprep.subr.mxu0 0.0
    %4078 = vmatpush1.msra.mxu0 0.0
    %4079 = vmatprep.subr.mxu0 0.0
    %4080 = vmatpush1.msra.mxu0 0.0
    %4081 = vmatprep.subr.mxu0 0.0
    %4082 = vmatpush1.msra.mxu0 0.0
    %4083 = vmatprep.subr.mxu0 0.0
    %4084 = vmatpush1.msra.mxu0 0.0
    %4085 = vmatprep.subr.mxu0 0.0
    %4086 = vmatpush1.msra.mxu0 0.0
    %4087 = vmatprep.subr.mxu0 0.0
    %4088 = vmatpush1.msra.mxu0 0.0
    %4089 = vmatprep.subr.mxu0 0.0
    %4090 = vmatpush1.msra.mxu0 0.0
    %4091 = vmatprep.subr.mxu0 0.0
    %4092 = vmatpush1.msra.mxu0 0.0
    %4093 = vmatprep.subr.mxu0 0.0
    %4094 = vmatpush1.msra.mxu0 0.0
    %4095 = vmatprep.subr.mxu0 0.0
    %4096 = vmatpush1.msra.mxu0 0.0
    %4097 = vmatprep.subr.mxu0 0.0
    %4098 = vmatpush1.msra.mxu0 0.0
    %4099 = vmatprep.subr.mxu0 0.0
    %4100 = vmatpush1.msra.mxu0 0.0
    %4101 = vmatprep.subr.mxu0 0.0
    %4102 = vmatpush1.msra.mxu0 0.0
    %4103 = vmatprep.subr.mxu0 0.0
    %4104 = vmatpush1.msra.mxu0 0.0
    %4105 = vmatprep.mubr.f32.mxu0 0.0
    %4106 = vmatmul.mubr.f32.gmra.mrb[0].mxu0 %v3956
    %v4107 = vpop.f32.mrb[0].mxu0
    %v4108 = vadd.f32 0.0, %v4107
    %v4109 = vpop.f32.mrb[0].mxu0
    %v4110 = vadd.f32 0.0, %v4109
    %4111 = vdwg.mxu0
    %v4112 = vadd.f32 %v3922, %v4037
    %v4113 = vadd.f32 %v3923, %v4039
    %v4114 = vadd.f32 %v3924, %v4108
    %v4115 = vadd.f32 %v3925, %v4110
    %s4116 = scalar_lea.vmem %s3, 2688
    %v4117 = vld [vmem:[%s4116] sm:$0xff]
    %v4118 = vld [vmem:[%s4116 + $0x8] sm:$0xff]
    %v4119 = vld [vmem:[%s4116 + $0x10] sm:$0xff]
    %v4120 = vld [vmem:[%s4116 + $0x18] sm:$0xff]
    %v4121 = vld [vmem:[%s4116 + $0x20] sm:$0xff]
    %v4122 = vld [vmem:[%s4116 + $0x28] sm:$0xff]
    %v4123 = vld [vmem:[%s4116 + $0x30] sm:$0xff]
    %v4124 = vld [vmem:[%s4116 + $0x38] sm:$0xff]
    %v4125 = vld [vmem:[%s4116 + $0x40] sm:$0xff]
    %v4126 = vld [vmem:[%s4116 + $0x48] sm:$0xff]
    %v4127 = vld [vmem:[%s4116 + $0x50] sm:$0xff]
    %v4128 = vld [vmem:[%s4116 + $0x58] sm:$0xff]
    %v4129 = vld [vmem:[%s4116 + $0x60] sm:$0xff]
    %v4130 = vld [vmem:[%s4116 + $0x68] sm:$0xff]
    %v4131 = vld [vmem:[%s4116 + $0x70] sm:$0xff]
    %v4132 = vld [vmem:[%s4116 + $0x78] sm:$0xff]
    %v4133 = vld [vmem:[%s4116 + $0x80] sm:$0xff]
    %v4134 = vld [vmem:[%s4116 + $0x88] sm:$0xff]
    %v4135 = vld [vmem:[%s4116 + $0x90] sm:$0xff]
    %v4136 = vld [vmem:[%s4116 + $0x98] sm:$0xff]
    %v4137 = vld [vmem:[%s4116 + $0xa0] sm:$0xff]
    %v4138 = vld [vmem:[%s4116 + $0xa8] sm:$0xff]
    %v4139 = vld [vmem:[%s4116 + $0xb0] sm:$0xff]
    %v4140 = vld [vmem:[%s4116 + $0xb8] sm:$0xff]
    %v4141 = vld [vmem:[%s4116 + $0xc0] sm:$0x3]
    %v4142 = vld [vmem:[%s4116 + $0xc8] sm:$0x3]
    %v4143 = vld [vmem:[%s4116 + $0xd0] sm:$0x3]
    %v4144 = vld [vmem:[%s4116 + $0xd8] sm:$0x3]
    %v4146 = vsel %vm1900, %v1839, 0
    %v4149 = vsel %vm1904, %v4141, 0
    %v4152 = vsel %vm1904, %v4142, 0
    %v4155 = vsel %vm1904, %v4143, 0
    %v4158 = vsel %vm1904, %v4144, 0
    %4160 = vmatprep.subr.mxu0 %v4118
    %4161 = vmatpush1.msra.mxu0 %v4117
    %4162 = vmatprep.subr.mxu0 %v4122
    %4163 = vmatpush1.msra.mxu0 %v4121
    %4164 = vmatprep.subr.mxu0 %v4126
    %4165 = vmatpush1.msra.mxu0 %v4125
    %4166 = vmatprep.subr.mxu0 %v4130
    %4167 = vmatpush1.msra.mxu0 %v4129
    %4168 = vmatprep.subr.mxu0 %v4134
    %4169 = vmatpush1.msra.mxu0 %v4133
    %4170 = vmatprep.subr.mxu0 %v4138
    %4171 = vmatpush1.msra.mxu0 %v4137
    %4172 = vmatprep.subr.mxu0 %v4152
    %4173 = vmatpush1.msra.mxu0 %v4149
    %4174 = vmatprep.subr.mxu0 0.0
    %4175 = vmatpush1.msra.mxu0 0.0
    %4176 = vmatprep.subr.mxu0 0.0
    %4177 = vmatpush1.msra.mxu0 0.0
    %4178 = vmatprep.subr.mxu0 0.0
    %4179 = vmatpush1.msra.mxu0 0.0
    %4180 = vmatprep.subr.mxu0 0.0
    %4181 = vmatpush1.msra.mxu0 0.0
    %4182 = vmatprep.subr.mxu0 0.0
    %4183 = vmatpush1.msra.mxu0 0.0
    %4184 = vmatprep.subr.mxu0 0.0
    %4185 = vmatpush1.msra.mxu0 0.0
    %4186 = vmatprep.subr.mxu0 0.0
    %4187 = vmatpush1.msra.mxu0 0.0
    %4188 = vmatprep.subr.mxu0 0.0
    %4189 = vmatpush1.msra.mxu0 0.0
    %4190 = vmatprep.subr.mxu0 0.0
    %4191 = vmatpush1.msra.mxu0 0.0
    %4192 = vmatprep.subr.mxu0 0.0
    %4193 = vmatpush1.msra.mxu0 0.0
    %4194 = vmatprep.subr.mxu0 0.0
    %4195 = vmatpush1.msra.mxu0 0.0
    %4196 = vmatprep.subr.mxu0 0.0
    %4197 = vmatpush1.msra.mxu0 0.0
    %4198 = vmatprep.subr.mxu0 0.0
    %4199 = vmatpush1.msra.mxu0 0.0
    %4200 = vmatprep.subr.mxu0 0.0
    %4201 = vmatpush1.msra.mxu0 0.0
    %4202 = vmatprep.subr.mxu0 0.0
    %4203 = vmatpush1.msra.mxu0 0.0
    %4204 = vmatprep.subr.mxu0 0.0
    %4205 = vmatpush1.msra.mxu0 0.0
    %4206 = vmatprep.subr.mxu0 0.0
    %4207 = vmatpush1.msra.mxu0 0.0
    %4208 = vmatprep.subr.mxu0 0.0
    %4209 = vmatpush1.msra.mxu0 0.0
    %4210 = vmatprep.subr.mxu0 0.0
    %4211 = vmatpush1.msra.mxu0 0.0
    %4212 = vmatprep.subr.mxu0 0.0
    %4213 = vmatpush1.msra.mxu0 0.0
    %4214 = vmatprep.subr.mxu0 0.0
    %4215 = vmatpush1.msra.mxu0 0.0
    %4216 = vmatprep.subr.mxu0 0.0
    %4217 = vmatpush1.msra.mxu0 0.0
    %4218 = vmatprep.subr.mxu0 0.0
    %4219 = vmatpush1.msra.mxu0 0.0
    %4220 = vmatprep.subr.mxu0 0.0
    %4221 = vmatpush1.msra.mxu0 0.0
    %4222 = vmatprep.subr.mxu0 0.0
    %4223 = vmatpush1.msra.mxu0 0.0
    %4224 = vmatprep.mubr.f32.mxu0 0.0
    %4225 = vmatmul.mubr.f32.gmra.mrb[0].mxu0 %v4146
    %v4226 = vpop.f32.mrb[0].mxu0
    %v4227 = vadd.f32 0.0, %v4226
    %v4228 = vpop.f32.mrb[0].mxu0
    %v4229 = vadd.f32 0.0, %v4228
    %4230 = vdwg.mxu0
    %4231 = vmatprep.subr.mxu0 %v4120
    %4232 = vmatpush1.msra.mxu0 %v4119
    %4233 = vmatprep.subr.mxu0 %v4124
    %4234 = vmatpush1.msra.mxu0 %v4123
    %4235 = vmatprep.subr.mxu0 %v4128
    %4236 = vmatpush1.msra.mxu0 %v4127
    %4237 = vmatprep.subr.mxu0 %v4132
    %4238 = vmatpush1.msra.mxu0 %v4131
    %4239 = vmatprep.subr.mxu0 %v4136
    %4240 = vmatpush1.msra.mxu0 %v4135
    %4241 = vmatprep.subr.mxu0 %v4140
    %4242 = vmatpush1.msra.mxu0 %v4139
    %4243 = vmatprep.subr.mxu0 %v4158
    %4244 = vmatpush1.msra.mxu0 %v4155
    %4245 = vmatprep.subr.mxu0 0.0
    %4246 = vmatpush1.msra.mxu0 0.0
    %4247 = vmatprep.subr.mxu0 0.0
    %4248 = vmatpush1.msra.mxu0 0.0
    %4249 = vmatprep.subr.mxu0 0.0
    %4250 = vmatpush1.msra.mxu0 0.0
    %4251 = vmatprep.subr.mxu0 0.0
    %4252 = vmatpush1.msra.mxu0 0.0
    %4253 = vmatprep.subr.mxu0 0.0
    %4254 = vmatpush1.msra.mxu0 0.0
    %4255 = vmatprep.subr.mxu0 0.0
    %4256 = vmatpush1.msra.mxu0 0.0
    %4257 = vmatprep.subr.mxu0 0.0
    %4258 = vmatpush1.msra.mxu0 0.0
    %4259 = vmatprep.subr.mxu0 0.0
    %4260 = vmatpush1.msra.mxu0 0.0
    %4261 = vmatprep.subr.mxu0 0.0
    %4262 = vmatpush1.msra.mxu0 0.0
    %4263 = vmatprep.subr.mxu0 0.0
    %4264 = vmatpush1.msra.mxu0 0.0
    %4265 = vmatprep.subr.mxu0 0.0
    %4266 = vmatpush1.msra.mxu0 0.0
    %4267 = vmatprep.subr.mxu0 0.0
    %4268 = vmatpush1.msra.mxu0 0.0
    %4269 = vmatprep.subr.mxu0 0.0
    %4270 = vmatpush1.msra.mxu0 0.0
    %4271 = vmatprep.subr.mxu0 0.0
    %4272 = vmatpush1.msra.mxu0 0.0
    %4273 = vmatprep.subr.mxu0 0.0
    %4274 = vmatpush1.msra.mxu0 0.0
    %4275 = vmatprep.subr.mxu0 0.0
    %4276 = vmatpush1.msra.mxu0 0.0
    %4277 = vmatprep.subr.mxu0 0.0
    %4278 = vmatpush1.msra.mxu0 0.0
    %4279 = vmatprep.subr.mxu0 0.0
    %4280 = vmatpush1.msra.mxu0 0.0
    %4281 = vmatprep.subr.mxu0 0.0
    %4282 = vmatpush1.msra.mxu0 0.0
    %4283 = vmatprep.subr.mxu0 0.0
    %4284 = vmatpush1.msra.mxu0 0.0
    %4285 = vmatprep.subr.mxu0 0.0
    %4286 = vmatpush1.msra.mxu0 0.0
    %4287 = vmatprep.subr.mxu0 0.0
    %4288 = vmatpush1.msra.mxu0 0.0
    %4289 = vmatprep.subr.mxu0 0.0
    %4290 = vmatpush1.msra.mxu0 0.0
    %4291 = vmatprep.subr.mxu0 0.0
    %4292 = vmatpush1.msra.mxu0 0.0
    %4293 = vmatprep.subr.mxu0 0.0
    %4294 = vmatpush1.msra.mxu0 0.0
    %4295 = vmatprep.mubr.f32.mxu0 0.0
    %4296 = vmatmul.mubr.f32.gmra.mrb[0].mxu0 %v4146
    %v4297 = vpop.f32.mrb[0].mxu0
    %v4298 = vadd.f32 0.0, %v4297
    %v4299 = vpop.f32.mrb[0].mxu0
    %v4300 = vadd.f32 0.0, %v4299
    %4301 = vdwg.mxu0
    %v4302 = vadd.f32 %v4112, %v4227
    %v4303 = vadd.f32 %v4113, %v4229
    %v4304 = vadd.f32 %v4114, %v4298
    %v4305 = vadd.f32 %v4115, %v4300
    %s4306 = scalar_lea.vmem %s3, 2912
    %v4307 = vld [vmem:[%s4306] sm:$0xff]
    %v4308 = vld [vmem:[%s4306 + $0x8] sm:$0xff]
    %v4309 = vld [vmem:[%s4306 + $0x10] sm:$0xff]
    %v4310 = vld [vmem:[%s4306 + $0x18] sm:$0xff]
    %v4311 = vld [vmem:[%s4306 + $0x20] sm:$0xff]
    %v4312 = vld [vmem:[%s4306 + $0x28] sm:$0xff]
    %v4313 = vld [vmem:[%s4306 + $0x30] sm:$0xff]
    %v4314 = vld [vmem:[%s4306 + $0x38] sm:$0xff]
    %v4315 = vld [vmem:[%s4306 + $0x40] sm:$0xff]
    %v4316 = vld [vmem:[%s4306 + $0x48] sm:$0xff]
    %v4317 = vld [vmem:[%s4306 + $0x50] sm:$0xff]
    %v4318 = vld [vmem:[%s4306 + $0x58] sm:$0xff]
    %v4319 = vld [vmem:[%s4306 + $0x60] sm:$0xff]
    %v4320 = vld [vmem:[%s4306 + $0x68] sm:$0xff]
    %v4321 = vld [vmem:[%s4306 + $0x70] sm:$0xff]
    %v4322 = vld [vmem:[%s4306 + $0x78] sm:$0xff]
    %v4323 = vld [vmem:[%s4306 + $0x80] sm:$0xff]
    %v4324 = vld [vmem:[%s4306 + $0x88] sm:$0xff]
    %v4325 = vld [vmem:[%s4306 + $0x90] sm:$0xff]
    %v4326 = vld [vmem:[%s4306 + $0x98] sm:$0xff]
    %v4327 = vld [vmem:[%s4306 + $0xa0] sm:$0xff]
    %v4328 = vld [vmem:[%s4306 + $0xa8] sm:$0xff]
    %v4329 = vld [vmem:[%s4306 + $0xb0] sm:$0xff]
    %v4330 = vld [vmem:[%s4306 + $0xb8] sm:$0xff]
    %v4331 = vld [vmem:[%s4306 + $0xc0] sm:$0x3]
    %v4332 = vld [vmem:[%s4306 + $0xc8] sm:$0x3]
    %v4333 = vld [vmem:[%s4306 + $0xd0] sm:$0x3]
    %v4334 = vld [vmem:[%s4306 + $0xd8] sm:$0x3]
    %v4336 = vsel %vm1900, %v1840, 0
    %v4339 = vsel %vm1904, %v4331, 0
    %v4342 = vsel %vm1904, %v4332, 0
    %v4345 = vsel %vm1904, %v4333, 0
    %v4348 = vsel %vm1904, %v4334, 0
    %4350 = vmatprep.subr.mxu0 %v4308
    %4351 = vmatpush1.msra.mxu0 %v4307
    %4352 = vmatprep.subr.mxu0 %v4312
    %4353 = vmatpush1.msra.mxu0 %v4311
    %4354 = vmatprep.subr.mxu0 %v4316
    %4355 = vmatpush1.msra.mxu0 %v4315
    %4356 = vmatprep.subr.mxu0 %v4320
    %4357 = vmatpush1.msra.mxu0 %v4319
    %4358 = vmatprep.subr.mxu0 %v4324
    %4359 = vmatpush1.msra.mxu0 %v4323
    %4360 = vmatprep.subr.mxu0 %v4328
    %4361 = vmatpush1.msra.mxu0 %v4327
    %4362 = vmatprep.subr.mxu0 %v4342
    %4363 = vmatpush1.msra.mxu0 %v4339
    %4364 = vmatprep.subr.mxu0 0.0
    %4365 = vmatpush1.msra.mxu0 0.0
    %4366 = vmatprep.subr.mxu0 0.0
    %4367 = vmatpush1.msra.mxu0 0.0
    %4368 = vmatprep.subr.mxu0 0.0
    %4369 = vmatpush1.msra.mxu0 0.0
    %4370 = vmatprep.subr.mxu0 0.0
    %4371 = vmatpush1.msra.mxu0 0.0
    %4372 = vmatprep.subr.mxu0 0.0
    %4373 = vmatpush1.msra.mxu0 0.0
    %4374 = vmatprep.subr.mxu0 0.0
    %4375 = vmatpush1.msra.mxu0 0.0
    %4376 = vmatprep.subr.mxu0 0.0
    %4377 = vmatpush1.msra.mxu0 0.0
    %4378 = vmatprep.subr.mxu0 0.0
    %4379 = vmatpush1.msra.mxu0 0.0
    %4380 = vmatprep.subr.mxu0 0.0
    %4381 = vmatpush1.msra.mxu0 0.0
    %4382 = vmatprep.subr.mxu0 0.0
    %4383 = vmatpush1.msra.mxu0 0.0
    %4384 = vmatprep.subr.mxu0 0.0
    %4385 = vmatpush1.msra.mxu0 0.0
    %4386 = vmatprep.subr.mxu0 0.0
    %4387 = vmatpush1.msra.mxu0 0.0
    %4388 = vmatprep.subr.mxu0 0.0
    %4389 = vmatpush1.msra.mxu0 0.0
    %4390 = vmatprep.subr.mxu0 0.0
    %4391 = vmatpush1.msra.mxu0 0.0
    %4392 = vmatprep.subr.mxu0 0.0
    %4393 = vmatpush1.msra.mxu0 0.0
    %4394 = vmatprep.subr.mxu0 0.0
    %4395 = vmatpush1.msra.mxu0 0.0
    %4396 = vmatprep.subr.mxu0 0.0
    %4397 = vmatpush1.msra.mxu0 0.0
    %4398 = vmatprep.subr.mxu0 0.0
    %4399 = vmatpush1.msra.mxu0 0.0
    %4400 = vmatprep.subr.mxu0 0.0
    %4401 = vmatpush1.msra.mxu0 0.0
    %4402 = vmatprep.subr.mxu0 0.0
    %4403 = vmatpush1.msra.mxu0 0.0
    %4404 = vmatprep.subr.mxu0 0.0
    %4405 = vmatpush1.msra.mxu0 0.0
    %4406 = vmatprep.subr.mxu0 0.0
    %4407 = vmatpush1.msra.mxu0 0.0
    %4408 = vmatprep.subr.mxu0 0.0
    %4409 = vmatpush1.msra.mxu0 0.0
    %4410 = vmatprep.subr.mxu0 0.0
    %4411 = vmatpush1.msra.mxu0 0.0
    %4412 = vmatprep.subr.mxu0 0.0
    %4413 = vmatpush1.msra.mxu0 0.0
    %4414 = vmatprep.mubr.f32.mxu0 0.0
    %4415 = vmatmul.mubr.f32.gmra.mrb[0].mxu0 %v4336
    %v4416 = vpop.f32.mrb[0].mxu0
    %v4417 = vadd.f32 0.0, %v4416
    %v4418 = vpop.f32.mrb[0].mxu0
    %v4419 = vadd.f32 0.0, %v4418
    %4420 = vdwg.mxu0
    %4421 = vmatprep.subr.mxu0 %v4310
    %4422 = vmatpush1.msra.mxu0 %v4309
    %4423 = vmatprep.subr.mxu0 %v4314
    %4424 = vmatpush1.msra.mxu0 %v4313
    %4425 = vmatprep.subr.mxu0 %v4318
    %4426 = vmatpush1.msra.mxu0 %v4317
    %4427 = vmatprep.subr.mxu0 %v4322
    %4428 = vmatpush1.msra.mxu0 %v4321
    %4429 = vmatprep.subr.mxu0 %v4326
    %4430 = vmatpush1.msra.mxu0 %v4325
    %4431 = vmatprep.subr.mxu0 %v4330
    %4432 = vmatpush1.msra.mxu0 %v4329
    %4433 = vmatprep.subr.mxu0 %v4348
    %4434 = vmatpush1.msra.mxu0 %v4345
    %4435 = vmatprep.subr.mxu0 0.0
    %4436 = vmatpush1.msra.mxu0 0.0
    %4437 = vmatprep.subr.mxu0 0.0
    %4438 = vmatpush1.msra.mxu0 0.0
    %4439 = vmatprep.subr.mxu0 0.0
    %4440 = vmatpush1.msra.mxu0 0.0
    %4441 = vmatprep.subr.mxu0 0.0
    %4442 = vmatpush1.msra.mxu0 0.0
    %4443 = vmatprep.subr.mxu0 0.0
    %4444 = vmatpush1.msra.mxu0 0.0
    %4445 = vmatprep.subr.mxu0 0.0
    %4446 = vmatpush1.msra.mxu0 0.0
    %4447 = vmatprep.subr.mxu0 0.0
    %4448 = vmatpush1.msra.mxu0 0.0
    %4449 = vmatprep.subr.mxu0 0.0
    %4450 = vmatpush1.msra.mxu0 0.0
    %4451 = vmatprep.subr.mxu0 0.0
    %4452 = vmatpush1.msra.mxu0 0.0
    %4453 = vmatprep.subr.mxu0 0.0
    %4454 = vmatpush1.msra.mxu0 0.0
    %4455 = vmatprep.subr.mxu0 0.0
    %4456 = vmatpush1.msra.mxu0 0.0
    %4457 = vmatprep.subr.mxu0 0.0
    %4458 = vmatpush1.msra.mxu0 0.0
    %4459 = vmatprep.subr.mxu0 0.0
    %4460 = vmatpush1.msra.mxu0 0.0
    %4461 = vmatprep.subr.mxu0 0.0
    %4462 = vmatpush1.msra.mxu0 0.0
    %4463 = vmatprep.subr.mxu0 0.0
    %4464 = vmatpush1.msra.mxu0 0.0
    %4465 = vmatprep.subr.mxu0 0.0
    %4466 = vmatpush1.msra.mxu0 0.0
    %4467 = vmatprep.subr.mxu0 0.0
    %4468 = vmatpush1.msra.mxu0 0.0
    %4469 = vmatprep.subr.mxu0 0.0
    %4470 = vmatpush1.msra.mxu0 0.0
    %4471 = vmatprep.subr.mxu0 0.0
    %4472 = vmatpush1.msra.mxu0 0.0
    %4473 = vmatprep.subr.mxu0 0.0
    %4474 = vmatpush1.msra.mxu0 0.0
    %4475 = vmatprep.subr.mxu0 0.0
    %4476 = vmatpush1.msra.mxu0 0.0
    %4477 = vmatprep.subr.mxu0 0.0
    %4478 = vmatpush1.msra.mxu0 0.0
    %4479 = vmatprep.subr.mxu0 0.0
    %4480 = vmatpush1.msra.mxu0 0.0
    %4481 = vmatprep.subr.mxu0 0.0
    %4482 = vmatpush1.msra.mxu0 0.0
    %4483 = vmatprep.subr.mxu0 0.0
    %4484 = vmatpush1.msra.mxu0 0.0
    %4485 = vmatprep.mubr.f32.mxu0 0.0
    %4486 = vmatmul.mubr.f32.gmra.mrb[0].mxu0 %v4336
    %v4487 = vpop.f32.mrb[0].mxu0
    %v4488 = vadd.f32 0.0, %v4487
    %v4489 = vpop.f32.mrb[0].mxu0
    %v4490 = vadd.f32 0.0, %v4489
    %4491 = vdwg.mxu0
    %v4492 = vadd.f32 %v4302, %v4417
    %v4493 = vadd.f32 %v4303, %v4419
    %v4494 = vadd.f32 %v4304, %v4488
    %v4495 = vadd.f32 %v4305, %v4490
    %s4496 = scalar_lea.vmem %s3, 3136
    %v4497 = vld [vmem:[%s4496] sm:$0xff]
    %v4498 = vld [vmem:[%s4496 + $0x8] sm:$0xff]
    %v4499 = vld [vmem:[%s4496 + $0x10] sm:$0xff]
    %v4500 = vld [vmem:[%s4496 + $0x18] sm:$0xff]
    %v4501 = vld [vmem:[%s4496 + $0x20] sm:$0xff]
    %v4502 = vld [vmem:[%s4496 + $0x28] sm:$0xff]
    %v4503 = vld [vmem:[%s4496 + $0x30] sm:$0xff]
    %v4504 = vld [vmem:[%s4496 + $0x38] sm:$0xff]
    %v4505 = vld [vmem:[%s4496 + $0x40] sm:$0xff]
    %v4506 = vld [vmem:[%s4496 + $0x48] sm:$0xff]
    %v4507 = vld [vmem:[%s4496 + $0x50] sm:$0xff]
    %v4508 = vld [vmem:[%s4496 + $0x58] sm:$0xff]
    %v4509 = vld [vmem:[%s4496 + $0x60] sm:$0xff]
    %v4510 = vld [vmem:[%s4496 + $0x68] sm:$0xff]
    %v4511 = vld [vmem:[%s4496 + $0x70] sm:$0xff]
    %v4512 = vld [vmem:[%s4496 + $0x78] sm:$0xff]
    %v4513 = vld [vmem:[%s4496 + $0x80] sm:$0xff]
    %v4514 = vld [vmem:[%s4496 + $0x88] sm:$0xff]
    %v4515 = vld [vmem:[%s4496 + $0x90] sm:$0xff]
    %v4516 = vld [vmem:[%s4496 + $0x98] sm:$0xff]
    %v4517 = vld [vmem:[%s4496 + $0xa0] sm:$0xff]
    %v4518 = vld [vmem:[%s4496 + $0xa8] sm:$0xff]
    %v4519 = vld [vmem:[%s4496 + $0xb0] sm:$0xff]
    %v4520 = vld [vmem:[%s4496 + $0xb8] sm:$0xff]
    %v4521 = vld [vmem:[%s4496 + $0xc0] sm:$0x3]
    %v4522 = vld [vmem:[%s4496 + $0xc8] sm:$0x3]
    %v4523 = vld [vmem:[%s4496 + $0xd0] sm:$0x3]
    %v4524 = vld [vmem:[%s4496 + $0xd8] sm:$0x3]
    %v4526 = vsel %vm1900, %v1841, 0
    %v4529 = vsel %vm1904, %v4521, 0
    %v4532 = vsel %vm1904, %v4522, 0
    %v4535 = vsel %vm1904, %v4523, 0
    %v4538 = vsel %vm1904, %v4524, 0
    %4540 = vmatprep.subr.mxu0 %v4498
    %4541 = vmatpush1.msra.mxu0 %v4497
    %4542 = vmatprep.subr.mxu0 %v4502
    %4543 = vmatpush1.msra.mxu0 %v4501
    %4544 = vmatprep.subr.mxu0 %v4506
    %4545 = vmatpush1.msra.mxu0 %v4505
    %4546 = vmatprep.subr.mxu0 %v4510
    %4547 = vmatpush1.msra.mxu0 %v4509
    %4548 = vmatprep.subr.mxu0 %v4514
    %4549 = vmatpush1.msra.mxu0 %v4513
    %4550 = vmatprep.subr.mxu0 %v4518
    %4551 = vmatpush1.msra.mxu0 %v4517
    %4552 = vmatprep.subr.mxu0 %v4532
    %4553 = vmatpush1.msra.mxu0 %v4529
    %4554 = vmatprep.subr.mxu0 0.0
    %4555 = vmatpush1.msra.mxu0 0.0
    %4556 = vmatprep.subr.mxu0 0.0
    %4557 = vmatpush1.msra.mxu0 0.0
    %4558 = vmatprep.subr.mxu0 0.0
    %4559 = vmatpush1.msra.mxu0 0.0
    %4560 = vmatprep.subr.mxu0 0.0
    %4561 = vmatpush1.msra.mxu0 0.0
    %4562 = vmatprep.subr.mxu0 0.0
    %4563 = vmatpush1.msra.mxu0 0.0
    %4564 = vmatprep.subr.mxu0 0.0
    %4565 = vmatpush1.msra.mxu0 0.0
    %4566 = vmatprep.subr.mxu0 0.0
    %4567 = vmatpush1.msra.mxu0 0.0
    %4568 = vmatprep.subr.mxu0 0.0
    %4569 = vmatpush1.msra.mxu0 0.0
    %4570 = vmatprep.subr.mxu0 0.0
    %4571 = vmatpush1.msra.mxu0 0.0
    %4572 = vmatprep.subr.mxu0 0.0
    %4573 = vmatpush1.msra.mxu0 0.0
    %4574 = vmatprep.subr.mxu0 0.0
    %4575 = vmatpush1.msra.mxu0 0.0
    %4576 = vmatprep.subr.mxu0 0.0
    %4577 = vmatpush1.msra.mxu0 0.0
    %4578 = vmatprep.subr.mxu0 0.0
    %4579 = vmatpush1.msra.mxu0 0.0
    %4580 = vmatprep.subr.mxu0 0.0
    %4581 = vmatpush1.msra.mxu0 0.0
    %4582 = vmatprep.subr.mxu0 0.0
    %4583 = vmatpush1.msra.mxu0 0.0
    %4584 = vmatprep.subr.mxu0 0.0
    %4585 = vmatpush1.msra.mxu0 0.0
    %4586 = vmatprep.subr.mxu0 0.0
    %4587 = vmatpush1.msra.mxu0 0.0
    %4588 = vmatprep.subr.mxu0 0.0
    %4589 = vmatpush1.msra.mxu0 0.0
    %4590 = vmatprep.subr.mxu0 0.0
    %4591 = vmatpush1.msra.mxu0 0.0
    %4592 = vmatprep.subr.mxu0 0.0
    %4593 = vmatpush1.msra.mxu0 0.0
    %4594 = vmatprep.subr.mxu0 0.0
    %4595 = vmatpush1.msra.mxu0 0.0
    %4596 = vmatprep.subr.mxu0 0.0
    %4597 = vmatpush1.msra.mxu0 0.0
    %4598 = vmatprep.subr.mxu0 0.0
    %4599 = vmatpush1.msra.mxu0 0.0
    %4600 = vmatprep.subr.mxu0 0.0
    %4601 = vmatpush1.msra.mxu0 0.0
    %4602 = vmatprep.subr.mxu0 0.0
    %4603 = vmatpush1.msra.mxu0 0.0
    %4604 = vmatprep.mubr.f32.mxu0 0.0
    %4605 = vmatmul.mubr.f32.gmra.mrb[0].mxu0 %v4526
    %v4606 = vpop.f32.mrb[0].mxu0
    %v4607 = vadd.f32 0.0, %v4606
    %v4608 = vpop.f32.mrb[0].mxu0
    %v4609 = vadd.f32 0.0, %v4608
    %4610 = vdwg.mxu0
    %4611 = vmatprep.subr.mxu0 %v4500
    %4612 = vmatpush1.msra.mxu0 %v4499
    %4613 = vmatprep.subr.mxu0 %v4504
    %4614 = vmatpush1.msra.mxu0 %v4503
    %4615 = vmatprep.subr.mxu0 %v4508
    %4616 = vmatpush1.msra.mxu0 %v4507
    %4617 = vmatprep.subr.mxu0 %v4512
    %4618 = vmatpush1.msra.mxu0 %v4511
    %4619 = vmatprep.subr.mxu0 %v4516
    %4620 = vmatpush1.msra.mxu0 %v4515
    %4621 = vmatprep.subr.mxu0 %v4520
    %4622 = vmatpush1.msra.mxu0 %v4519
    %4623 = vmatprep.subr.mxu0 %v4538
    %4624 = vmatpush1.msra.mxu0 %v4535
    %4625 = vmatprep.subr.mxu0 0.0
    %4626 = vmatpush1.msra.mxu0 0.0
    %4627 = vmatprep.subr.mxu0 0.0
    %4628 = vmatpush1.msra.mxu0 0.0
    %4629 = vmatprep.subr.mxu0 0.0
    %4630 = vmatpush1.msra.mxu0 0.0
    %4631 = vmatprep.subr.mxu0 0.0
    %4632 = vmatpush1.msra.mxu0 0.0
    %4633 = vmatprep.subr.mxu0 0.0
    %4634 = vmatpush1.msra.mxu0 0.0
    %4635 = vmatprep.subr.mxu0 0.0
    %4636 = vmatpush1.msra.mxu0 0.0
    %4637 = vmatprep.subr.mxu0 0.0
    %4638 = vmatpush1.msra.mxu0 0.0
    %4639 = vmatprep.subr.mxu0 0.0
    %4640 = vmatpush1.msra.mxu0 0.0
    %4641 = vmatprep.subr.mxu0 0.0
    %4642 = vmatpush1.msra.mxu0 0.0
    %4643 = vmatprep.subr.mxu0 0.0
    %4644 = vmatpush1.msra.mxu0 0.0
    %4645 = vmatprep.subr.mxu0 0.0
    %4646 = vmatpush1.msra.mxu0 0.0
    %4647 = vmatprep.subr.mxu0 0.0
    %4648 = vmatpush1.msra.mxu0 0.0
    %4649 = vmatprep.subr.mxu0 0.0
    %4650 = vmatpush1.msra.mxu0 0.0
    %4651 = vmatprep.subr.mxu0 0.0
    %4652 = vmatpush1.msra.mxu0 0.0
    %4653 = vmatprep.subr.mxu0 0.0
    %4654 = vmatpush1.msra.mxu0 0.0
    %4655 = vmatprep.subr.mxu0 0.0
    %4656 = vmatpush1.msra.mxu0 0.0
    %4657 = vmatprep.subr.mxu0 0.0
    %4658 = vmatpush1.msra.mxu0 0.0
    %4659 = vmatprep.subr.mxu0 0.0
    %4660 = vmatpush1.msra.mxu0 0.0
    %4661 = vmatprep.subr.mxu0 0.0
    %4662 = vmatpush1.msra.mxu0 0.0
    %4663 = vmatprep.subr.mxu0 0.0
    %4664 = vmatpush1.msra.mxu0 0.0
    %4665 = vmatprep.subr.mxu0 0.0
    %4666 = vmatpush1.msra.mxu0 0.0
    %4667 = vmatprep.subr.mxu0 0.0
    %4668 = vmatpush1.msra.mxu0 0.0
    %4669 = vmatprep.subr.mxu0 0.0
    %4670 = vmatpush1.msra.mxu0 0.0
    %4671 = vmatprep.subr.mxu0 0.0
    %4672 = vmatpush1.msra.mxu0 0.0
    %4673 = vmatprep.subr.mxu0 0.0
    %4674 = vmatpush1.msra.mxu0 0.0
    %4675 = vmatprep.mubr.f32.mxu0 0.0
    %4676 = vmatmul.mubr.f32.gmra.mrb[0].mxu0 %v4526
    %v4677 = vpop.f32.mrb[0].mxu0
    %v4678 = vadd.f32 0.0, %v4677
    %v4679 = vpop.f32.mrb[0].mxu0
    %v4680 = vadd.f32 0.0, %v4679
    %4681 = vdwg.mxu0
    %v4682 = vadd.f32 %v4492, %v4607
    %v4683 = vadd.f32 %v4493, %v4609
    %v4684 = vadd.f32 %v4494, %v4678
    %v4685 = vadd.f32 %v4495, %v4680
    %s4686 = scalar_lea.vmem %s3, 3360
    %v4687 = vld [vmem:[%s4686] sm:$0xff]
    %v4688 = vld [vmem:[%s4686 + $0x8] sm:$0xff]
    %v4689 = vld [vmem:[%s4686 + $0x10] sm:$0xff]
    %v4690 = vld [vmem:[%s4686 + $0x18] sm:$0xff]
    %v4691 = vld [vmem:[%s4686 + $0x20] sm:$0xff]
    %v4692 = vld [vmem:[%s4686 + $0x28] sm:$0xff]
    %v4693 = vld [vmem:[%s4686 + $0x30] sm:$0xff]
    %v4694 = vld [vmem:[%s4686 + $0x38] sm:$0xff]
    %v4695 = vld [vmem:[%s4686 + $0x40] sm:$0xff]
    %v4696 = vld [vmem:[%s4686 + $0x48] sm:$0xff]
    %v4697 = vld [vmem:[%s4686 + $0x50] sm:$0xff]
    %v4698 = vld [vmem:[%s4686 + $0x58] sm:$0xff]
    %v4699 = vld [vmem:[%s4686 + $0x60] sm:$0xff]
    %v4700 = vld [vmem:[%s4686 + $0x68] sm:$0xff]
    %v4701 = vld [vmem:[%s4686 + $0x70] sm:$0xff]
    %v4702 = vld [vmem:[%s4686 + $0x78] sm:$0xff]
    %v4703 = vld [vmem:[%s4686 + $0x80] sm:$0xff]
    %v4704 = vld [vmem:[%s4686 + $0x88] sm:$0xff]
    %v4705 = vld [vmem:[%s4686 + $0x90] sm:$0xff]
    %v4706 = vld [vmem:[%s4686 + $0x98] sm:$0xff]
    %v4707 = vld [vmem:[%s4686 + $0xa0] sm:$0xff]
    %v4708 = vld [vmem:[%s4686 + $0xa8] sm:$0xff]
    %v4709 = vld [vmem:[%s4686 + $0xb0] sm:$0xff]
    %v4710 = vld [vmem:[%s4686 + $0xb8] sm:$0xff]
    %v4711 = vld [vmem:[%s4686 + $0xc0] sm:$0x3]
    %v4712 = vld [vmem:[%s4686 + $0xc8] sm:$0x3]
    %v4713 = vld [vmem:[%s4686 + $0xd0] sm:$0x3]
    %v4714 = vld [vmem:[%s4686 + $0xd8] sm:$0x3]
    %v4716 = vsel %vm1900, %v1842, 0
    %v4719 = vsel %vm1904, %v4711, 0
    %v4722 = vsel %vm1904, %v4712, 0
    %v4725 = vsel %vm1904, %v4713, 0
    %v4728 = vsel %vm1904, %v4714, 0
    %4730 = vmatprep.subr.mxu0 %v4688
    %4731 = vmatpush1.msra.mxu0 %v4687
    %4732 = vmatprep.subr.mxu0 %v4692
    %4733 = vmatpush1.msra.mxu0 %v4691
    %4734 = vmatprep.subr.mxu0 %v4696
    %4735 = vmatpush1.msra.mxu0 %v4695
    %4736 = vmatprep.subr.mxu0 %v4700
    %4737 = vmatpush1.msra.mxu0 %v4699
    %4738 = vmatprep.subr.mxu0 %v4704
    %4739 = vmatpush1.msra.mxu0 %v4703
    %4740 = vmatprep.subr.mxu0 %v4708
    %4741 = vmatpush1.msra.mxu0 %v4707
    %4742 = vmatprep.subr.mxu0 %v4722
    %4743 = vmatpush1.msra.mxu0 %v4719
    %4744 = vmatprep.subr.mxu0 0.0
    %4745 = vmatpush1.msra.mxu0 0.0
    %4746 = vmatprep.subr.mxu0 0.0
    %4747 = vmatpush1.msra.mxu0 0.0
    %4748 = vmatprep.subr.mxu0 0.0
    %4749 = vmatpush1.msra.mxu0 0.0
    %4750 = vmatprep.subr.mxu0 0.0
    %4751 = vmatpush1.msra.mxu0 0.0
    %4752 = vmatprep.subr.mxu0 0.0
    %4753 = vmatpush1.msra.mxu0 0.0
    %4754 = vmatprep.subr.mxu0 0.0
    %4755 = vmatpush1.msra.mxu0 0.0
    %4756 = vmatprep.subr.mxu0 0.0
    %4757 = vmatpush1.msra.mxu0 0.0
    %4758 = vmatprep.subr.mxu0 0.0
    %4759 = vmatpush1.msra.mxu0 0.0
    %4760 = vmatprep.subr.mxu0 0.0
    %4761 = vmatpush1.msra.mxu0 0.0
    %4762 = vmatprep.subr.mxu0 0.0
    %4763 = vmatpush1.msra.mxu0 0.0
    %4764 = vmatprep.subr.mxu0 0.0
    %4765 = vmatpush1.msra.mxu0 0.0
    %4766 = vmatprep.subr.mxu0 0.0
    %4767 = vmatpush1.msra.mxu0 0.0
    %4768 = vmatprep.subr.mxu0 0.0
    %4769 = vmatpush1.msra.mxu0 0.0
    %4770 = vmatprep.subr.mxu0 0.0
    %4771 = vmatpush1.msra.mxu0 0.0
    %4772 = vmatprep.subr.mxu0 0.0
    %4773 = vmatpush1.msra.mxu0 0.0
    %4774 = vmatprep.subr.mxu0 0.0
    %4775 = vmatpush1.msra.mxu0 0.0
    %4776 = vmatprep.subr.mxu0 0.0
    %4777 = vmatpush1.msra.mxu0 0.0
    %4778 = vmatprep.subr.mxu0 0.0
    %4779 = vmatpush1.msra.mxu0 0.0
    %4780 = vmatprep.subr.mxu0 0.0
    %4781 = vmatpush1.msra.mxu0 0.0
    %4782 = vmatprep.subr.mxu0 0.0
    %4783 = vmatpush1.msra.mxu0 0.0
    %4784 = vmatprep.subr.mxu0 0.0
    %4785 = vmatpush1.msra.mxu0 0.0
    %4786 = vmatprep.subr.mxu0 0.0
    %4787 = vmatpush1.msra.mxu0 0.0
    %4788 = vmatprep.subr.mxu0 0.0
    %4789 = vmatpush1.msra.mxu0 0.0
    %4790 = vmatprep.subr.mxu0 0.0
    %4791 = vmatpush1.msra.mxu0 0.0
    %4792 = vmatprep.subr.mxu0 0.0
    %4793 = vmatpush1.msra.mxu0 0.0
    %4794 = vmatprep.mubr.f32.mxu0 0.0
    %4795 = vmatmul.mubr.f32.gmra.mrb[0].mxu0 %v4716
    %v4796 = vpop.f32.mrb[0].mxu0
    %v4797 = vadd.f32 0.0, %v4796
    %v4798 = vpop.f32.mrb[0].mxu0
    %v4799 = vadd.f32 0.0, %v4798
    %4800 = vdwg.mxu0
    %4801 = vmatprep.subr.mxu0 %v4690
    %4802 = vmatpush1.msra.mxu0 %v4689
    %4803 = vmatprep.subr.mxu0 %v4694
    %4804 = vmatpush1.msra.mxu0 %v4693
    %4805 = vmatprep.subr.mxu0 %v4698
    %4806 = vmatpush1.msra.mxu0 %v4697
    %4807 = vmatprep.subr.mxu0 %v4702
    %4808 = vmatpush1.msra.mxu0 %v4701
    %4809 = vmatprep.subr.mxu0 %v4706
    %4810 = vmatpush1.msra.mxu0 %v4705
    %4811 = vmatprep.subr.mxu0 %v4710
    %4812 = vmatpush1.msra.mxu0 %v4709
    %4813 = vmatprep.subr.mxu0 %v4728
    %4814 = vmatpush1.msra.mxu0 %v4725
    %4815 = vmatprep.subr.mxu0 0.0
    %4816 = vmatpush1.msra.mxu0 0.0
    %4817 = vmatprep.subr.mxu0 0.0
    %4818 = vmatpush1.msra.mxu0 0.0
    %4819 = vmatprep.subr.mxu0 0.0
    %4820 = vmatpush1.msra.mxu0 0.0
    %4821 = vmatprep.subr.mxu0 0.0
    %4822 = vmatpush1.msra.mxu0 0.0
    %4823 = vmatprep.subr.mxu0 0.0
    %4824 = vmatpush1.msra.mxu0 0.0
    %4825 = vmatprep.subr.mxu0 0.0
    %4826 = vmatpush1.msra.mxu0 0.0
    %4827 = vmatprep.subr.mxu0 0.0
    %4828 = vmatpush1.msra.mxu0 0.0
    %4829 = vmatprep.subr.mxu0 0.0
    %4830 = vmatpush1.msra.mxu0 0.0
    %4831 = vmatprep.subr.mxu0 0.0
    %4832 = vmatpush1.msra.mxu0 0.0
    %4833 = vmatprep.subr.mxu0 0.0
    %4834 = vmatpush1.msra.mxu0 0.0
    %4835 = vmatprep.subr.mxu0 0.0
    %4836 = vmatpush1.msra.mxu0 0.0
    %4837 = vmatprep.subr.mxu0 0.0
    %4838 = vmatpush1.msra.mxu0 0.0
    %4839 = vmatprep.subr.mxu0 0.0
    %4840 = vmatpush1.msra.mxu0 0.0
    %4841 = vmatprep.subr.mxu0 0.0
    %4842 = vmatpush1.msra.mxu0 0.0
    %4843 = vmatprep.subr.mxu0 0.0
    %4844 = vmatpush1.msra.mxu0 0.0
    %4845 = vmatprep.subr.mxu0 0.0
    %4846 = vmatpush1.msra.mxu0 0.0
    %4847 = vmatprep.subr.mxu0 0.0
    %4848 = vmatpush1.msra.mxu0 0.0
    %4849 = vmatprep.subr.mxu0 0.0
    %4850 = vmatpush1.msra.mxu0 0.0
    %4851 = vmatprep.subr.mxu0 0.0
    %4852 = vmatpush1.msra.mxu0 0.0
    %4853 = vmatprep.subr.mxu0 0.0
    %4854 = vmatpush1.msra.mxu0 0.0
    %4855 = vmatprep.subr.mxu0 0.0
    %4856 = vmatpush1.msra.mxu0 0.0
    %4857 = vmatprep.subr.mxu0 0.0
    %4858 = vmatpush1.msra.mxu0 0.0
    %4859 = vmatprep.subr.mxu0 0.0
    %4860 = vmatpush1.msra.mxu0 0.0
    %4861 = vmatprep.subr.mxu0 0.0
    %4862 = vmatpush1.msra.mxu0 0.0
    %4863 = vmatprep.subr.mxu0 0.0
    %4864 = vmatpush1.msra.mxu0 0.0
    %4865 = vmatprep.mubr.f32.mxu0 0.0
    %4866 = vmatmul.mubr.f32.gmra.mrb[0].mxu0 %v4716
    %v4867 = vpop.f32.mrb[0].mxu0
    %v4868 = vadd.f32 0.0, %v4867
    %v4869 = vpop.f32.mrb[0].mxu0
    %v4870 = vadd.f32 0.0, %v4869
    %4871 = vdwg.mxu0
    %v4872 = vadd.f32 %v4682, %v4797
    %v4873 = vadd.f32 %v4683, %v4799
    %v4874 = vadd.f32 %v4684, %v4868
    %v4875 = vadd.f32 %v4685, %v4870
    %v4876 = vld [vmem:[%s4] sm:$0xf]
    %v4878 = vlaneseq
    %v4879 = vshrl.u32 %v4878, 7
    %v4880 = vsub.s32 0, %v4879
    %v4881 = vrot.slane %v4876, %v4880
    %v4882 = vlaneseq
    %v4883 = vshrl.u32 %v4882, 7
    %v4884 = vsub.s32 1, %v4883
    %v4885 = vrot.slane %v4876, %v4884
    %v4886 = vlaneseq
    %v4887 = vshrl.u32 %v4886, 7
    %v4888 = vsub.s32 2, %v4887
    %v4889 = vrot.slane %v4876, %v4888
    %v4890 = vlaneseq
    %v4891 = vshrl.u32 %v4890, 7
    %v4892 = vsub.s32 3, %v4891
    %v4893 = vrot.slane %v4876, %v4892
    %v4898 = vadd.f32 %v4872, %v4881
    %v4899 = vadd.f32 %v4873, %v4885
    %v4900 = vadd.f32 %v4874, %v4889
    %v4901 = vadd.f32 %v4875, %v4893
    %v4902 = vmax.f32 %v4898, 0.0
    %v4903 = vmax.f32 %v4899, 0.0
    %v4904 = vmax.f32 %v4900, 0.0
    %v4905 = vmax.f32 %v4901, 0.0
    %v4906 = vld [vmem:[%s5] sm:$0xff]
    %v4907 = vld [vmem:[%s5 + $0x8] sm:$0xff]
    %v4908 = vld [vmem:[%s5 + $0x10] sm:$0xff]
    %v4909 = vld [vmem:[%s5 + $0x18] sm:$0xff]
    %v4910 = vld [vmem:[%s5 + $0x20] sm:$0xff]
    %v4911 = vld [vmem:[%s5 + $0x28] sm:$0xff]
    %v4912 = vld [vmem:[%s5 + $0x30] sm:$0xff]
    %v4913 = vld [vmem:[%s5 + $0x38] sm:$0xff]
    %v4914 = vld [vmem:[%s5 + $0x40] sm:$0xff]
    %v4915 = vld [vmem:[%s5 + $0x48] sm:$0xff]
    %v4916 = vld [vmem:[%s5 + $0x50] sm:$0xff]
    %v4917 = vld [vmem:[%s5 + $0x58] sm:$0xff]
    %v4918 = vld [vmem:[%s5 + $0x60] sm:$0xff]
    %v4919 = vld [vmem:[%s5 + $0x68] sm:$0xff]
    %v4920 = vld [vmem:[%s5 + $0x70] sm:$0xff]
    %v4921 = vld [vmem:[%s5 + $0x78] sm:$0xff]
    %v4922 = vld [vmem:[%s5 + $0x80] sm:$0xff]
    %v4923 = vld [vmem:[%s5 + $0x88] sm:$0xff]
    %v4924 = vld [vmem:[%s5 + $0x90] sm:$0xff]
    %v4925 = vld [vmem:[%s5 + $0x98] sm:$0xff]
    %v4926 = vld [vmem:[%s5 + $0xa0] sm:$0xff]
    %v4927 = vld [vmem:[%s5 + $0xa8] sm:$0xff]
    %v4928 = vld [vmem:[%s5 + $0xb0] sm:$0xff]
    %v4929 = vld [vmem:[%s5 + $0xb8] sm:$0xff]
    %v4930 = vld [vmem:[%s5 + $0xc0] sm:$0xff]
    %v4931 = vld [vmem:[%s5 + $0xc8] sm:$0xff]
    %v4932 = vld [vmem:[%s5 + $0xd0] sm:$0xff]
    %v4933 = vld [vmem:[%s5 + $0xd8] sm:$0xff]
    %v4934 = vld [vmem:[%s5 + $0xe0] sm:$0xff]
    %v4935 = vld [vmem:[%s5 + $0xe8] sm:$0xff]
    %v4936 = vld [vmem:[%s5 + $0xf0] sm:$0xff]
    %v4937 = vld [vmem:[%s5 + $0xf8] sm:$0xff]
    %v4938 = vld [vmem:[%s5 + $0x100] sm:$0xff]
    %v4939 = vld [vmem:[%s5 + $0x108] sm:$0xff]
    %v4940 = vld [vmem:[%s5 + $0x110] sm:$0xff]
    %v4941 = vld [vmem:[%s5 + $0x118] sm:$0xff]
    %v4942 = vld [vmem:[%s5 + $0x120] sm:$0xff]
    %v4943 = vld [vmem:[%s5 + $0x128] sm:$0xff]
    %v4944 = vld [vmem:[%s5 + $0x130] sm:$0xff]
    %v4945 = vld [vmem:[%s5 + $0x138] sm:$0xff]
    %v4946 = vld [vmem:[%s5 + $0x140] sm:$0xff]
    %v4947 = vld [vmem:[%s5 + $0x148] sm:$0xff]
    %v4948 = vld [vmem:[%s5 + $0x150] sm:$0xff]
    %v4949 = vld [vmem:[%s5 + $0x158] sm:$0xff]
    %v4950 = vld [vmem:[%s5 + $0x160] sm:$0xff]
    %v4951 = vld [vmem:[%s5 + $0x168] sm:$0xff]
    %v4952 = vld [vmem:[%s5 + $0x170] sm:$0xff]
    %v4953 = vld [vmem:[%s5 + $0x178] sm:$0xff]
    %v4954 = vld [vmem:[%s5 + $0x180] sm:$0xff]
    %v4955 = vld [vmem:[%s5 + $0x188] sm:$0xff]
    %v4956 = vld [vmem:[%s5 + $0x190] sm:$0xff]
    %v4957 = vld [vmem:[%s5 + $0x198] sm:$0xff]
    %v4958 = vld [vmem:[%s5 + $0x1a0] sm:$0xff]
    %v4959 = vld [vmem:[%s5 + $0x1a8] sm:$0xff]
    %v4960 = vld [vmem:[%s5 + $0x1b0] sm:$0xff]
    %v4961 = vld [vmem:[%s5 + $0x1b8] sm:$0xff]
    %v4962 = vld [vmem:[%s5 + $0x1c0] sm:$0xff]
    %v4963 = vld [vmem:[%s5 + $0x1c8] sm:$0xff]
    %v4964 = vld [vmem:[%s5 + $0x1d0] sm:$0xff]
    %v4965 = vld [vmem:[%s5 + $0x1d8] sm:$0xff]
    %v4966 = vld [vmem:[%s5 + $0x1e0] sm:$0xff]
    %v4967 = vld [vmem:[%s5 + $0x1e8] sm:$0xff]
    %v4968 = vld [vmem:[%s5 + $0x1f0] sm:$0xf]
    %v4969 = vld [vmem:[%s6] sm:$0x1]
    %v4971 = vlaneseq
    %v4972 = vshrl.u32 %v4971, 7
    %v4973 = vsub.s32 0, %v4972
    %v4974 = vrot.slane %v4969, %v4973
    %v4977 = vsel %vm179, %v4905, 0
    %v4980 = vsel %vm228, %v4968, 0
    %4982 = vmatprep.subr.mxu0 0.0
    %4983 = vmatpush1.msra.mxu0 %v4906
    %4984 = vmatprep.subr.mxu0 0.0
    %4985 = vmatpush1.msra.mxu0 %v4907
    %4986 = vmatprep.subr.mxu0 0.0
    %4987 = vmatpush1.msra.mxu0 %v4908
    %4988 = vmatprep.subr.mxu0 0.0
    %4989 = vmatpush1.msra.mxu0 %v4909
    %4990 = vmatprep.subr.mxu0 0.0
    %4991 = vmatpush1.msra.mxu0 %v4910
    %4992 = vmatprep.subr.mxu0 0.0
    %4993 = vmatpush1.msra.mxu0 %v4911
    %4994 = vmatprep.subr.mxu0 0.0
    %4995 = vmatpush1.msra.mxu0 %v4912
    %4996 = vmatprep.subr.mxu0 0.0
    %4997 = vmatpush1.msra.mxu0 %v4913
    %4998 = vmatprep.subr.mxu0 0.0
    %4999 = vmatpush1.msra.mxu0 %v4914
    %5000 = vmatprep.subr.mxu0 0.0
    %5001 = vmatpush1.msra.mxu0 %v4915
    %5002 = vmatprep.subr.mxu0 0.0
    %5003 = vmatpush1.msra.mxu0 %v4916
    %5004 = vmatprep.subr.mxu0 0.0
    %5005 = vmatpush1.msra.mxu0 %v4917
    %5006 = vmatprep.subr.mxu0 0.0
    %5007 = vmatpush1.msra.mxu0 %v4918
    %5008 = vmatprep.subr.mxu0 0.0
    %5009 = vmatpush1.msra.mxu0 %v4919
    %5010 = vmatprep.subr.mxu0 0.0
    %5011 = vmatpush1.msra.mxu0 %v4920
    %5012 = vmatprep.subr.mxu0 0.0
    %5013 = vmatpush1.msra.mxu0 %v4921
    %5014 = vmatprep.subr.mxu0 0.0
    %5015 = vmatpush1.msra.mxu0 %v4922
    %5016 = vmatprep.subr.mxu0 0.0
    %5017 = vmatpush1.msra.mxu0 %v4923
    %5018 = vmatprep.subr.mxu0 0.0
    %5019 = vmatpush1.msra.mxu0 %v4924
    %5020 = vmatprep.subr.mxu0 0.0
    %5021 = vmatpush1.msra.mxu0 %v4925
    %5022 = vmatprep.subr.mxu0 0.0
    %5023 = vmatpush1.msra.mxu0 %v4926
    %5024 = vmatprep.subr.mxu0 0.0
    %5025 = vmatpush1.msra.mxu0 %v4927
    %5026 = vmatprep.subr.mxu0 0.0
    %5027 = vmatpush1.msra.mxu0 %v4928
    %5028 = vmatprep.subr.mxu0 0.0
    %5029 = vmatpush1.msra.mxu0 %v4929
    %5030 = vmatprep.subr.mxu0 0.0
    %5031 = vmatpush1.msra.mxu0 %v4930
    %5032 = vmatprep.subr.mxu0 0.0
    %5033 = vmatpush1.msra.mxu0 %v4931
    %5034 = vmatprep.subr.mxu0 0.0
    %5035 = vmatpush1.msra.mxu0 %v4932
    %5036 = vmatprep.subr.mxu0 0.0
    %5037 = vmatpush1.msra.mxu0 %v4933
    %5038 = vmatprep.subr.mxu0 0.0
    %5039 = vmatpush1.msra.mxu0 %v4934
    %5040 = vmatprep.subr.mxu0 0.0
    %5041 = vmatpush1.msra.mxu0 %v4935
    %5042 = vmatprep.subr.mxu0 0.0
    %5043 = vmatpush1.msra.mxu0 %v4936
    %5044 = vmatprep.subr.mxu0 0.0
    %5045 = vmatpush1.msra.mxu0 %v4937
    %5046 = vmatprep.mubr.f32.mxu0 %v4903
    %5047 = vmatmul.mubr.f32.gmra.mrb[0].mxu0 %v4902
    %v5048 = vpop.f32.mrb[0].mxu0
    %v5049 = vadd.f32 %v4974, %v5048
    %v5050 = vpop.f32.mrb[0].mxu0
    %5051 = vdwg.mxu0
    %5052 = vmatprep.subr.mxu0 0.0
    %5053 = vmatpush1.msra.mxu0 %v4938
    %5054 = vmatprep.subr.mxu0 0.0
    %5055 = vmatpush1.msra.mxu0 %v4939
    %5056 = vmatprep.subr.mxu0 0.0
    %5057 = vmatpush1.msra.mxu0 %v4940
    %5058 = vmatprep.subr.mxu0 0.0
    %5059 = vmatpush1.msra.mxu0 %v4941
    %5060 = vmatprep.subr.mxu0 0.0
    %5061 = vmatpush1.msra.mxu0 %v4942
    %5062 = vmatprep.subr.mxu0 0.0
    %5063 = vmatpush1.msra.mxu0 %v4943
    %5064 = vmatprep.subr.mxu0 0.0
    %5065 = vmatpush1.msra.mxu0 %v4944
    %5066 = vmatprep.subr.mxu0 0.0
    %5067 = vmatpush1.msra.mxu0 %v4945
    %5068 = vmatprep.subr.mxu0 0.0
    %5069 = vmatpush1.msra.mxu0 %v4946
    %5070 = vmatprep.subr.mxu0 0.0
    %5071 = vmatpush1.msra.mxu0 %v4947
    %5072 = vmatprep.subr.mxu0 0.0
    %5073 = vmatpush1.msra.mxu0 %v4948
    %5074 = vmatprep.subr.mxu0 0.0
    %5075 = vmatpush1.msra.mxu0 %v4949
    %5076 = vmatprep.subr.mxu0 0.0
    %5077 = vmatpush1.msra.mxu0 %v4950
    %5078 = vmatprep.subr.mxu0 0.0
    %5079 = vmatpush1.msra.mxu0 %v4951
    %5080 = vmatprep.subr.mxu0 0.0
    %5081 = vmatpush1.msra.mxu0 %v4952
    %5082 = vmatprep.subr.mxu0 0.0
    %5083 = vmatpush1.msra.mxu0 %v4953
    %5084 = vmatprep.subr.mxu0 0.0
    %5085 = vmatpush1.msra.mxu0 %v4954
    %5086 = vmatprep.subr.mxu0 0.0
    %5087 = vmatpush1.msra.mxu0 %v4955
    %5088 = vmatprep.subr.mxu0 0.0
    %5089 = vmatpush1.msra.mxu0 %v4956
    %5090 = vmatprep.subr.mxu0 0.0
    %5091 = vmatpush1.msra.mxu0 %v4957
    %5092 = vmatprep.subr.mxu0 0.0
    %5093 = vmatpush1.msra.mxu0 %v4958
    %5094 = vmatprep.subr.mxu0 0.0
    %5095 = vmatpush1.msra.mxu0 %v4959
    %5096 = vmatprep.subr.mxu0 0.0
    %5097 = vmatpush1.msra.mxu0 %v4960
    %5098 = vmatprep.subr.mxu0 0.0
    %5099 = vmatpush1.msra.mxu0 %v4961
    %5100 = vmatprep.subr.mxu0 0.0
    %5101 = vmatpush1.msra.mxu0 %v4962
    %5102 = vmatprep.subr.mxu0 0.0
    %5103 = vmatpush1.msra.mxu0 %v4963
    %5104 = vmatprep.subr.mxu0 0.0
    %5105 = vmatpush1.msra.mxu0 %v4964
    %5106 = vmatprep.subr.mxu0 0.0
    %5107 = vmatpush1.msra.mxu0 %v4965
    %5108 = vmatprep.subr.mxu0 0.0
    %5109 = vmatpush1.msra.mxu0 %v4966
    %5110 = vmatprep.subr.mxu0 0.0
    %5111 = vmatpush1.msra.mxu0 %v4967
    %5112 = vmatprep.subr.mxu0 0.0
    %5113 = vmatpush1.msra.mxu0 %v4980
    %5114 = vmatprep.subr.mxu0 0.0
    %5115 = vmatpush1.msra.mxu0 0.0
    %5116 = vmatprep.mubr.f32.mxu0 %v4977
    %5117 = vmatmul.mubr.f32.gmra.mrb[0].mxu0 %v4904
    %v5118 = vpop.f32.mrb[0].mxu0
    %v5119 = vadd.f32 %v5049, %v5118
    %v5120 = vpop.f32.mrb[0].mxu0
    %5121 = vdwg.mxu0
    %v5122 = vtanh.pop %v5119
    %v5123 = vld [vmem:[%s7] sm:$0xff]
    %v5124 = vld [vmem:[%s7 + $0x8] sm:$0xff]
    %v5125 = vld [vmem:[%s7 + $0x10] sm:$0xff]
    %v5126 = vld [vmem:[%s7 + $0x18] sm:$0xff]
    %v5127 = vld [vmem:[%s7 + $0x20] sm:$0xff]
    %v5128 = vld [vmem:[%s7 + $0x28] sm:$0xff]
    %v5129 = vld [vmem:[%s7 + $0x30] sm:$0xff]
    %v5130 = vld [vmem:[%s7 + $0x38] sm:$0xff]
    %v5131 = vld [vmem:[%s7 + $0x40] sm:$0xff]
    %v5132 = vld [vmem:[%s7 + $0x48] sm:$0xff]
    %v5133 = vld [vmem:[%s7 + $0x50] sm:$0xff]
    %v5134 = vld [vmem:[%s7 + $0x58] sm:$0xff]
    %v5135 = vld [vmem:[%s7 + $0x60] sm:$0xff]
    %v5136 = vld [vmem:[%s7 + $0x68] sm:$0xff]
    %v5137 = vld [vmem:[%s7 + $0x70] sm:$0xff]
    %v5138 = vld [vmem:[%s7 + $0x78] sm:$0xff]
    %v5139 = vld [vmem:[#allocation2] sm:$0x1]
    %v5141 = vlaneseq
    %v5142 = vshrl.u32 %v5141, 7
    %v5143 = vsub.s32 0, %v5142
    %v5144 = vrot.slane %v5139, %v5143
    %5146 = vmatprep.subr.mxu0 0.0
    %5147 = vmatpush1.msra.mxu0 %v5123
    %5148 = vmatprep.subr.mxu0 0.0
    %5149 = vmatpush1.msra.mxu0 %v5124
    %5150 = vmatprep.subr.mxu0 0.0
    %5151 = vmatpush1.msra.mxu0 %v5125
    %5152 = vmatprep.subr.mxu0 0.0
    %5153 = vmatpush1.msra.mxu0 %v5126
    %5154 = vmatprep.subr.mxu0 0.0
    %5155 = vmatpush1.msra.mxu0 %v5127
    %5156 = vmatprep.subr.mxu0 0.0
    %5157 = vmatpush1.msra.mxu0 %v5128
    %5158 = vmatprep.subr.mxu0 0.0
    %5159 = vmatpush1.msra.mxu0 %v5129
    %5160 = vmatprep.subr.mxu0 0.0
    %5161 = vmatpush1.msra.mxu0 %v5130
    %5162 = vmatprep.subr.mxu0 0.0
    %5163 = vmatpush1.msra.mxu0 %v5131
    %5164 = vmatprep.subr.mxu0 0.0
    %5165 = vmatpush1.msra.mxu0 %v5132
    %5166 = vmatprep.subr.mxu0 0.0
    %5167 = vmatpush1.msra.mxu0 %v5133
    %5168 = vmatprep.subr.mxu0 0.0
    %5169 = vmatpush1.msra.mxu0 %v5134
    %5170 = vmatprep.subr.mxu0 0.0
    %5171 = vmatpush1.msra.mxu0 %v5135
    %5172 = vmatprep.subr.mxu0 0.0
    %5173 = vmatpush1.msra.mxu0 %v5136
    %5174 = vmatprep.subr.mxu0 0.0
    %5175 = vmatpush1.msra.mxu0 %v5137
    %5176 = vmatprep.subr.mxu0 0.0
    %5177 = vmatpush1.msra.mxu0 %v5138
    %5178 = vmatprep.subr.mxu0 0.0
    %5179 = vmatpush1.msra.mxu0 0.0
    %5180 = vmatprep.subr.mxu0 0.0
    %5181 = vmatpush1.msra.mxu0 0.0
    %5182 = vmatprep.subr.mxu0 0.0
    %5183 = vmatpush1.msra.mxu0 0.0
    %5184 = vmatprep.subr.mxu0 0.0
    %5185 = vmatpush1.msra.mxu0 0.0
    %5186 = vmatprep.subr.mxu0 0.0
    %5187 = vmatpush1.msra.mxu0 0.0
    %5188 = vmatprep.subr.mxu0 0.0
    %5189 = vmatpush1.msra.mxu0 0.0
    %5190 = vmatprep.subr.mxu0 0.0
    %5191 = vmatpush1.msra.mxu0 0.0
    %5192 = vmatprep.subr.mxu0 0.0
    %5193 = vmatpush1.msra.mxu0 0.0
    %5194 = vmatprep.subr.mxu0 0.0
    %5195 = vmatpush1.msra.mxu0 0.0
    %5196 = vmatprep.subr.mxu0 0.0
    %5197 = vmatpush1.msra.mxu0 0.0
    %5198 = vmatprep.subr.mxu0 0.0
    %5199 = vmatpush1.msra.mxu0 0.0
    %5200 = vmatprep.subr.mxu0 0.0
    %5201 = vmatpush1.msra.mxu0 0.0
    %5202 = vmatprep.subr.mxu0 0.0
    %5203 = vmatpush1.msra.mxu0 0.0
    %5204 = vmatprep.subr.mxu0 0.0
    %5205 = vmatpush1.msra.mxu0 0.0
    %5206 = vmatprep.subr.mxu0 0.0
    %5207 = vmatpush1.msra.mxu0 0.0
    %5208 = vmatprep.subr.mxu0 0.0
    %5209 = vmatpush1.msra.mxu0 0.0
    %5210 = vmatprep.mubr.f32.mxu0 0.0
    %5211 = vmatmul.mubr.f32.gmra.mrb[0].mxu0 %v5122
    %v5212 = vpop.f32.mrb[0].mxu0
    %v5213 = vadd.f32 %v5144, %v5212
    %v5214 = vpop.f32.mrb[0].mxu0
    %5215 = vdwg.mxu0
    %vm5216 = vcmask 7168
    %v5217 = vsel %vm5216, %v5213, -inf
    %v5218 = vrot.slane %v5217, 4
    %v5219 = vmax.f32 %v5217, %v5218
    %v5220 = vrot.slane %v5219, 2
    %v5221 = vmax.f32 %v5219, %v5220
    %v5222 = vrot.slane %v5221, 1
    %v5223 = vmax.f32 %v5221, %v5222
    %v5224 = vsub.f32 %v5213, %v5223
    %v5225 = vmul.f32 %v5224, 1.442695
    %v5226 = vpow.pop %v5225
    %v5227 = vsel %vm5216, %v5226, 0.0
    %v5228 = vrot.slane %v5227, 4
    %v5229 = vadd.f32 %v5227, %v5228
    %v5230 = vrot.slane %v5229, 2
    %v5231 = vadd.f32 %v5229, %v5230
    %v5232 = vrot.slane %v5231, 1
    %v5233 = vadd.f32 %v5231, %v5232
    %v5234 = vrcp.pop %v5233
    %v5235 = vmul.f32 %v5226, %v5234
    %5237 = vset.pattern.permute.xlu0 0
    %5238 = vperm.xlu0 %5237, %v5235
    %v5239 = vpop.permute.xlu0 %5238
    %v5241 = vmul.f32 %v5239, %v4902
    %v5242 = vmul.f32 %v5239, %v4903
    %v5243 = vmul.f32 %v5239, %v4904
    %v5244 = vmul.f32 %v5239, %v4905
    %v5245 = vrot.slane %v5241, 4
    %v5246 = vadd.f32 %v5241, %v5245
    %v5247 = vrot.slane %v5246, 2
    %v5248 = vadd.f32 %v5246, %v5247
    %v5249 = vrot.slane %v5248, 1
    %v5250 = vadd.f32 %v5248, %v5249
    %v5251 = vrot.slane %v5242, 4
    %v5252 = vadd.f32 %v5242, %v5251
    %v5253 = vrot.slane %v5252, 2
    %v5254 = vadd.f32 %v5252, %v5253
    %v5255 = vrot.slane %v5254, 1
    %v5256 = vadd.f32 %v5254, %v5255
    %v5257 = vrot.slane %v5243, 4
    %v5258 = vadd.f32 %v5243, %v5257
    %v5259 = vrot.slane %v5258, 2
    %v5260 = vadd.f32 %v5258, %v5259
    %v5261 = vrot.slane %v5260, 1
    %v5262 = vadd.f32 %v5260, %v5261
    %v5263 = vsel %vm179, %v5244, 0.0
    %v5264 = vrot.slane %v5263, 4
    %v5265 = vadd.f32 %v5263, %v5264
    %v5266 = vrot.slane %v5265, 2
    %v5267 = vadd.f32 %v5265, %v5266
    %v5268 = vrot.slane %v5267, 1
    %v5269 = vadd.f32 %v5267, %v5268
    %v5270 = vld [vmem:[%s9] sm:$0xff]
    %v5271 = vld [vmem:[%s9 + $0x8] sm:$0xff]
    %v5272 = vld [vmem:[%s9 + $0x10] sm:$0xff]
    %v5273 = vld [vmem:[%s9 + $0x18] sm:$0xff]
    %v5274 = vld [vmem:[%s9 + $0x20] sm:$0xff]
    %v5275 = vld [vmem:[%s9 + $0x28] sm:$0xff]
    %v5276 = vld [vmem:[%s9 + $0x30] sm:$0xff]
    %v5277 = vld [vmem:[%s9 + $0x38] sm:$0xff]
    %v5278 = vld [vmem:[%s9 + $0x40] sm:$0xff]
    %v5279 = vld [vmem:[%s9 + $0x48] sm:$0xff]
    %v5280 = vld [vmem:[%s9 + $0x50] sm:$0xff]
    %v5281 = vld [vmem:[%s9 + $0x58] sm:$0xff]
    %v5282 = vld [vmem:[%s9 + $0x60] sm:$0xff]
    %v5283 = vld [vmem:[%s9 + $0x68] sm:$0xff]
    %v5284 = vld [vmem:[%s9 + $0x70] sm:$0xff]
    %v5285 = vld [vmem:[%s9 + $0x78] sm:$0xff]
    %v5286 = vld [vmem:[%s9 + $0x80] sm:$0xff]
    %v5287 = vld [vmem:[%s9 + $0x88] sm:$0xff]
    %v5288 = vld [vmem:[%s9 + $0x90] sm:$0xff]
    %v5289 = vld [vmem:[%s9 + $0x98] sm:$0xff]
    %v5290 = vld [vmem:[%s9 + $0xa0] sm:$0xff]
    %v5291 = vld [vmem:[%s9 + $0xa8] sm:$0xff]
    %v5292 = vld [vmem:[%s9 + $0xb0] sm:$0xff]
    %v5293 = vld [vmem:[%s9 + $0xb8] sm:$0xff]
    %v5294 = vld [vmem:[%s9 + $0xc0] sm:$0xff]
    %v5295 = vld [vmem:[%s9 + $0xc8] sm:$0xff]
    %v5296 = vld [vmem:[%s9 + $0xd0] sm:$0xff]
    %v5297 = vld [vmem:[%s9 + $0xd8] sm:$0xff]
    %v5298 = vld [vmem:[%s9 + $0xe0] sm:$0xff]
    %v5299 = vld [vmem:[%s9 + $0xe8] sm:$0xff]
    %v5300 = vld [vmem:[%s9 + $0xf0] sm:$0xff]
    %v5301 = vld [vmem:[%s9 + $0xf8] sm:$0xff]
    %v5302 = vld [vmem:[%s9 + $0x100] sm:$0xff]
    %v5303 = vld [vmem:[%s9 + $0x108] sm:$0xff]
    %v5304 = vld [vmem:[%s9 + $0x110] sm:$0xff]
    %v5305 = vld [vmem:[%s9 + $0x118] sm:$0xff]
    %v5306 = vld [vmem:[%s9 + $0x120] sm:$0xff]
    %v5307 = vld [vmem:[%s9 + $0x128] sm:$0xff]
    %v5308 = vld [vmem:[%s9 + $0x130] sm:$0xff]
    %v5309 = vld [vmem:[%s9 + $0x138] sm:$0xff]
    %v5310 = vld [vmem:[%s9 + $0x140] sm:$0xff]
    %v5311 = vld [vmem:[%s9 + $0x148] sm:$0xff]
    %v5312 = vld [vmem:[%s9 + $0x150] sm:$0xff]
    %v5313 = vld [vmem:[%s9 + $0x158] sm:$0xff]
    %v5314 = vld [vmem:[%s9 + $0x160] sm:$0xff]
    %v5315 = vld [vmem:[%s9 + $0x168] sm:$0xff]
    %v5316 = vld [vmem:[%s9 + $0x170] sm:$0xff]
    %v5317 = vld [vmem:[%s9 + $0x178] sm:$0xff]
    %v5318 = vld [vmem:[%s9 + $0x180] sm:$0xff]
    %v5319 = vld [vmem:[%s9 + $0x188] sm:$0xff]
    %v5320 = vld [vmem:[%s9 + $0x190] sm:$0xff]
    %v5321 = vld [vmem:[%s9 + $0x198] sm:$0xff]
    %v5322 = vld [vmem:[%s9 + $0x1a0] sm:$0xff]
    %v5323 = vld [vmem:[%s9 + $0x1a8] sm:$0xff]
    %v5324 = vld [vmem:[%s9 + $0x1b0] sm:$0xff]
    %v5325 = vld [vmem:[%s9 + $0x1b8] sm:$0xff]
    %v5326 = vld [vmem:[%s9 + $0x1c0] sm:$0xff]
    %v5327 = vld [vmem:[%s9 + $0x1c8] sm:$0xff]
    %v5328 = vld [vmem:[%s9 + $0x1d0] sm:$0xff]
    %v5329 = vld [vmem:[%s9 + $0x1d8] sm:$0xff]
    %v5330 = vld [vmem:[%s9 + $0x1e0] sm:$0xff]
    %v5331 = vld [vmem:[%s9 + $0x1e8] sm:$0xff]
    %v5332 = vld [vmem:[%s9 + $0x1f0] sm:$0xf]
    %v5333 = vld [vmem:[#allocation3] sm:$0x1]
    %v5335 = vsel %vm179, %v5269, 0
    %v5338 = vsel %vm228, %v5332, 0
    %5340 = vmatprep.subr.mxu0 0.0
    %5341 = vmatpush1.msra.mxu0 %v5270
    %5342 = vmatprep.subr.mxu0 0.0
    %5343 = vmatpush1.msra.mxu0 %v5271
    %5344 = vmatprep.subr.mxu0 0.0
    %5345 = vmatpush1.msra.mxu0 %v5272
    %5346 = vmatprep.subr.mxu0 0.0
    %5347 = vmatpush1.msra.mxu0 %v5273
    %5348 = vmatprep.subr.mxu0 0.0
    %5349 = vmatpush1.msra.mxu0 %v5274
    %5350 = vmatprep.subr.mxu0 0.0
    %5351 = vmatpush1.msra.mxu0 %v5275
    %5352 = vmatprep.subr.mxu0 0.0
    %5353 = vmatpush1.msra.mxu0 %v5276
    %5354 = vmatprep.subr.mxu0 0.0
    %5355 = vmatpush1.msra.mxu0 %v5277
    %5356 = vmatprep.subr.mxu0 0.0
    %5357 = vmatpush1.msra.mxu0 %v5278
    %5358 = vmatprep.subr.mxu0 0.0
    %5359 = vmatpush1.msra.mxu0 %v5279
    %5360 = vmatprep.subr.mxu0 0.0
    %5361 = vmatpush1.msra.mxu0 %v5280
    %5362 = vmatprep.subr.mxu0 0.0
    %5363 = vmatpush1.msra.mxu0 %v5281
    %5364 = vmatprep.subr.mxu0 0.0
    %5365 = vmatpush1.msra.mxu0 %v5282
    %5366 = vmatprep.subr.mxu0 0.0
    %5367 = vmatpush1.msra.mxu0 %v5283
    %5368 = vmatprep.subr.mxu0 0.0
    %5369 = vmatpush1.msra.mxu0 %v5284
    %5370 = vmatprep.subr.mxu0 0.0
    %5371 = vmatpush1.msra.mxu0 %v5285
    %5372 = vmatprep.subr.mxu0 0.0
    %5373 = vmatpush1.msra.mxu0 %v5286
    %5374 = vmatprep.subr.mxu0 0.0
    %5375 = vmatpush1.msra.mxu0 %v5287
    %5376 = vmatprep.subr.mxu0 0.0
    %5377 = vmatpush1.msra.mxu0 %v5288
    %5378 = vmatprep.subr.mxu0 0.0
    %5379 = vmatpush1.msra.mxu0 %v5289
    %5380 = vmatprep.subr.mxu0 0.0
    %5381 = vmatpush1.msra.mxu0 %v5290
    %5382 = vmatprep.subr.mxu0 0.0
    %5383 = vmatpush1.msra.mxu0 %v5291
    %5384 = vmatprep.subr.mxu0 0.0
    %5385 = vmatpush1.msra.mxu0 %v5292
    %5386 = vmatprep.subr.mxu0 0.0
    %5387 = vmatpush1.msra.mxu0 %v5293
    %5388 = vmatprep.subr.mxu0 0.0
    %5389 = vmatpush1.msra.mxu0 %v5294
    %5390 = vmatprep.subr.mxu0 0.0
    %5391 = vmatpush1.msra.mxu0 %v5295
    %5392 = vmatprep.subr.mxu0 0.0
    %5393 = vmatpush1.msra.mxu0 %v5296
    %5394 = vmatprep.subr.mxu0 0.0
    %5395 = vmatpush1.msra.mxu0 %v5297
    %5396 = vmatprep.subr.mxu0 0.0
    %5397 = vmatpush1.msra.mxu0 %v5298
    %5398 = vmatprep.subr.mxu0 0.0
    %5399 = vmatpush1.msra.mxu0 %v5299
    %5400 = vmatprep.subr.mxu0 0.0
    %5401 = vmatpush1.msra.mxu0 %v5300
    %5402 = vmatprep.subr.mxu0 0.0
    %5403 = vmatpush1.msra.mxu0 %v5301
    %5404 = vmatprep.mubr.f32.mxu0 %v5256
    %5405 = vmatmul.mubr.f32.gmra.mrb[0].mxu0 %v5250
    %v5406 = vpop.f32.mrb[0].mxu0
    %v5407 = vadd.f32 %v5333, %v5406
    %v5408 = vpop.f32.mrb[0].mxu0
    %5409 = vdwg.mxu0
    %5410 = vmatprep.subr.mxu0 0.0
    %5411 = vmatpush1.msra.mxu0 %v5302
    %5412 = vmatprep.subr.mxu0 0.0
    %5413 = vmatpush1.msra.mxu0 %v5303
    %5414 = vmatprep.subr.mxu0 0.0
    %5415 = vmatpush1.msra.mxu0 %v5304
    %5416 = vmatprep.subr.mxu0 0.0
    %5417 = vmatpush1.msra.mxu0 %v5305
    %5418 = vmatprep.subr.mxu0 0.0
    %5419 = vmatpush1.msra.mxu0 %v5306
    %5420 = vmatprep.subr.mxu0 0.0
    %5421 = vmatpush1.msra.mxu0 %v5307
    %5422 = vmatprep.subr.mxu0 0.0
    %5423 = vmatpush1.msra.mxu0 %v5308
    %5424 = vmatprep.subr.mxu0 0.0
    %5425 = vmatpush1.msra.mxu0 %v5309
    %5426 = vmatprep.subr.mxu0 0.0
    %5427 = vmatpush1.msra.mxu0 %v5310
    %5428 = vmatprep.subr.mxu0 0.0
    %5429 = vmatpush1.msra.mxu0 %v5311
    %5430 = vmatprep.subr.mxu0 0.0
    %5431 = vmatpush1.msra.mxu0 %v5312
    %5432 = vmatprep.subr.mxu0 0.0
    %5433 = vmatpush1.msra.mxu0 %v5313
    %5434 = vmatprep.subr.mxu0 0.0
    %5435 = vmatpush1.msra.mxu0 %v5314
    %5436 = vmatprep.subr.mxu0 0.0
    %5437 = vmatpush1.msra.mxu0 %v5315
    %5438 = vmatprep.subr.mxu0 0.0
    %5439 = vmatpush1.msra.mxu0 %v5316
    %5440 = vmatprep.subr.mxu0 0.0
    %5441 = vmatpush1.msra.mxu0 %v5317
    %5442 = vmatprep.subr.mxu0 0.0
    %5443 = vmatpush1.msra.mxu0 %v5318
    %5444 = vmatprep.subr.mxu0 0.0
    %5445 = vmatpush1.msra.mxu0 %v5319
    %5446 = vmatprep.subr.mxu0 0.0
    %5447 = vmatpush1.msra.mxu0 %v5320
    %5448 = vmatprep.subr.mxu0 0.0
    %5449 = vmatpush1.msra.mxu0 %v5321
    %5450 = vmatprep.subr.mxu0 0.0
    %5451 = vmatpush1.msra.mxu0 %v5322
    %5452 = vmatprep.subr.mxu0 0.0
    %5453 = vmatpush1.msra.mxu0 %v5323
    %5454 = vmatprep.subr.mxu0 0.0
    %5455 = vmatpush1.msra.mxu0 %v5324
    %5456 = vmatprep.subr.mxu0 0.0
    %5457 = vmatpush1.msra.mxu0 %v5325
    %5458 = vmatprep.subr.mxu0 0.0
    %5459 = vmatpush1.msra.mxu0 %v5326
    %5460 = vmatprep.subr.mxu0 0.0
    %5461 = vmatpush1.msra.mxu0 %v5327
    %5462 = vmatprep.subr.mxu0 0.0
    %5463 = vmatpush1.msra.mxu0 %v5328
    %5464 = vmatprep.subr.mxu0 0.0
    %5465 = vmatpush1.msra.mxu0 %v5329
    %5466 = vmatprep.subr.mxu0 0.0
    %5467 = vmatpush1.msra.mxu0 %v5330
    %5468 = vmatprep.subr.mxu0 0.0
    %5469 = vmatpush1.msra.mxu0 %v5331
    %5470 = vmatprep.subr.mxu0 0.0
    %5471 = vmatpush1.msra.mxu0 %v5338
    %5472 = vmatprep.subr.mxu0 0.0
    %5473 = vmatpush1.msra.mxu0 0.0
    %5474 = vmatprep.mubr.f32.mxu0 %v5335
    %5475 = vmatmul.mubr.f32.gmra.mrb[0].mxu0 %v5262
    %v5476 = vpop.f32.mrb[0].mxu0
    %v5477 = vadd.f32 %v5407, %v5476
    %v5478 = vpop.f32.mrb[0].mxu0
    %5479 = vdwg.mxu0
    %v5480 = vxor.u32 %v5477, 2147483648
    %v5481 = vmul.f32 %v5480, 1.442695
    %v5482 = vpow.pop %v5481
    %v5483 = vadd.f32 %v5482, 1.0
    %v5484 = vrcp.pop %v5483
    %v5485 = vmul.f32 1.0, %v5484
    %vm5486 = vcmask 0
    %5487 = vst.msk [vmem:[#allocation4] sm:$0x1] %vm5486, %v5485
    %5488 = vst.msk [vmem:[%s12] sm:$0xff] %vm5216, %v5235
    // Predicated region
    $region46: #{attention_mil_forward.3} parent=1 // pred_check
      _
    $region47: #{attention_mil_forward.3} parent=1 // pred_check_branch
      %5490 = sbr.rel (0) target = $region49
    $region48: #{attention_mil_forward.3} parent=1 // pred_region
      %s5492 = ssub.s32 16, 16
      %5493 = vsyncadd [#allocation5], %s5492
      %s5495 = sshll.u32 [#allocation4], 4
      %s5496 = int_to_ptr.vmem [resolvable:$true] %s5495
      %5498 = dma.vmem_to_hbm [thread:$0]  %s5496, 16, %s11, [#allocation5]
    $region49: #{attention_mil_forward.3} parent=1 // pred_fallthru
      _
    // Predicated region
    $region50: #{attention_mil_forward.3} parent=1 // pred_check
      _
    $region51: #{attention_mil_forward.3} parent=1 // pred_check_branch
      %5500 = sbr.rel (0) target = $region53
    $region52: #{attention_mil_forward.3} parent=1 // pred_region
      _
    $region53: #{attention_mil_forward.3} parent=1 // pred_fallthru
      _
    // Predicated region
    $region54: #{attention_mil_forward.3} parent=1 // pred_check
      _
    $region55: #{attention_mil_forward.3} parent=1 // pred_check_branch
      %5502 = sbr.rel (0) target = $region57
    $region56: #{attention_mil_forward.3} parent=1 // pred_region
      %5503 = dma.done [#allocation5], 16
    $region57: #{attention_mil_forward.3} parent=1 // pred_fallthru
      _
    // Predicated region
    $region58: #{attention_mil_forward.3} parent=1 // pred_check
      _
    $region59: #{attention_mil_forward.3} parent=1 // pred_check_branch
      %5505 = sbr.rel (0) target = $region61
    $region60: #{attention_mil_forward.3} parent=1 // pred_region
      _
    $region61: #{attention_mil_forward.3} parent=1 // pred_fallthru
      _
    %5506 = vsyncpa [#allocation5], 1

</llo_original>
